<compile_context>
chip_gen: v6e
topology: v6e:2x2x1
jax: 0.10.0
libtpu: 0.0.40
codegen_flags: <defaults>
</compile_context>

<pallas_src>
import functools
import math

import jax
import jax.numpy as jnp
from jax import lax
from jax.experimental import pallas as pl
from jax.experimental.pallas import tpu as pltpu

# ---------------- static configuration (mirrors AttentionLevel.__init__) ----------------
MODEL_RESOLUTION = 32
PATCH_SIZE = 16
FEAT_DIM = 96
UPSAMPLE_FACTOR = 4
NUM_HEADS = 16
WINDOW_SIZE = 7                                           # _AF_DEFAULT_WND_SIZE

LR_NUM_PATCHES = MODEL_RESOLUTION // PATCH_SIZE           # 2
NUM_PATCHES = LR_NUM_PATCHES * UPSAMPLE_FACTOR            # 8  == attention "width"
GUIDE_DIM = FEAT_DIM                                      # inputs = ['tiles']
REAL_HEAD_DIM = GUIDE_DIM // NUM_HEADS                    # 6
HEAD_DIM = 2 ** int(math.ceil(math.log2(REAL_HEAD_DIM)))  # 8  (np2 padding of head dim)
SM_SCALE = REAL_HEAD_DIM ** -0.5                          # scale uses the *real* head dim
RADIUS = WINDOW_SIZE // 2
NUMEL = NUM_PATCHES * NUM_PATCHES                         # 64
LN_EPS = 1e-5


# --------------------------- fused forward kernel (one grid step per batch) ---------------------------
def _attention_level_kernel(x_ref, pos_ref, g_ref, b_ref, wqkv_ref, wproj_ref,
                            bproj_ref, bias_ref, o_ref, *, num_heads, head_dim):
    # x_ref/pos_ref: (1, N, C) tokens.  wqkv_ref: (3*H*D, C) bf16 (q-rows pre-scaled by sm_scale).
    # wproj_ref: (H*D, C) f32 (zero rows for padded head dims).  bias_ref: (H, N, N) f32 combined
    # alibi bias + window mask.  o_ref: (1, N, C).

    # ----- tile positional bias + LayerNorm (lane reductions, f32) -----
    x = x_ref[0].astype(jnp.float32) + pos_ref[0].astype(jnp.float32)      # (N, C)
    mu = jnp.mean(x, axis=-1, keepdims=True)
    var = jnp.mean(jnp.square(x - mu), axis=-1, keepdims=True)
    xn = (x - mu) * lax.rsqrt(var + LN_EPS) * g_ref[...] + b_ref[...]      # (N, C)

    # ----- QKV projection, TRANSPOSED output so heads are sublane slices -----
    # qkv_t = W_qkv @ xn^T : (3HD, C) . (N, C)^T -> (3HD, N);  bf16 operands, f32 accumulation.
    qkv_t = lax.dot_general(wqkv_ref[...], xn.astype(jnp.bfloat16),
                            (((1,), (1,)), ((), ())),
                            preferred_element_type=jnp.float32)            # (384, 64) f32

    k_off = num_heads * head_dim
    v_off = 2 * num_heads * head_dim

    # residual + proj bias as the accumulator init; per-head projection accumulated below
    y = x + bproj_ref[...]                                                  # (N, C)

    for h in range(num_heads):                     # all heads in one grid step (unrolled, static slices)
        r0 = h * head_dim
        q_t = qkv_t[r0:r0 + head_dim, :]                                    # (D, N) sublane slice
        k_t = qkv_t[k_off + r0:k_off + r0 + head_dim, :]                    # (D, N)
        v_t = qkv_t[v_off + r0:v_off + r0 + head_dim, :]                    # (D, N)

        # s[q, kv] = sum_d q_t[d, q] * k_t[d, kv]   (attention scale already folded into q rows)
        s = lax.dot_general(q_t, k_t, (((0,), (0,)), ((), ())),
                            preferred_element_type=jnp.float32)             # (N, N)
        s = s + bias_ref[h]                        # precomputed alibi bias + local-window mask

        m = jnp.max(s, axis=-1, keepdims=True)
        p = jnp.exp(s - m)
        l = jnp.sum(p, axis=-1, keepdims=True)

        # o[q, d] = sum_kv p[q, kv] * v_t[d, kv]
        o_h = lax.dot_general(p, v_t, (((1,), (1,)), ((), ())),
                              preferred_element_type=jnp.float32)           # (N, D)
        o_h = o_h / l                              # exact normalization

        # per-head output-projection accumulation (sublane-aligned weight slice, no concat)
        y = y + jnp.dot(o_h, wproj_ref[r0:r0 + head_dim, :],
                        preferred_element_type=jnp.float32)                 # (N, C)

    # ResidualSingle: out = x + proj(attn(LN(x)))  (residual already folded into y init)
    o_ref[0] = y.astype(o_ref.dtype)


# ----------------- precomputed per-head (alibi bias + window mask) table -----------------
def _alibi_window_bias(n):
    idx = jnp.arange(n, dtype=jnp.int32)
    r = idx // NUM_PATCHES
    c = idx % NUM_PATCHES
    rd = r[:, None] - r[None, :]
    cd = c[:, None] - c[None, :]
    within = ((rd >= -RADIUS) & (rd <= RADIUS) & (cd >= -RADIUS) & (cd <= RADIUS))
    neg = jnp.where(within, 0.0, -1e30).astype(jnp.float32)                 # (N, N)
    h = jnp.arange(NUM_HEADS)
    alibi = (1.0 / 2.0 ** ((h + 2) // 2)).astype(jnp.float32)               # deterministic, not learned
    dmap = jnp.where((h % 2 == 0)[:, None, None],
                     jnp.abs(rd)[None, :, :].astype(jnp.float32),
                     jnp.abs(cd)[None, :, :].astype(jnp.float32))           # (H, N, N)
    return -alibi[:, None, None] * dmap + neg[None, :, :]                   # (H, N, N) f32


# ------------------------------ full forward pass ------------------------------
def attention_level_forward(params, guidance, lr_source, tiles):
    del guidance, lr_source                        # unused with inputs=['tiles']
    b, c, hh, ww = tiles.shape
    n = hh * ww
    hd = NUM_HEADS * HEAD_DIM

    # Layout glue kept in the wrapper (tiny one-off XLA ops on <50 KB tensors):
    tile_pos = jnp.repeat(jnp.repeat(params['tile_pos'], LR_NUM_PATCHES, axis=2),
                          LR_NUM_PATCHES, axis=3)                           # (1, C, H, W)
    pos_tok = jnp.transpose(tile_pos, (0, 2, 3, 1)).reshape(1, n, c)        # (1, N, C)
    x_tok = jnp.transpose(tiles, (0, 2, 3, 1)).reshape(b, n, c)             # (B, N, C)

    # QKV weight in native nn.Linear (out, in) orientation; fold the attention scale into the
    # q-rows (linear, qkv_bias=False) and cast to bf16 for the MXU.
    wqkv = params['w_qkv'].at[:hd].multiply(SM_SCALE).astype(jnp.bfloat16)  # (3*H*D, C) bf16

    # proj weight -> (H*D, C) with zero rows for the padded head dims (so no 8->6 slice in-kernel)
    wproj_pad = jnp.pad(params['w_proj'].T.reshape(NUM_HEADS, REAL_HEAD_DIM, c),
                        ((0, 0), (0, HEAD_DIM - REAL_HEAD_DIM), (0, 0))
                        ).reshape(hd, c).astype(jnp.float32)                # (128, C)

    bias = _alibi_window_bias(n)                                            # (H, N, N) f32

    kern = functools.partial(_attention_level_kernel,
                             num_heads=NUM_HEADS, head_dim=HEAD_DIM)

    tok_spec = pl.BlockSpec((1, n, c), lambda i: (i, 0, 0))
    shared_tok = pl.BlockSpec((1, n, c), lambda i: (0, 0, 0))
    vec_spec = pl.BlockSpec((1, c), lambda i: (0, 0))

    out_tok = pl.pallas_call(
        kern,
        out_shape=jax.ShapeDtypeStruct((b, n, c), jnp.float32),
        grid=(b,),
        in_specs=[tok_spec,                                                  # tokens
                  shared_tok,                                                # tile_pos (shared)
                  vec_spec, vec_spec,                                        # LN gamma / beta
                  pl.BlockSpec((3 * hd, c), lambda i: (0, 0)),               # W_qkv (bf16, q pre-scaled)
                  pl.BlockSpec((hd, c), lambda i: (0, 0)),                   # W_proj (padded rows)
                  vec_spec,                                                  # proj bias
                  pl.BlockSpec((NUM_HEADS, n, n), lambda i: (0, 0, 0))],     # alibi+mask table
        out_specs=tok_spec,
        compiler_params=pltpu.CompilerParams(dimension_semantics=("parallel",)),
    )(x_tok, pos_tok,
      params['ln_gamma'].reshape(1, c), params['ln_beta'].reshape(1, c),
      wqkv, wproj_pad, params['b_proj'].reshape(1, c), bias)

    out = out_tok[..., :FEAT_DIM].reshape(b, hh, ww, FEAT_DIM)
    return jnp.transpose(out, (0, 3, 1, 2))


# ------------------------------ plain-JAX reference (mirrors PyTorch incl. N-padding) ------------------------------
def reference_forward(params, guidance, lr_source, tiles):
    del guidance, lr_source
    b, c, hh, ww = tiles.shape
    n = hh * ww
    tp = jnp.repeat(jnp.repeat(params['tile_pos'], LR_NUM_PATCHES, axis=2),
                    LR_NUM_PATCHES, axis=3)
    x = jnp.transpose(tiles + tp, (0, 2, 3, 1)).reshape(b, n, c)
    mu = x.mean(-1, keepdims=True)
    var = ((x - mu) ** 2).mean(-1, keepdims=True)
    xn = (x - mu) / jnp.sqrt(var + LN_EPS) * params['ln_gamma'] + params['ln_beta']
    pad = (n + 127) // 128 * 128 - n
    n2 = n + pad
    xp = jnp.pad(xn, ((0, 0), (0, pad), (0, 0)))
    qkv = (xp @ params['w_qkv'].T).reshape(b, n2, 3, NUM_HEADS * HEAD_DIM)

    def hr(t):
        return t.reshape(b, n2, NUM_HEADS, HEAD_DIM).transpose(0, 2, 1, 3)

    q, k, v = hr(qkv[:, :, 0]), hr(qkv[:, :, 1]), hr(qkv[:, :, 2])
    s = jnp.einsum('bhqd,bhkd->bhqk', q, k) * SM_SCALE
    qi = jnp.arange(n2)[:, None]
    ki = jnp.arange(n2)[None, :]
    rd = qi // NUM_PATCHES - ki // NUM_PATCHES
    cd = qi % NUM_PATCHES - ki % NUM_PATCHES
    hidx = jnp.arange(NUM_HEADS)
    alibi = (1.0 / 2.0 ** ((hidx + 2) // 2)).astype(jnp.float32)
    delta = (rd[None] * ((hidx + 1) % 2)[:, None, None]
             + cd[None] * (hidx % 2)[:, None, None])
    s = s + (alibi[:, None, None] * (-jnp.abs(delta).astype(jnp.float32)))[None]
    valid = ((qi < NUMEL) & (ki < NUMEL)) | (qi == ki)
    within = (rd >= -RADIUS) & (rd <= RADIUS) & (cd >= -RADIUS) & (cd <= RADIUS)
    s = jnp.where((valid & within)[None, None], s, -jnp.inf)
    a = jax.nn.softmax(s, axis=-1)
    o = jnp.einsum('bhqk,bhkd->bhqd', a, v)[..., :REAL_HEAD_DIM]
    y = o.transpose(0, 2, 1, 3).reshape(b, n2, c)[:, :n]
    y = y @ params['w_proj'].T + params['b_proj']
    out = (x + y)[..., :FEAT_DIM]
    return out.reshape(b, hh, ww, FEAT_DIM).transpose(0, 3, 1, 2)


if __name__ == "__main__":
    key = jax.random.PRNGKey(0)
    ks = jax.random.split(key, 9)
    params = {
        'tile_pos': 0.05 * jax.random.normal(
            ks[0], (1, FEAT_DIM, UPSAMPLE_FACTOR, UPSAMPLE_FACTOR), jnp.float32),
        'ln_gamma': 1.0 + 0.05 * jax.random.normal(ks[1], (GUIDE_DIM,), jnp.float32),
        'ln_beta': 0.05 * jax.random.normal(ks[2], (GUIDE_DIM,), jnp.float32),
        # PyTorch nn.Linear orientation (out_features, in_features); out covers the padded head dim
        'w_qkv': 0.02 * jax.random.normal(
            ks[3], (3 * NUM_HEADS * HEAD_DIM, GUIDE_DIM), jnp.float32),
        'w_proj': 0.02 * jax.random.normal(ks[4], (GUIDE_DIM, GUIDE_DIM), jnp.float32),
        'b_proj': 0.02 * jax.random.normal(ks[5], (GUIDE_DIM,), jnp.float32),
    }

    guidance = jax.random.normal(ks[6], (2, 3, MODEL_RESOLUTION, MODEL_RESOLUTION), jnp.float32)
    lr_source = jax.random.normal(ks[7], (2, FEAT_DIM, LR_NUM_PATCHES, LR_NUM_PATCHES), jnp.float32)
    tiles = jax.random.normal(ks[8], (2, FEAT_DIM, NUM_PATCHES, NUM_PATCHES), jnp.float32)

    out = jax.jit(attention_level_forward)(params, guidance, lr_source, tiles)
    out = jax.block_until_ready(out)

    ref = reference_forward(params, guidance, lr_source, tiles)
    assert out.shape == (2, FEAT_DIM, NUM_PATCHES, NUM_PATCHES), out.shape
    assert bool(jnp.all(jnp.isfinite(out)))
    assert bool(jnp.allclose(out, ref, rtol=5e-3, atol=5e-3)), \
        float(jnp.max(jnp.abs(out - ref)))
    print("KERNEL_OK")
</pallas_src>

<mosaic_0001>
module attributes {stable_mosaic.version = 11 : i64} {
  func.func @_attention_level_kernel(%arg0: i32, %arg1: memref<1x64x96xf32, #tpu.memory_space<vmem>>, %arg2: memref<1x64x96xf32, #tpu.memory_space<vmem>>, %arg3: memref<1x96xf32, #tpu.memory_space<vmem>>, %arg4: memref<1x96xf32, #tpu.memory_space<vmem>>, %arg5: memref<384x96xbf16, #tpu.memory_space<vmem>>, %arg6: memref<128x96xf32, #tpu.memory_space<vmem>>, %arg7: memref<1x96xf32, #tpu.memory_space<vmem>>, %arg8: memref<16x64x64xf32, #tpu.memory_space<vmem>>, %arg9: memref<1x64x96xf32, #tpu.memory_space<vmem>>) attributes {dimension_semantics = [#tpu.dimension_semantics<parallel>], iteration_bounds = array<i64: 2>, scalar_prefetch = 0 : i64, scratch_operands = 0 : i64, tpu.core_type = #tpu.core_type<tc>, window_params = [{transform_indices = @transform_0, window_bounds = array<i64: 1, 64, 96>}, {pipeline_mode = #tpu.pipeline_mode<synchronous>, transform_indices = @transform_1, window_bounds = array<i64: 1, 64, 96>}, {pipeline_mode = #tpu.pipeline_mode<synchronous>, transform_indices = @transform_2, window_bounds = array<i64: 1, 96>}, {pipeline_mode = #tpu.pipeline_mode<synchronous>, transform_indices = @transform_3, window_bounds = array<i64: 1, 96>}, {pipeline_mode = #tpu.pipeline_mode<synchronous>, transform_indices = @transform_4, window_bounds = array<i64: 384, 96>}, {pipeline_mode = #tpu.pipeline_mode<synchronous>, transform_indices = @transform_5, window_bounds = array<i64: 128, 96>}, {pipeline_mode = #tpu.pipeline_mode<synchronous>, transform_indices = @transform_6, window_bounds = array<i64: 1, 96>}, {pipeline_mode = #tpu.pipeline_mode<synchronous>, transform_indices = @transform_7, window_bounds = array<i64: 16, 64, 64>}, {transform_indices = @transform_8, window_bounds = array<i64: 1, 64, 96>}]} {
    %c0 = arith.constant 0 : index
    %c0_0 = arith.constant 0 : index
    %c0_1 = arith.constant 0 : index
    %0 = vector.load %arg1[%c0, %c0_0, %c0_1] : memref<1x64x96xf32, #tpu.memory_space<vmem>>, vector<1x64x96xf32>
    %1 = vector.shape_cast %0 : vector<1x64x96xf32> to vector<64x96xf32>
    %c0_2 = arith.constant 0 : index
    %c0_3 = arith.constant 0 : index
    %c0_4 = arith.constant 0 : index
    %2 = vector.load %arg2[%c0_2, %c0_3, %c0_4] : memref<1x64x96xf32, #tpu.memory_space<vmem>>, vector<1x64x96xf32>
    %3 = vector.shape_cast %2 : vector<1x64x96xf32> to vector<64x96xf32>
    %4 = arith.addf %1, %3 : vector<64x96xf32>
    %cst = arith.constant dense<0.000000e+00> : vector<64xf32>
    %5 = vector.multi_reduction <add>, %4, %cst [1] : vector<64x96xf32> to vector<64xf32>
    %6 = vector.shape_cast %5 : vector<64xf32> to vector<64x1xf32>
    %cst_5 = arith.constant 9.600000e+01 : f32
    %7 = vector.broadcast %cst_5 : f32 to vector<64x1xf32>
    %8 = arith.divf %6, %7 : vector<64x1xf32>
    %9 = vector.broadcast %8 : vector<64x1xf32> to vector<64x96xf32>
    %10 = arith.subf %4, %9 : vector<64x96xf32>
    %11 = arith.mulf %10, %10 : vector<64x96xf32>
    %cst_6 = arith.constant dense<0.000000e+00> : vector<64xf32>
    %12 = vector.multi_reduction <add>, %11, %cst_6 [1] : vector<64x96xf32> to vector<64xf32>
    %13 = vector.shape_cast %12 : vector<64xf32> to vector<64x1xf32>
    %cst_7 = arith.constant 9.600000e+01 : f32
    %14 = vector.broadcast %cst_7 : f32 to vector<64x1xf32>
    %15 = arith.divf %13, %14 : vector<64x1xf32>
    %16 = vector.broadcast %8 : vector<64x1xf32> to vector<64x96xf32>
    %17 = arith.subf %4, %16 : vector<64x96xf32>
    %cst_8 = arith.constant 9.99999974E-6 : f32
    %18 = vector.broadcast %cst_8 : f32 to vector<64x1xf32>
    %19 = arith.addf %15, %18 : vector<64x1xf32>
    %20 = math.rsqrt %19 : vector<64x1xf32>
    %21 = vector.broadcast %20 : vector<64x1xf32> to vector<64x96xf32>
    %22 = arith.mulf %17, %21 : vector<64x96xf32>
    %c0_9 = arith.constant 0 : index
    %c0_10 = arith.constant 0 : index
    %23 = vector.load %arg3[%c0_9, %c0_10] : memref<1x96xf32, #tpu.memory_space<vmem>>, vector<1x96xf32>
    %24 = vector.broadcast %23 : vector<1x96xf32> to vector<64x96xf32>
    %25 = arith.mulf %22, %24 : vector<64x96xf32>
    %c0_11 = arith.constant 0 : index
    %c0_12 = arith.constant 0 : index
    %26 = vector.load %arg4[%c0_11, %c0_12] : memref<1x96xf32, #tpu.memory_space<vmem>>, vector<1x96xf32>
    %27 = vector.broadcast %26 : vector<1x96xf32> to vector<64x96xf32>
    %28 = arith.addf %25, %27 : vector<64x96xf32>
    %c0_13 = arith.constant 0 : index
    %c0_14 = arith.constant 0 : index
    %29 = vector.load %arg5[%c0_13, %c0_14] : memref<384x96xbf16, #tpu.memory_space<vmem>>, vector<384x96xbf16>
    %30 = arith.truncf %28 : vector<64x96xf32> to vector<64x96xbf16>
    %cst_15 = arith.constant dense<0.000000e+00> : vector<384x64xf32>
    %31 = tpu.matmul %29, %30, %cst_15 {dimension_numbers = #tpu.dot_dimension_numbers<[1], [1], [0], [0], [0, 0, 1, 0], [], []>} : vector<384x96xbf16>, vector<64x96xbf16>, vector<384x64xf32> -> vector<384x64xf32>
    %c0_16 = arith.constant 0 : index
    %c0_17 = arith.constant 0 : index
    %32 = vector.load %arg7[%c0_16, %c0_17] : memref<1x96xf32, #tpu.memory_space<vmem>>, vector<1x96xf32>
    %33 = vector.broadcast %32 : vector<1x96xf32> to vector<64x96xf32>
    %34 = arith.addf %4, %33 : vector<64x96xf32>
    %35 = vector.extract_strided_slice %31 {offsets = [0, 0], sizes = [8, 64], strides = [1, 1]} : vector<384x64xf32> to vector<8x64xf32>
    %36 = vector.extract_strided_slice %31 {offsets = [128, 0], sizes = [8, 64], strides = [1, 1]} : vector<384x64xf32> to vector<8x64xf32>
    %37 = vector.extract_strided_slice %31 {offsets = [256, 0], sizes = [8, 64], strides = [1, 1]} : vector<384x64xf32> to vector<8x64xf32>
    %cst_18 = arith.constant dense<0.000000e+00> : vector<64x64xf32>
    %38 = tpu.matmul %35, %36, %cst_18 {dimension_numbers = #tpu.dot_dimension_numbers<[0], [0], [1], [1], [0, 1, 1, 1], [], []>} : vector<8x64xf32>, vector<8x64xf32>, vector<64x64xf32> -> vector<64x64xf32>
    %c0_19 = arith.constant 0 : index
    %c0_20 = arith.constant 0 : index
    %c0_21 = arith.constant 0 : index
    %39 = vector.load %arg8[%c0_19, %c0_20, %c0_21] : memref<16x64x64xf32, #tpu.memory_space<vmem>>, vector<1x64x64xf32>
    %40 = vector.shape_cast %39 : vector<1x64x64xf32> to vector<64x64xf32>
    %41 = arith.addf %38, %40 : vector<64x64xf32>
    %cst_22 = arith.constant dense<0xFF800000> : vector<64xf32>
    %42 = vector.multi_reduction <maximumf>, %41, %cst_22 [1] : vector<64x64xf32> to vector<64xf32>
    %43 = vector.shape_cast %42 : vector<64xf32> to vector<64x1xf32>
    %44 = vector.broadcast %43 : vector<64x1xf32> to vector<64x64xf32>
    %45 = arith.subf %41, %44 : vector<64x64xf32>
    %46 = math.exp %45 : vector<64x64xf32>
    %cst_23 = arith.constant dense<0.000000e+00> : vector<64xf32>
    %47 = vector.multi_reduction <add>, %46, %cst_23 [1] : vector<64x64xf32> to vector<64xf32>
    %48 = vector.shape_cast %47 : vector<64xf32> to vector<64x1xf32>
    %cst_24 = arith.constant dense<0.000000e+00> : vector<64x8xf32>
    %49 = tpu.matmul %46, %37, %cst_24 {dimension_numbers = #tpu.dot_dimension_numbers<[1], [1], [0], [0], [0, 0, 1, 0], [], []>} : vector<64x64xf32>, vector<8x64xf32>, vector<64x8xf32> -> vector<64x8xf32>
    %50 = vector.broadcast %48 : vector<64x1xf32> to vector<64x8xf32>
    %51 = arith.divf %49, %50 : vector<64x8xf32>
    %c0_25 = arith.constant 0 : index
    %c0_26 = arith.constant 0 : index
    %52 = vector.load %arg6[%c0_25, %c0_26] : memref<128x96xf32, #tpu.memory_space<vmem>>, vector<8x96xf32>
    %cst_27 = arith.constant dense<0.000000e+00> : vector<64x96xf32>
    %53 = tpu.matmul %51, %52, %cst_27 {dimension_numbers = #tpu.dot_dimension_numbers<[1], [0], [0], [1], [0, 0, 1, 1], [], []>} : vector<64x8xf32>, vector<8x96xf32>, vector<64x96xf32> -> vector<64x96xf32>
    %54 = arith.addf %34, %53 : vector<64x96xf32>
    %55 = vector.extract_strided_slice %31 {offsets = [8, 0], sizes = [8, 64], strides = [1, 1]} : vector<384x64xf32> to vector<8x64xf32>
    %56 = vector.extract_strided_slice %31 {offsets = [136, 0], sizes = [8, 64], strides = [1, 1]} : vector<384x64xf32> to vector<8x64xf32>
    %57 = vector.extract_strided_slice %31 {offsets = [264, 0], sizes = [8, 64], strides = [1, 1]} : vector<384x64xf32> to vector<8x64xf32>
    %cst_28 = arith.constant dense<0.000000e+00> : vector<64x64xf32>
    %58 = tpu.matmul %55, %56, %cst_28 {dimension_numbers = #tpu.dot_dimension_numbers<[0], [0], [1], [1], [0, 1, 1, 1], [], []>} : vector<8x64xf32>, vector<8x64xf32>, vector<64x64xf32> -> vector<64x64xf32>
    %c1 = arith.constant 1 : index
    %c0_29 = arith.constant 0 : index
    %c0_30 = arith.constant 0 : index
    %59 = vector.load %arg8[%c1, %c0_29, %c0_30] : memref<16x64x64xf32, #tpu.memory_space<vmem>>, vector<1x64x64xf32>
    %60 = vector.shape_cast %59 : vector<1x64x64xf32> to vector<64x64xf32>
    %61 = arith.addf %58, %60 : vector<64x64xf32>
    %cst_31 = arith.constant dense<0xFF800000> : vector<64xf32>
    %62 = vector.multi_reduction <maximumf>, %61, %cst_31 [1] : vector<64x64xf32> to vector<64xf32>
    %63 = vector.shape_cast %62 : vector<64xf32> to vector<64x1xf32>
    %64 = vector.broadcast %63 : vector<64x1xf32> to vector<64x64xf32>
    %65 = arith.subf %61, %64 : vector<64x64xf32>
    %66 = math.exp %65 : vector<64x64xf32>
    %cst_32 = arith.constant dense<0.000000e+00> : vector<64xf32>
    %67 = vector.multi_reduction <add>, %66, %cst_32 [1] : vector<64x64xf32> to vector<64xf32>
    %68 = vector.shape_cast %67 : vector<64xf32> to vector<64x1xf32>
    %cst_33 = arith.constant dense<0.000000e+00> : vector<64x8xf32>
    %69 = tpu.matmul %66, %57, %cst_33 {dimension_numbers = #tpu.dot_dimension_numbers<[1], [1], [0], [0], [0, 0, 1, 0], [], []>} : vector<64x64xf32>, vector<8x64xf32>, vector<64x8xf32> -> vector<64x8xf32>
    %70 = vector.broadcast %68 : vector<64x1xf32> to vector<64x8xf32>
    %71 = arith.divf %69, %70 : vector<64x8xf32>
    %c8 = arith.constant 8 : index
    %c0_34 = arith.constant 0 : index
    %72 = vector.load %arg6[%c8, %c0_34] : memref<128x96xf32, #tpu.memory_space<vmem>>, vector<8x96xf32>
    %cst_35 = arith.constant dense<0.000000e+00> : vector<64x96xf32>
    %73 = tpu.matmul %71, %72, %cst_35 {dimension_numbers = #tpu.dot_dimension_numbers<[1], [0], [0], [1], [0, 0, 1, 1], [], []>} : vector<64x8xf32>, vector<8x96xf32>, vector<64x96xf32> -> vector<64x96xf32>
    %74 = arith.addf %54, %73 : vector<64x96xf32>
    %75 = vector.extract_strided_slice %31 {offsets = [16, 0], sizes = [8, 64], strides = [1, 1]} : vector<384x64xf32> to vector<8x64xf32>
    %76 = vector.extract_strided_slice %31 {offsets = [144, 0], sizes = [8, 64], strides = [1, 1]} : vector<384x64xf32> to vector<8x64xf32>
    %77 = vector.extract_strided_slice %31 {offsets = [272, 0], sizes = [8, 64], strides = [1, 1]} : vector<384x64xf32> to vector<8x64xf32>
    %cst_36 = arith.constant dense<0.000000e+00> : vector<64x64xf32>
    %78 = tpu.matmul %75, %76, %cst_36 {dimension_numbers = #tpu.dot_dimension_numbers<[0], [0], [1], [1], [0, 1, 1, 1], [], []>} : vector<8x64xf32>, vector<8x64xf32>, vector<64x64xf32> -> vector<64x64xf32>
    %c2 = arith.constant 2 : index
    %c0_37 = arith.constant 0 : index
    %c0_38 = arith.constant 0 : index
    %79 = vector.load %arg8[%c2, %c0_37, %c0_38] : memref<16x64x64xf32, #tpu.memory_space<vmem>>, vector<1x64x64xf32>
    %80 = vector.shape_cast %79 : vector<1x64x64xf32> to vector<64x64xf32>
    %81 = arith.addf %78, %80 : vector<64x64xf32>
    %cst_39 = arith.constant dense<0xFF800000> : vector<64xf32>
    %82 = vector.multi_reduction <maximumf>, %81, %cst_39 [1] : vector<64x64xf32> to vector<64xf32>
    %83 = vector.shape_cast %82 : vector<64xf32> to vector<64x1xf32>
    %84 = vector.broadcast %83 : vector<64x1xf32> to vector<64x64xf32>
    %85 = arith.subf %81, %84 : vector<64x64xf32>
    %86 = math.exp %85 : vector<64x64xf32>
    %cst_40 = arith.constant dense<0.000000e+00> : vector<64xf32>
    %87 = vector.multi_reduction <add>, %86, %cst_40 [1] : vector<64x64xf32> to vector<64xf32>
    %88 = vector.shape_cast %87 : vector<64xf32> to vector<64x1xf32>
    %cst_41 = arith.constant dense<0.000000e+00> : vector<64x8xf32>
    %89 = tpu.matmul %86, %77, %cst_41 {dimension_numbers = #tpu.dot_dimension_numbers<[1], [1], [0], [0], [0, 0, 1, 0], [], []>} : vector<64x64xf32>, vector<8x64xf32>, vector<64x8xf32> -> vector<64x8xf32>
    %90 = vector.broadcast %88 : vector<64x1xf32> to vector<64x8xf32>
    %91 = arith.divf %89, %90 : vector<64x8xf32>
    %c16 = arith.constant 16 : index
    %c0_42 = arith.constant 0 : index
    %92 = vector.load %arg6[%c16, %c0_42] : memref<128x96xf32, #tpu.memory_space<vmem>>, vector<8x96xf32>
    %cst_43 = arith.constant dense<0.000000e+00> : vector<64x96xf32>
    %93 = tpu.matmul %91, %92, %cst_43 {dimension_numbers = #tpu.dot_dimension_numbers<[1], [0], [0], [1], [0, 0, 1, 1], [], []>} : vector<64x8xf32>, vector<8x96xf32>, vector<64x96xf32> -> vector<64x96xf32>
    %94 = arith.addf %74, %93 : vector<64x96xf32>
    %95 = vector.extract_strided_slice %31 {offsets = [24, 0], sizes = [8, 64], strides = [1, 1]} : vector<384x64xf32> to vector<8x64xf32>
    %96 = vector.extract_strided_slice %31 {offsets = [152, 0], sizes = [8, 64], strides = [1, 1]} : vector<384x64xf32> to vector<8x64xf32>
    %97 = vector.extract_strided_slice %31 {offsets = [280, 0], sizes = [8, 64], strides = [1, 1]} : vector<384x64xf32> to vector<8x64xf32>
    %cst_44 = arith.constant dense<0.000000e+00> : vector<64x64xf32>
    %98 = tpu.matmul %95, %96, %cst_44 {dimension_numbers = #tpu.dot_dimension_numbers<[0], [0], [1], [1], [0, 1, 1, 1], [], []>} : vector<8x64xf32>, vector<8x64xf32>, vector<64x64xf32> -> vector<64x64xf32>
    %c3 = arith.constant 3 : index
    %c0_45 = arith.constant 0 : index
    %c0_46 = arith.constant 0 : index
    %99 = vector.load %arg8[%c3, %c0_45, %c0_46] : memref<16x64x64xf32, #tpu.memory_space<vmem>>, vector<1x64x64xf32>
    %100 = vector.shape_cast %99 : vector<1x64x64xf32> to vector<64x64xf32>
    %101 = arith.addf %98, %100 : vector<64x64xf32>
    %cst_47 = arith.constant dense<0xFF800000> : vector<64xf32>
    %102 = vector.multi_reduction <maximumf>, %101, %cst_47 [1] : vector<64x64xf32> to vector<64xf32>
    %103 = vector.shape_cast %102 : vector<64xf32> to vector<64x1xf32>
    %104 = vector.broadcast %103 : vector<64x1xf32> to vector<64x64xf32>
    %105 = arith.subf %101, %104 : vector<64x64xf32>
    %106 = math.exp %105 : vector<64x64xf32>
    %cst_48 = arith.constant dense<0.000000e+00> : vector<64xf32>
    %107 = vector.multi_reduction <add>, %106, %cst_48 [1] : vector<64x64xf32> to vector<64xf32>
    %108 = vector.shape_cast %107 : vector<64xf32> to vector<64x1xf32>
    %cst_49 = arith.constant dense<0.000000e+00> : vector<64x8xf32>
    %109 = tpu.matmul %106, %97, %cst_49 {dimension_numbers = #tpu.dot_dimension_numbers<[1], [1], [0], [0], [0, 0, 1, 0], [], []>} : vector<64x64xf32>, vector<8x64xf32>, vector<64x8xf32> -> vector<64x8xf32>
    %110 = vector.broadcast %108 : vector<64x1xf32> to vector<64x8xf32>
    %111 = arith.divf %109, %110 : vector<64x8xf32>
    %c24 = arith.constant 24 : index
    %c0_50 = arith.constant 0 : index
    %112 = vector.load %arg6[%c24, %c0_50] : memref<128x96xf32, #tpu.memory_space<vmem>>, vector<8x96xf32>
    %cst_51 = arith.constant dense<0.000000e+00> : vector<64x96xf32>
    %113 = tpu.matmul %111, %112, %cst_51 {dimension_numbers = #tpu.dot_dimension_numbers<[1], [0], [0], [1], [0, 0, 1, 1], [], []>} : vector<64x8xf32>, vector<8x96xf32>, vector<64x96xf32> -> vector<64x96xf32>
    %114 = arith.addf %94, %113 : vector<64x96xf32>
    %115 = vector.extract_strided_slice %31 {offsets = [32, 0], sizes = [8, 64], strides = [1, 1]} : vector<384x64xf32> to vector<8x64xf32>
    %116 = vector.extract_strided_slice %31 {offsets = [160, 0], sizes = [8, 64], strides = [1, 1]} : vector<384x64xf32> to vector<8x64xf32>
    %117 = vector.extract_strided_slice %31 {offsets = [288, 0], sizes = [8, 64], strides = [1, 1]} : vector<384x64xf32> to vector<8x64xf32>
    %cst_52 = arith.constant dense<0.000000e+00> : vector<64x64xf32>
    %118 = tpu.matmul %115, %116, %cst_52 {dimension_numbers = #tpu.dot_dimension_numbers<[0], [0], [1], [1], [0, 1, 1, 1], [], []>} : vector<8x64xf32>, vector<8x64xf32>, vector<64x64xf32> -> vector<64x64xf32>
    %c4 = arith.constant 4 : index
    %c0_53 = arith.constant 0 : index
    %c0_54 = arith.constant 0 : index
    %119 = vector.load %arg8[%c4, %c0_53, %c0_54] : memref<16x64x64xf32, #tpu.memory_space<vmem>>, vector<1x64x64xf32>
    %120 = vector.shape_cast %119 : vector<1x64x64xf32> to vector<64x64xf32>
    %121 = arith.addf %118, %120 : vector<64x64xf32>
    %cst_55 = arith.constant dense<0xFF800000> : vector<64xf32>
    %122 = vector.multi_reduction <maximumf>, %121, %cst_55 [1] : vector<64x64xf32> to vector<64xf32>
    %123 = vector.shape_cast %122 : vector<64xf32> to vector<64x1xf32>
    %124 = vector.broadcast %123 : vector<64x1xf32> to vector<64x64xf32>
    %125 = arith.subf %121, %124 : vector<64x64xf32>
    %126 = math.exp %125 : vector<64x64xf32>
    %cst_56 = arith.constant dense<0.000000e+00> : vector<64xf32>
    %127 = vector.multi_reduction <add>, %126, %cst_56 [1] : vector<64x64xf32> to vector<64xf32>
    %128 = vector.shape_cast %127 : vector<64xf32> to vector<64x1xf32>
    %cst_57 = arith.constant dense<0.000000e+00> : vector<64x8xf32>
    %129 = tpu.matmul %126, %117, %cst_57 {dimension_numbers = #tpu.dot_dimension_numbers<[1], [1], [0], [0], [0, 0, 1, 0], [], []>} : vector<64x64xf32>, vector<8x64xf32>, vector<64x8xf32> -> vector<64x8xf32>
    %130 = vector.broadcast %128 : vector<64x1xf32> to vector<64x8xf32>
    %131 = arith.divf %129, %130 : vector<64x8xf32>
    %c32 = arith.constant 32 : index
    %c0_58 = arith.constant 0 : index
    %132 = vector.load %arg6[%c32, %c0_58] : memref<128x96xf32, #tpu.memory_space<vmem>>, vector<8x96xf32>
    %cst_59 = arith.constant dense<0.000000e+00> : vector<64x96xf32>
    %133 = tpu.matmul %131, %132, %cst_59 {dimension_numbers = #tpu.dot_dimension_numbers<[1], [0], [0], [1], [0, 0, 1, 1], [], []>} : vector<64x8xf32>, vector<8x96xf32>, vector<64x96xf32> -> vector<64x96xf32>
    %134 = arith.addf %114, %133 : vector<64x96xf32>
    %135 = vector.extract_strided_slice %31 {offsets = [40, 0], sizes = [8, 64], strides = [1, 1]} : vector<384x64xf32> to vector<8x64xf32>
    %136 = vector.extract_strided_slice %31 {offsets = [168, 0], sizes = [8, 64], strides = [1, 1]} : vector<384x64xf32> to vector<8x64xf32>
    %137 = vector.extract_strided_slice %31 {offsets = [296, 0], sizes = [8, 64], strides = [1, 1]} : vector<384x64xf32> to vector<8x64xf32>
    %cst_60 = arith.constant dense<0.000000e+00> : vector<64x64xf32>
    %138 = tpu.matmul %135, %136, %cst_60 {dimension_numbers = #tpu.dot_dimension_numbers<[0], [0], [1], [1], [0, 1, 1, 1], [], []>} : vector<8x64xf32>, vector<8x64xf32>, vector<64x64xf32> -> vector<64x64xf32>
    %c5 = arith.constant 5 : index
    %c0_61 = arith.constant 0 : index
    %c0_62 = arith.constant 0 : index
    %139 = vector.load %arg8[%c5, %c0_61, %c0_62] : memref<16x64x64xf32, #tpu.memory_space<vmem>>, vector<1x64x64xf32>
    %140 = vector.shape_cast %139 : vector<1x64x64xf32> to vector<64x64xf32>
    %141 = arith.addf %138, %140 : vector<64x64xf32>
    %cst_63 = arith.constant dense<0xFF800000> : vector<64xf32>
    %142 = vector.multi_reduction <maximumf>, %141, %cst_63 [1] : vector<64x64xf32> to vector<64xf32>
    %143 = vector.shape_cast %142 : vector<64xf32> to vector<64x1xf32>
    %144 = vector.broadcast %143 : vector<64x1xf32> to vector<64x64xf32>
    %145 = arith.subf %141, %144 : vector<64x64xf32>
    %146 = math.exp %145 : vector<64x64xf32>
    %cst_64 = arith.constant dense<0.000000e+00> : vector<64xf32>
    %147 = vector.multi_reduction <add>, %146, %cst_64 [1] : vector<64x64xf32> to vector<64xf32>
    %148 = vector.shape_cast %147 : vector<64xf32> to vector<64x1xf32>
    %cst_65 = arith.constant dense<0.000000e+00> : vector<64x8xf32>
    %149 = tpu.matmul %146, %137, %cst_65 {dimension_numbers = #tpu.dot_dimension_numbers<[1], [1], [0], [0], [0, 0, 1, 0], [], []>} : vector<64x64xf32>, vector<8x64xf32>, vector<64x8xf32> -> vector<64x8xf32>
    %150 = vector.broadcast %148 : vector<64x1xf32> to vector<64x8xf32>
    %151 = arith.divf %149, %150 : vector<64x8xf32>
    %c40 = arith.constant 40 : index
    %c0_66 = arith.constant 0 : index
    %152 = vector.load %arg6[%c40, %c0_66] : memref<128x96xf32, #tpu.memory_space<vmem>>, vector<8x96xf32>
    %cst_67 = arith.constant dense<0.000000e+00> : vector<64x96xf32>
    %153 = tpu.matmul %151, %152, %cst_67 {dimension_numbers = #tpu.dot_dimension_numbers<[1], [0], [0], [1], [0, 0, 1, 1], [], []>} : vector<64x8xf32>, vector<8x96xf32>, vector<64x96xf32> -> vector<64x96xf32>
    %154 = arith.addf %134, %153 : vector<64x96xf32>
    %155 = vector.extract_strided_slice %31 {offsets = [48, 0], sizes = [8, 64], strides = [1, 1]} : vector<384x64xf32> to vector<8x64xf32>
    %156 = vector.extract_strided_slice %31 {offsets = [176, 0], sizes = [8, 64], strides = [1, 1]} : vector<384x64xf32> to vector<8x64xf32>
    %157 = vector.extract_strided_slice %31 {offsets = [304, 0], sizes = [8, 64], strides = [1, 1]} : vector<384x64xf32> to vector<8x64xf32>
    %cst_68 = arith.constant dense<0.000000e+00> : vector<64x64xf32>
    %158 = tpu.matmul %155, %156, %cst_68 {dimension_numbers = #tpu.dot_dimension_numbers<[0], [0], [1], [1], [0, 1, 1, 1], [], []>} : vector<8x64xf32>, vector<8x64xf32>, vector<64x64xf32> -> vector<64x64xf32>
    %c6 = arith.constant 6 : index
    %c0_69 = arith.constant 0 : index
    %c0_70 = arith.constant 0 : index
    %159 = vector.load %arg8[%c6, %c0_69, %c0_70] : memref<16x64x64xf32, #tpu.memory_space<vmem>>, vector<1x64x64xf32>
    %160 = vector.shape_cast %159 : vector<1x64x64xf32> to vector<64x64xf32>
    %161 = arith.addf %158, %160 : vector<64x64xf32>
    %cst_71 = arith.constant dense<0xFF800000> : vector<64xf32>
    %162 = vector.multi_reduction <maximumf>, %161, %cst_71 [1] : vector<64x64xf32> to vector<64xf32>
    %163 = vector.shape_cast %162 : vector<64xf32> to vector<64x1xf32>
    %164 = vector.broadcast %163 : vector<64x1xf32> to vector<64x64xf32>
    %165 = arith.subf %161, %164 : vector<64x64xf32>
    %166 = math.exp %165 : vector<64x64xf32>
    %cst_72 = arith.constant dense<0.000000e+00> : vector<64xf32>
    %167 = vector.multi_reduction <add>, %166, %cst_72 [1] : vector<64x64xf32> to vector<64xf32>
    %168 = vector.shape_cast %167 : vector<64xf32> to vector<64x1xf32>
    %cst_73 = arith.constant dense<0.000000e+00> : vector<64x8xf32>
    %169 = tpu.matmul %166, %157, %cst_73 {dimension_numbers = #tpu.dot_dimension_numbers<[1], [1], [0], [0], [0, 0, 1, 0], [], []>} : vector<64x64xf32>, vector<8x64xf32>, vector<64x8xf32> -> vector<64x8xf32>
    %170 = vector.broadcast %168 : vector<64x1xf32> to vector<64x8xf32>
    %171 = arith.divf %169, %170 : vector<64x8xf32>
    %c48 = arith.constant 48 : index
    %c0_74 = arith.constant 0 : index
    %172 = vector.load %arg6[%c48, %c0_74] : memref<128x96xf32, #tpu.memory_space<vmem>>, vector<8x96xf32>
    %cst_75 = arith.constant dense<0.000000e+00> : vector<64x96xf32>
    %173 = tpu.matmul %171, %172, %cst_75 {dimension_numbers = #tpu.dot_dimension_numbers<[1], [0], [0], [1], [0, 0, 1, 1], [], []>} : vector<64x8xf32>, vector<8x96xf32>, vector<64x96xf32> -> vector<64x96xf32>
    %174 = arith.addf %154, %173 : vector<64x96xf32>
    %175 = vector.extract_strided_slice %31 {offsets = [56, 0], sizes = [8, 64], strides = [1, 1]} : vector<384x64xf32> to vector<8x64xf32>
    %176 = vector.extract_strided_slice %31 {offsets = [184, 0], sizes = [8, 64], strides = [1, 1]} : vector<384x64xf32> to vector<8x64xf32>
    %177 = vector.extract_strided_slice %31 {offsets = [312, 0], sizes = [8, 64], strides = [1, 1]} : vector<384x64xf32> to vector<8x64xf32>
    %cst_76 = arith.constant dense<0.000000e+00> : vector<64x64xf32>
    %178 = tpu.matmul %175, %176, %cst_76 {dimension_numbers = #tpu.dot_dimension_numbers<[0], [0], [1], [1], [0, 1, 1, 1], [], []>} : vector<8x64xf32>, vector<8x64xf32>, vector<64x64xf32> -> vector<64x64xf32>
    %c7 = arith.constant 7 : index
    %c0_77 = arith.constant 0 : index
    %c0_78 = arith.constant 0 : index
    %179 = vector.load %arg8[%c7, %c0_77, %c0_78] : memref<16x64x64xf32, #tpu.memory_space<vmem>>, vector<1x64x64xf32>
    %180 = vector.shape_cast %179 : vector<1x64x64xf32> to vector<64x64xf32>
    %181 = arith.addf %178, %180 : vector<64x64xf32>
    %cst_79 = arith.constant dense<0xFF800000> : vector<64xf32>
    %182 = vector.multi_reduction <maximumf>, %181, %cst_79 [1] : vector<64x64xf32> to vector<64xf32>
    %183 = vector.shape_cast %182 : vector<64xf32> to vector<64x1xf32>
    %184 = vector.broadcast %183 : vector<64x1xf32> to vector<64x64xf32>
    %185 = arith.subf %181, %184 : vector<64x64xf32>
    %186 = math.exp %185 : vector<64x64xf32>
    %cst_80 = arith.constant dense<0.000000e+00> : vector<64xf32>
    %187 = vector.multi_reduction <add>, %186, %cst_80 [1] : vector<64x64xf32> to vector<64xf32>
    %188 = vector.shape_cast %187 : vector<64xf32> to vector<64x1xf32>
    %cst_81 = arith.constant dense<0.000000e+00> : vector<64x8xf32>
    %189 = tpu.matmul %186, %177, %cst_81 {dimension_numbers = #tpu.dot_dimension_numbers<[1], [1], [0], [0], [0, 0, 1, 0], [], []>} : vector<64x64xf32>, vector<8x64xf32>, vector<64x8xf32> -> vector<64x8xf32>
    %190 = vector.broadcast %188 : vector<64x1xf32> to vector<64x8xf32>
    %191 = arith.divf %189, %190 : vector<64x8xf32>
    %c56 = arith.constant 56 : index
    %c0_82 = arith.constant 0 : index
    %192 = vector.load %arg6[%c56, %c0_82] : memref<128x96xf32, #tpu.memory_space<vmem>>, vector<8x96xf32>
    %cst_83 = arith.constant dense<0.000000e+00> : vector<64x96xf32>
    %193 = tpu.matmul %191, %192, %cst_83 {dimension_numbers = #tpu.dot_dimension_numbers<[1], [0], [0], [1], [0, 0, 1, 1], [], []>} : vector<64x8xf32>, vector<8x96xf32>, vector<64x96xf32> -> vector<64x96xf32>
    %194 = arith.addf %174, %193 : vector<64x96xf32>
    %195 = vector.extract_strided_slice %31 {offsets = [64, 0], sizes = [8, 64], strides = [1, 1]} : vector<384x64xf32> to vector<8x64xf32>
    %196 = vector.extract_strided_slice %31 {offsets = [192, 0], sizes = [8, 64], strides = [1, 1]} : vector<384x64xf32> to vector<8x64xf32>
    %197 = vector.extract_strided_slice %31 {offsets = [320, 0], sizes = [8, 64], strides = [1, 1]} : vector<384x64xf32> to vector<8x64xf32>
    %cst_84 = arith.constant dense<0.000000e+00> : vector<64x64xf32>
    %198 = tpu.matmul %195, %196, %cst_84 {dimension_numbers = #tpu.dot_dimension_numbers<[0], [0], [1], [1], [0, 1, 1, 1], [], []>} : vector<8x64xf32>, vector<8x64xf32>, vector<64x64xf32> -> vector<64x64xf32>
    %c8_85 = arith.constant 8 : index
    %c0_86 = arith.constant 0 : index
    %c0_87 = arith.constant 0 : index
    %199 = vector.load %arg8[%c8_85, %c0_86, %c0_87] : memref<16x64x64xf32, #tpu.memory_space<vmem>>, vector<1x64x64xf32>
    %200 = vector.shape_cast %199 : vector<1x64x64xf32> to vector<64x64xf32>
    %201 = arith.addf %198, %200 : vector<64x64xf32>
    %cst_88 = arith.constant dense<0xFF800000> : vector<64xf32>
    %202 = vector.multi_reduction <maximumf>, %201, %cst_88 [1] : vector<64x64xf32> to vector<64xf32>
    %203 = vector.shape_cast %202 : vector<64xf32> to vector<64x1xf32>
    %204 = vector.broadcast %203 : vector<64x1xf32> to vector<64x64xf32>
    %205 = arith.subf %201, %204 : vector<64x64xf32>
    %206 = math.exp %205 : vector<64x64xf32>
    %cst_89 = arith.constant dense<0.000000e+00> : vector<64xf32>
    %207 = vector.multi_reduction <add>, %206, %cst_89 [1] : vector<64x64xf32> to vector<64xf32>
    %208 = vector.shape_cast %207 : vector<64xf32> to vector<64x1xf32>
    %cst_90 = arith.constant dense<0.000000e+00> : vector<64x8xf32>
    %209 = tpu.matmul %206, %197, %cst_90 {dimension_numbers = #tpu.dot_dimension_numbers<[1], [1], [0], [0], [0, 0, 1, 0], [], []>} : vector<64x64xf32>, vector<8x64xf32>, vector<64x8xf32> -> vector<64x8xf32>
    %210 = vector.broadcast %208 : vector<64x1xf32> to vector<64x8xf32>
    %211 = arith.divf %209, %210 : vector<64x8xf32>
    %c64 = arith.constant 64 : index
    %c0_91 = arith.constant 0 : index
    %212 = vector.load %arg6[%c64, %c0_91] : memref<128x96xf32, #tpu.memory_space<vmem>>, vector<8x96xf32>
    %cst_92 = arith.constant dense<0.000000e+00> : vector<64x96xf32>
    %213 = tpu.matmul %211, %212, %cst_92 {dimension_numbers = #tpu.dot_dimension_numbers<[1], [0], [0], [1], [0, 0, 1, 1], [], []>} : vector<64x8xf32>, vector<8x96xf32>, vector<64x96xf32> -> vector<64x96xf32>
    %214 = arith.addf %194, %213 : vector<64x96xf32>
    %215 = vector.extract_strided_slice %31 {offsets = [72, 0], sizes = [8, 64], strides = [1, 1]} : vector<384x64xf32> to vector<8x64xf32>
    %216 = vector.extract_strided_slice %31 {offsets = [200, 0], sizes = [8, 64], strides = [1, 1]} : vector<384x64xf32> to vector<8x64xf32>
    %217 = vector.extract_strided_slice %31 {offsets = [328, 0], sizes = [8, 64], strides = [1, 1]} : vector<384x64xf32> to vector<8x64xf32>
    %cst_93 = arith.constant dense<0.000000e+00> : vector<64x64xf32>
    %218 = tpu.matmul %215, %216, %cst_93 {dimension_numbers = #tpu.dot_dimension_numbers<[0], [0], [1], [1], [0, 1, 1, 1], [], []>} : vector<8x64xf32>, vector<8x64xf32>, vector<64x64xf32> -> vector<64x64xf32>
    %c9 = arith.constant 9 : index
    %c0_94 = arith.constant 0 : index
    %c0_95 = arith.constant 0 : index
    %219 = vector.load %arg8[%c9, %c0_94, %c0_95] : memref<16x64x64xf32, #tpu.memory_space<vmem>>, vector<1x64x64xf32>
    %220 = vector.shape_cast %219 : vector<1x64x64xf32> to vector<64x64xf32>
    %221 = arith.addf %218, %220 : vector<64x64xf32>
    %cst_96 = arith.constant dense<0xFF800000> : vector<64xf32>
    %222 = vector.multi_reduction <maximumf>, %221, %cst_96 [1] : vector<64x64xf32> to vector<64xf32>
    %223 = vector.shape_cast %222 : vector<64xf32> to vector<64x1xf32>
    %224 = vector.broadcast %223 : vector<64x1xf32> to vector<64x64xf32>
    %225 = arith.subf %221, %224 : vector<64x64xf32>
    %226 = math.exp %225 : vector<64x64xf32>
    %cst_97 = arith.constant dense<0.000000e+00> : vector<64xf32>
    %227 = vector.multi_reduction <add>, %226, %cst_97 [1] : vector<64x64xf32> to vector<64xf32>
    %228 = vector.shape_cast %227 : vector<64xf32> to vector<64x1xf32>
    %cst_98 = arith.constant dense<0.000000e+00> : vector<64x8xf32>
    %229 = tpu.matmul %226, %217, %cst_98 {dimension_numbers = #tpu.dot_dimension_numbers<[1], [1], [0], [0], [0, 0, 1, 0], [], []>} : vector<64x64xf32>, vector<8x64xf32>, vector<64x8xf32> -> vector<64x8xf32>
    %230 = vector.broadcast %228 : vector<64x1xf32> to vector<64x8xf32>
    %231 = arith.divf %229, %230 : vector<64x8xf32>
    %c72 = arith.constant 72 : index
    %c0_99 = arith.constant 0 : index
    %232 = vector.load %arg6[%c72, %c0_99] : memref<128x96xf32, #tpu.memory_space<vmem>>, vector<8x96xf32>
    %cst_100 = arith.constant dense<0.000000e+00> : vector<64x96xf32>
    %233 = tpu.matmul %231, %232, %cst_100 {dimension_numbers = #tpu.dot_dimension_numbers<[1], [0], [0], [1], [0, 0, 1, 1], [], []>} : vector<64x8xf32>, vector<8x96xf32>, vector<64x96xf32> -> vector<64x96xf32>
    %234 = arith.addf %214, %233 : vector<64x96xf32>
    %235 = vector.extract_strided_slice %31 {offsets = [80, 0], sizes = [8, 64], strides = [1, 1]} : vector<384x64xf32> to vector<8x64xf32>
    %236 = vector.extract_strided_slice %31 {offsets = [208, 0], sizes = [8, 64], strides = [1, 1]} : vector<384x64xf32> to vector<8x64xf32>
    %237 = vector.extract_strided_slice %31 {offsets = [336, 0], sizes = [8, 64], strides = [1, 1]} : vector<384x64xf32> to vector<8x64xf32>
    %cst_101 = arith.constant dense<0.000000e+00> : vector<64x64xf32>
    %238 = tpu.matmul %235, %236, %cst_101 {dimension_numbers = #tpu.dot_dimension_numbers<[0], [0], [1], [1], [0, 1, 1, 1], [], []>} : vector<8x64xf32>, vector<8x64xf32>, vector<64x64xf32> -> vector<64x64xf32>
    %c10 = arith.constant 10 : index
    %c0_102 = arith.constant 0 : index
    %c0_103 = arith.constant 0 : index
    %239 = vector.load %arg8[%c10, %c0_102, %c0_103] : memref<16x64x64xf32, #tpu.memory_space<vmem>>, vector<1x64x64xf32>
    %240 = vector.shape_cast %239 : vector<1x64x64xf32> to vector<64x64xf32>
    %241 = arith.addf %238, %240 : vector<64x64xf32>
    %cst_104 = arith.constant dense<0xFF800000> : vector<64xf32>
    %242 = vector.multi_reduction <maximumf>, %241, %cst_104 [1] : vector<64x64xf32> to vector<64xf32>
    %243 = vector.shape_cast %242 : vector<64xf32> to vector<64x1xf32>
    %244 = vector.broadcast %243 : vector<64x1xf32> to vector<64x64xf32>
    %245 = arith.subf %241, %244 : vector<64x64xf32>
    %246 = math.exp %245 : vector<64x64xf32>
    %cst_105 = arith.constant dense<0.000000e+00> : vector<64xf32>
    %247 = vector.multi_reduction <add>, %246, %cst_105 [1] : vector<64x64xf32> to vector<64xf32>
    %248 = vector.shape_cast %247 : vector<64xf32> to vector<64x1xf32>
    %cst_106 = arith.constant dense<0.000000e+00> : vector<64x8xf32>
    %249 = tpu.matmul %246, %237, %cst_106 {dimension_numbers = #tpu.dot_dimension_numbers<[1], [1], [0], [0], [0, 0, 1, 0], [], []>} : vector<64x64xf32>, vector<8x64xf32>, vector<64x8xf32> -> vector<64x8xf32>
    %250 = vector.broadcast %248 : vector<64x1xf32> to vector<64x8xf32>
    %251 = arith.divf %249, %250 : vector<64x8xf32>
    %c80 = arith.constant 80 : index
    %c0_107 = arith.constant 0 : index
    %252 = vector.load %arg6[%c80, %c0_107] : memref<128x96xf32, #tpu.memory_space<vmem>>, vector<8x96xf32>
    %cst_108 = arith.constant dense<0.000000e+00> : vector<64x96xf32>
    %253 = tpu.matmul %251, %252, %cst_108 {dimension_numbers = #tpu.dot_dimension_numbers<[1], [0], [0], [1], [0, 0, 1, 1], [], []>} : vector<64x8xf32>, vector<8x96xf32>, vector<64x96xf32> -> vector<64x96xf32>
    %254 = arith.addf %234, %253 : vector<64x96xf32>
    %255 = vector.extract_strided_slice %31 {offsets = [88, 0], sizes = [8, 64], strides = [1, 1]} : vector<384x64xf32> to vector<8x64xf32>
    %256 = vector.extract_strided_slice %31 {offsets = [216, 0], sizes = [8, 64], strides = [1, 1]} : vector<384x64xf32> to vector<8x64xf32>
    %257 = vector.extract_strided_slice %31 {offsets = [344, 0], sizes = [8, 64], strides = [1, 1]} : vector<384x64xf32> to vector<8x64xf32>
    %cst_109 = arith.constant dense<0.000000e+00> : vector<64x64xf32>
    %258 = tpu.matmul %255, %256, %cst_109 {dimension_numbers = #tpu.dot_dimension_numbers<[0], [0], [1], [1], [0, 1, 1, 1], [], []>} : vector<8x64xf32>, vector<8x64xf32>, vector<64x64xf32> -> vector<64x64xf32>
    %c11 = arith.constant 11 : index
    %c0_110 = arith.constant 0 : index
    %c0_111 = arith.constant 0 : index
    %259 = vector.load %arg8[%c11, %c0_110, %c0_111] : memref<16x64x64xf32, #tpu.memory_space<vmem>>, vector<1x64x64xf32>
    %260 = vector.shape_cast %259 : vector<1x64x64xf32> to vector<64x64xf32>
    %261 = arith.addf %258, %260 : vector<64x64xf32>
    %cst_112 = arith.constant dense<0xFF800000> : vector<64xf32>
    %262 = vector.multi_reduction <maximumf>, %261, %cst_112 [1] : vector<64x64xf32> to vector<64xf32>
    %263 = vector.shape_cast %262 : vector<64xf32> to vector<64x1xf32>
    %264 = vector.broadcast %263 : vector<64x1xf32> to vector<64x64xf32>
    %265 = arith.subf %261, %264 : vector<64x64xf32>
    %266 = math.exp %265 : vector<64x64xf32>
    %cst_113 = arith.constant dense<0.000000e+00> : vector<64xf32>
    %267 = vector.multi_reduction <add>, %266, %cst_113 [1] : vector<64x64xf32> to vector<64xf32>
    %268 = vector.shape_cast %267 : vector<64xf32> to vector<64x1xf32>
    %cst_114 = arith.constant dense<0.000000e+00> : vector<64x8xf32>
    %269 = tpu.matmul %266, %257, %cst_114 {dimension_numbers = #tpu.dot_dimension_numbers<[1], [1], [0], [0], [0, 0, 1, 0], [], []>} : vector<64x64xf32>, vector<8x64xf32>, vector<64x8xf32> -> vector<64x8xf32>
    %270 = vector.broadcast %268 : vector<64x1xf32> to vector<64x8xf32>
    %271 = arith.divf %269, %270 : vector<64x8xf32>
    %c88 = arith.constant 88 : index
    %c0_115 = arith.constant 0 : index
    %272 = vector.load %arg6[%c88, %c0_115] : memref<128x96xf32, #tpu.memory_space<vmem>>, vector<8x96xf32>
    %cst_116 = arith.constant dense<0.000000e+00> : vector<64x96xf32>
    %273 = tpu.matmul %271, %272, %cst_116 {dimension_numbers = #tpu.dot_dimension_numbers<[1], [0], [0], [1], [0, 0, 1, 1], [], []>} : vector<64x8xf32>, vector<8x96xf32>, vector<64x96xf32> -> vector<64x96xf32>
    %274 = arith.addf %254, %273 : vector<64x96xf32>
    %275 = vector.extract_strided_slice %31 {offsets = [96, 0], sizes = [8, 64], strides = [1, 1]} : vector<384x64xf32> to vector<8x64xf32>
    %276 = vector.extract_strided_slice %31 {offsets = [224, 0], sizes = [8, 64], strides = [1, 1]} : vector<384x64xf32> to vector<8x64xf32>
    %277 = vector.extract_strided_slice %31 {offsets = [352, 0], sizes = [8, 64], strides = [1, 1]} : vector<384x64xf32> to vector<8x64xf32>
    %cst_117 = arith.constant dense<0.000000e+00> : vector<64x64xf32>
    %278 = tpu.matmul %275, %276, %cst_117 {dimension_numbers = #tpu.dot_dimension_numbers<[0], [0], [1], [1], [0, 1, 1, 1], [], []>} : vector<8x64xf32>, vector<8x64xf32>, vector<64x64xf32> -> vector<64x64xf32>
    %c12 = arith.constant 12 : index
    %c0_118 = arith.constant 0 : index
    %c0_119 = arith.constant 0 : index
    %279 = vector.load %arg8[%c12, %c0_118, %c0_119] : memref<16x64x64xf32, #tpu.memory_space<vmem>>, vector<1x64x64xf32>
    %280 = vector.shape_cast %279 : vector<1x64x64xf32> to vector<64x64xf32>
    %281 = arith.addf %278, %280 : vector<64x64xf32>
    %cst_120 = arith.constant dense<0xFF800000> : vector<64xf32>
    %282 = vector.multi_reduction <maximumf>, %281, %cst_120 [1] : vector<64x64xf32> to vector<64xf32>
    %283 = vector.shape_cast %282 : vector<64xf32> to vector<64x1xf32>
    %284 = vector.broadcast %283 : vector<64x1xf32> to vector<64x64xf32>
    %285 = arith.subf %281, %284 : vector<64x64xf32>
    %286 = math.exp %285 : vector<64x64xf32>
    %cst_121 = arith.constant dense<0.000000e+00> : vector<64xf32>
    %287 = vector.multi_reduction <add>, %286, %cst_121 [1] : vector<64x64xf32> to vector<64xf32>
    %288 = vector.shape_cast %287 : vector<64xf32> to vector<64x1xf32>
    %cst_122 = arith.constant dense<0.000000e+00> : vector<64x8xf32>
    %289 = tpu.matmul %286, %277, %cst_122 {dimension_numbers = #tpu.dot_dimension_numbers<[1], [1], [0], [0], [0, 0, 1, 0], [], []>} : vector<64x64xf32>, vector<8x64xf32>, vector<64x8xf32> -> vector<64x8xf32>
    %290 = vector.broadcast %288 : vector<64x1xf32> to vector<64x8xf32>
    %291 = arith.divf %289, %290 : vector<64x8xf32>
    %c96 = arith.constant 96 : index
    %c0_123 = arith.constant 0 : index
    %292 = vector.load %arg6[%c96, %c0_123] : memref<128x96xf32, #tpu.memory_space<vmem>>, vector<8x96xf32>
    %cst_124 = arith.constant dense<0.000000e+00> : vector<64x96xf32>
    %293 = tpu.matmul %291, %292, %cst_124 {dimension_numbers = #tpu.dot_dimension_numbers<[1], [0], [0], [1], [0, 0, 1, 1], [], []>} : vector<64x8xf32>, vector<8x96xf32>, vector<64x96xf32> -> vector<64x96xf32>
    %294 = arith.addf %274, %293 : vector<64x96xf32>
    %295 = vector.extract_strided_slice %31 {offsets = [104, 0], sizes = [8, 64], strides = [1, 1]} : vector<384x64xf32> to vector<8x64xf32>
    %296 = vector.extract_strided_slice %31 {offsets = [232, 0], sizes = [8, 64], strides = [1, 1]} : vector<384x64xf32> to vector<8x64xf32>
    %297 = vector.extract_strided_slice %31 {offsets = [360, 0], sizes = [8, 64], strides = [1, 1]} : vector<384x64xf32> to vector<8x64xf32>
    %cst_125 = arith.constant dense<0.000000e+00> : vector<64x64xf32>
    %298 = tpu.matmul %295, %296, %cst_125 {dimension_numbers = #tpu.dot_dimension_numbers<[0], [0], [1], [1], [0, 1, 1, 1], [], []>} : vector<8x64xf32>, vector<8x64xf32>, vector<64x64xf32> -> vector<64x64xf32>
    %c13 = arith.constant 13 : index
    %c0_126 = arith.constant 0 : index
    %c0_127 = arith.constant 0 : index
    %299 = vector.load %arg8[%c13, %c0_126, %c0_127] : memref<16x64x64xf32, #tpu.memory_space<vmem>>, vector<1x64x64xf32>
    %300 = vector.shape_cast %299 : vector<1x64x64xf32> to vector<64x64xf32>
    %301 = arith.addf %298, %300 : vector<64x64xf32>
    %cst_128 = arith.constant dense<0xFF800000> : vector<64xf32>
    %302 = vector.multi_reduction <maximumf>, %301, %cst_128 [1] : vector<64x64xf32> to vector<64xf32>
    %303 = vector.shape_cast %302 : vector<64xf32> to vector<64x1xf32>
    %304 = vector.broadcast %303 : vector<64x1xf32> to vector<64x64xf32>
    %305 = arith.subf %301, %304 : vector<64x64xf32>
    %306 = math.exp %305 : vector<64x64xf32>
    %cst_129 = arith.constant dense<0.000000e+00> : vector<64xf32>
    %307 = vector.multi_reduction <add>, %306, %cst_129 [1] : vector<64x64xf32> to vector<64xf32>
    %308 = vector.shape_cast %307 : vector<64xf32> to vector<64x1xf32>
    %cst_130 = arith.constant dense<0.000000e+00> : vector<64x8xf32>
    %309 = tpu.matmul %306, %297, %cst_130 {dimension_numbers = #tpu.dot_dimension_numbers<[1], [1], [0], [0], [0, 0, 1, 0], [], []>} : vector<64x64xf32>, vector<8x64xf32>, vector<64x8xf32> -> vector<64x8xf32>
    %310 = vector.broadcast %308 : vector<64x1xf32> to vector<64x8xf32>
    %311 = arith.divf %309, %310 : vector<64x8xf32>
    %c104 = arith.constant 104 : index
    %c0_131 = arith.constant 0 : index
    %312 = vector.load %arg6[%c104, %c0_131] : memref<128x96xf32, #tpu.memory_space<vmem>>, vector<8x96xf32>
    %cst_132 = arith.constant dense<0.000000e+00> : vector<64x96xf32>
    %313 = tpu.matmul %311, %312, %cst_132 {dimension_numbers = #tpu.dot_dimension_numbers<[1], [0], [0], [1], [0, 0, 1, 1], [], []>} : vector<64x8xf32>, vector<8x96xf32>, vector<64x96xf32> -> vector<64x96xf32>
    %314 = arith.addf %294, %313 : vector<64x96xf32>
    %315 = vector.extract_strided_slice %31 {offsets = [112, 0], sizes = [8, 64], strides = [1, 1]} : vector<384x64xf32> to vector<8x64xf32>
    %316 = vector.extract_strided_slice %31 {offsets = [240, 0], sizes = [8, 64], strides = [1, 1]} : vector<384x64xf32> to vector<8x64xf32>
    %317 = vector.extract_strided_slice %31 {offsets = [368, 0], sizes = [8, 64], strides = [1, 1]} : vector<384x64xf32> to vector<8x64xf32>
    %cst_133 = arith.constant dense<0.000000e+00> : vector<64x64xf32>
    %318 = tpu.matmul %315, %316, %cst_133 {dimension_numbers = #tpu.dot_dimension_numbers<[0], [0], [1], [1], [0, 1, 1, 1], [], []>} : vector<8x64xf32>, vector<8x64xf32>, vector<64x64xf32> -> vector<64x64xf32>
    %c14 = arith.constant 14 : index
    %c0_134 = arith.constant 0 : index
    %c0_135 = arith.constant 0 : index
    %319 = vector.load %arg8[%c14, %c0_134, %c0_135] : memref<16x64x64xf32, #tpu.memory_space<vmem>>, vector<1x64x64xf32>
    %320 = vector.shape_cast %319 : vector<1x64x64xf32> to vector<64x64xf32>
    %321 = arith.addf %318, %320 : vector<64x64xf32>
    %cst_136 = arith.constant dense<0xFF800000> : vector<64xf32>
    %322 = vector.multi_reduction <maximumf>, %321, %cst_136 [1] : vector<64x64xf32> to vector<64xf32>
    %323 = vector.shape_cast %322 : vector<64xf32> to vector<64x1xf32>
    %324 = vector.broadcast %323 : vector<64x1xf32> to vector<64x64xf32>
    %325 = arith.subf %321, %324 : vector<64x64xf32>
    %326 = math.exp %325 : vector<64x64xf32>
    %cst_137 = arith.constant dense<0.000000e+00> : vector<64xf32>
    %327 = vector.multi_reduction <add>, %326, %cst_137 [1] : vector<64x64xf32> to vector<64xf32>
    %328 = vector.shape_cast %327 : vector<64xf32> to vector<64x1xf32>
    %cst_138 = arith.constant dense<0.000000e+00> : vector<64x8xf32>
    %329 = tpu.matmul %326, %317, %cst_138 {dimension_numbers = #tpu.dot_dimension_numbers<[1], [1], [0], [0], [0, 0, 1, 0], [], []>} : vector<64x64xf32>, vector<8x64xf32>, vector<64x8xf32> -> vector<64x8xf32>
    %330 = vector.broadcast %328 : vector<64x1xf32> to vector<64x8xf32>
    %331 = arith.divf %329, %330 : vector<64x8xf32>
    %c112 = arith.constant 112 : index
    %c0_139 = arith.constant 0 : index
    %332 = vector.load %arg6[%c112, %c0_139] : memref<128x96xf32, #tpu.memory_space<vmem>>, vector<8x96xf32>
    %cst_140 = arith.constant dense<0.000000e+00> : vector<64x96xf32>
    %333 = tpu.matmul %331, %332, %cst_140 {dimension_numbers = #tpu.dot_dimension_numbers<[1], [0], [0], [1], [0, 0, 1, 1], [], []>} : vector<64x8xf32>, vector<8x96xf32>, vector<64x96xf32> -> vector<64x96xf32>
    %334 = arith.addf %314, %333 : vector<64x96xf32>
    %335 = vector.extract_strided_slice %31 {offsets = [120, 0], sizes = [8, 64], strides = [1, 1]} : vector<384x64xf32> to vector<8x64xf32>
    %336 = vector.extract_strided_slice %31 {offsets = [248, 0], sizes = [8, 64], strides = [1, 1]} : vector<384x64xf32> to vector<8x64xf32>
    %337 = vector.extract_strided_slice %31 {offsets = [376, 0], sizes = [8, 64], strides = [1, 1]} : vector<384x64xf32> to vector<8x64xf32>
    %cst_141 = arith.constant dense<0.000000e+00> : vector<64x64xf32>
    %338 = tpu.matmul %335, %336, %cst_141 {dimension_numbers = #tpu.dot_dimension_numbers<[0], [0], [1], [1], [0, 1, 1, 1], [], []>} : vector<8x64xf32>, vector<8x64xf32>, vector<64x64xf32> -> vector<64x64xf32>
    %c15 = arith.constant 15 : index
    %c0_142 = arith.constant 0 : index
    %c0_143 = arith.constant 0 : index
    %339 = vector.load %arg8[%c15, %c0_142, %c0_143] : memref<16x64x64xf32, #tpu.memory_space<vmem>>, vector<1x64x64xf32>
    %340 = vector.shape_cast %339 : vector<1x64x64xf32> to vector<64x64xf32>
    %341 = arith.addf %338, %340 : vector<64x64xf32>
    %cst_144 = arith.constant dense<0xFF800000> : vector<64xf32>
    %342 = vector.multi_reduction <maximumf>, %341, %cst_144 [1] : vector<64x64xf32> to vector<64xf32>
    %343 = vector.shape_cast %342 : vector<64xf32> to vector<64x1xf32>
    %344 = vector.broadcast %343 : vector<64x1xf32> to vector<64x64xf32>
    %345 = arith.subf %341, %344 : vector<64x64xf32>
    %346 = math.exp %345 : vector<64x64xf32>
    %cst_145 = arith.constant dense<0.000000e+00> : vector<64xf32>
    %347 = vector.multi_reduction <add>, %346, %cst_145 [1] : vector<64x64xf32> to vector<64xf32>
    %348 = vector.shape_cast %347 : vector<64xf32> to vector<64x1xf32>
    %cst_146 = arith.constant dense<0.000000e+00> : vector<64x8xf32>
    %349 = tpu.matmul %346, %337, %cst_146 {dimension_numbers = #tpu.dot_dimension_numbers<[1], [1], [0], [0], [0, 0, 1, 0], [], []>} : vector<64x64xf32>, vector<8x64xf32>, vector<64x8xf32> -> vector<64x8xf32>
    %350 = vector.broadcast %348 : vector<64x1xf32> to vector<64x8xf32>
    %351 = arith.divf %349, %350 : vector<64x8xf32>
    %c120 = arith.constant 120 : index
    %c0_147 = arith.constant 0 : index
    %352 = vector.load %arg6[%c120, %c0_147] : memref<128x96xf32, #tpu.memory_space<vmem>>, vector<8x96xf32>
    %cst_148 = arith.constant dense<0.000000e+00> : vector<64x96xf32>
    %353 = tpu.matmul %351, %352, %cst_148 {dimension_numbers = #tpu.dot_dimension_numbers<[1], [0], [0], [1], [0, 0, 1, 1], [], []>} : vector<64x8xf32>, vector<8x96xf32>, vector<64x96xf32> -> vector<64x96xf32>
    %354 = arith.addf %334, %353 : vector<64x96xf32>
    %c0_149 = arith.constant 0 : index
    %c0_150 = arith.constant 0 : index
    %c0_151 = arith.constant 0 : index
    %355 = vector.load %arg9[%c0_149, %c0_150, %c0_151] : memref<1x64x96xf32, #tpu.memory_space<vmem>>, vector<1x64x96xf32>
    %356 = vector.shape_cast %355 : vector<1x64x96xf32> to vector<64x96xf32>
    %357 = vector.shape_cast %354 : vector<64x96xf32> to vector<1x64x96xf32>
    tpu.vector_store %arg9[%c0_149, %c0_150, %c0_151], %357 {strides = array<i32>} : memref<1x64x96xf32, #tpu.memory_space<vmem>>, vector<1x64x96xf32>,
    return
  }
  func.func @transform_0(%arg0: i32) -> (i32, i32, i32) {
    %c0_i32 = arith.constant 0 : i32
    %c0_i32_0 = arith.constant 0 : i32
    %c0_i32_1 = arith.constant 0 : i32
    return %arg0, %c0_i32, %c0_i32_0 : i32, i32, i32
  }
  func.func @transform_1(%arg0: i32) -> (i32, i32, i32) {
    %c0_i32 = arith.constant 0 : i32
    %c0_i32_0 = arith.constant 0 : i32
    %c0_i32_1 = arith.constant 0 : i32
    %c0_i32_2 = arith.constant 0 : i32
    return %c0_i32, %c0_i32_0, %c0_i32_1 : i32, i32, i32
  }
  func.func @transform_2(%arg0: i32) -> (i32, i32) {
    %c0_i32 = arith.constant 0 : i32
    %c0_i32_0 = arith.constant 0 : i32
    %c0_i32_1 = arith.constant 0 : i32
    return %c0_i32, %c0_i32_0 : i32, i32
  }
  func.func @transform_3(%arg0: i32) -> (i32, i32) {
    %c0_i32 = arith.constant 0 : i32
    %c0_i32_0 = arith.constant 0 : i32
    %c0_i32_1 = arith.constant 0 : i32
    return %c0_i32, %c0_i32_0 : i32, i32
  }
  func.func @transform_4(%arg0: i32) -> (i32, i32) {
    %c0_i32 = arith.constant 0 : i32
    %c0_i32_0 = arith.constant 0 : i32
    %c0_i32_1 = arith.constant 0 : i32
    return %c0_i32, %c0_i32_0 : i32, i32
  }
  func.func @transform_5(%arg0: i32) -> (i32, i32) {
    %c0_i32 = arith.constant 0 : i32
    %c0_i32_0 = arith.constant 0 : i32
    %c0_i32_1 = arith.constant 0 : i32
    return %c0_i32, %c0_i32_0 : i32, i32
  }
  func.func @transform_6(%arg0: i32) -> (i32, i32) {
    %c0_i32 = arith.constant 0 : i32
    %c0_i32_0 = arith.constant 0 : i32
    %c0_i32_1 = arith.constant 0 : i32
    return %c0_i32, %c0_i32_0 : i32, i32
  }
  func.func @transform_7(%arg0: i32) -> (i32, i32, i32) {
    %c0_i32 = arith.constant 0 : i32
    %c0_i32_0 = arith.constant 0 : i32
    %c0_i32_1 = arith.constant 0 : i32
    %c0_i32_2 = arith.constant 0 : i32
    return %c0_i32, %c0_i32_0, %c0_i32_1 : i32, i32, i32
  }
  func.func @transform_8(%arg0: i32) -> (i32, i32, i32) {
    %c0_i32 = arith.constant 0 : i32
    %c0_i32_0 = arith.constant 0 : i32
    %c0_i32_1 = arith.constant 0 : i32
    return %arg0, %c0_i32, %c0_i32_0 : i32, i32, i32
  }
}

</mosaic_0001>

<llo_original>
// kernel: attention_level_forward.1
$region0: #{attention_level_forward.1}
  #allocation0 [shape = 'u32[]', space=smem, size = 0x4, offset = 0x4, fixed_abs, tag = 'smem constant byte address 0x4 - core index']
  #allocation1 [shape = 'u32[144,128]{1,0:T(1,128)}', space=vmem, size = 0x12000, scoped, tag = 'internal scratch']
  %s0 = inlined_call_operand.vmem [shape: f32[2,64,96], index: 0, kind: input, shape index: {}]
  %s1 = inlined_call_operand.vmem [shape: f32[1,64,96], index: 1, kind: input, shape index: {}]
  %s2 = inlined_call_operand.vmem [shape: f32[1,96], index: 2, kind: input, shape index: {}]
  %s3 = inlined_call_operand.vmem [shape: f32[1,96], index: 3, kind: input, shape index: {}]
  %s4 = inlined_call_operand.vmem [shape: bf16[384,96], index: 4, kind: input, shape index: {}]
  %s5 = inlined_call_operand.vmem [shape: f32[128,96], index: 5, kind: input, shape index: {}]
  %s6 = inlined_call_operand.vmem [shape: f32[1,96], index: 6, kind: input, shape index: {}]
  %s7 = inlined_call_operand.vmem [shape: f32[16,64,64], index: 7, kind: input, shape index: {}]
  %s8 = inlined_call_operand.hbm [shape: f32[2,64,96], index: 8, kind: output, shape index: {}]
  %s9 = sld [smem:[#allocation0]]
  $region65: #{attention_level_forward.1} parent=0
    _
  %s11 = ssub.s32 1, %s9
  %s12 = scalar_select 0, %s11, %s9
  $region1: #{attention_level_forward.1} parent=0
    #allocation2 [shape = 'u8[65536]{0}', space=vmem, size = 0x10000, scoped, tag = 'output window, operand 0']
    #allocation3 [shape = 's32[2]{0}', space=sflag, size = 0x8, scoped, tag = 'scoped memory for attention_level_forward.1']
    %13 = vsyncpa [#allocation3], 0
    %s14 = scalar_lea.sflag [#allocation3], 1
    %15 = vsyncpa %s14, 0
    loop: start=0, step=1, limit=4
    $region2: #{attention_level_forward.1} parent=1 // loop_pre_header
      _
    $region3: #{attention_level_forward.1} parent=1 // loop_header
      %s17 = sphi 0, %s21
      %p18 = scmp.ge.s32.totalorder %s17, 4
      %s27 = sphi 0, %s29
      %s30 = sphi 0, %s27
      %s31 = sphi 0, %s30
      %s47 = sphi 0, %s31
      %s51 = sphi 0, %s51
      %s53 = sphi 0, %s51
      %s54 = sphi 0, %s53
      %s68 = sphi 0, %s54
      %s72 = sphi 0, %s72
      %s74 = sphi 0, %s72
      %s75 = sphi 0, %s74
      %s89 = sphi 0, %s75
      %s93 = sphi 0, %s93
      %s95 = sphi 0, %s93
      %s96 = sphi 0, %s95
      %s110 = sphi 0, %s96
      %s114 = sphi 0, %s114
      %s116 = sphi 0, %s114
      %s117 = sphi 0, %s116
      %s131 = sphi 0, %s117
      %s135 = sphi 0, %s135
      %s137 = sphi 0, %s135
      %s138 = sphi 0, %s137
      %s152 = sphi 0, %s138
      %s156 = sphi 0, %s156
      %s158 = sphi 0, %s156
      %s159 = sphi 0, %s158
      %s173 = sphi 0, %s159
      %s177 = sphi 0, %s177
      %s179 = sphi 0, %s177
      %s180 = sphi 0, %s179
      %s194 = sphi 0, %s180
      %s200 = sphi 0, %s202
      %s203 = sphi 0, %s200
      %s204 = sphi 0, %s203
      %s220 = sphi 0, %s204
    $region4: #{attention_level_forward.1} parent=1 // loop_header_branch
      %20 = sbr.rel (%p18) target = $region8
    $region5: #{attention_level_forward.1} parent=1 // loop_body
      %s22 = ssub.s32 %s17, 1
      %s23 = ssub.s32 %s17, 2
      %s24 = sadd.s32 %s17, 1
      %s25 = ssub.s32 %s17, %s24
      %p26 = scmp.eq.s32.totalorder %s25, 0
      %s28 = sadd.s32 %s27, 1
      %s29 = scalar_select %p26, %s27, %s28
      %p32 = pneg %p26
      %p33 = scmp.eq.s32.totalorder %s17, 1
      %p34 = por %p32, %p33
      %p35 = scmp.ne.s32.totalorder %s27, %s30
      %p36 = scmp.eq.s32.totalorder %s17, 0
      %p37 = por %p35, %p36
      %p38 = scmp.ne.s32.totalorder %s27, %s30
      %p39 = scmp.eq.s32.totalorder %s22, 1
      %p40 = por %p38, %p39
      %p41 = scmp.ne.s32.totalorder %s30, %s31
      %p42 = scmp.eq.s32.totalorder %s22, 0
      %p43 = por %p41, %p42
      %p44 = scmp.ne.s32.totalorder %s30, %s31
      %p45 = scmp.eq.s32.totalorder %s23, 1
      %p46 = por %p44, %p45
      %p48 = scmp.ne.s32.totalorder %s31, %s47
      %p49 = scmp.eq.s32.totalorder %s23, 0
      %p50 = por %p48, %p49
      %s52 = sadd.s32 %s51, 1
      %p55 = scmp.eq.s32.totalorder %s17, 1
      %p56 = scmp.ne.s32.totalorder %s51, %s53
      %p57 = scmp.eq.s32.totalorder %s17, 0
      %p58 = por %p56, %p57
      %p59 = scmp.ne.s32.totalorder %s51, %s53
      %p60 = scmp.eq.s32.totalorder %s22, 1
      %p61 = por %p59, %p60
      %p62 = scmp.ne.s32.totalorder %s53, %s54
      %p63 = scmp.eq.s32.totalorder %s22, 0
      %p64 = por %p62, %p63
      %p65 = scmp.ne.s32.totalorder %s53, %s54
      %p66 = scmp.eq.s32.totalorder %s23, 1
      %p67 = por %p65, %p66
      %p69 = scmp.ne.s32.totalorder %s54, %s68
      %p70 = scmp.eq.s32.totalorder %s23, 0
      %p71 = por %p69, %p70
      %s73 = sadd.s32 %s72, 1
      %p76 = scmp.eq.s32.totalorder %s17, 1
      %p77 = scmp.ne.s32.totalorder %s72, %s74
      %p78 = scmp.eq.s32.totalorder %s17, 0
      %p79 = por %p77, %p78
      %p80 = scmp.ne.s32.totalorder %s72, %s74
      %p81 = scmp.eq.s32.totalorder %s22, 1
      %p82 = por %p80, %p81
      %p83 = scmp.ne.s32.totalorder %s74, %s75
      %p84 = scmp.eq.s32.totalorder %s22, 0
      %p85 = por %p83, %p84
      %p86 = scmp.ne.s32.totalorder %s74, %s75
      %p87 = scmp.eq.s32.totalorder %s23, 1
      %p88 = por %p86, %p87
      %p90 = scmp.ne.s32.totalorder %s75, %s89
      %p91 = scmp.eq.s32.totalorder %s23, 0
      %p92 = por %p90, %p91
      %s94 = sadd.s32 %s93, 1
      %p97 = scmp.eq.s32.totalorder %s17, 1
      %p98 = scmp.ne.s32.totalorder %s93, %s95
      %p99 = scmp.eq.s32.totalorder %s17, 0
      %p100 = por %p98, %p99
      %p101 = scmp.ne.s32.totalorder %s93, %s95
      %p102 = scmp.eq.s32.totalorder %s22, 1
      %p103 = por %p101, %p102
      %p104 = scmp.ne.s32.totalorder %s95, %s96
      %p105 = scmp.eq.s32.totalorder %s22, 0
      %p106 = por %p104, %p105
      %p107 = scmp.ne.s32.totalorder %s95, %s96
      %p108 = scmp.eq.s32.totalorder %s23, 1
      %p109 = por %p107, %p108
      %p111 = scmp.ne.s32.totalorder %s96, %s110
      %p112 = scmp.eq.s32.totalorder %s23, 0
      %p113 = por %p111, %p112
      %s115 = sadd.s32 %s114, 1
      %p118 = scmp.eq.s32.totalorder %s17, 1
      %p119 = scmp.ne.s32.totalorder %s114, %s116
      %p120 = scmp.eq.s32.totalorder %s17, 0
      %p121 = por %p119, %p120
      %p122 = scmp.ne.s32.totalorder %s114, %s116
      %p123 = scmp.eq.s32.totalorder %s22, 1
      %p124 = por %p122, %p123
      %p125 = scmp.ne.s32.totalorder %s116, %s117
      %p126 = scmp.eq.s32.totalorder %s22, 0
      %p127 = por %p125, %p126
      %p128 = scmp.ne.s32.totalorder %s116, %s117
      %p129 = scmp.eq.s32.totalorder %s23, 1
      %p130 = por %p128, %p129
      %p132 = scmp.ne.s32.totalorder %s117, %s131
      %p133 = scmp.eq.s32.totalorder %s23, 0
      %p134 = por %p132, %p133
      %s136 = sadd.s32 %s135, 1
      %p139 = scmp.eq.s32.totalorder %s17, 1
      %p140 = scmp.ne.s32.totalorder %s135, %s137
      %p141 = scmp.eq.s32.totalorder %s17, 0
      %p142 = por %p140, %p141
      %p143 = scmp.ne.s32.totalorder %s135, %s137
      %p144 = scmp.eq.s32.totalorder %s22, 1
      %p145 = por %p143, %p144
      %p146 = scmp.ne.s32.totalorder %s137, %s138
      %p147 = scmp.eq.s32.totalorder %s22, 0
      %p148 = por %p146, %p147
      %p149 = scmp.ne.s32.totalorder %s137, %s138
      %p150 = scmp.eq.s32.totalorder %s23, 1
      %p151 = por %p149, %p150
      %p153 = scmp.ne.s32.totalorder %s138, %s152
      %p154 = scmp.eq.s32.totalorder %s23, 0
      %p155 = por %p153, %p154
      %s157 = sadd.s32 %s156, 1
      %p160 = scmp.eq.s32.totalorder %s17, 1
      %p161 = scmp.ne.s32.totalorder %s156, %s158
      %p162 = scmp.eq.s32.totalorder %s17, 0
      %p163 = por %p161, %p162
      %p164 = scmp.ne.s32.totalorder %s156, %s158
      %p165 = scmp.eq.s32.totalorder %s22, 1
      %p166 = por %p164, %p165
      %p167 = scmp.ne.s32.totalorder %s158, %s159
      %p168 = scmp.eq.s32.totalorder %s22, 0
      %p169 = por %p167, %p168
      %p170 = scmp.ne.s32.totalorder %s158, %s159
      %p171 = scmp.eq.s32.totalorder %s23, 1
      %p172 = por %p170, %p171
      %p174 = scmp.ne.s32.totalorder %s159, %s173
      %p175 = scmp.eq.s32.totalorder %s23, 0
      %p176 = por %p174, %p175
      %s178 = sadd.s32 %s177, 1
      %p181 = scmp.eq.s32.totalorder %s17, 1
      %p182 = scmp.ne.s32.totalorder %s177, %s179
      %p183 = scmp.eq.s32.totalorder %s17, 0
      %p184 = por %p182, %p183
      %p185 = scmp.ne.s32.totalorder %s177, %s179
      %p186 = scmp.eq.s32.totalorder %s22, 1
      %p187 = por %p185, %p186
      %p188 = scmp.ne.s32.totalorder %s179, %s180
      %p189 = scmp.eq.s32.totalorder %s22, 0
      %p190 = por %p188, %p189
      %p191 = scmp.ne.s32.totalorder %s179, %s180
      %p192 = scmp.eq.s32.totalorder %s23, 1
      %p193 = por %p191, %p192
      %p195 = scmp.ne.s32.totalorder %s180, %s194
      %p196 = scmp.eq.s32.totalorder %s23, 0
      %p197 = por %p195, %p196
      %s198 = ssub.s32 %s17, %s24
      %p199 = scmp.eq.s32.totalorder %s198, 0
      %s201 = sadd.s32 %s200, 1
      %s202 = scalar_select %p199, %s200, %s201
      %p205 = pneg %p199
      %p206 = scmp.eq.s32.totalorder %s17, 1
      %p207 = por %p205, %p206
      %p208 = scmp.ne.s32.totalorder %s200, %s203
      %p209 = scmp.eq.s32.totalorder %s17, 0
      %p210 = por %p208, %p209
      %p211 = scmp.ne.s32.totalorder %s200, %s203
      %p212 = scmp.eq.s32.totalorder %s22, 1
      %p213 = por %p211, %p212
      %p214 = scmp.ne.s32.totalorder %s203, %s204
      %p215 = scmp.eq.s32.totalorder %s22, 0
      %p216 = por %p214, %p215
      %p217 = scmp.ne.s32.totalorder %s203, %s204
      %p218 = scmp.eq.s32.totalorder %s23, 1
      %p219 = por %p217, %p218
      %p221 = scmp.ne.s32.totalorder %s204, %s220
      %p222 = scmp.eq.s32.totalorder %s23, 0
      %p223 = por %p221, %p222
      %p224 = scmp.le.s32.totalorder 1, %s17
      %p225 = scmp.lt.s32.totalorder %s17, 3
      %p226 = pnand %p224, %p225
      %p227 = pneg %p226
      // Predicated region
      $region9: #{attention_level_forward.1} parent=5 // pred_check
        _
      $region10: #{attention_level_forward.1} parent=5 // pred_check_branch
        %229 = sbr.rel (%p226) target = $region12
      $region11: #{attention_level_forward.1} parent=5 // pred_region
        %s230 = ssub.s32 %s17, 1
        // Predicated region
        $region13: #{attention_level_forward.1} parent=11 // pred_check
          %p231 = pneg %p64
        $region14: #{attention_level_forward.1} parent=11 // pred_check_branch
          %233 = sbr.rel (%p231) target = $region16
        $region15: #{attention_level_forward.1} parent=11 // pred_region
          _
        $region16: #{attention_level_forward.1} parent=11 // pred_fallthru
          _
        // Predicated region
        $region17: #{attention_level_forward.1} parent=11 // pred_check
          %p234 = pneg %p85
        $region18: #{attention_level_forward.1} parent=11 // pred_check_branch
          %236 = sbr.rel (%p234) target = $region20
        $region19: #{attention_level_forward.1} parent=11 // pred_region
          _
        $region20: #{attention_level_forward.1} parent=11 // pred_fallthru
          _
        // Predicated region
        $region21: #{attention_level_forward.1} parent=11 // pred_check
          %p237 = pneg %p106
        $region22: #{attention_level_forward.1} parent=11 // pred_check_branch
          %239 = sbr.rel (%p237) target = $region24
        $region23: #{attention_level_forward.1} parent=11 // pred_region
          _
        $region24: #{attention_level_forward.1} parent=11 // pred_fallthru
          _
        // Predicated region
        $region25: #{attention_level_forward.1} parent=11 // pred_check
          %p240 = pneg %p127
        $region26: #{attention_level_forward.1} parent=11 // pred_check_branch
          %242 = sbr.rel (%p240) target = $region28
        $region27: #{attention_level_forward.1} parent=11 // pred_region
          _
        $region28: #{attention_level_forward.1} parent=11 // pred_fallthru
          _
        // Predicated region
        $region29: #{attention_level_forward.1} parent=11 // pred_check
          %p243 = pneg %p148
        $region30: #{attention_level_forward.1} parent=11 // pred_check_branch
          %245 = sbr.rel (%p243) target = $region32
        $region31: #{attention_level_forward.1} parent=11 // pred_region
          _
        $region32: #{attention_level_forward.1} parent=11 // pred_fallthru
          _
        // Predicated region
        $region33: #{attention_level_forward.1} parent=11 // pred_check
          %p246 = pneg %p169
        $region34: #{attention_level_forward.1} parent=11 // pred_check_branch
          %248 = sbr.rel (%p246) target = $region36
        $region35: #{attention_level_forward.1} parent=11 // pred_region
          _
        $region36: #{attention_level_forward.1} parent=11 // pred_fallthru
          _
        // Predicated region
        $region37: #{attention_level_forward.1} parent=11 // pred_check
          %p249 = pneg %p190
        $region38: #{attention_level_forward.1} parent=11 // pred_check_branch
          %251 = sbr.rel (%p249) target = $region40
        $region39: #{attention_level_forward.1} parent=11 // pred_region
          _
        $region40: #{attention_level_forward.1} parent=11 // pred_fallthru
          _
      $region12: #{attention_level_forward.1} parent=5 // pred_fallthru
        _
      %p252 = scmp.lt.s32.totalorder %s17, 2
      // Predicated region
      $region41: #{attention_level_forward.1} parent=5 // pred_check
        %p253 = pneg %p252
      $region42: #{attention_level_forward.1} parent=5 // pred_check_branch
        %255 = sbr.rel (%p253) target = $region44
      $region43: #{attention_level_forward.1} parent=5 // pred_region
        // Predicated region
        $region45: #{attention_level_forward.1} parent=43 // pred_check
          %p256 = pneg %p37
        $region46: #{attention_level_forward.1} parent=43 // pred_check_branch
          %258 = sbr.rel (%p256) target = $region48
        $region47: #{attention_level_forward.1} parent=43 // pred_region
          %p259 = scmp.lt.s32.totalorder %s17, 1
          %s260 = scalar_select %p259, %s17, 1
          %s261 = smul.addr %s260, 8
          %s262 = smul.addr %s261, 8
          %s263 = scalar_lea.vmem %s0, %s262
        $region48: #{attention_level_forward.1} parent=43 // pred_fallthru
          _
      $region44: #{attention_level_forward.1} parent=5 // pred_fallthru
        _
      %p264 = scmp.le.s32.totalorder 1, %s17
      %p265 = scmp.lt.s32.totalorder %s17, 3
      %p266 = pnand %p264, %p265
      %p267 = pneg %p266
      // Predicated region
      $region49: #{attention_level_forward.1} parent=5 // pred_check
        _
      $region50: #{attention_level_forward.1} parent=5 // pred_check_branch
        %269 = sbr.rel (%p266) target = $region52
      $region51: #{attention_level_forward.1} parent=5 // pred_region
        %s270 = ssub.s32 %s17, 1
        %p271 = scmp.lt.s32.totalorder %s22, 1
        %s272 = scalar_select %p271, %s22, 1
        %s273 = smul.addr %s272, 8
        %s274 = smul.addr %s273, 8
        %s275 = scalar_lea.vmem %s0, %s274
        %p276 = pneg %p43
        %p277 = pneg %p40
        %p278 = pneg %p64
        %p279 = pneg %p61
        %p280 = pneg %p85
        %p281 = pneg %p82
        %p282 = pneg %p106
        %p283 = pneg %p103
        %p284 = pneg %p127
        %p285 = pneg %p124
        %p286 = pneg %p148
        %p287 = pneg %p145
        %p288 = pneg %p169
        %p289 = pneg %p166
        %p290 = pneg %p190
        %p291 = pneg %p187
        %p292 = pneg %p216
        %p293 = pneg %p213
        %s294 = sand.u32 %s203, 1
        %s295 = scalar_lea.sflag [#allocation3], %s294
        %s296 = sand.u32 %s203, 1
        %s297 = smul.addr %s296, 64
        %s298 = scalar_lea.vmem [#allocation2], %s297
        %p299 = scmp.lt.s32.totalorder %s22, 1
        %s300 = scalar_select %p299, %s22, 1
        %s301 = smul.addr %s300, 8
        %s302 = smul.addr %s301, 8
        %s303 = scalar_lea.vmem %s0, %s302
        %v305 = vld [vmem:[%s303] sm:$0xff]
        %v306 = vld [vmem:[%s303 + $0x8] sm:$0xff]
        %v307 = vld [vmem:[%s303 + $0x10] sm:$0xff]
        %v308 = vld [vmem:[%s303 + $0x18] sm:$0xff]
        %v309 = vld [vmem:[%s303 + $0x20] sm:$0xff]
        %v310 = vld [vmem:[%s303 + $0x28] sm:$0xff]
        %v311 = vld [vmem:[%s303 + $0x30] sm:$0xff]
        %v312 = vld [vmem:[%s303 + $0x38] sm:$0xff]
        %v313 = vld [vmem:[%s1] sm:$0xff]
        %v314 = vld [vmem:[%s1 + $0x8] sm:$0xff]
        %v315 = vld [vmem:[%s1 + $0x10] sm:$0xff]
        %v316 = vld [vmem:[%s1 + $0x18] sm:$0xff]
        %v317 = vld [vmem:[%s1 + $0x20] sm:$0xff]
        %v318 = vld [vmem:[%s1 + $0x28] sm:$0xff]
        %v319 = vld [vmem:[%s1 + $0x30] sm:$0xff]
        %v320 = vld [vmem:[%s1 + $0x38] sm:$0xff]
        %v321 = vadd.f32 %v305, %v313
        %v322 = vadd.f32 %v306, %v314
        %v323 = vadd.f32 %v307, %v315
        %v324 = vadd.f32 %v308, %v316
        %v325 = vadd.f32 %v309, %v317
        %v326 = vadd.f32 %v310, %v318
        %v327 = vadd.f32 %v311, %v319
        %v328 = vadd.f32 %v312, %v320
        %vm329 = vcmask 785408
        %v330 = vsel %vm329, %v321, 0.0
        %331 = vadd.xlane.f32.xlu0 %v330
        %v332 = vpop.xlane.xlu0 %331
        %v333 = vsel %vm329, %v322, 0.0
        %334 = vadd.xlane.f32.xlu0 %v333
        %v335 = vpop.xlane.xlu0 %334
        %v336 = vsel %vm329, %v323, 0.0
        %337 = vadd.xlane.f32.xlu0 %v336
        %v338 = vpop.xlane.xlu0 %337
        %v339 = vsel %vm329, %v324, 0.0
        %340 = vadd.xlane.f32.xlu0 %v339
        %v341 = vpop.xlane.xlu0 %340
        %v342 = vsel %vm329, %v325, 0.0
        %343 = vadd.xlane.f32.xlu0 %v342
        %v344 = vpop.xlane.xlu0 %343
        %v345 = vsel %vm329, %v326, 0.0
        %346 = vadd.xlane.f32.xlu0 %v345
        %v347 = vpop.xlane.xlu0 %346
        %v348 = vsel %vm329, %v327, 0.0
        %349 = vadd.xlane.f32.xlu0 %v348
        %v350 = vpop.xlane.xlu0 %349
        %v351 = vsel %vm329, %v328, 0.0
        %352 = vadd.xlane.f32.xlu0 %v351
        %v353 = vpop.xlane.xlu0 %352
        %v354 = vrcp.pop 96.0
        %v355 = vmul.f32 %v332, %v354
        %v356 = vmul.f32 %v335, %v354
        %v357 = vmul.f32 %v338, %v354
        %v358 = vmul.f32 %v341, %v354
        %v359 = vmul.f32 %v344, %v354
        %v360 = vmul.f32 %v347, %v354
        %v361 = vmul.f32 %v350, %v354
        %v362 = vmul.f32 %v353, %v354
        %v363 = vsub.f32 %v321, %v355
        %v364 = vsub.f32 %v322, %v356
        %v365 = vsub.f32 %v323, %v357
        %v366 = vsub.f32 %v324, %v358
        %v367 = vsub.f32 %v325, %v359
        %v368 = vsub.f32 %v326, %v360
        %v369 = vsub.f32 %v327, %v361
        %v370 = vsub.f32 %v328, %v362
        %v371 = vmul.f32 %v363, %v363
        %v372 = vmul.f32 %v364, %v364
        %v373 = vmul.f32 %v365, %v365
        %v374 = vmul.f32 %v366, %v366
        %v375 = vmul.f32 %v367, %v367
        %v376 = vmul.f32 %v368, %v368
        %v377 = vmul.f32 %v369, %v369
        %v378 = vmul.f32 %v370, %v370
        %v379 = vsel %vm329, %v371, 0.0
        %380 = vadd.xlane.f32.xlu0 %v379
        %v381 = vpop.xlane.xlu0 %380
        %v382 = vsel %vm329, %v372, 0.0
        %383 = vadd.xlane.f32.xlu0 %v382
        %v384 = vpop.xlane.xlu0 %383
        %v385 = vsel %vm329, %v373, 0.0
        %386 = vadd.xlane.f32.xlu0 %v385
        %v387 = vpop.xlane.xlu0 %386
        %v388 = vsel %vm329, %v374, 0.0
        %389 = vadd.xlane.f32.xlu0 %v388
        %v390 = vpop.xlane.xlu0 %389
        %v391 = vsel %vm329, %v375, 0.0
        %392 = vadd.xlane.f32.xlu0 %v391
        %v393 = vpop.xlane.xlu0 %392
        %v394 = vsel %vm329, %v376, 0.0
        %395 = vadd.xlane.f32.xlu0 %v394
        %v396 = vpop.xlane.xlu0 %395
        %v397 = vsel %vm329, %v377, 0.0
        %398 = vadd.xlane.f32.xlu0 %v397
        %v399 = vpop.xlane.xlu0 %398
        %v400 = vsel %vm329, %v378, 0.0
        %401 = vadd.xlane.f32.xlu0 %v400
        %v402 = vpop.xlane.xlu0 %401
        %v403 = vmul.f32 %v381, %v354
        %v404 = vmul.f32 %v384, %v354
        %v405 = vmul.f32 %v387, %v354
        %v406 = vmul.f32 %v390, %v354
        %v407 = vmul.f32 %v393, %v354
        %v408 = vmul.f32 %v396, %v354
        %v409 = vmul.f32 %v399, %v354
        %v410 = vmul.f32 %v402, %v354
        %v411 = vadd.f32 %v403, 1e-05
        %v412 = vadd.f32 %v404, 1e-05
        %v413 = vadd.f32 %v405, 1e-05
        %v414 = vadd.f32 %v406, 1e-05
        %v415 = vadd.f32 %v407, 1e-05
        %v416 = vadd.f32 %v408, 1e-05
        %v417 = vadd.f32 %v409, 1e-05
        %v418 = vadd.f32 %v410, 1e-05
        %v419 = vrsqrt.pop %v411
        %v420 = vrsqrt.pop %v412
        %v421 = vrsqrt.pop %v413
        %v422 = vrsqrt.pop %v414
        %v423 = vrsqrt.pop %v415
        %v424 = vrsqrt.pop %v416
        %v425 = vrsqrt.pop %v417
        %v426 = vrsqrt.pop %v418
        %v427 = vmul.f32 %v363, %v419
        %v428 = vmul.f32 %v364, %v420
        %v429 = vmul.f32 %v365, %v421
        %v430 = vmul.f32 %v366, %v422
        %v431 = vmul.f32 %v367, %v423
        %v432 = vmul.f32 %v368, %v424
        %v433 = vmul.f32 %v369, %v425
        %v434 = vmul.f32 %v370, %v426
        %v435 = vld [vmem:[%s2] sm:$0x1]
        %v437 = vlaneseq
        %v438 = vshrl.u32 %v437, 7
        %v439 = vsub.s32 0, %v438
        %v440 = vrot.slane %v435, %v439
        %v442 = vmul.f32 %v427, %v440
        %v443 = vmul.f32 %v428, %v440
        %v444 = vmul.f32 %v429, %v440
        %v445 = vmul.f32 %v430, %v440
        %v446 = vmul.f32 %v431, %v440
        %v447 = vmul.f32 %v432, %v440
        %v448 = vmul.f32 %v433, %v440
        %v449 = vmul.f32 %v434, %v440
        %v450 = vld [vmem:[%s3] sm:$0x1]
        %v452 = vlaneseq
        %v453 = vshrl.u32 %v452, 7
        %v454 = vsub.s32 0, %v453
        %v455 = vrot.slane %v450, %v454
        %v457 = vadd.f32 %v442, %v455
        %v458 = vadd.f32 %v443, %v455
        %v459 = vadd.f32 %v444, %v455
        %v460 = vadd.f32 %v445, %v455
        %v461 = vadd.f32 %v446, %v455
        %v462 = vadd.f32 %v447, %v455
        %v463 = vadd.f32 %v448, %v455
        %v464 = vadd.f32 %v449, %v455
        %v465 = vld [vmem:[%s4] sm:$0xf]
        %v466 = vld [vmem:[%s4 + $0x4] sm:$0xf]
        %v467 = vld [vmem:[%s4 + $0x8] sm:$0xf]
        %v468 = vld [vmem:[%s4 + $0xc] sm:$0xf]
        %v469 = vld [vmem:[%s4 + $0x10] sm:$0xf]
        %v470 = vld [vmem:[%s4 + $0x14] sm:$0xf]
        %v471 = vld [vmem:[%s4 + $0x18] sm:$0xf]
        %v472 = vld [vmem:[%s4 + $0x1c] sm:$0xf]
        %v473 = vld [vmem:[%s4 + $0x20] sm:$0xf]
        %v474 = vld [vmem:[%s4 + $0x24] sm:$0xf]
        %v475 = vld [vmem:[%s4 + $0x28] sm:$0xf]
        %v476 = vld [vmem:[%s4 + $0x2c] sm:$0xf]
        %v477 = vld [vmem:[%s4 + $0x30] sm:$0xf]
        %v478 = vld [vmem:[%s4 + $0x34] sm:$0xf]
        %v479 = vld [vmem:[%s4 + $0x38] sm:$0xf]
        %v480 = vld [vmem:[%s4 + $0x3c] sm:$0xf]
        %v481 = vld [vmem:[%s4 + $0x40] sm:$0xf]
        %v482 = vld [vmem:[%s4 + $0x44] sm:$0xf]
        %v483 = vld [vmem:[%s4 + $0x48] sm:$0xf]
        %v484 = vld [vmem:[%s4 + $0x4c] sm:$0xf]
        %v485 = vld [vmem:[%s4 + $0x50] sm:$0xf]
        %v486 = vld [vmem:[%s4 + $0x54] sm:$0xf]
        %v487 = vld [vmem:[%s4 + $0x58] sm:$0xf]
        %v488 = vld [vmem:[%s4 + $0x5c] sm:$0xf]
        %v489 = vld [vmem:[%s4 + $0x60] sm:$0xf]
        %v490 = vld [vmem:[%s4 + $0x64] sm:$0xf]
        %v491 = vld [vmem:[%s4 + $0x68] sm:$0xf]
        %v492 = vld [vmem:[%s4 + $0x6c] sm:$0xf]
        %v493 = vld [vmem:[%s4 + $0x70] sm:$0xf]
        %v494 = vld [vmem:[%s4 + $0x74] sm:$0xf]
        %v495 = vld [vmem:[%s4 + $0x78] sm:$0xf]
        %v496 = vld [vmem:[%s4 + $0x7c] sm:$0xf]
        %v497 = vld [vmem:[%s4 + $0x80] sm:$0xf]
        %v498 = vld [vmem:[%s4 + $0x84] sm:$0xf]
        %v499 = vld [vmem:[%s4 + $0x88] sm:$0xf]
        %v500 = vld [vmem:[%s4 + $0x8c] sm:$0xf]
        %v501 = vld [vmem:[%s4 + $0x90] sm:$0xf]
        %v502 = vld [vmem:[%s4 + $0x94] sm:$0xf]
        %v503 = vld [vmem:[%s4 + $0x98] sm:$0xf]
        %v504 = vld [vmem:[%s4 + $0x9c] sm:$0xf]
        %v505 = vld [vmem:[%s4 + $0xa0] sm:$0xf]
        %v506 = vld [vmem:[%s4 + $0xa4] sm:$0xf]
        %v507 = vld [vmem:[%s4 + $0xa8] sm:$0xf]
        %v508 = vld [vmem:[%s4 + $0xac] sm:$0xf]
        %v509 = vld [vmem:[%s4 + $0xb0] sm:$0xf]
        %v510 = vld [vmem:[%s4 + $0xb4] sm:$0xf]
        %v511 = vld [vmem:[%s4 + $0xb8] sm:$0xf]
        %v512 = vld [vmem:[%s4 + $0xbc] sm:$0xf]
        %v513 = vpack.c.bf16 %v458, %v457
        %v514 = vpack.c.bf16 %v460, %v459
        %v515 = vpack.c.bf16 %v462, %v461
        %v516 = vpack.c.bf16 %v464, %v463
        %v565 = vunpack.c.l.b16 %v465
        %v566 = vunpack.c.l.b16 %v466
        %v567 = vunpack.c.l.b16 %v467
        %v568 = vunpack.c.l.b16 %v468
        %v569 = vunpack.c.l.b16 %v469
        %v570 = vunpack.c.l.b16 %v470
        %v571 = vunpack.c.l.b16 %v471
        %v572 = vunpack.c.l.b16 %v472
        %v573 = vunpack.c.l.b16 %v473
        %v574 = vunpack.c.l.b16 %v474
        %v575 = vunpack.c.l.b16 %v475
        %v576 = vunpack.c.l.b16 %v476
        %v577 = vunpack.c.l.b16 %v477
        %v578 = vunpack.c.l.b16 %v478
        %v579 = vunpack.c.l.b16 %v479
        %v580 = vunpack.c.l.b16 %v480
        %v581 = vunpack.c.l.b16 %v481
        %v582 = vunpack.c.l.b16 %v482
        %v583 = vunpack.c.l.b16 %v483
        %v584 = vunpack.c.l.b16 %v484
        %v585 = vunpack.c.l.b16 %v485
        %v586 = vunpack.c.l.b16 %v486
        %v587 = vunpack.c.l.b16 %v487
        %v588 = vunpack.c.l.b16 %v488
        %v589 = vunpack.c.l.b16 %v489
        %v590 = vunpack.c.l.b16 %v490
        %v591 = vunpack.c.l.b16 %v491
        %v592 = vunpack.c.l.b16 %v492
        %v593 = vunpack.c.l.b16 %v493
        %v594 = vunpack.c.l.b16 %v494
        %v595 = vunpack.c.l.b16 %v495
        %v596 = vunpack.c.l.b16 %v496
        %v597 = vunpack.c.l.b16 %v497
        %v598 = vunpack.c.l.b16 %v498
        %v599 = vunpack.c.l.b16 %v499
        %v600 = vunpack.c.l.b16 %v500
        %v601 = vunpack.c.l.b16 %v501
        %v602 = vunpack.c.l.b16 %v502
        %v603 = vunpack.c.l.b16 %v503
        %v604 = vunpack.c.l.b16 %v504
        %v605 = vunpack.c.l.b16 %v505
        %v606 = vunpack.c.l.b16 %v506
        %v607 = vunpack.c.l.b16 %v507
        %v608 = vunpack.c.l.b16 %v508
        %v609 = vunpack.c.l.b16 %v509
        %v610 = vunpack.c.l.b16 %v510
        %v611 = vunpack.c.l.b16 %v511
        %v612 = vunpack.c.l.b16 %v512
        %v613 = vpack.c.b16 %v566, %v565
        %v614 = vpack.c.b16 %v568, %v567
        %v615 = vpack.c.b16 %v570, %v569
        %v616 = vpack.c.b16 %v572, %v571
        %v617 = vpack.c.b16 %v574, %v573
        %v618 = vpack.c.b16 %v576, %v575
        %v619 = vpack.c.b16 %v578, %v577
        %v620 = vpack.c.b16 %v580, %v579
        %v621 = vpack.c.b16 %v582, %v581
        %v622 = vpack.c.b16 %v584, %v583
        %v623 = vpack.c.b16 %v586, %v585
        %v624 = vpack.c.b16 %v588, %v587
        %v625 = vpack.c.b16 %v590, %v589
        %v626 = vpack.c.b16 %v592, %v591
        %v627 = vpack.c.b16 %v594, %v593
        %v628 = vpack.c.b16 %v596, %v595
        %v629 = vpack.c.b16 %v598, %v597
        %v630 = vpack.c.b16 %v600, %v599
        %v631 = vpack.c.b16 %v602, %v601
        %v632 = vpack.c.b16 %v604, %v603
        %v633 = vpack.c.b16 %v606, %v605
        %v634 = vpack.c.b16 %v608, %v607
        %v635 = vpack.c.b16 %v610, %v609
        %v636 = vpack.c.b16 %v612, %v611
        %v638 = vsel %vm329, %v613, 0
        %v641 = vsel %vm329, %v614, 0
        %v644 = vsel %vm329, %v615, 0
        %v647 = vsel %vm329, %v616, 0
        %v650 = vsel %vm329, %v617, 0
        %v653 = vsel %vm329, %v618, 0
        %v656 = vsel %vm329, %v619, 0
        %v659 = vsel %vm329, %v620, 0
        %v662 = vsel %vm329, %v621, 0
        %v665 = vsel %vm329, %v622, 0
        %v668 = vsel %vm329, %v623, 0
        %v671 = vsel %vm329, %v624, 0
        %v674 = vsel %vm329, %v625, 0
        %v677 = vsel %vm329, %v626, 0
        %v680 = vsel %vm329, %v627, 0
        %v683 = vsel %vm329, %v628, 0
        %v686 = vsel %vm329, %v629, 0
        %v689 = vsel %vm329, %v630, 0
        %v692 = vsel %vm329, %v631, 0
        %v695 = vsel %vm329, %v632, 0
        %v698 = vsel %vm329, %v633, 0
        %v701 = vsel %vm329, %v634, 0
        %v704 = vsel %vm329, %v635, 0
        %v707 = vsel %vm329, %v636, 0
        %v710 = vsel %vm329, %v513, 0
        %v713 = vsel %vm329, %v514, 0
        %v716 = vsel %vm329, %v515, 0
        %v719 = vsel %vm329, %v516, 0
        %721 = vmatprep.subr.bf16.mxu0 0
        %722 = vmatpush1.bf16.xpose.msra.mxu0 0
        %723 = vmatprep.subr.bf16.mxu0 0
        %724 = vmatpush1.bf16.xpose.msra.mxu0 0
        %725 = vmatprep.subr.bf16.mxu0 0
        %726 = vmatpush1.bf16.xpose.msra.mxu0 0
        %727 = vmatprep.subr.bf16.mxu0 0
        %728 = vmatpush1.bf16.xpose.msra.mxu0 0
        %729 = vmatprep.subr.bf16.mxu0 0
        %730 = vmatpush1.bf16.xpose.msra.mxu0 %v719
        %731 = vmatprep.subr.bf16.mxu0 0
        %732 = vmatpush1.bf16.xpose.msra.mxu0 %v716
        %733 = vmatprep.subr.bf16.mxu0 0
        %734 = vmatpush1.bf16.xpose.msra.mxu0 %v713
        %735 = vmatprep.subr.bf16.mxu0 0
        %736 = vmatpush1.bf16.xpose.msra.mxu0 %v710
        %737 = vmatprep.subr.bf16.mxu0 0
        %738 = vmatpush2.bf16.xpose.msra.mxu0 0
        %739 = vmatprep.subr.bf16.mxu0 0
        %740 = vmatpush2.bf16.xpose.msra.mxu0 0
        %741 = vmatprep.subr.bf16.mxu0 0
        %742 = vmatpush2.bf16.xpose.msra.mxu0 0
        %743 = vmatprep.subr.bf16.mxu0 0
        %744 = vmatpush2.bf16.xpose.msra.mxu0 0
        %745 = vmatprep.subr.bf16.mxu0 0
        %746 = vmatpush2.bf16.xpose.msra.mxu0 0
        %747 = vmatprep.subr.bf16.mxu0 0
        %748 = vmatpush2.bf16.xpose.msra.mxu0 0
        %749 = vmatprep.subr.bf16.mxu0 0
        %750 = vmatpush2.bf16.xpose.msra.mxu0 0
        %751 = vmatprep.subr.bf16.mxu0 0
        %752 = vmatpush2.bf16.xpose.msra.mxu0 0
        %753 = vmatprep.mubr.bf16.mxu0 0
        %754 = vmatmul.mubr.bf16.gmra.mxu0 %v638
        %v755 = vpop.f32.mrf.mxu0
        %v756 = vadd.f32 0.0, %v755
        %v757 = vpop.f32.mrf.mxu0
        %v758 = vpop.f32.mrf.mxu0
        %v759 = vadd.f32 0.0, %v758
        %v760 = vpop.f32.mrf.mxu0
        %761 = vmatprep.mubr.bf16.mxu0 0
        %762 = vmatmul.mubr.bf16.gmra.mxu0 %v641
        %v763 = vpop.f32.mrf.mxu0
        %v764 = vadd.f32 0.0, %v763
        %v765 = vpop.f32.mrf.mxu0
        %v766 = vpop.f32.mrf.mxu0
        %v767 = vadd.f32 0.0, %v766
        %v768 = vpop.f32.mrf.mxu0
        %769 = vmatprep.mubr.bf16.mxu0 0
        %770 = vmatmul.mubr.bf16.gmra.mxu0 %v644
        %v771 = vpop.f32.mrf.mxu0
        %v772 = vadd.f32 0.0, %v771
        %v773 = vpop.f32.mrf.mxu0
        %v774 = vpop.f32.mrf.mxu0
        %v775 = vadd.f32 0.0, %v774
        %v776 = vpop.f32.mrf.mxu0
        %777 = vmatprep.mubr.bf16.mxu0 0
        %778 = vmatmul.mubr.bf16.gmra.mxu0 %v647
        %v779 = vpop.f32.mrf.mxu0
        %v780 = vadd.f32 0.0, %v779
        %v781 = vpop.f32.mrf.mxu0
        %v782 = vpop.f32.mrf.mxu0
        %v783 = vadd.f32 0.0, %v782
        %v784 = vpop.f32.mrf.mxu0
        %785 = vmatprep.mubr.bf16.mxu0 0
        %786 = vmatmul.mubr.bf16.gmra.mxu0 %v650
        %v787 = vpop.f32.mrf.mxu0
        %v788 = vadd.f32 0.0, %v787
        %v789 = vpop.f32.mrf.mxu0
        %v790 = vpop.f32.mrf.mxu0
        %v791 = vadd.f32 0.0, %v790
        %v792 = vpop.f32.mrf.mxu0
        %793 = vmatprep.mubr.bf16.mxu0 0
        %794 = vmatmul.mubr.bf16.gmra.mxu0 %v653
        %v795 = vpop.f32.mrf.mxu0
        %v796 = vadd.f32 0.0, %v795
        %v797 = vpop.f32.mrf.mxu0
        %v798 = vpop.f32.mrf.mxu0
        %v799 = vadd.f32 0.0, %v798
        %v800 = vpop.f32.mrf.mxu0
        %801 = vmatprep.mubr.bf16.mxu0 0
        %802 = vmatmul.mubr.bf16.gmra.mxu0 %v656
        %v803 = vpop.f32.mrf.mxu0
        %v804 = vadd.f32 0.0, %v803
        %v805 = vpop.f32.mrf.mxu0
        %v806 = vpop.f32.mrf.mxu0
        %v807 = vadd.f32 0.0, %v806
        %v808 = vpop.f32.mrf.mxu0
        %809 = vmatprep.mubr.bf16.mxu0 0
        %810 = vmatmul.mubr.bf16.gmra.mxu0 %v659
        %v811 = vpop.f32.mrf.mxu0
        %v812 = vadd.f32 0.0, %v811
        %v813 = vpop.f32.mrf.mxu0
        %v814 = vpop.f32.mrf.mxu0
        %v815 = vadd.f32 0.0, %v814
        %v816 = vpop.f32.mrf.mxu0
        %817 = vmatprep.mubr.bf16.mxu0 0
        %818 = vmatmul.mubr.bf16.gmra.mxu0 %v662
        %v819 = vpop.f32.mrf.mxu0
        %v820 = vadd.f32 0.0, %v819
        %v821 = vpop.f32.mrf.mxu0
        %v822 = vpop.f32.mrf.mxu0
        %v823 = vadd.f32 0.0, %v822
        %v824 = vpop.f32.mrf.mxu0
        %825 = vmatprep.mubr.bf16.mxu0 0
        %826 = vmatmul.mubr.bf16.gmra.mxu0 %v665
        %v827 = vpop.f32.mrf.mxu0
        %v828 = vadd.f32 0.0, %v827
        %v829 = vpop.f32.mrf.mxu0
        %v830 = vpop.f32.mrf.mxu0
        %v831 = vadd.f32 0.0, %v830
        %v832 = vpop.f32.mrf.mxu0
        %833 = vmatprep.mubr.bf16.mxu0 0
        %834 = vmatmul.mubr.bf16.gmra.mxu0 %v668
        %v835 = vpop.f32.mrf.mxu0
        %v836 = vadd.f32 0.0, %v835
        %v837 = vpop.f32.mrf.mxu0
        %v838 = vpop.f32.mrf.mxu0
        %v839 = vadd.f32 0.0, %v838
        %v840 = vpop.f32.mrf.mxu0
        %841 = vmatprep.mubr.bf16.mxu0 0
        %842 = vmatmul.mubr.bf16.gmra.mxu0 %v671
        %v843 = vpop.f32.mrf.mxu0
        %v844 = vadd.f32 0.0, %v843
        %v845 = vpop.f32.mrf.mxu0
        %v846 = vpop.f32.mrf.mxu0
        %v847 = vadd.f32 0.0, %v846
        %v848 = vpop.f32.mrf.mxu0
        %849 = vmatprep.mubr.bf16.mxu0 0
        %850 = vmatmul.mubr.bf16.gmra.mxu0 %v674
        %v851 = vpop.f32.mrf.mxu0
        %v852 = vadd.f32 0.0, %v851
        %v853 = vpop.f32.mrf.mxu0
        %v854 = vpop.f32.mrf.mxu0
        %v855 = vadd.f32 0.0, %v854
        %v856 = vpop.f32.mrf.mxu0
        %857 = vmatprep.mubr.bf16.mxu0 0
        %858 = vmatmul.mubr.bf16.gmra.mxu0 %v677
        %v859 = vpop.f32.mrf.mxu0
        %v860 = vadd.f32 0.0, %v859
        %v861 = vpop.f32.mrf.mxu0
        %v862 = vpop.f32.mrf.mxu0
        %v863 = vadd.f32 0.0, %v862
        %v864 = vpop.f32.mrf.mxu0
        %865 = vmatprep.mubr.bf16.mxu0 0
        %866 = vmatmul.mubr.bf16.gmra.mxu0 %v680
        %v867 = vpop.f32.mrf.mxu0
        %v868 = vadd.f32 0.0, %v867
        %v869 = vpop.f32.mrf.mxu0
        %v870 = vpop.f32.mrf.mxu0
        %v871 = vadd.f32 0.0, %v870
        %v872 = vpop.f32.mrf.mxu0
        %873 = vmatprep.mubr.bf16.mxu0 0
        %874 = vmatmul.mubr.bf16.gmra.mxu0 %v683
        %v875 = vpop.f32.mrf.mxu0
        %v876 = vadd.f32 0.0, %v875
        %v877 = vpop.f32.mrf.mxu0
        %v878 = vpop.f32.mrf.mxu0
        %v879 = vadd.f32 0.0, %v878
        %v880 = vpop.f32.mrf.mxu0
        %881 = vmatprep.mubr.bf16.mxu0 0
        %882 = vmatmul.mubr.bf16.gmra.mxu0 %v686
        %v883 = vpop.f32.mrf.mxu0
        %v884 = vadd.f32 0.0, %v883
        %v885 = vpop.f32.mrf.mxu0
        %v886 = vpop.f32.mrf.mxu0
        %v887 = vadd.f32 0.0, %v886
        %v888 = vpop.f32.mrf.mxu0
        %889 = vmatprep.mubr.bf16.mxu0 0
        %890 = vmatmul.mubr.bf16.gmra.mxu0 %v689
        %v891 = vpop.f32.mrf.mxu0
        %v892 = vadd.f32 0.0, %v891
        %v893 = vpop.f32.mrf.mxu0
        %v894 = vpop.f32.mrf.mxu0
        %v895 = vadd.f32 0.0, %v894
        %v896 = vpop.f32.mrf.mxu0
        %897 = vmatprep.mubr.bf16.mxu0 0
        %898 = vmatmul.mubr.bf16.gmra.mxu0 %v692
        %v899 = vpop.f32.mrf.mxu0
        %v900 = vadd.f32 0.0, %v899
        %v901 = vpop.f32.mrf.mxu0
        %v902 = vpop.f32.mrf.mxu0
        %v903 = vadd.f32 0.0, %v902
        %v904 = vpop.f32.mrf.mxu0
        %905 = vmatprep.mubr.bf16.mxu0 0
        %906 = vmatmul.mubr.bf16.gmra.mxu0 %v695
        %v907 = vpop.f32.mrf.mxu0
        %v908 = vadd.f32 0.0, %v907
        %v909 = vpop.f32.mrf.mxu0
        %v910 = vpop.f32.mrf.mxu0
        %v911 = vadd.f32 0.0, %v910
        %v912 = vpop.f32.mrf.mxu0
        %913 = vmatprep.mubr.bf16.mxu0 0
        %914 = vmatmul.mubr.bf16.gmra.mxu0 %v698
        %v915 = vpop.f32.mrf.mxu0
        %v916 = vadd.f32 0.0, %v915
        %v917 = vpop.f32.mrf.mxu0
        %v918 = vpop.f32.mrf.mxu0
        %v919 = vadd.f32 0.0, %v918
        %v920 = vpop.f32.mrf.mxu0
        %921 = vmatprep.mubr.bf16.mxu0 0
        %922 = vmatmul.mubr.bf16.gmra.mxu0 %v701
        %v923 = vpop.f32.mrf.mxu0
        %v924 = vadd.f32 0.0, %v923
        %v925 = vpop.f32.mrf.mxu0
        %v926 = vpop.f32.mrf.mxu0
        %v927 = vadd.f32 0.0, %v926
        %v928 = vpop.f32.mrf.mxu0
        %929 = vmatprep.mubr.bf16.mxu0 0
        %930 = vmatmul.mubr.bf16.gmra.mxu0 %v704
        %v931 = vpop.f32.mrf.mxu0
        %v932 = vadd.f32 0.0, %v931
        %v933 = vpop.f32.mrf.mxu0
        %v934 = vpop.f32.mrf.mxu0
        %v935 = vadd.f32 0.0, %v934
        %v936 = vpop.f32.mrf.mxu0
        %937 = vmatprep.mubr.bf16.mxu0 0
        %938 = vmatmul.mubr.bf16.gmra.mxu0 %v707
        %v939 = vpop.f32.mrf.mxu0
        %v940 = vadd.f32 0.0, %v939
        %v941 = vpop.f32.mrf.mxu0
        %v942 = vpop.f32.mrf.mxu0
        %v943 = vadd.f32 0.0, %v942
        %v944 = vpop.f32.mrf.mxu0
        %945 = vdwg.mxu0
        %v946 = vld [vmem:[%s6] sm:$0x1]
        %v948 = vlaneseq
        %v949 = vshrl.u32 %v948, 7
        %v950 = vsub.s32 0, %v949
        %v951 = vrot.slane %v946, %v950
        %v953 = vadd.f32 %v321, %v951
        %v954 = vadd.f32 %v322, %v951
        %v955 = vadd.f32 %v323, %v951
        %v956 = vadd.f32 %v324, %v951
        %v957 = vadd.f32 %v325, %v951
        %v958 = vadd.f32 %v326, %v951
        %v959 = vadd.f32 %v327, %v951
        %v960 = vadd.f32 %v328, %v951
        %v961 = vld [vmem:[%s7] sm:$0xff]
        %v962 = vld [vmem:[%s7 + $0x8] sm:$0xff]
        %v963 = vld [vmem:[%s7 + $0x10] sm:$0xff]
        %v964 = vld [vmem:[%s7 + $0x18] sm:$0xff]
        %v965 = vld [vmem:[%s7 + $0x20] sm:$0xff]
        %v966 = vld [vmem:[%s7 + $0x28] sm:$0xff]
        %v967 = vld [vmem:[%s7 + $0x30] sm:$0xff]
        %v968 = vld [vmem:[%s7 + $0x38] sm:$0xff]
        %969 = vxpose.xlu0.b32.start [1/16] %v756, 128
        %970 = vxpose.xlu0.b32.cont [2/16] 0.0, 128
        %971 = vxpose.xlu0.b32.cont [3/16] 0.0, 128
        %972 = vxpose.xlu0.b32.cont [4/16] 0.0, 128
        %973 = vxpose.xlu0.b32.cont [5/16] 0.0, 128
        %974 = vxpose.xlu0.b32.cont [6/16] 0.0, 128
        %975 = vxpose.xlu0.b32.cont [7/16] 0.0, 128
        %976 = vxpose.xlu0.b32.cont [8/16] 0.0, 128
        %977 = vxpose.xlu0.b32.cont [9/16] 0.0, 128
        %978 = vxpose.xlu0.b32.cont [10/16] 0.0, 128
        %979 = vxpose.xlu0.b32.cont [11/16] 0.0, 128
        %980 = vxpose.xlu0.b32.cont [12/16] 0.0, 128
        %981 = vxpose.xlu0.b32.cont [13/16] 0.0, 128
        %982 = vxpose.xlu0.b32.cont [14/16] 0.0, 128
        %983 = vxpose.xlu0.b32.cont [15/16] 0.0, 128
        %984 = vxpose.xlu0.b32.end [16/16] 0.0, 128
        %v985 = vpop.trf.xlu0
        %v986 = vpop.trf.xlu0
        %v987 = vpop.trf.xlu0
        %v988 = vpop.trf.xlu0
        %v989 = vpop.trf.xlu0
        %v990 = vpop.trf.xlu0
        %v991 = vpop.trf.xlu0
        %v992 = vpop.trf.xlu0
        %v993 = vpop.trf.xlu0
        %v994 = vpop.trf.xlu0
        %v995 = vpop.trf.xlu0
        %v996 = vpop.trf.xlu0
        %v997 = vpop.trf.xlu0
        %v998 = vpop.trf.xlu0
        %v999 = vpop.trf.xlu0
        %v1000 = vpop.trf.xlu0
        %vm1001 = vcmask 64512
        %v1003 = vsel %vm1001, %v985, 0
        %v1006 = vsel %vm1001, %v986, 0
        %v1009 = vsel %vm1001, %v987, 0
        %v1012 = vsel %vm1001, %v988, 0
        %v1015 = vsel %vm1001, %v989, 0
        %v1018 = vsel %vm1001, %v990, 0
        %v1021 = vsel %vm1001, %v991, 0
        %v1024 = vsel %vm1001, %v992, 0
        %1026 = vmatprep.subr.mxu0 0.0
        %1027 = vmatpush1.msra.mxu0 0.0
        %1028 = vmatprep.subr.mxu0 0.0
        %1029 = vmatpush1.msra.mxu0 0.0
        %1030 = vmatprep.subr.mxu0 0.0
        %1031 = vmatpush1.msra.mxu0 0.0
        %1032 = vmatprep.subr.mxu0 0.0
        %1033 = vmatpush1.msra.mxu0 0.0
        %1034 = vmatprep.subr.mxu0 0.0
        %1035 = vmatpush1.msra.mxu0 0.0
        %1036 = vmatprep.subr.mxu0 0.0
        %1037 = vmatpush1.msra.mxu0 0.0
        %1038 = vmatprep.subr.mxu0 0.0
        %1039 = vmatpush1.msra.mxu0 0.0
        %1040 = vmatprep.subr.mxu0 0.0
        %1041 = vmatpush1.msra.mxu0 0.0
        %1042 = vmatprep.subr.mxu0 0.0
        %1043 = vmatpush1.msra.mxu0 0.0
        %1044 = vmatprep.subr.mxu0 0.0
        %1045 = vmatpush1.msra.mxu0 0.0
        %1046 = vmatprep.subr.mxu0 0.0
        %1047 = vmatpush1.msra.mxu0 0.0
        %1048 = vmatprep.subr.mxu0 0.0
        %1049 = vmatpush1.msra.mxu0 0.0
        %1050 = vmatprep.subr.mxu0 0.0
        %1051 = vmatpush1.msra.mxu0 0.0
        %1052 = vmatprep.subr.mxu0 0.0
        %1053 = vmatpush1.msra.mxu0 0.0
        %1054 = vmatprep.subr.mxu0 0.0
        %1055 = vmatpush1.msra.mxu0 0.0
        %1056 = vmatprep.subr.mxu0 0.0
        %1057 = vmatpush1.msra.mxu0 %v820
        %1058 = vmatprep.subr.mxu0 0.0
        %1059 = vmatpush2.msra.mxu0 0.0
        %1060 = vmatprep.subr.mxu0 0.0
        %1061 = vmatpush2.msra.mxu0 0.0
        %1062 = vmatprep.subr.mxu0 0.0
        %1063 = vmatpush2.msra.mxu0 0.0
        %1064 = vmatprep.subr.mxu0 0.0
        %1065 = vmatpush2.msra.mxu0 0.0
        %1066 = vmatprep.subr.mxu0 0.0
        %1067 = vmatpush2.msra.mxu0 0.0
        %1068 = vmatprep.subr.mxu0 0.0
        %1069 = vmatpush2.msra.mxu0 0.0
        %1070 = vmatprep.subr.mxu0 0.0
        %1071 = vmatpush2.msra.mxu0 0.0
        %1072 = vmatprep.subr.mxu0 0.0
        %1073 = vmatpush2.msra.mxu0 0.0
        %1074 = vmatprep.subr.mxu0 0.0
        %1075 = vmatpush2.msra.mxu0 0.0
        %1076 = vmatprep.subr.mxu0 0.0
        %1077 = vmatpush2.msra.mxu0 0.0
        %1078 = vmatprep.subr.mxu0 0.0
        %1079 = vmatpush2.msra.mxu0 0.0
        %1080 = vmatprep.subr.mxu0 0.0
        %1081 = vmatpush2.msra.mxu0 0.0
        %1082 = vmatprep.subr.mxu0 0.0
        %1083 = vmatpush2.msra.mxu0 0.0
        %1084 = vmatprep.subr.mxu0 0.0
        %1085 = vmatpush2.msra.mxu0 0.0
        %1086 = vmatprep.subr.mxu0 0.0
        %1087 = vmatpush2.msra.mxu0 0.0
        %1088 = vmatprep.subr.mxu0 0.0
        %1089 = vmatpush2.msra.mxu0 0.0
        %1090 = vmatprep.mubr.f32.mxu0 0.0
        %1091 = vmatmul.mubr.f32.gmra.mxu0 %v1003
        %v1092 = vpop.f32.mrf.mxu0
        %v1093 = vadd.f32 %v961, %v1092
        %v1094 = vpop.f32.mrf.mxu0
        %1095 = vmatprep.mubr.f32.mxu0 0.0
        %1096 = vmatmul.mubr.f32.gmra.mxu0 %v1006
        %v1097 = vpop.f32.mrf.mxu0
        %v1098 = vadd.f32 %v962, %v1097
        %v1099 = vpop.f32.mrf.mxu0
        %1100 = vmatprep.mubr.f32.mxu0 0.0
        %1101 = vmatmul.mubr.f32.gmra.mxu0 %v1009
        %v1102 = vpop.f32.mrf.mxu0
        %v1103 = vadd.f32 %v963, %v1102
        %v1104 = vpop.f32.mrf.mxu0
        %1105 = vmatprep.mubr.f32.mxu0 0.0
        %1106 = vmatmul.mubr.f32.gmra.mxu0 %v1012
        %v1107 = vpop.f32.mrf.mxu0
        %v1108 = vadd.f32 %v964, %v1107
        %v1109 = vpop.f32.mrf.mxu0
        %1110 = vmatprep.mubr.f32.mxu0 0.0
        %1111 = vmatmul.mubr.f32.gmra.mxu0 %v1015
        %v1112 = vpop.f32.mrf.mxu0
        %v1113 = vadd.f32 %v965, %v1112
        %v1114 = vpop.f32.mrf.mxu0
        %1115 = vmatprep.mubr.f32.mxu0 0.0
        %1116 = vmatmul.mubr.f32.gmra.mxu0 %v1018
        %v1117 = vpop.f32.mrf.mxu0
        %v1118 = vadd.f32 %v966, %v1117
        %v1119 = vpop.f32.mrf.mxu0
        %1120 = vmatprep.mubr.f32.mxu0 0.0
        %1121 = vmatmul.mubr.f32.gmra.mxu0 %v1021
        %v1122 = vpop.f32.mrf.mxu0
        %v1123 = vadd.f32 %v967, %v1122
        %v1124 = vpop.f32.mrf.mxu0
        %1125 = vmatprep.mubr.f32.mxu0 0.0
        %1126 = vmatmul.mubr.f32.gmra.mxu0 %v1024
        %v1127 = vpop.f32.mrf.mxu0
        %v1128 = vadd.f32 %v968, %v1127
        %v1129 = vpop.f32.mrf.mxu0
        %1130 = vdwg.mxu0
        %vm1131 = vcmask 523264
        %v1132 = vsel %vm1131, %v1093, -inf
        %1133 = vmax.xlane.f32.xlu0 %v1132
        %v1134 = vpop.xlane.xlu0 %1133
        %v1135 = vsel %vm1131, %v1098, -inf
        %1136 = vmax.xlane.f32.xlu0 %v1135
        %v1137 = vpop.xlane.xlu0 %1136
        %v1138 = vsel %vm1131, %v1103, -inf
        %1139 = vmax.xlane.f32.xlu0 %v1138
        %v1140 = vpop.xlane.xlu0 %1139
        %v1141 = vsel %vm1131, %v1108, -inf
        %1142 = vmax.xlane.f32.xlu0 %v1141
        %v1143 = vpop.xlane.xlu0 %1142
        %v1144 = vsel %vm1131, %v1113, -inf
        %1145 = vmax.xlane.f32.xlu0 %v1144
        %v1146 = vpop.xlane.xlu0 %1145
        %v1147 = vsel %vm1131, %v1118, -inf
        %1148 = vmax.xlane.f32.xlu0 %v1147
        %v1149 = vpop.xlane.xlu0 %1148
        %v1150 = vsel %vm1131, %v1123, -inf
        %1151 = vmax.xlane.f32.xlu0 %v1150
        %v1152 = vpop.xlane.xlu0 %1151
        %v1153 = vsel %vm1131, %v1128, -inf
        %1154 = vmax.xlane.f32.xlu0 %v1153
        %v1155 = vpop.xlane.xlu0 %1154
        %v1156 = vsub.f32 %v1093, %v1134
        %v1157 = vsub.f32 %v1098, %v1137
        %v1158 = vsub.f32 %v1103, %v1140
        %v1159 = vsub.f32 %v1108, %v1143
        %v1160 = vsub.f32 %v1113, %v1146
        %v1161 = vsub.f32 %v1118, %v1149
        %v1162 = vsub.f32 %v1123, %v1152
        %v1163 = vsub.f32 %v1128, %v1155
        %v1164 = vmul.f32 %v1156, 1.442695
        %v1165 = vpow.pop %v1164
        %v1166 = vmul.f32 %v1157, 1.442695
        %v1167 = vpow.pop %v1166
        %v1168 = vmul.f32 %v1158, 1.442695
        %v1169 = vpow.pop %v1168
        %v1170 = vmul.f32 %v1159, 1.442695
        %v1171 = vpow.pop %v1170
        %v1172 = vmul.f32 %v1160, 1.442695
        %v1173 = vpow.pop %v1172
        %v1174 = vmul.f32 %v1161, 1.442695
        %v1175 = vpow.pop %v1174
        %v1176 = vmul.f32 %v1162, 1.442695
        %v1177 = vpow.pop %v1176
        %v1178 = vmul.f32 %v1163, 1.442695
        %v1179 = vpow.pop %v1178
        %v1180 = vsel %vm1131, %v1165, 0.0
        %1181 = vadd.xlane.f32.xlu0 %v1180
        %v1182 = vpop.xlane.xlu0 %1181
        %v1183 = vsel %vm1131, %v1167, 0.0
        %1184 = vadd.xlane.f32.xlu0 %v1183
        %v1185 = vpop.xlane.xlu0 %1184
        %v1186 = vsel %vm1131, %v1169, 0.0
        %1187 = vadd.xlane.f32.xlu0 %v1186
        %v1188 = vpop.xlane.xlu0 %1187
        %v1189 = vsel %vm1131, %v1171, 0.0
        %1190 = vadd.xlane.f32.xlu0 %v1189
        %v1191 = vpop.xlane.xlu0 %1190
        %v1192 = vsel %vm1131, %v1173, 0.0
        %1193 = vadd.xlane.f32.xlu0 %v1192
        %v1194 = vpop.xlane.xlu0 %1193
        %v1195 = vsel %vm1131, %v1175, 0.0
        %1196 = vadd.xlane.f32.xlu0 %v1195
        %v1197 = vpop.xlane.xlu0 %1196
        %v1198 = vsel %vm1131, %v1177, 0.0
        %1199 = vadd.xlane.f32.xlu0 %v1198
        %v1200 = vpop.xlane.xlu0 %1199
        %v1201 = vsel %vm1131, %v1179, 0.0
        %1202 = vadd.xlane.f32.xlu0 %v1201
        %v1203 = vpop.xlane.xlu0 %1202
        %v1205 = vsel %vm1131, %v1165, 0
        %v1208 = vsel %vm1131, %v1167, 0
        %v1211 = vsel %vm1131, %v1169, 0
        %v1214 = vsel %vm1131, %v1171, 0
        %v1217 = vsel %vm1131, %v1173, 0
        %v1220 = vsel %vm1131, %v1175, 0
        %v1223 = vsel %vm1131, %v1177, 0
        %v1226 = vsel %vm1131, %v1179, 0
        %v1229 = vsel %vm1131, %v884, 0
        %1231 = vmatprep.subr.mxu0 0.0
        %1232 = vmatpush1.xpose.msra.mxu0 0.0
        %1233 = vmatprep.subr.mxu0 0.0
        %1234 = vmatpush1.xpose.msra.mxu0 0.0
        %1235 = vmatprep.subr.mxu0 0.0
        %1236 = vmatpush1.xpose.msra.mxu0 0.0
        %1237 = vmatprep.subr.mxu0 0.0
        %1238 = vmatpush1.xpose.msra.mxu0 0.0
        %1239 = vmatprep.subr.mxu0 0.0
        %1240 = vmatpush1.xpose.msra.mxu0 0.0
        %1241 = vmatprep.subr.mxu0 0.0
        %1242 = vmatpush1.xpose.msra.mxu0 0.0
        %1243 = vmatprep.subr.mxu0 0.0
        %1244 = vmatpush1.xpose.msra.mxu0 0.0
        %1245 = vmatprep.subr.mxu0 0.0
        %1246 = vmatpush1.xpose.msra.mxu0 0.0
        %1247 = vmatprep.subr.mxu0 0.0
        %1248 = vmatpush1.xpose.msra.mxu0 0.0
        %1249 = vmatprep.subr.mxu0 0.0
        %1250 = vmatpush1.xpose.msra.mxu0 0.0
        %1251 = vmatprep.subr.mxu0 0.0
        %1252 = vmatpush1.xpose.msra.mxu0 0.0
        %1253 = vmatprep.subr.mxu0 0.0
        %1254 = vmatpush1.xpose.msra.mxu0 0.0
        %1255 = vmatprep.subr.mxu0 0.0
        %1256 = vmatpush1.xpose.msra.mxu0 0.0
        %1257 = vmatprep.subr.mxu0 0.0
        %1258 = vmatpush1.xpose.msra.mxu0 0.0
        %1259 = vmatprep.subr.mxu0 0.0
        %1260 = vmatpush1.xpose.msra.mxu0 0.0
        %1261 = vmatprep.subr.mxu0 0.0
        %1262 = vmatpush1.xpose.msra.mxu0 %v1229
        %1263 = vmatprep.subr.mxu0 0.0
        %1264 = vmatpush2.xpose.msra.mxu0 0.0
        %1265 = vmatprep.subr.mxu0 0.0
        %1266 = vmatpush2.xpose.msra.mxu0 0.0
        %1267 = vmatprep.subr.mxu0 0.0
        %1268 = vmatpush2.xpose.msra.mxu0 0.0
        %1269 = vmatprep.subr.mxu0 0.0
        %1270 = vmatpush2.xpose.msra.mxu0 0.0
        %1271 = vmatprep.subr.mxu0 0.0
        %1272 = vmatpush2.xpose.msra.mxu0 0.0
        %1273 = vmatprep.subr.mxu0 0.0
        %1274 = vmatpush2.xpose.msra.mxu0 0.0
        %1275 = vmatprep.subr.mxu0 0.0
        %1276 = vmatpush2.xpose.msra.mxu0 0.0
        %1277 = vmatprep.subr.mxu0 0.0
        %1278 = vmatpush2.xpose.msra.mxu0 0.0
        %1279 = vmatprep.subr.mxu0 0.0
        %1280 = vmatpush2.xpose.msra.mxu0 0.0
        %1281 = vmatprep.subr.mxu0 0.0
        %1282 = vmatpush2.xpose.msra.mxu0 0.0
        %1283 = vmatprep.subr.mxu0 0.0
        %1284 = vmatpush2.xpose.msra.mxu0 0.0
        %1285 = vmatprep.subr.mxu0 0.0
        %1286 = vmatpush2.xpose.msra.mxu0 0.0
        %1287 = vmatprep.subr.mxu0 0.0
        %1288 = vmatpush2.xpose.msra.mxu0 0.0
        %1289 = vmatprep.subr.mxu0 0.0
        %1290 = vmatpush2.xpose.msra.mxu0 0.0
        %1291 = vmatprep.subr.mxu0 0.0
        %1292 = vmatpush2.xpose.msra.mxu0 0.0
        %1293 = vmatprep.subr.mxu0 0.0
        %1294 = vmatpush2.xpose.msra.mxu0 0.0
        %1295 = vmatprep.mubr.f32.mxu0 0.0
        %1296 = vmatmul.mubr.f32.gmra.mxu0 %v1205
        %v1297 = vpop.f32.mrf.mxu0
        %v1298 = vadd.f32 0.0, %v1297
        %v1299 = vpop.f32.mrf.mxu0
        %1300 = vmatprep.mubr.f32.mxu0 0.0
        %1301 = vmatmul.mubr.f32.gmra.mxu0 %v1208
        %v1302 = vpop.f32.mrf.mxu0
        %v1303 = vadd.f32 0.0, %v1302
        %v1304 = vpop.f32.mrf.mxu0
        %1305 = vmatprep.mubr.f32.mxu0 0.0
        %1306 = vmatmul.mubr.f32.gmra.mxu0 %v1211
        %v1307 = vpop.f32.mrf.mxu0
        %v1308 = vadd.f32 0.0, %v1307
        %v1309 = vpop.f32.mrf.mxu0
        %1310 = vmatprep.mubr.f32.mxu0 0.0
        %1311 = vmatmul.mubr.f32.gmra.mxu0 %v1214
        %v1312 = vpop.f32.mrf.mxu0
        %v1313 = vadd.f32 0.0, %v1312
        %v1314 = vpop.f32.mrf.mxu0
        %1315 = vmatprep.mubr.f32.mxu0 0.0
        %1316 = vmatmul.mubr.f32.gmra.mxu0 %v1217
        %v1317 = vpop.f32.mrf.mxu0
        %v1318 = vadd.f32 0.0, %v1317
        %v1319 = vpop.f32.mrf.mxu0
        %1320 = vmatprep.mubr.f32.mxu0 0.0
        %1321 = vmatmul.mubr.f32.gmra.mxu0 %v1220
        %v1322 = vpop.f32.mrf.mxu0
        %v1323 = vadd.f32 0.0, %v1322
        %v1324 = vpop.f32.mrf.mxu0
        %1325 = vmatprep.mubr.f32.mxu0 0.0
        %1326 = vmatmul.mubr.f32.gmra.mxu0 %v1223
        %v1327 = vpop.f32.mrf.mxu0
        %v1328 = vadd.f32 0.0, %v1327
        %v1329 = vpop.f32.mrf.mxu0
        %1330 = vmatprep.mubr.f32.mxu0 0.0
        %1331 = vmatmul.mubr.f32.gmra.mxu0 %v1226
        %v1332 = vpop.f32.mrf.mxu0
        %v1333 = vadd.f32 0.0, %v1332
        %v1334 = vpop.f32.mrf.mxu0
        %1335 = vdwg.mxu0
        %v1336 = vrcp.pop %v1182
        %v1337 = vmul.f32 %v1298, %v1336
        %v1338 = vrcp.pop %v1185
        %v1339 = vmul.f32 %v1303, %v1338
        %v1340 = vrcp.pop %v1188
        %v1341 = vmul.f32 %v1308, %v1340
        %v1342 = vrcp.pop %v1191
        %v1343 = vmul.f32 %v1313, %v1342
        %v1344 = vrcp.pop %v1194
        %v1345 = vmul.f32 %v1318, %v1344
        %v1346 = vrcp.pop %v1197
        %v1347 = vmul.f32 %v1323, %v1346
        %v1348 = vrcp.pop %v1200
        %v1349 = vmul.f32 %v1328, %v1348
        %v1350 = vrcp.pop %v1203
        %v1351 = vmul.f32 %v1333, %v1350
        %v1352 = vld [vmem:[%s5] sm:$0xff]
        %v1354 = vsel %vm1001, %v1337, 0
        %v1357 = vsel %vm1001, %v1339, 0
        %v1360 = vsel %vm1001, %v1341, 0
        %v1363 = vsel %vm1001, %v1343, 0
        %v1366 = vsel %vm1001, %v1345, 0
        %v1369 = vsel %vm1001, %v1347, 0
        %v1372 = vsel %vm1001, %v1349, 0
        %v1375 = vsel %vm1001, %v1351, 0
        %1377 = vmatprep.subr.mxu0 0.0
        %1378 = vmatpush1.msra.mxu0 0.0
        %1379 = vmatprep.subr.mxu0 0.0
        %1380 = vmatpush1.msra.mxu0 0.0
        %1381 = vmatprep.subr.mxu0 0.0
        %1382 = vmatpush1.msra.mxu0 0.0
        %1383 = vmatprep.subr.mxu0 0.0
        %1384 = vmatpush1.msra.mxu0 0.0
        %1385 = vmatprep.subr.mxu0 0.0
        %1386 = vmatpush1.msra.mxu0 0.0
        %1387 = vmatprep.subr.mxu0 0.0
        %1388 = vmatpush1.msra.mxu0 0.0
        %1389 = vmatprep.subr.mxu0 0.0
        %1390 = vmatpush1.msra.mxu0 0.0
        %1391 = vmatprep.subr.mxu0 0.0
        %1392 = vmatpush1.msra.mxu0 0.0
        %1393 = vmatprep.subr.mxu0 0.0
        %1394 = vmatpush1.msra.mxu0 0.0
        %1395 = vmatprep.subr.mxu0 0.0
        %1396 = vmatpush1.msra.mxu0 0.0
        %1397 = vmatprep.subr.mxu0 0.0
        %1398 = vmatpush1.msra.mxu0 0.0
        %1399 = vmatprep.subr.mxu0 0.0
        %1400 = vmatpush1.msra.mxu0 0.0
        %1401 = vmatprep.subr.mxu0 0.0
        %1402 = vmatpush1.msra.mxu0 0.0
        %1403 = vmatprep.subr.mxu0 0.0
        %1404 = vmatpush1.msra.mxu0 0.0
        %1405 = vmatprep.subr.mxu0 0.0
        %1406 = vmatpush1.msra.mxu0 0.0
        %1407 = vmatprep.subr.mxu0 0.0
        %1408 = vmatpush1.msra.mxu0 %v1352
        %1409 = vmatprep.subr.mxu0 0.0
        %1410 = vmatpush2.msra.mxu0 0.0
        %1411 = vmatprep.subr.mxu0 0.0
        %1412 = vmatpush2.msra.mxu0 0.0
        %1413 = vmatprep.subr.mxu0 0.0
        %1414 = vmatpush2.msra.mxu0 0.0
        %1415 = vmatprep.subr.mxu0 0.0
        %1416 = vmatpush2.msra.mxu0 0.0
        %1417 = vmatprep.subr.mxu0 0.0
        %1418 = vmatpush2.msra.mxu0 0.0
        %1419 = vmatprep.subr.mxu0 0.0
        %1420 = vmatpush2.msra.mxu0 0.0
        %1421 = vmatprep.subr.mxu0 0.0
        %1422 = vmatpush2.msra.mxu0 0.0
        %1423 = vmatprep.subr.mxu0 0.0
        %1424 = vmatpush2.msra.mxu0 0.0
        %1425 = vmatprep.subr.mxu0 0.0
        %1426 = vmatpush2.msra.mxu0 0.0
        %1427 = vmatprep.subr.mxu0 0.0
        %1428 = vmatpush2.msra.mxu0 0.0
        %1429 = vmatprep.subr.mxu0 0.0
        %1430 = vmatpush2.msra.mxu0 0.0
        %1431 = vmatprep.subr.mxu0 0.0
        %1432 = vmatpush2.msra.mxu0 0.0
        %1433 = vmatprep.subr.mxu0 0.0
        %1434 = vmatpush2.msra.mxu0 0.0
        %1435 = vmatprep.subr.mxu0 0.0
        %1436 = vmatpush2.msra.mxu0 0.0
        %1437 = vmatprep.subr.mxu0 0.0
        %1438 = vmatpush2.msra.mxu0 0.0
        %1439 = vmatprep.subr.mxu0 0.0
        %1440 = vmatpush2.msra.mxu0 0.0
        %1441 = vmatprep.mubr.f32.mxu0 0.0
        %1442 = vmatmul.mubr.f32.gmra.mxu0 %v1354
        %v1443 = vpop.f32.mrf.mxu0
        %v1444 = vadd.f32 0.0, %v1443
        %v1445 = vpop.f32.mrf.mxu0
        %1446 = vmatprep.mubr.f32.mxu0 0.0
        %1447 = vmatmul.mubr.f32.gmra.mxu0 %v1357
        %v1448 = vpop.f32.mrf.mxu0
        %v1449 = vadd.f32 0.0, %v1448
        %v1450 = vpop.f32.mrf.mxu0
        %1451 = vmatprep.mubr.f32.mxu0 0.0
        %1452 = vmatmul.mubr.f32.gmra.mxu0 %v1360
        %v1453 = vpop.f32.mrf.mxu0
        %v1454 = vadd.f32 0.0, %v1453
        %v1455 = vpop.f32.mrf.mxu0
        %1456 = vmatprep.mubr.f32.mxu0 0.0
        %1457 = vmatmul.mubr.f32.gmra.mxu0 %v1363
        %v1458 = vpop.f32.mrf.mxu0
        %v1459 = vadd.f32 0.0, %v1458
        %v1460 = vpop.f32.mrf.mxu0
        %1461 = vmatprep.mubr.f32.mxu0 0.0
        %1462 = vmatmul.mubr.f32.gmra.mxu0 %v1366
        %v1463 = vpop.f32.mrf.mxu0
        %v1464 = vadd.f32 0.0, %v1463
        %v1465 = vpop.f32.mrf.mxu0
        %1466 = vmatprep.mubr.f32.mxu0 0.0
        %1467 = vmatmul.mubr.f32.gmra.mxu0 %v1369
        %v1468 = vpop.f32.mrf.mxu0
        %v1469 = vadd.f32 0.0, %v1468
        %v1470 = vpop.f32.mrf.mxu0
        %1471 = vmatprep.mubr.f32.mxu0 0.0
        %1472 = vmatmul.mubr.f32.gmra.mxu0 %v1372
        %v1473 = vpop.f32.mrf.mxu0
        %v1474 = vadd.f32 0.0, %v1473
        %v1475 = vpop.f32.mrf.mxu0
        %1476 = vmatprep.mubr.f32.mxu0 0.0
        %1477 = vmatmul.mubr.f32.gmra.mxu0 %v1375
        %v1478 = vpop.f32.mrf.mxu0
        %v1479 = vadd.f32 0.0, %v1478
        %v1480 = vpop.f32.mrf.mxu0
        %1481 = vdwg.mxu0
        %v1482 = vadd.f32 %v953, %v1444
        %v1483 = vadd.f32 %v954, %v1449
        %v1484 = vadd.f32 %v955, %v1454
        %v1485 = vadd.f32 %v956, %v1459
        %v1486 = vadd.f32 %v957, %v1464
        %v1487 = vadd.f32 %v958, %v1469
        %v1488 = vadd.f32 %v959, %v1474
        %v1489 = vadd.f32 %v960, %v1479
        %s1490 = scalar_lea.vmem %s7, 64
        %v1491 = vld [vmem:[%s1490] sm:$0xff]
        %v1492 = vld [vmem:[%s1490 + $0x8] sm:$0xff]
        %v1493 = vld [vmem:[%s1490 + $0x10] sm:$0xff]
        %v1494 = vld [vmem:[%s1490 + $0x18] sm:$0xff]
        %v1495 = vld [vmem:[%s1490 + $0x20] sm:$0xff]
        %v1496 = vld [vmem:[%s1490 + $0x28] sm:$0xff]
        %v1497 = vld [vmem:[%s1490 + $0x30] sm:$0xff]
        %v1498 = vld [vmem:[%s1490 + $0x38] sm:$0xff]
        %1499 = vxpose.xlu0.b32.start [1/16] %v759, 128
        %1500 = vxpose.xlu0.b32.cont [2/16] 0.0, 128
        %1501 = vxpose.xlu0.b32.cont [3/16] 0.0, 128
        %1502 = vxpose.xlu0.b32.cont [4/16] 0.0, 128
        %1503 = vxpose.xlu0.b32.cont [5/16] 0.0, 128
        %1504 = vxpose.xlu0.b32.cont [6/16] 0.0, 128
        %1505 = vxpose.xlu0.b32.cont [7/16] 0.0, 128
        %1506 = vxpose.xlu0.b32.cont [8/16] 0.0, 128
        %1507 = vxpose.xlu0.b32.cont [9/16] 0.0, 128
        %1508 = vxpose.xlu0.b32.cont [10/16] 0.0, 128
        %1509 = vxpose.xlu0.b32.cont [11/16] 0.0, 128
        %1510 = vxpose.xlu0.b32.cont [12/16] 0.0, 128
        %1511 = vxpose.xlu0.b32.cont [13/16] 0.0, 128
        %1512 = vxpose.xlu0.b32.cont [14/16] 0.0, 128
        %1513 = vxpose.xlu0.b32.cont [15/16] 0.0, 128
        %1514 = vxpose.xlu0.b32.end [16/16] 0.0, 128
        %v1515 = vpop.trf.xlu0
        %v1516 = vpop.trf.xlu0
        %v1517 = vpop.trf.xlu0
        %v1518 = vpop.trf.xlu0
        %v1519 = vpop.trf.xlu0
        %v1520 = vpop.trf.xlu0
        %v1521 = vpop.trf.xlu0
        %v1522 = vpop.trf.xlu0
        %v1523 = vpop.trf.xlu0
        %v1524 = vpop.trf.xlu0
        %v1525 = vpop.trf.xlu0
        %v1526 = vpop.trf.xlu0
        %v1527 = vpop.trf.xlu0
        %v1528 = vpop.trf.xlu0
        %v1529 = vpop.trf.xlu0
        %v1530 = vpop.trf.xlu0
        %v1532 = vsel %vm1001, %v1515, 0
        %v1535 = vsel %vm1001, %v1516, 0
        %v1538 = vsel %vm1001, %v1517, 0
        %v1541 = vsel %vm1001, %v1518, 0
        %v1544 = vsel %vm1001, %v1519, 0
        %v1547 = vsel %vm1001, %v1520, 0
        %v1550 = vsel %vm1001, %v1521, 0
        %v1553 = vsel %vm1001, %v1522, 0
        %1555 = vmatprep.subr.mxu0 0.0
        %1556 = vmatpush1.msra.mxu0 0.0
        %1557 = vmatprep.subr.mxu0 0.0
        %1558 = vmatpush1.msra.mxu0 0.0
        %1559 = vmatprep.subr.mxu0 0.0
        %1560 = vmatpush1.msra.mxu0 0.0
        %1561 = vmatprep.subr.mxu0 0.0
        %1562 = vmatpush1.msra.mxu0 0.0
        %1563 = vmatprep.subr.mxu0 0.0
        %1564 = vmatpush1.msra.mxu0 0.0
        %1565 = vmatprep.subr.mxu0 0.0
        %1566 = vmatpush1.msra.mxu0 0.0
        %1567 = vmatprep.subr.mxu0 0.0
        %1568 = vmatpush1.msra.mxu0 0.0
        %1569 = vmatprep.subr.mxu0 0.0
        %1570 = vmatpush1.msra.mxu0 0.0
        %1571 = vmatprep.subr.mxu0 0.0
        %1572 = vmatpush1.msra.mxu0 0.0
        %1573 = vmatprep.subr.mxu0 0.0
        %1574 = vmatpush1.msra.mxu0 0.0
        %1575 = vmatprep.subr.mxu0 0.0
        %1576 = vmatpush1.msra.mxu0 0.0
        %1577 = vmatprep.subr.mxu0 0.0
        %1578 = vmatpush1.msra.mxu0 0.0
        %1579 = vmatprep.subr.mxu0 0.0
        %1580 = vmatpush1.msra.mxu0 0.0
        %1581 = vmatprep.subr.mxu0 0.0
        %1582 = vmatpush1.msra.mxu0 0.0
        %1583 = vmatprep.subr.mxu0 0.0
        %1584 = vmatpush1.msra.mxu0 0.0
        %1585 = vmatprep.subr.mxu0 0.0
        %1586 = vmatpush1.msra.mxu0 %v823
        %1587 = vmatprep.subr.mxu0 0.0
        %1588 = vmatpush2.msra.mxu0 0.0
        %1589 = vmatprep.subr.mxu0 0.0
        %1590 = vmatpush2.msra.mxu0 0.0
        %1591 = vmatprep.subr.mxu0 0.0
        %1592 = vmatpush2.msra.mxu0 0.0
        %1593 = vmatprep.subr.mxu0 0.0
        %1594 = vmatpush2.msra.mxu0 0.0
        %1595 = vmatprep.subr.mxu0 0.0
        %1596 = vmatpush2.msra.mxu0 0.0
        %1597 = vmatprep.subr.mxu0 0.0
        %1598 = vmatpush2.msra.mxu0 0.0
        %1599 = vmatprep.subr.mxu0 0.0
        %1600 = vmatpush2.msra.mxu0 0.0
        %1601 = vmatprep.subr.mxu0 0.0
        %1602 = vmatpush2.msra.mxu0 0.0
        %1603 = vmatprep.subr.mxu0 0.0
        %1604 = vmatpush2.msra.mxu0 0.0
        %1605 = vmatprep.subr.mxu0 0.0
        %1606 = vmatpush2.msra.mxu0 0.0
        %1607 = vmatprep.subr.mxu0 0.0
        %1608 = vmatpush2.msra.mxu0 0.0
        %1609 = vmatprep.subr.mxu0 0.0
        %1610 = vmatpush2.msra.mxu0 0.0
        %1611 = vmatprep.subr.mxu0 0.0
        %1612 = vmatpush2.msra.mxu0 0.0
        %1613 = vmatprep.subr.mxu0 0.0
        %1614 = vmatpush2.msra.mxu0 0.0
        %1615 = vmatprep.subr.mxu0 0.0
        %1616 = vmatpush2.msra.mxu0 0.0
        %1617 = vmatprep.subr.mxu0 0.0
        %1618 = vmatpush2.msra.mxu0 0.0
        %1619 = vmatprep.mubr.f32.mxu0 0.0
        %1620 = vmatmul.mubr.f32.gmra.mxu0 %v1532
        %v1621 = vpop.f32.mrf.mxu0
        %v1622 = vadd.f32 %v1491, %v1621
        %v1623 = vpop.f32.mrf.mxu0
        %1624 = vmatprep.mubr.f32.mxu0 0.0
        %1625 = vmatmul.mubr.f32.gmra.mxu0 %v1535
        %v1626 = vpop.f32.mrf.mxu0
        %v1627 = vadd.f32 %v1492, %v1626
        %v1628 = vpop.f32.mrf.mxu0
        %1629 = vmatprep.mubr.f32.mxu0 0.0
        %1630 = vmatmul.mubr.f32.gmra.mxu0 %v1538
        %v1631 = vpop.f32.mrf.mxu0
        %v1632 = vadd.f32 %v1493, %v1631
        %v1633 = vpop.f32.mrf.mxu0
        %1634 = vmatprep.mubr.f32.mxu0 0.0
        %1635 = vmatmul.mubr.f32.gmra.mxu0 %v1541
        %v1636 = vpop.f32.mrf.mxu0
        %v1637 = vadd.f32 %v1494, %v1636
        %v1638 = vpop.f32.mrf.mxu0
        %1639 = vmatprep.mubr.f32.mxu0 0.0
        %1640 = vmatmul.mubr.f32.gmra.mxu0 %v1544
        %v1641 = vpop.f32.mrf.mxu0
        %v1642 = vadd.f32 %v1495, %v1641
        %v1643 = vpop.f32.mrf.mxu0
        %1644 = vmatprep.mubr.f32.mxu0 0.0
        %1645 = vmatmul.mubr.f32.gmra.mxu0 %v1547
        %v1646 = vpop.f32.mrf.mxu0
        %v1647 = vadd.f32 %v1496, %v1646
        %v1648 = vpop.f32.mrf.mxu0
        %1649 = vmatprep.mubr.f32.mxu0 0.0
        %1650 = vmatmul.mubr.f32.gmra.mxu0 %v1550
        %v1651 = vpop.f32.mrf.mxu0
        %v1652 = vadd.f32 %v1497, %v1651
        %v1653 = vpop.f32.mrf.mxu0
        %1654 = vmatprep.mubr.f32.mxu0 0.0
        %1655 = vmatmul.mubr.f32.gmra.mxu0 %v1553
        %v1656 = vpop.f32.mrf.mxu0
        %v1657 = vadd.f32 %v1498, %v1656
        %v1658 = vpop.f32.mrf.mxu0
        %1659 = vdwg.mxu0
        %v1660 = vsel %vm1131, %v1622, -inf
        %1661 = vmax.xlane.f32.xlu0 %v1660
        %v1662 = vpop.xlane.xlu0 %1661
        %v1663 = vsel %vm1131, %v1627, -inf
        %1664 = vmax.xlane.f32.xlu0 %v1663
        %v1665 = vpop.xlane.xlu0 %1664
        %v1666 = vsel %vm1131, %v1632, -inf
        %1667 = vmax.xlane.f32.xlu0 %v1666
        %v1668 = vpop.xlane.xlu0 %1667
        %v1669 = vsel %vm1131, %v1637, -inf
        %1670 = vmax.xlane.f32.xlu0 %v1669
        %v1671 = vpop.xlane.xlu0 %1670
        %v1672 = vsel %vm1131, %v1642, -inf
        %1673 = vmax.xlane.f32.xlu0 %v1672
        %v1674 = vpop.xlane.xlu0 %1673
        %v1675 = vsel %vm1131, %v1647, -inf
        %1676 = vmax.xlane.f32.xlu0 %v1675
        %v1677 = vpop.xlane.xlu0 %1676
        %v1678 = vsel %vm1131, %v1652, -inf
        %1679 = vmax.xlane.f32.xlu0 %v1678
        %v1680 = vpop.xlane.xlu0 %1679
        %v1681 = vsel %vm1131, %v1657, -inf
        %1682 = vmax.xlane.f32.xlu0 %v1681
        %v1683 = vpop.xlane.xlu0 %1682
        %v1684 = vsub.f32 %v1622, %v1662
        %v1685 = vsub.f32 %v1627, %v1665
        %v1686 = vsub.f32 %v1632, %v1668
        %v1687 = vsub.f32 %v1637, %v1671
        %v1688 = vsub.f32 %v1642, %v1674
        %v1689 = vsub.f32 %v1647, %v1677
        %v1690 = vsub.f32 %v1652, %v1680
        %v1691 = vsub.f32 %v1657, %v1683
        %v1692 = vmul.f32 %v1684, 1.442695
        %v1693 = vpow.pop %v1692
        %v1694 = vmul.f32 %v1685, 1.442695
        %v1695 = vpow.pop %v1694
        %v1696 = vmul.f32 %v1686, 1.442695
        %v1697 = vpow.pop %v1696
        %v1698 = vmul.f32 %v1687, 1.442695
        %v1699 = vpow.pop %v1698
        %v1700 = vmul.f32 %v1688, 1.442695
        %v1701 = vpow.pop %v1700
        %v1702 = vmul.f32 %v1689, 1.442695
        %v1703 = vpow.pop %v1702
        %v1704 = vmul.f32 %v1690, 1.442695
        %v1705 = vpow.pop %v1704
        %v1706 = vmul.f32 %v1691, 1.442695
        %v1707 = vpow.pop %v1706
        %v1708 = vsel %vm1131, %v1693, 0.0
        %1709 = vadd.xlane.f32.xlu0 %v1708
        %v1710 = vpop.xlane.xlu0 %1709
        %v1711 = vsel %vm1131, %v1695, 0.0
        %1712 = vadd.xlane.f32.xlu0 %v1711
        %v1713 = vpop.xlane.xlu0 %1712
        %v1714 = vsel %vm1131, %v1697, 0.0
        %1715 = vadd.xlane.f32.xlu0 %v1714
        %v1716 = vpop.xlane.xlu0 %1715
        %v1717 = vsel %vm1131, %v1699, 0.0
        %1718 = vadd.xlane.f32.xlu0 %v1717
        %v1719 = vpop.xlane.xlu0 %1718
        %v1720 = vsel %vm1131, %v1701, 0.0
        %1721 = vadd.xlane.f32.xlu0 %v1720
        %v1722 = vpop.xlane.xlu0 %1721
        %v1723 = vsel %vm1131, %v1703, 0.0
        %1724 = vadd.xlane.f32.xlu0 %v1723
        %v1725 = vpop.xlane.xlu0 %1724
        %v1726 = vsel %vm1131, %v1705, 0.0
        %1727 = vadd.xlane.f32.xlu0 %v1726
        %v1728 = vpop.xlane.xlu0 %1727
        %v1729 = vsel %vm1131, %v1707, 0.0
        %1730 = vadd.xlane.f32.xlu0 %v1729
        %v1731 = vpop.xlane.xlu0 %1730
        %v1733 = vsel %vm1131, %v1693, 0
        %v1736 = vsel %vm1131, %v1695, 0
        %v1739 = vsel %vm1131, %v1697, 0
        %v1742 = vsel %vm1131, %v1699, 0
        %v1745 = vsel %vm1131, %v1701, 0
        %v1748 = vsel %vm1131, %v1703, 0
        %v1751 = vsel %vm1131, %v1705, 0
        %v1754 = vsel %vm1131, %v1707, 0
        %v1757 = vsel %vm1131, %v887, 0
        %1759 = vmatprep.subr.mxu0 0.0
        %1760 = vmatpush1.xpose.msra.mxu0 0.0
        %1761 = vmatprep.subr.mxu0 0.0
        %1762 = vmatpush1.xpose.msra.mxu0 0.0
        %1763 = vmatprep.subr.mxu0 0.0
        %1764 = vmatpush1.xpose.msra.mxu0 0.0
        %1765 = vmatprep.subr.mxu0 0.0
        %1766 = vmatpush1.xpose.msra.mxu0 0.0
        %1767 = vmatprep.subr.mxu0 0.0
        %1768 = vmatpush1.xpose.msra.mxu0 0.0
        %1769 = vmatprep.subr.mxu0 0.0
        %1770 = vmatpush1.xpose.msra.mxu0 0.0
        %1771 = vmatprep.subr.mxu0 0.0
        %1772 = vmatpush1.xpose.msra.mxu0 0.0
        %1773 = vmatprep.subr.mxu0 0.0
        %1774 = vmatpush1.xpose.msra.mxu0 0.0
        %1775 = vmatprep.subr.mxu0 0.0
        %1776 = vmatpush1.xpose.msra.mxu0 0.0
        %1777 = vmatprep.subr.mxu0 0.0
        %1778 = vmatpush1.xpose.msra.mxu0 0.0
        %1779 = vmatprep.subr.mxu0 0.0
        %1780 = vmatpush1.xpose.msra.mxu0 0.0
        %1781 = vmatprep.subr.mxu0 0.0
        %1782 = vmatpush1.xpose.msra.mxu0 0.0
        %1783 = vmatprep.subr.mxu0 0.0
        %1784 = vmatpush1.xpose.msra.mxu0 0.0
        %1785 = vmatprep.subr.mxu0 0.0
        %1786 = vmatpush1.xpose.msra.mxu0 0.0
        %1787 = vmatprep.subr.mxu0 0.0
        %1788 = vmatpush1.xpose.msra.mxu0 0.0
        %1789 = vmatprep.subr.mxu0 0.0
        %1790 = vmatpush1.xpose.msra.mxu0 %v1757
        %1791 = vmatprep.subr.mxu0 0.0
        %1792 = vmatpush2.xpose.msra.mxu0 0.0
        %1793 = vmatprep.subr.mxu0 0.0
        %1794 = vmatpush2.xpose.msra.mxu0 0.0
        %1795 = vmatprep.subr.mxu0 0.0
        %1796 = vmatpush2.xpose.msra.mxu0 0.0
        %1797 = vmatprep.subr.mxu0 0.0
        %1798 = vmatpush2.xpose.msra.mxu0 0.0
        %1799 = vmatprep.subr.mxu0 0.0
        %1800 = vmatpush2.xpose.msra.mxu0 0.0
        %1801 = vmatprep.subr.mxu0 0.0
        %1802 = vmatpush2.xpose.msra.mxu0 0.0
        %1803 = vmatprep.subr.mxu0 0.0
        %1804 = vmatpush2.xpose.msra.mxu0 0.0
        %1805 = vmatprep.subr.mxu0 0.0
        %1806 = vmatpush2.xpose.msra.mxu0 0.0
        %1807 = vmatprep.subr.mxu0 0.0
        %1808 = vmatpush2.xpose.msra.mxu0 0.0
        %1809 = vmatprep.subr.mxu0 0.0
        %1810 = vmatpush2.xpose.msra.mxu0 0.0
        %1811 = vmatprep.subr.mxu0 0.0
        %1812 = vmatpush2.xpose.msra.mxu0 0.0
        %1813 = vmatprep.subr.mxu0 0.0
        %1814 = vmatpush2.xpose.msra.mxu0 0.0
        %1815 = vmatprep.subr.mxu0 0.0
        %1816 = vmatpush2.xpose.msra.mxu0 0.0
        %1817 = vmatprep.subr.mxu0 0.0
        %1818 = vmatpush2.xpose.msra.mxu0 0.0
        %1819 = vmatprep.subr.mxu0 0.0
        %1820 = vmatpush2.xpose.msra.mxu0 0.0
        %1821 = vmatprep.subr.mxu0 0.0
        %1822 = vmatpush2.xpose.msra.mxu0 0.0
        %1823 = vmatprep.mubr.f32.mxu0 0.0
        %1824 = vmatmul.mubr.f32.gmra.mxu0 %v1733
        %v1825 = vpop.f32.mrf.mxu0
        %v1826 = vadd.f32 0.0, %v1825
        %v1827 = vpop.f32.mrf.mxu0
        %1828 = vmatprep.mubr.f32.mxu0 0.0
        %1829 = vmatmul.mubr.f32.gmra.mxu0 %v1736
        %v1830 = vpop.f32.mrf.mxu0
        %v1831 = vadd.f32 0.0, %v1830
        %v1832 = vpop.f32.mrf.mxu0
        %1833 = vmatprep.mubr.f32.mxu0 0.0
        %1834 = vmatmul.mubr.f32.gmra.mxu0 %v1739
        %v1835 = vpop.f32.mrf.mxu0
        %v1836 = vadd.f32 0.0, %v1835
        %v1837 = vpop.f32.mrf.mxu0
        %1838 = vmatprep.mubr.f32.mxu0 0.0
        %1839 = vmatmul.mubr.f32.gmra.mxu0 %v1742
        %v1840 = vpop.f32.mrf.mxu0
        %v1841 = vadd.f32 0.0, %v1840
        %v1842 = vpop.f32.mrf.mxu0
        %1843 = vmatprep.mubr.f32.mxu0 0.0
        %1844 = vmatmul.mubr.f32.gmra.mxu0 %v1745
        %v1845 = vpop.f32.mrf.mxu0
        %v1846 = vadd.f32 0.0, %v1845
        %v1847 = vpop.f32.mrf.mxu0
        %1848 = vmatprep.mubr.f32.mxu0 0.0
        %1849 = vmatmul.mubr.f32.gmra.mxu0 %v1748
        %v1850 = vpop.f32.mrf.mxu0
        %v1851 = vadd.f32 0.0, %v1850
        %v1852 = vpop.f32.mrf.mxu0
        %1853 = vmatprep.mubr.f32.mxu0 0.0
        %1854 = vmatmul.mubr.f32.gmra.mxu0 %v1751
        %v1855 = vpop.f32.mrf.mxu0
        %v1856 = vadd.f32 0.0, %v1855
        %v1857 = vpop.f32.mrf.mxu0
        %1858 = vmatprep.mubr.f32.mxu0 0.0
        %1859 = vmatmul.mubr.f32.gmra.mxu0 %v1754
        %v1860 = vpop.f32.mrf.mxu0
        %v1861 = vadd.f32 0.0, %v1860
        %v1862 = vpop.f32.mrf.mxu0
        %1863 = vdwg.mxu0
        %v1864 = vrcp.pop %v1710
        %v1865 = vmul.f32 %v1826, %v1864
        %v1866 = vrcp.pop %v1713
        %v1867 = vmul.f32 %v1831, %v1866
        %v1868 = vrcp.pop %v1716
        %v1869 = vmul.f32 %v1836, %v1868
        %v1870 = vrcp.pop %v1719
        %v1871 = vmul.f32 %v1841, %v1870
        %v1872 = vrcp.pop %v1722
        %v1873 = vmul.f32 %v1846, %v1872
        %v1874 = vrcp.pop %v1725
        %v1875 = vmul.f32 %v1851, %v1874
        %v1876 = vrcp.pop %v1728
        %v1877 = vmul.f32 %v1856, %v1876
        %v1878 = vrcp.pop %v1731
        %v1879 = vmul.f32 %v1861, %v1878
        %v1880 = vld [vmem:[%s5 + $0x8] sm:$0xff]
        %v1882 = vsel %vm1001, %v1865, 0
        %v1885 = vsel %vm1001, %v1867, 0
        %v1888 = vsel %vm1001, %v1869, 0
        %v1891 = vsel %vm1001, %v1871, 0
        %v1894 = vsel %vm1001, %v1873, 0
        %v1897 = vsel %vm1001, %v1875, 0
        %v1900 = vsel %vm1001, %v1877, 0
        %v1903 = vsel %vm1001, %v1879, 0
        %1905 = vmatprep.subr.mxu0 0.0
        %1906 = vmatpush1.msra.mxu0 0.0
        %1907 = vmatprep.subr.mxu0 0.0
        %1908 = vmatpush1.msra.mxu0 0.0
        %1909 = vmatprep.subr.mxu0 0.0
        %1910 = vmatpush1.msra.mxu0 0.0
        %1911 = vmatprep.subr.mxu0 0.0
        %1912 = vmatpush1.msra.mxu0 0.0
        %1913 = vmatprep.subr.mxu0 0.0
        %1914 = vmatpush1.msra.mxu0 0.0
        %1915 = vmatprep.subr.mxu0 0.0
        %1916 = vmatpush1.msra.mxu0 0.0
        %1917 = vmatprep.subr.mxu0 0.0
        %1918 = vmatpush1.msra.mxu0 0.0
        %1919 = vmatprep.subr.mxu0 0.0
        %1920 = vmatpush1.msra.mxu0 0.0
        %1921 = vmatprep.subr.mxu0 0.0
        %1922 = vmatpush1.msra.mxu0 0.0
        %1923 = vmatprep.subr.mxu0 0.0
        %1924 = vmatpush1.msra.mxu0 0.0
        %1925 = vmatprep.subr.mxu0 0.0
        %1926 = vmatpush1.msra.mxu0 0.0
        %1927 = vmatprep.subr.mxu0 0.0
        %1928 = vmatpush1.msra.mxu0 0.0
        %1929 = vmatprep.subr.mxu0 0.0
        %1930 = vmatpush1.msra.mxu0 0.0
        %1931 = vmatprep.subr.mxu0 0.0
        %1932 = vmatpush1.msra.mxu0 0.0
        %1933 = vmatprep.subr.mxu0 0.0
        %1934 = vmatpush1.msra.mxu0 0.0
        %1935 = vmatprep.subr.mxu0 0.0
        %1936 = vmatpush1.msra.mxu0 %v1880
        %1937 = vmatprep.subr.mxu0 0.0
        %1938 = vmatpush2.msra.mxu0 0.0
        %1939 = vmatprep.subr.mxu0 0.0
        %1940 = vmatpush2.msra.mxu0 0.0
        %1941 = vmatprep.subr.mxu0 0.0
        %1942 = vmatpush2.msra.mxu0 0.0
        %1943 = vmatprep.subr.mxu0 0.0
        %1944 = vmatpush2.msra.mxu0 0.0
        %1945 = vmatprep.subr.mxu0 0.0
        %1946 = vmatpush2.msra.mxu0 0.0
        %1947 = vmatprep.subr.mxu0 0.0
        %1948 = vmatpush2.msra.mxu0 0.0
        %1949 = vmatprep.subr.mxu0 0.0
        %1950 = vmatpush2.msra.mxu0 0.0
        %1951 = vmatprep.subr.mxu0 0.0
        %1952 = vmatpush2.msra.mxu0 0.0
        %1953 = vmatprep.subr.mxu0 0.0
        %1954 = vmatpush2.msra.mxu0 0.0
        %1955 = vmatprep.subr.mxu0 0.0
        %1956 = vmatpush2.msra.mxu0 0.0
        %1957 = vmatprep.subr.mxu0 0.0
        %1958 = vmatpush2.msra.mxu0 0.0
        %1959 = vmatprep.subr.mxu0 0.0
        %1960 = vmatpush2.msra.mxu0 0.0
        %1961 = vmatprep.subr.mxu0 0.0
        %1962 = vmatpush2.msra.mxu0 0.0
        %1963 = vmatprep.subr.mxu0 0.0
        %1964 = vmatpush2.msra.mxu0 0.0
        %1965 = vmatprep.subr.mxu0 0.0
        %1966 = vmatpush2.msra.mxu0 0.0
        %1967 = vmatprep.subr.mxu0 0.0
        %1968 = vmatpush2.msra.mxu0 0.0
        %1969 = vmatprep.mubr.f32.mxu0 0.0
        %1970 = vmatmul.mubr.f32.gmra.mxu0 %v1882
        %v1971 = vpop.f32.mrf.mxu0
        %v1972 = vadd.f32 0.0, %v1971
        %v1973 = vpop.f32.mrf.mxu0
        %1974 = vmatprep.mubr.f32.mxu0 0.0
        %1975 = vmatmul.mubr.f32.gmra.mxu0 %v1885
        %v1976 = vpop.f32.mrf.mxu0
        %v1977 = vadd.f32 0.0, %v1976
        %v1978 = vpop.f32.mrf.mxu0
        %1979 = vmatprep.mubr.f32.mxu0 0.0
        %1980 = vmatmul.mubr.f32.gmra.mxu0 %v1888
        %v1981 = vpop.f32.mrf.mxu0
        %v1982 = vadd.f32 0.0, %v1981
        %v1983 = vpop.f32.mrf.mxu0
        %1984 = vmatprep.mubr.f32.mxu0 0.0
        %1985 = vmatmul.mubr.f32.gmra.mxu0 %v1891
        %v1986 = vpop.f32.mrf.mxu0
        %v1987 = vadd.f32 0.0, %v1986
        %v1988 = vpop.f32.mrf.mxu0
        %1989 = vmatprep.mubr.f32.mxu0 0.0
        %1990 = vmatmul.mubr.f32.gmra.mxu0 %v1894
        %v1991 = vpop.f32.mrf.mxu0
        %v1992 = vadd.f32 0.0, %v1991
        %v1993 = vpop.f32.mrf.mxu0
        %1994 = vmatprep.mubr.f32.mxu0 0.0
        %1995 = vmatmul.mubr.f32.gmra.mxu0 %v1897
        %v1996 = vpop.f32.mrf.mxu0
        %v1997 = vadd.f32 0.0, %v1996
        %v1998 = vpop.f32.mrf.mxu0
        %1999 = vmatprep.mubr.f32.mxu0 0.0
        %2000 = vmatmul.mubr.f32.gmra.mxu0 %v1900
        %v2001 = vpop.f32.mrf.mxu0
        %v2002 = vadd.f32 0.0, %v2001
        %v2003 = vpop.f32.mrf.mxu0
        %2004 = vmatprep.mubr.f32.mxu0 0.0
        %2005 = vmatmul.mubr.f32.gmra.mxu0 %v1903
        %v2006 = vpop.f32.mrf.mxu0
        %v2007 = vadd.f32 0.0, %v2006
        %v2008 = vpop.f32.mrf.mxu0
        %2009 = vdwg.mxu0
        %v2010 = vadd.f32 %v1482, %v1972
        %v2011 = vadd.f32 %v1483, %v1977
        %v2012 = vadd.f32 %v1484, %v1982
        %v2013 = vadd.f32 %v1485, %v1987
        %v2014 = vadd.f32 %v1486, %v1992
        %v2015 = vadd.f32 %v1487, %v1997
        %v2016 = vadd.f32 %v1488, %v2002
        %v2017 = vadd.f32 %v1489, %v2007
        %s2018 = scalar_lea.vmem %s7, 128
        %v2019 = vld [vmem:[%s2018] sm:$0xff]
        %v2020 = vld [vmem:[%s2018 + $0x8] sm:$0xff]
        %v2021 = vld [vmem:[%s2018 + $0x10] sm:$0xff]
        %v2022 = vld [vmem:[%s2018 + $0x18] sm:$0xff]
        %v2023 = vld [vmem:[%s2018 + $0x20] sm:$0xff]
        %v2024 = vld [vmem:[%s2018 + $0x28] sm:$0xff]
        %v2025 = vld [vmem:[%s2018 + $0x30] sm:$0xff]
        %v2026 = vld [vmem:[%s2018 + $0x38] sm:$0xff]
        %2027 = vxpose.xlu0.b32.start [1/16] %v764, 128
        %2028 = vxpose.xlu0.b32.cont [2/16] 0.0, 128
        %2029 = vxpose.xlu0.b32.cont [3/16] 0.0, 128
        %2030 = vxpose.xlu0.b32.cont [4/16] 0.0, 128
        %2031 = vxpose.xlu0.b32.cont [5/16] 0.0, 128
        %2032 = vxpose.xlu0.b32.cont [6/16] 0.0, 128
        %2033 = vxpose.xlu0.b32.cont [7/16] 0.0, 128
        %2034 = vxpose.xlu0.b32.cont [8/16] 0.0, 128
        %2035 = vxpose.xlu0.b32.cont [9/16] 0.0, 128
        %2036 = vxpose.xlu0.b32.cont [10/16] 0.0, 128
        %2037 = vxpose.xlu0.b32.cont [11/16] 0.0, 128
        %2038 = vxpose.xlu0.b32.cont [12/16] 0.0, 128
        %2039 = vxpose.xlu0.b32.cont [13/16] 0.0, 128
        %2040 = vxpose.xlu0.b32.cont [14/16] 0.0, 128
        %2041 = vxpose.xlu0.b32.cont [15/16] 0.0, 128
        %2042 = vxpose.xlu0.b32.end [16/16] 0.0, 128
        %v2043 = vpop.trf.xlu0
        %v2044 = vpop.trf.xlu0
        %v2045 = vpop.trf.xlu0
        %v2046 = vpop.trf.xlu0
        %v2047 = vpop.trf.xlu0
        %v2048 = vpop.trf.xlu0
        %v2049 = vpop.trf.xlu0
        %v2050 = vpop.trf.xlu0
        %v2051 = vpop.trf.xlu0
        %v2052 = vpop.trf.xlu0
        %v2053 = vpop.trf.xlu0
        %v2054 = vpop.trf.xlu0
        %v2055 = vpop.trf.xlu0
        %v2056 = vpop.trf.xlu0
        %v2057 = vpop.trf.xlu0
        %v2058 = vpop.trf.xlu0
        %v2060 = vsel %vm1001, %v2043, 0
        %v2063 = vsel %vm1001, %v2044, 0
        %v2066 = vsel %vm1001, %v2045, 0
        %v2069 = vsel %vm1001, %v2046, 0
        %v2072 = vsel %vm1001, %v2047, 0
        %v2075 = vsel %vm1001, %v2048, 0
        %v2078 = vsel %vm1001, %v2049, 0
        %v2081 = vsel %vm1001, %v2050, 0
        %2083 = vmatprep.subr.mxu0 0.0
        %2084 = vmatpush1.msra.mxu0 0.0
        %2085 = vmatprep.subr.mxu0 0.0
        %2086 = vmatpush1.msra.mxu0 0.0
        %2087 = vmatprep.subr.mxu0 0.0
        %2088 = vmatpush1.msra.mxu0 0.0
        %2089 = vmatprep.subr.mxu0 0.0
        %2090 = vmatpush1.msra.mxu0 0.0
        %2091 = vmatprep.subr.mxu0 0.0
        %2092 = vmatpush1.msra.mxu0 0.0
        %2093 = vmatprep.subr.mxu0 0.0
        %2094 = vmatpush1.msra.mxu0 0.0
        %2095 = vmatprep.subr.mxu0 0.0
        %2096 = vmatpush1.msra.mxu0 0.0
        %2097 = vmatprep.subr.mxu0 0.0
        %2098 = vmatpush1.msra.mxu0 0.0
        %2099 = vmatprep.subr.mxu0 0.0
        %2100 = vmatpush1.msra.mxu0 0.0
        %2101 = vmatprep.subr.mxu0 0.0
        %2102 = vmatpush1.msra.mxu0 0.0
        %2103 = vmatprep.subr.mxu0 0.0
        %2104 = vmatpush1.msra.mxu0 0.0
        %2105 = vmatprep.subr.mxu0 0.0
        %2106 = vmatpush1.msra.mxu0 0.0
        %2107 = vmatprep.subr.mxu0 0.0
        %2108 = vmatpush1.msra.mxu0 0.0
        %2109 = vmatprep.subr.mxu0 0.0
        %2110 = vmatpush1.msra.mxu0 0.0
        %2111 = vmatprep.subr.mxu0 0.0
        %2112 = vmatpush1.msra.mxu0 0.0
        %2113 = vmatprep.subr.mxu0 0.0
        %2114 = vmatpush1.msra.mxu0 %v828
        %2115 = vmatprep.subr.mxu0 0.0
        %2116 = vmatpush2.msra.mxu0 0.0
        %2117 = vmatprep.subr.mxu0 0.0
        %2118 = vmatpush2.msra.mxu0 0.0
        %2119 = vmatprep.subr.mxu0 0.0
        %2120 = vmatpush2.msra.mxu0 0.0
        %2121 = vmatprep.subr.mxu0 0.0
        %2122 = vmatpush2.msra.mxu0 0.0
        %2123 = vmatprep.subr.mxu0 0.0
        %2124 = vmatpush2.msra.mxu0 0.0
        %2125 = vmatprep.subr.mxu0 0.0
        %2126 = vmatpush2.msra.mxu0 0.0
        %2127 = vmatprep.subr.mxu0 0.0
        %2128 = vmatpush2.msra.mxu0 0.0
        %2129 = vmatprep.subr.mxu0 0.0
        %2130 = vmatpush2.msra.mxu0 0.0
        %2131 = vmatprep.subr.mxu0 0.0
        %2132 = vmatpush2.msra.mxu0 0.0
        %2133 = vmatprep.subr.mxu0 0.0
        %2134 = vmatpush2.msra.mxu0 0.0
        %2135 = vmatprep.subr.mxu0 0.0
        %2136 = vmatpush2.msra.mxu0 0.0
        %2137 = vmatprep.subr.mxu0 0.0
        %2138 = vmatpush2.msra.mxu0 0.0
        %2139 = vmatprep.subr.mxu0 0.0
        %2140 = vmatpush2.msra.mxu0 0.0
        %2141 = vmatprep.subr.mxu0 0.0
        %2142 = vmatpush2.msra.mxu0 0.0
        %2143 = vmatprep.subr.mxu0 0.0
        %2144 = vmatpush2.msra.mxu0 0.0
        %2145 = vmatprep.subr.mxu0 0.0
        %2146 = vmatpush2.msra.mxu0 0.0
        %2147 = vmatprep.mubr.f32.mxu0 0.0
        %2148 = vmatmul.mubr.f32.gmra.mxu0 %v2060
        %v2149 = vpop.f32.mrf.mxu0
        %v2150 = vadd.f32 %v2019, %v2149
        %v2151 = vpop.f32.mrf.mxu0
        %2152 = vmatprep.mubr.f32.mxu0 0.0
        %2153 = vmatmul.mubr.f32.gmra.mxu0 %v2063
        %v2154 = vpop.f32.mrf.mxu0
        %v2155 = vadd.f32 %v2020, %v2154
        %v2156 = vpop.f32.mrf.mxu0
        %2157 = vmatprep.mubr.f32.mxu0 0.0
        %2158 = vmatmul.mubr.f32.gmra.mxu0 %v2066
        %v2159 = vpop.f32.mrf.mxu0
        %v2160 = vadd.f32 %v2021, %v2159
        %v2161 = vpop.f32.mrf.mxu0
        %2162 = vmatprep.mubr.f32.mxu0 0.0
        %2163 = vmatmul.mubr.f32.gmra.mxu0 %v2069
        %v2164 = vpop.f32.mrf.mxu0
        %v2165 = vadd.f32 %v2022, %v2164
        %v2166 = vpop.f32.mrf.mxu0
        %2167 = vmatprep.mubr.f32.mxu0 0.0
        %2168 = vmatmul.mubr.f32.gmra.mxu0 %v2072
        %v2169 = vpop.f32.mrf.mxu0
        %v2170 = vadd.f32 %v2023, %v2169
        %v2171 = vpop.f32.mrf.mxu0
        %2172 = vmatprep.mubr.f32.mxu0 0.0
        %2173 = vmatmul.mubr.f32.gmra.mxu0 %v2075
        %v2174 = vpop.f32.mrf.mxu0
        %v2175 = vadd.f32 %v2024, %v2174
        %v2176 = vpop.f32.mrf.mxu0
        %2177 = vmatprep.mubr.f32.mxu0 0.0
        %2178 = vmatmul.mubr.f32.gmra.mxu0 %v2078
        %v2179 = vpop.f32.mrf.mxu0
        %v2180 = vadd.f32 %v2025, %v2179
        %v2181 = vpop.f32.mrf.mxu0
        %2182 = vmatprep.mubr.f32.mxu0 0.0
        %2183 = vmatmul.mubr.f32.gmra.mxu0 %v2081
        %v2184 = vpop.f32.mrf.mxu0
        %v2185 = vadd.f32 %v2026, %v2184
        %v2186 = vpop.f32.mrf.mxu0
        %2187 = vdwg.mxu0
        %v2188 = vsel %vm1131, %v2150, -inf
        %2189 = vmax.xlane.f32.xlu0 %v2188
        %v2190 = vpop.xlane.xlu0 %2189
        %v2191 = vsel %vm1131, %v2155, -inf
        %2192 = vmax.xlane.f32.xlu0 %v2191
        %v2193 = vpop.xlane.xlu0 %2192
        %v2194 = vsel %vm1131, %v2160, -inf
        %2195 = vmax.xlane.f32.xlu0 %v2194
        %v2196 = vpop.xlane.xlu0 %2195
        %v2197 = vsel %vm1131, %v2165, -inf
        %2198 = vmax.xlane.f32.xlu0 %v2197
        %v2199 = vpop.xlane.xlu0 %2198
        %v2200 = vsel %vm1131, %v2170, -inf
        %2201 = vmax.xlane.f32.xlu0 %v2200
        %v2202 = vpop.xlane.xlu0 %2201
        %v2203 = vsel %vm1131, %v2175, -inf
        %2204 = vmax.xlane.f32.xlu0 %v2203
        %v2205 = vpop.xlane.xlu0 %2204
        %v2206 = vsel %vm1131, %v2180, -inf
        %2207 = vmax.xlane.f32.xlu0 %v2206
        %v2208 = vpop.xlane.xlu0 %2207
        %v2209 = vsel %vm1131, %v2185, -inf
        %2210 = vmax.xlane.f32.xlu0 %v2209
        %v2211 = vpop.xlane.xlu0 %2210
        %v2212 = vsub.f32 %v2150, %v2190
        %v2213 = vsub.f32 %v2155, %v2193
        %v2214 = vsub.f32 %v2160, %v2196
        %v2215 = vsub.f32 %v2165, %v2199
        %v2216 = vsub.f32 %v2170, %v2202
        %v2217 = vsub.f32 %v2175, %v2205
        %v2218 = vsub.f32 %v2180, %v2208
        %v2219 = vsub.f32 %v2185, %v2211
        %v2220 = vmul.f32 %v2212, 1.442695
        %v2221 = vpow.pop %v2220
        %v2222 = vmul.f32 %v2213, 1.442695
        %v2223 = vpow.pop %v2222
        %v2224 = vmul.f32 %v2214, 1.442695
        %v2225 = vpow.pop %v2224
        %v2226 = vmul.f32 %v2215, 1.442695
        %v2227 = vpow.pop %v2226
        %v2228 = vmul.f32 %v2216, 1.442695
        %v2229 = vpow.pop %v2228
        %v2230 = vmul.f32 %v2217, 1.442695
        %v2231 = vpow.pop %v2230
        %v2232 = vmul.f32 %v2218, 1.442695
        %v2233 = vpow.pop %v2232
        %v2234 = vmul.f32 %v2219, 1.442695
        %v2235 = vpow.pop %v2234
        %v2236 = vsel %vm1131, %v2221, 0.0
        %2237 = vadd.xlane.f32.xlu0 %v2236
        %v2238 = vpop.xlane.xlu0 %2237
        %v2239 = vsel %vm1131, %v2223, 0.0
        %2240 = vadd.xlane.f32.xlu0 %v2239
        %v2241 = vpop.xlane.xlu0 %2240
        %v2242 = vsel %vm1131, %v2225, 0.0
        %2243 = vadd.xlane.f32.xlu0 %v2242
        %v2244 = vpop.xlane.xlu0 %2243
        %v2245 = vsel %vm1131, %v2227, 0.0
        %2246 = vadd.xlane.f32.xlu0 %v2245
        %v2247 = vpop.xlane.xlu0 %2246
        %v2248 = vsel %vm1131, %v2229, 0.0
        %2249 = vadd.xlane.f32.xlu0 %v2248
        %v2250 = vpop.xlane.xlu0 %2249
        %v2251 = vsel %vm1131, %v2231, 0.0
        %2252 = vadd.xlane.f32.xlu0 %v2251
        %v2253 = vpop.xlane.xlu0 %2252
        %v2254 = vsel %vm1131, %v2233, 0.0
        %2255 = vadd.xlane.f32.xlu0 %v2254
        %v2256 = vpop.xlane.xlu0 %2255
        %v2257 = vsel %vm1131, %v2235, 0.0
        %2258 = vadd.xlane.f32.xlu0 %v2257
        %v2259 = vpop.xlane.xlu0 %2258
        %v2261 = vsel %vm1131, %v2221, 0
        %v2264 = vsel %vm1131, %v2223, 0
        %v2267 = vsel %vm1131, %v2225, 0
        %v2270 = vsel %vm1131, %v2227, 0
        %v2273 = vsel %vm1131, %v2229, 0
        %v2276 = vsel %vm1131, %v2231, 0
        %v2279 = vsel %vm1131, %v2233, 0
        %v2282 = vsel %vm1131, %v2235, 0
        %v2285 = vsel %vm1131, %v892, 0
        %2287 = vmatprep.subr.mxu0 0.0
        %2288 = vmatpush1.xpose.msra.mxu0 0.0
        %2289 = vmatprep.subr.mxu0 0.0
        %2290 = vmatpush1.xpose.msra.mxu0 0.0
        %2291 = vmatprep.subr.mxu0 0.0
        %2292 = vmatpush1.xpose.msra.mxu0 0.0
        %2293 = vmatprep.subr.mxu0 0.0
        %2294 = vmatpush1.xpose.msra.mxu0 0.0
        %2295 = vmatprep.subr.mxu0 0.0
        %2296 = vmatpush1.xpose.msra.mxu0 0.0
        %2297 = vmatprep.subr.mxu0 0.0
        %2298 = vmatpush1.xpose.msra.mxu0 0.0
        %2299 = vmatprep.subr.mxu0 0.0
        %2300 = vmatpush1.xpose.msra.mxu0 0.0
        %2301 = vmatprep.subr.mxu0 0.0
        %2302 = vmatpush1.xpose.msra.mxu0 0.0
        %2303 = vmatprep.subr.mxu0 0.0
        %2304 = vmatpush1.xpose.msra.mxu0 0.0
        %2305 = vmatprep.subr.mxu0 0.0
        %2306 = vmatpush1.xpose.msra.mxu0 0.0
        %2307 = vmatprep.subr.mxu0 0.0
        %2308 = vmatpush1.xpose.msra.mxu0 0.0
        %2309 = vmatprep.subr.mxu0 0.0
        %2310 = vmatpush1.xpose.msra.mxu0 0.0
        %2311 = vmatprep.subr.mxu0 0.0
        %2312 = vmatpush1.xpose.msra.mxu0 0.0
        %2313 = vmatprep.subr.mxu0 0.0
        %2314 = vmatpush1.xpose.msra.mxu0 0.0
        %2315 = vmatprep.subr.mxu0 0.0
        %2316 = vmatpush1.xpose.msra.mxu0 0.0
        %2317 = vmatprep.subr.mxu0 0.0
        %2318 = vmatpush1.xpose.msra.mxu0 %v2285
        %2319 = vmatprep.subr.mxu0 0.0
        %2320 = vmatpush2.xpose.msra.mxu0 0.0
        %2321 = vmatprep.subr.mxu0 0.0
        %2322 = vmatpush2.xpose.msra.mxu0 0.0
        %2323 = vmatprep.subr.mxu0 0.0
        %2324 = vmatpush2.xpose.msra.mxu0 0.0
        %2325 = vmatprep.subr.mxu0 0.0
        %2326 = vmatpush2.xpose.msra.mxu0 0.0
        %2327 = vmatprep.subr.mxu0 0.0
        %2328 = vmatpush2.xpose.msra.mxu0 0.0
        %2329 = vmatprep.subr.mxu0 0.0
        %2330 = vmatpush2.xpose.msra.mxu0 0.0
        %2331 = vmatprep.subr.mxu0 0.0
        %2332 = vmatpush2.xpose.msra.mxu0 0.0
        %2333 = vmatprep.subr.mxu0 0.0
        %2334 = vmatpush2.xpose.msra.mxu0 0.0
        %2335 = vmatprep.subr.mxu0 0.0
        %2336 = vmatpush2.xpose.msra.mxu0 0.0
        %2337 = vmatprep.subr.mxu0 0.0
        %2338 = vmatpush2.xpose.msra.mxu0 0.0
        %2339 = vmatprep.subr.mxu0 0.0
        %2340 = vmatpush2.xpose.msra.mxu0 0.0
        %2341 = vmatprep.subr.mxu0 0.0
        %2342 = vmatpush2.xpose.msra.mxu0 0.0
        %2343 = vmatprep.subr.mxu0 0.0
        %2344 = vmatpush2.xpose.msra.mxu0 0.0
        %2345 = vmatprep.subr.mxu0 0.0
        %2346 = vmatpush2.xpose.msra.mxu0 0.0
        %2347 = vmatprep.subr.mxu0 0.0
        %2348 = vmatpush2.xpose.msra.mxu0 0.0
        %2349 = vmatprep.subr.mxu0 0.0
        %2350 = vmatpush2.xpose.msra.mxu0 0.0
        %2351 = vmatprep.mubr.f32.mxu0 0.0
        %2352 = vmatmul.mubr.f32.gmra.mxu0 %v2261
        %v2353 = vpop.f32.mrf.mxu0
        %v2354 = vadd.f32 0.0, %v2353
        %v2355 = vpop.f32.mrf.mxu0
        %2356 = vmatprep.mubr.f32.mxu0 0.0
        %2357 = vmatmul.mubr.f32.gmra.mxu0 %v2264
        %v2358 = vpop.f32.mrf.mxu0
        %v2359 = vadd.f32 0.0, %v2358
        %v2360 = vpop.f32.mrf.mxu0
        %2361 = vmatprep.mubr.f32.mxu0 0.0
        %2362 = vmatmul.mubr.f32.gmra.mxu0 %v2267
        %v2363 = vpop.f32.mrf.mxu0
        %v2364 = vadd.f32 0.0, %v2363
        %v2365 = vpop.f32.mrf.mxu0
        %2366 = vmatprep.mubr.f32.mxu0 0.0
        %2367 = vmatmul.mubr.f32.gmra.mxu0 %v2270
        %v2368 = vpop.f32.mrf.mxu0
        %v2369 = vadd.f32 0.0, %v2368
        %v2370 = vpop.f32.mrf.mxu0
        %2371 = vmatprep.mubr.f32.mxu0 0.0
        %2372 = vmatmul.mubr.f32.gmra.mxu0 %v2273
        %v2373 = vpop.f32.mrf.mxu0
        %v2374 = vadd.f32 0.0, %v2373
        %v2375 = vpop.f32.mrf.mxu0
        %2376 = vmatprep.mubr.f32.mxu0 0.0
        %2377 = vmatmul.mubr.f32.gmra.mxu0 %v2276
        %v2378 = vpop.f32.mrf.mxu0
        %v2379 = vadd.f32 0.0, %v2378
        %v2380 = vpop.f32.mrf.mxu0
        %2381 = vmatprep.mubr.f32.mxu0 0.0
        %2382 = vmatmul.mubr.f32.gmra.mxu0 %v2279
        %v2383 = vpop.f32.mrf.mxu0
        %v2384 = vadd.f32 0.0, %v2383
        %v2385 = vpop.f32.mrf.mxu0
        %2386 = vmatprep.mubr.f32.mxu0 0.0
        %2387 = vmatmul.mubr.f32.gmra.mxu0 %v2282
        %v2388 = vpop.f32.mrf.mxu0
        %v2389 = vadd.f32 0.0, %v2388
        %v2390 = vpop.f32.mrf.mxu0
        %2391 = vdwg.mxu0
        %v2392 = vrcp.pop %v2238
        %v2393 = vmul.f32 %v2354, %v2392
        %v2394 = vrcp.pop %v2241
        %v2395 = vmul.f32 %v2359, %v2394
        %v2396 = vrcp.pop %v2244
        %v2397 = vmul.f32 %v2364, %v2396
        %v2398 = vrcp.pop %v2247
        %v2399 = vmul.f32 %v2369, %v2398
        %v2400 = vrcp.pop %v2250
        %v2401 = vmul.f32 %v2374, %v2400
        %v2402 = vrcp.pop %v2253
        %v2403 = vmul.f32 %v2379, %v2402
        %v2404 = vrcp.pop %v2256
        %v2405 = vmul.f32 %v2384, %v2404
        %v2406 = vrcp.pop %v2259
        %v2407 = vmul.f32 %v2389, %v2406
        %v2408 = vld [vmem:[%s5 + $0x10] sm:$0xff]
        %v2410 = vsel %vm1001, %v2393, 0
        %v2413 = vsel %vm1001, %v2395, 0
        %v2416 = vsel %vm1001, %v2397, 0
        %v2419 = vsel %vm1001, %v2399, 0
        %v2422 = vsel %vm1001, %v2401, 0
        %v2425 = vsel %vm1001, %v2403, 0
        %v2428 = vsel %vm1001, %v2405, 0
        %v2431 = vsel %vm1001, %v2407, 0
        %2433 = vmatprep.subr.mxu0 0.0
        %2434 = vmatpush1.msra.mxu0 0.0
        %2435 = vmatprep.subr.mxu0 0.0
        %2436 = vmatpush1.msra.mxu0 0.0
        %2437 = vmatprep.subr.mxu0 0.0
        %2438 = vmatpush1.msra.mxu0 0.0
        %2439 = vmatprep.subr.mxu0 0.0
        %2440 = vmatpush1.msra.mxu0 0.0
        %2441 = vmatprep.subr.mxu0 0.0
        %2442 = vmatpush1.msra.mxu0 0.0
        %2443 = vmatprep.subr.mxu0 0.0
        %2444 = vmatpush1.msra.mxu0 0.0
        %2445 = vmatprep.subr.mxu0 0.0
        %2446 = vmatpush1.msra.mxu0 0.0
        %2447 = vmatprep.subr.mxu0 0.0
        %2448 = vmatpush1.msra.mxu0 0.0
        %2449 = vmatprep.subr.mxu0 0.0
        %2450 = vmatpush1.msra.mxu0 0.0
        %2451 = vmatprep.subr.mxu0 0.0
        %2452 = vmatpush1.msra.mxu0 0.0
        %2453 = vmatprep.subr.mxu0 0.0
        %2454 = vmatpush1.msra.mxu0 0.0
        %2455 = vmatprep.subr.mxu0 0.0
        %2456 = vmatpush1.msra.mxu0 0.0
        %2457 = vmatprep.subr.mxu0 0.0
        %2458 = vmatpush1.msra.mxu0 0.0
        %2459 = vmatprep.subr.mxu0 0.0
        %2460 = vmatpush1.msra.mxu0 0.0
        %2461 = vmatprep.subr.mxu0 0.0
        %2462 = vmatpush1.msra.mxu0 0.0
        %2463 = vmatprep.subr.mxu0 0.0
        %2464 = vmatpush1.msra.mxu0 %v2408
        %2465 = vmatprep.subr.mxu0 0.0
        %2466 = vmatpush2.msra.mxu0 0.0
        %2467 = vmatprep.subr.mxu0 0.0
        %2468 = vmatpush2.msra.mxu0 0.0
        %2469 = vmatprep.subr.mxu0 0.0
        %2470 = vmatpush2.msra.mxu0 0.0
        %2471 = vmatprep.subr.mxu0 0.0
        %2472 = vmatpush2.msra.mxu0 0.0
        %2473 = vmatprep.subr.mxu0 0.0
        %2474 = vmatpush2.msra.mxu0 0.0
        %2475 = vmatprep.subr.mxu0 0.0
        %2476 = vmatpush2.msra.mxu0 0.0
        %2477 = vmatprep.subr.mxu0 0.0
        %2478 = vmatpush2.msra.mxu0 0.0
        %2479 = vmatprep.subr.mxu0 0.0
        %2480 = vmatpush2.msra.mxu0 0.0
        %2481 = vmatprep.subr.mxu0 0.0
        %2482 = vmatpush2.msra.mxu0 0.0
        %2483 = vmatprep.subr.mxu0 0.0
        %2484 = vmatpush2.msra.mxu0 0.0
        %2485 = vmatprep.subr.mxu0 0.0
        %2486 = vmatpush2.msra.mxu0 0.0
        %2487 = vmatprep.subr.mxu0 0.0
        %2488 = vmatpush2.msra.mxu0 0.0
        %2489 = vmatprep.subr.mxu0 0.0
        %2490 = vmatpush2.msra.mxu0 0.0
        %2491 = vmatprep.subr.mxu0 0.0
        %2492 = vmatpush2.msra.mxu0 0.0
        %2493 = vmatprep.subr.mxu0 0.0
        %2494 = vmatpush2.msra.mxu0 0.0
        %2495 = vmatprep.subr.mxu0 0.0
        %2496 = vmatpush2.msra.mxu0 0.0
        %2497 = vmatprep.mubr.f32.mxu0 0.0
        %2498 = vmatmul.mubr.f32.gmra.mxu0 %v2410
        %v2499 = vpop.f32.mrf.mxu0
        %v2500 = vadd.f32 0.0, %v2499
        %v2501 = vpop.f32.mrf.mxu0
        %2502 = vmatprep.mubr.f32.mxu0 0.0
        %2503 = vmatmul.mubr.f32.gmra.mxu0 %v2413
        %v2504 = vpop.f32.mrf.mxu0
        %v2505 = vadd.f32 0.0, %v2504
        %v2506 = vpop.f32.mrf.mxu0
        %2507 = vmatprep.mubr.f32.mxu0 0.0
        %2508 = vmatmul.mubr.f32.gmra.mxu0 %v2416
        %v2509 = vpop.f32.mrf.mxu0
        %v2510 = vadd.f32 0.0, %v2509
        %v2511 = vpop.f32.mrf.mxu0
        %2512 = vmatprep.mubr.f32.mxu0 0.0
        %2513 = vmatmul.mubr.f32.gmra.mxu0 %v2419
        %v2514 = vpop.f32.mrf.mxu0
        %v2515 = vadd.f32 0.0, %v2514
        %v2516 = vpop.f32.mrf.mxu0
        %2517 = vmatprep.mubr.f32.mxu0 0.0
        %2518 = vmatmul.mubr.f32.gmra.mxu0 %v2422
        %v2519 = vpop.f32.mrf.mxu0
        %v2520 = vadd.f32 0.0, %v2519
        %v2521 = vpop.f32.mrf.mxu0
        %2522 = vmatprep.mubr.f32.mxu0 0.0
        %2523 = vmatmul.mubr.f32.gmra.mxu0 %v2425
        %v2524 = vpop.f32.mrf.mxu0
        %v2525 = vadd.f32 0.0, %v2524
        %v2526 = vpop.f32.mrf.mxu0
        %2527 = vmatprep.mubr.f32.mxu0 0.0
        %2528 = vmatmul.mubr.f32.gmra.mxu0 %v2428
        %v2529 = vpop.f32.mrf.mxu0
        %v2530 = vadd.f32 0.0, %v2529
        %v2531 = vpop.f32.mrf.mxu0
        %2532 = vmatprep.mubr.f32.mxu0 0.0
        %2533 = vmatmul.mubr.f32.gmra.mxu0 %v2431
        %v2534 = vpop.f32.mrf.mxu0
        %v2535 = vadd.f32 0.0, %v2534
        %v2536 = vpop.f32.mrf.mxu0
        %2537 = vdwg.mxu0
        %v2538 = vadd.f32 %v2010, %v2500
        %v2539 = vadd.f32 %v2011, %v2505
        %v2540 = vadd.f32 %v2012, %v2510
        %v2541 = vadd.f32 %v2013, %v2515
        %v2542 = vadd.f32 %v2014, %v2520
        %v2543 = vadd.f32 %v2015, %v2525
        %v2544 = vadd.f32 %v2016, %v2530
        %v2545 = vadd.f32 %v2017, %v2535
        %s2546 = scalar_lea.vmem %s7, 192
        %v2547 = vld [vmem:[%s2546] sm:$0xff]
        %v2548 = vld [vmem:[%s2546 + $0x8] sm:$0xff]
        %v2549 = vld [vmem:[%s2546 + $0x10] sm:$0xff]
        %v2550 = vld [vmem:[%s2546 + $0x18] sm:$0xff]
        %v2551 = vld [vmem:[%s2546 + $0x20] sm:$0xff]
        %v2552 = vld [vmem:[%s2546 + $0x28] sm:$0xff]
        %v2553 = vld [vmem:[%s2546 + $0x30] sm:$0xff]
        %v2554 = vld [vmem:[%s2546 + $0x38] sm:$0xff]
        %2555 = vxpose.xlu0.b32.start [1/16] %v767, 128
        %2556 = vxpose.xlu0.b32.cont [2/16] 0.0, 128
        %2557 = vxpose.xlu0.b32.cont [3/16] 0.0, 128
        %2558 = vxpose.xlu0.b32.cont [4/16] 0.0, 128
        %2559 = vxpose.xlu0.b32.cont [5/16] 0.0, 128
        %2560 = vxpose.xlu0.b32.cont [6/16] 0.0, 128
        %2561 = vxpose.xlu0.b32.cont [7/16] 0.0, 128
        %2562 = vxpose.xlu0.b32.cont [8/16] 0.0, 128
        %2563 = vxpose.xlu0.b32.cont [9/16] 0.0, 128
        %2564 = vxpose.xlu0.b32.cont [10/16] 0.0, 128
        %2565 = vxpose.xlu0.b32.cont [11/16] 0.0, 128
        %2566 = vxpose.xlu0.b32.cont [12/16] 0.0, 128
        %2567 = vxpose.xlu0.b32.cont [13/16] 0.0, 128
        %2568 = vxpose.xlu0.b32.cont [14/16] 0.0, 128
        %2569 = vxpose.xlu0.b32.cont [15/16] 0.0, 128
        %2570 = vxpose.xlu0.b32.end [16/16] 0.0, 128
        %v2571 = vpop.trf.xlu0
        %v2572 = vpop.trf.xlu0
        %v2573 = vpop.trf.xlu0
        %v2574 = vpop.trf.xlu0
        %v2575 = vpop.trf.xlu0
        %v2576 = vpop.trf.xlu0
        %v2577 = vpop.trf.xlu0
        %v2578 = vpop.trf.xlu0
        %v2579 = vpop.trf.xlu0
        %v2580 = vpop.trf.xlu0
        %v2581 = vpop.trf.xlu0
        %v2582 = vpop.trf.xlu0
        %v2583 = vpop.trf.xlu0
        %v2584 = vpop.trf.xlu0
        %v2585 = vpop.trf.xlu0
        %v2586 = vpop.trf.xlu0
        %v2588 = vsel %vm1001, %v2571, 0
        %v2591 = vsel %vm1001, %v2572, 0
        %v2594 = vsel %vm1001, %v2573, 0
        %v2597 = vsel %vm1001, %v2574, 0
        %v2600 = vsel %vm1001, %v2575, 0
        %v2603 = vsel %vm1001, %v2576, 0
        %v2606 = vsel %vm1001, %v2577, 0
        %v2609 = vsel %vm1001, %v2578, 0
        %2611 = vmatprep.subr.mxu0 0.0
        %2612 = vmatpush1.msra.mxu0 0.0
        %2613 = vmatprep.subr.mxu0 0.0
        %2614 = vmatpush1.msra.mxu0 0.0
        %2615 = vmatprep.subr.mxu0 0.0
        %2616 = vmatpush1.msra.mxu0 0.0
        %2617 = vmatprep.subr.mxu0 0.0
        %2618 = vmatpush1.msra.mxu0 0.0
        %2619 = vmatprep.subr.mxu0 0.0
        %2620 = vmatpush1.msra.mxu0 0.0
        %2621 = vmatprep.subr.mxu0 0.0
        %2622 = vmatpush1.msra.mxu0 0.0
        %2623 = vmatprep.subr.mxu0 0.0
        %2624 = vmatpush1.msra.mxu0 0.0
        %2625 = vmatprep.subr.mxu0 0.0
        %2626 = vmatpush1.msra.mxu0 0.0
        %2627 = vmatprep.subr.mxu0 0.0
        %2628 = vmatpush1.msra.mxu0 0.0
        %2629 = vmatprep.subr.mxu0 0.0
        %2630 = vmatpush1.msra.mxu0 0.0
        %2631 = vmatprep.subr.mxu0 0.0
        %2632 = vmatpush1.msra.mxu0 0.0
        %2633 = vmatprep.subr.mxu0 0.0
        %2634 = vmatpush1.msra.mxu0 0.0
        %2635 = vmatprep.subr.mxu0 0.0
        %2636 = vmatpush1.msra.mxu0 0.0
        %2637 = vmatprep.subr.mxu0 0.0
        %2638 = vmatpush1.msra.mxu0 0.0
        %2639 = vmatprep.subr.mxu0 0.0
        %2640 = vmatpush1.msra.mxu0 0.0
        %2641 = vmatprep.subr.mxu0 0.0
        %2642 = vmatpush1.msra.mxu0 %v831
        %2643 = vmatprep.subr.mxu0 0.0
        %2644 = vmatpush2.msra.mxu0 0.0
        %2645 = vmatprep.subr.mxu0 0.0
        %2646 = vmatpush2.msra.mxu0 0.0
        %2647 = vmatprep.subr.mxu0 0.0
        %2648 = vmatpush2.msra.mxu0 0.0
        %2649 = vmatprep.subr.mxu0 0.0
        %2650 = vmatpush2.msra.mxu0 0.0
        %2651 = vmatprep.subr.mxu0 0.0
        %2652 = vmatpush2.msra.mxu0 0.0
        %2653 = vmatprep.subr.mxu0 0.0
        %2654 = vmatpush2.msra.mxu0 0.0
        %2655 = vmatprep.subr.mxu0 0.0
        %2656 = vmatpush2.msra.mxu0 0.0
        %2657 = vmatprep.subr.mxu0 0.0
        %2658 = vmatpush2.msra.mxu0 0.0
        %2659 = vmatprep.subr.mxu0 0.0
        %2660 = vmatpush2.msra.mxu0 0.0
        %2661 = vmatprep.subr.mxu0 0.0
        %2662 = vmatpush2.msra.mxu0 0.0
        %2663 = vmatprep.subr.mxu0 0.0
        %2664 = vmatpush2.msra.mxu0 0.0
        %2665 = vmatprep.subr.mxu0 0.0
        %2666 = vmatpush2.msra.mxu0 0.0
        %2667 = vmatprep.subr.mxu0 0.0
        %2668 = vmatpush2.msra.mxu0 0.0
        %2669 = vmatprep.subr.mxu0 0.0
        %2670 = vmatpush2.msra.mxu0 0.0
        %2671 = vmatprep.subr.mxu0 0.0
        %2672 = vmatpush2.msra.mxu0 0.0
        %2673 = vmatprep.subr.mxu0 0.0
        %2674 = vmatpush2.msra.mxu0 0.0
        %2675 = vmatprep.mubr.f32.mxu0 0.0
        %2676 = vmatmul.mubr.f32.gmra.mxu0 %v2588
        %v2677 = vpop.f32.mrf.mxu0
        %v2678 = vadd.f32 %v2547, %v2677
        %v2679 = vpop.f32.mrf.mxu0
        %2680 = vmatprep.mubr.f32.mxu0 0.0
        %2681 = vmatmul.mubr.f32.gmra.mxu0 %v2591
        %v2682 = vpop.f32.mrf.mxu0
        %v2683 = vadd.f32 %v2548, %v2682
        %v2684 = vpop.f32.mrf.mxu0
        %2685 = vmatprep.mubr.f32.mxu0 0.0
        %2686 = vmatmul.mubr.f32.gmra.mxu0 %v2594
        %v2687 = vpop.f32.mrf.mxu0
        %v2688 = vadd.f32 %v2549, %v2687
        %v2689 = vpop.f32.mrf.mxu0
        %2690 = vmatprep.mubr.f32.mxu0 0.0
        %2691 = vmatmul.mubr.f32.gmra.mxu0 %v2597
        %v2692 = vpop.f32.mrf.mxu0
        %v2693 = vadd.f32 %v2550, %v2692
        %v2694 = vpop.f32.mrf.mxu0
        %2695 = vmatprep.mubr.f32.mxu0 0.0
        %2696 = vmatmul.mubr.f32.gmra.mxu0 %v2600
        %v2697 = vpop.f32.mrf.mxu0
        %v2698 = vadd.f32 %v2551, %v2697
        %v2699 = vpop.f32.mrf.mxu0
        %2700 = vmatprep.mubr.f32.mxu0 0.0
        %2701 = vmatmul.mubr.f32.gmra.mxu0 %v2603
        %v2702 = vpop.f32.mrf.mxu0
        %v2703 = vadd.f32 %v2552, %v2702
        %v2704 = vpop.f32.mrf.mxu0
        %2705 = vmatprep.mubr.f32.mxu0 0.0
        %2706 = vmatmul.mubr.f32.gmra.mxu0 %v2606
        %v2707 = vpop.f32.mrf.mxu0
        %v2708 = vadd.f32 %v2553, %v2707
        %v2709 = vpop.f32.mrf.mxu0
        %2710 = vmatprep.mubr.f32.mxu0 0.0
        %2711 = vmatmul.mubr.f32.gmra.mxu0 %v2609
        %v2712 = vpop.f32.mrf.mxu0
        %v2713 = vadd.f32 %v2554, %v2712
        %v2714 = vpop.f32.mrf.mxu0
        %2715 = vdwg.mxu0
        %v2716 = vsel %vm1131, %v2678, -inf
        %2717 = vmax.xlane.f32.xlu0 %v2716
        %v2718 = vpop.xlane.xlu0 %2717
        %v2719 = vsel %vm1131, %v2683, -inf
        %2720 = vmax.xlane.f32.xlu0 %v2719
        %v2721 = vpop.xlane.xlu0 %2720
        %v2722 = vsel %vm1131, %v2688, -inf
        %2723 = vmax.xlane.f32.xlu0 %v2722
        %v2724 = vpop.xlane.xlu0 %2723
        %v2725 = vsel %vm1131, %v2693, -inf
        %2726 = vmax.xlane.f32.xlu0 %v2725
        %v2727 = vpop.xlane.xlu0 %2726
        %v2728 = vsel %vm1131, %v2698, -inf
        %2729 = vmax.xlane.f32.xlu0 %v2728
        %v2730 = vpop.xlane.xlu0 %2729
        %v2731 = vsel %vm1131, %v2703, -inf
        %2732 = vmax.xlane.f32.xlu0 %v2731
        %v2733 = vpop.xlane.xlu0 %2732
        %v2734 = vsel %vm1131, %v2708, -inf
        %2735 = vmax.xlane.f32.xlu0 %v2734
        %v2736 = vpop.xlane.xlu0 %2735
        %v2737 = vsel %vm1131, %v2713, -inf
        %2738 = vmax.xlane.f32.xlu0 %v2737
        %v2739 = vpop.xlane.xlu0 %2738
        %v2740 = vsub.f32 %v2678, %v2718
        %v2741 = vsub.f32 %v2683, %v2721
        %v2742 = vsub.f32 %v2688, %v2724
        %v2743 = vsub.f32 %v2693, %v2727
        %v2744 = vsub.f32 %v2698, %v2730
        %v2745 = vsub.f32 %v2703, %v2733
        %v2746 = vsub.f32 %v2708, %v2736
        %v2747 = vsub.f32 %v2713, %v2739
        %v2748 = vmul.f32 %v2740, 1.442695
        %v2749 = vpow.pop %v2748
        %v2750 = vmul.f32 %v2741, 1.442695
        %v2751 = vpow.pop %v2750
        %v2752 = vmul.f32 %v2742, 1.442695
        %v2753 = vpow.pop %v2752
        %v2754 = vmul.f32 %v2743, 1.442695
        %v2755 = vpow.pop %v2754
        %v2756 = vmul.f32 %v2744, 1.442695
        %v2757 = vpow.pop %v2756
        %v2758 = vmul.f32 %v2745, 1.442695
        %v2759 = vpow.pop %v2758
        %v2760 = vmul.f32 %v2746, 1.442695
        %v2761 = vpow.pop %v2760
        %v2762 = vmul.f32 %v2747, 1.442695
        %v2763 = vpow.pop %v2762
        %v2764 = vsel %vm1131, %v2749, 0.0
        %2765 = vadd.xlane.f32.xlu0 %v2764
        %v2766 = vpop.xlane.xlu0 %2765
        %v2767 = vsel %vm1131, %v2751, 0.0
        %2768 = vadd.xlane.f32.xlu0 %v2767
        %v2769 = vpop.xlane.xlu0 %2768
        %v2770 = vsel %vm1131, %v2753, 0.0
        %2771 = vadd.xlane.f32.xlu0 %v2770
        %v2772 = vpop.xlane.xlu0 %2771
        %v2773 = vsel %vm1131, %v2755, 0.0
        %2774 = vadd.xlane.f32.xlu0 %v2773
        %v2775 = vpop.xlane.xlu0 %2774
        %v2776 = vsel %vm1131, %v2757, 0.0
        %2777 = vadd.xlane.f32.xlu0 %v2776
        %v2778 = vpop.xlane.xlu0 %2777
        %v2779 = vsel %vm1131, %v2759, 0.0
        %2780 = vadd.xlane.f32.xlu0 %v2779
        %v2781 = vpop.xlane.xlu0 %2780
        %v2782 = vsel %vm1131, %v2761, 0.0
        %2783 = vadd.xlane.f32.xlu0 %v2782
        %v2784 = vpop.xlane.xlu0 %2783
        %v2785 = vsel %vm1131, %v2763, 0.0
        %2786 = vadd.xlane.f32.xlu0 %v2785
        %v2787 = vpop.xlane.xlu0 %2786
        %v2789 = vsel %vm1131, %v2749, 0
        %v2792 = vsel %vm1131, %v2751, 0
        %v2795 = vsel %vm1131, %v2753, 0
        %v2798 = vsel %vm1131, %v2755, 0
        %v2801 = vsel %vm1131, %v2757, 0
        %v2804 = vsel %vm1131, %v2759, 0
        %v2807 = vsel %vm1131, %v2761, 0
        %v2810 = vsel %vm1131, %v2763, 0
        %v2813 = vsel %vm1131, %v895, 0
        %2815 = vmatprep.subr.mxu0 0.0
        %2816 = vmatpush1.xpose.msra.mxu0 0.0
        %2817 = vmatprep.subr.mxu0 0.0
        %2818 = vmatpush1.xpose.msra.mxu0 0.0
        %2819 = vmatprep.subr.mxu0 0.0
        %2820 = vmatpush1.xpose.msra.mxu0 0.0
        %2821 = vmatprep.subr.mxu0 0.0
        %2822 = vmatpush1.xpose.msra.mxu0 0.0
        %2823 = vmatprep.subr.mxu0 0.0
        %2824 = vmatpush1.xpose.msra.mxu0 0.0
        %2825 = vmatprep.subr.mxu0 0.0
        %2826 = vmatpush1.xpose.msra.mxu0 0.0
        %2827 = vmatprep.subr.mxu0 0.0
        %2828 = vmatpush1.xpose.msra.mxu0 0.0
        %2829 = vmatprep.subr.mxu0 0.0
        %2830 = vmatpush1.xpose.msra.mxu0 0.0
        %2831 = vmatprep.subr.mxu0 0.0
        %2832 = vmatpush1.xpose.msra.mxu0 0.0
        %2833 = vmatprep.subr.mxu0 0.0
        %2834 = vmatpush1.xpose.msra.mxu0 0.0
        %2835 = vmatprep.subr.mxu0 0.0
        %2836 = vmatpush1.xpose.msra.mxu0 0.0
        %2837 = vmatprep.subr.mxu0 0.0
        %2838 = vmatpush1.xpose.msra.mxu0 0.0
        %2839 = vmatprep.subr.mxu0 0.0
        %2840 = vmatpush1.xpose.msra.mxu0 0.0
        %2841 = vmatprep.subr.mxu0 0.0
        %2842 = vmatpush1.xpose.msra.mxu0 0.0
        %2843 = vmatprep.subr.mxu0 0.0
        %2844 = vmatpush1.xpose.msra.mxu0 0.0
        %2845 = vmatprep.subr.mxu0 0.0
        %2846 = vmatpush1.xpose.msra.mxu0 %v2813
        %2847 = vmatprep.subr.mxu0 0.0
        %2848 = vmatpush2.xpose.msra.mxu0 0.0
        %2849 = vmatprep.subr.mxu0 0.0
        %2850 = vmatpush2.xpose.msra.mxu0 0.0
        %2851 = vmatprep.subr.mxu0 0.0
        %2852 = vmatpush2.xpose.msra.mxu0 0.0
        %2853 = vmatprep.subr.mxu0 0.0
        %2854 = vmatpush2.xpose.msra.mxu0 0.0
        %2855 = vmatprep.subr.mxu0 0.0
        %2856 = vmatpush2.xpose.msra.mxu0 0.0
        %2857 = vmatprep.subr.mxu0 0.0
        %2858 = vmatpush2.xpose.msra.mxu0 0.0
        %2859 = vmatprep.subr.mxu0 0.0
        %2860 = vmatpush2.xpose.msra.mxu0 0.0
        %2861 = vmatprep.subr.mxu0 0.0
        %2862 = vmatpush2.xpose.msra.mxu0 0.0
        %2863 = vmatprep.subr.mxu0 0.0
        %2864 = vmatpush2.xpose.msra.mxu0 0.0
        %2865 = vmatprep.subr.mxu0 0.0
        %2866 = vmatpush2.xpose.msra.mxu0 0.0
        %2867 = vmatprep.subr.mxu0 0.0
        %2868 = vmatpush2.xpose.msra.mxu0 0.0
        %2869 = vmatprep.subr.mxu0 0.0
        %2870 = vmatpush2.xpose.msra.mxu0 0.0
        %2871 = vmatprep.subr.mxu0 0.0
        %2872 = vmatpush2.xpose.msra.mxu0 0.0
        %2873 = vmatprep.subr.mxu0 0.0
        %2874 = vmatpush2.xpose.msra.mxu0 0.0
        %2875 = vmatprep.subr.mxu0 0.0
        %2876 = vmatpush2.xpose.msra.mxu0 0.0
        %2877 = vmatprep.subr.mxu0 0.0
        %2878 = vmatpush2.xpose.msra.mxu0 0.0
        %2879 = vmatprep.mubr.f32.mxu0 0.0
        %2880 = vmatmul.mubr.f32.gmra.mxu0 %v2789
        %v2881 = vpop.f32.mrf.mxu0
        %v2882 = vadd.f32 0.0, %v2881
        %v2883 = vpop.f32.mrf.mxu0
        %2884 = vmatprep.mubr.f32.mxu0 0.0
        %2885 = vmatmul.mubr.f32.gmra.mxu0 %v2792
        %v2886 = vpop.f32.mrf.mxu0
        %v2887 = vadd.f32 0.0, %v2886
        %v2888 = vpop.f32.mrf.mxu0
        %2889 = vmatprep.mubr.f32.mxu0 0.0
        %2890 = vmatmul.mubr.f32.gmra.mxu0 %v2795
        %v2891 = vpop.f32.mrf.mxu0
        %v2892 = vadd.f32 0.0, %v2891
        %v2893 = vpop.f32.mrf.mxu0
        %2894 = vmatprep.mubr.f32.mxu0 0.0
        %2895 = vmatmul.mubr.f32.gmra.mxu0 %v2798
        %v2896 = vpop.f32.mrf.mxu0
        %v2897 = vadd.f32 0.0, %v2896
        %v2898 = vpop.f32.mrf.mxu0
        %2899 = vmatprep.mubr.f32.mxu0 0.0
        %2900 = vmatmul.mubr.f32.gmra.mxu0 %v2801
        %v2901 = vpop.f32.mrf.mxu0
        %v2902 = vadd.f32 0.0, %v2901
        %v2903 = vpop.f32.mrf.mxu0
        %2904 = vmatprep.mubr.f32.mxu0 0.0
        %2905 = vmatmul.mubr.f32.gmra.mxu0 %v2804
        %v2906 = vpop.f32.mrf.mxu0
        %v2907 = vadd.f32 0.0, %v2906
        %v2908 = vpop.f32.mrf.mxu0
        %2909 = vmatprep.mubr.f32.mxu0 0.0
        %2910 = vmatmul.mubr.f32.gmra.mxu0 %v2807
        %v2911 = vpop.f32.mrf.mxu0
        %v2912 = vadd.f32 0.0, %v2911
        %v2913 = vpop.f32.mrf.mxu0
        %2914 = vmatprep.mubr.f32.mxu0 0.0
        %2915 = vmatmul.mubr.f32.gmra.mxu0 %v2810
        %v2916 = vpop.f32.mrf.mxu0
        %v2917 = vadd.f32 0.0, %v2916
        %v2918 = vpop.f32.mrf.mxu0
        %2919 = vdwg.mxu0
        %v2920 = vrcp.pop %v2766
        %v2921 = vmul.f32 %v2882, %v2920
        %v2922 = vrcp.pop %v2769
        %v2923 = vmul.f32 %v2887, %v2922
        %v2924 = vrcp.pop %v2772
        %v2925 = vmul.f32 %v2892, %v2924
        %v2926 = vrcp.pop %v2775
        %v2927 = vmul.f32 %v2897, %v2926
        %v2928 = vrcp.pop %v2778
        %v2929 = vmul.f32 %v2902, %v2928
        %v2930 = vrcp.pop %v2781
        %v2931 = vmul.f32 %v2907, %v2930
        %v2932 = vrcp.pop %v2784
        %v2933 = vmul.f32 %v2912, %v2932
        %v2934 = vrcp.pop %v2787
        %v2935 = vmul.f32 %v2917, %v2934
        %v2936 = vld [vmem:[%s5 + $0x18] sm:$0xff]
        %v2938 = vsel %vm1001, %v2921, 0
        %v2941 = vsel %vm1001, %v2923, 0
        %v2944 = vsel %vm1001, %v2925, 0
        %v2947 = vsel %vm1001, %v2927, 0
        %v2950 = vsel %vm1001, %v2929, 0
        %v2953 = vsel %vm1001, %v2931, 0
        %v2956 = vsel %vm1001, %v2933, 0
        %v2959 = vsel %vm1001, %v2935, 0
        %2961 = vmatprep.subr.mxu0 0.0
        %2962 = vmatpush1.msra.mxu0 0.0
        %2963 = vmatprep.subr.mxu0 0.0
        %2964 = vmatpush1.msra.mxu0 0.0
        %2965 = vmatprep.subr.mxu0 0.0
        %2966 = vmatpush1.msra.mxu0 0.0
        %2967 = vmatprep.subr.mxu0 0.0
        %2968 = vmatpush1.msra.mxu0 0.0
        %2969 = vmatprep.subr.mxu0 0.0
        %2970 = vmatpush1.msra.mxu0 0.0
        %2971 = vmatprep.subr.mxu0 0.0
        %2972 = vmatpush1.msra.mxu0 0.0
        %2973 = vmatprep.subr.mxu0 0.0
        %2974 = vmatpush1.msra.mxu0 0.0
        %2975 = vmatprep.subr.mxu0 0.0
        %2976 = vmatpush1.msra.mxu0 0.0
        %2977 = vmatprep.subr.mxu0 0.0
        %2978 = vmatpush1.msra.mxu0 0.0
        %2979 = vmatprep.subr.mxu0 0.0
        %2980 = vmatpush1.msra.mxu0 0.0
        %2981 = vmatprep.subr.mxu0 0.0
        %2982 = vmatpush1.msra.mxu0 0.0
        %2983 = vmatprep.subr.mxu0 0.0
        %2984 = vmatpush1.msra.mxu0 0.0
        %2985 = vmatprep.subr.mxu0 0.0
        %2986 = vmatpush1.msra.mxu0 0.0
        %2987 = vmatprep.subr.mxu0 0.0
        %2988 = vmatpush1.msra.mxu0 0.0
        %2989 = vmatprep.subr.mxu0 0.0
        %2990 = vmatpush1.msra.mxu0 0.0
        %2991 = vmatprep.subr.mxu0 0.0
        %2992 = vmatpush1.msra.mxu0 %v2936
        %2993 = vmatprep.subr.mxu0 0.0
        %2994 = vmatpush2.msra.mxu0 0.0
        %2995 = vmatprep.subr.mxu0 0.0
        %2996 = vmatpush2.msra.mxu0 0.0
        %2997 = vmatprep.subr.mxu0 0.0
        %2998 = vmatpush2.msra.mxu0 0.0
        %2999 = vmatprep.subr.mxu0 0.0
        %3000 = vmatpush2.msra.mxu0 0.0
        %3001 = vmatprep.subr.mxu0 0.0
        %3002 = vmatpush2.msra.mxu0 0.0
        %3003 = vmatprep.subr.mxu0 0.0
        %3004 = vmatpush2.msra.mxu0 0.0
        %3005 = vmatprep.subr.mxu0 0.0
        %3006 = vmatpush2.msra.mxu0 0.0
        %3007 = vmatprep.subr.mxu0 0.0
        %3008 = vmatpush2.msra.mxu0 0.0
        %3009 = vmatprep.subr.mxu0 0.0
        %3010 = vmatpush2.msra.mxu0 0.0
        %3011 = vmatprep.subr.mxu0 0.0
        %3012 = vmatpush2.msra.mxu0 0.0
        %3013 = vmatprep.subr.mxu0 0.0
        %3014 = vmatpush2.msra.mxu0 0.0
        %3015 = vmatprep.subr.mxu0 0.0
        %3016 = vmatpush2.msra.mxu0 0.0
        %3017 = vmatprep.subr.mxu0 0.0
        %3018 = vmatpush2.msra.mxu0 0.0
        %3019 = vmatprep.subr.mxu0 0.0
        %3020 = vmatpush2.msra.mxu0 0.0
        %3021 = vmatprep.subr.mxu0 0.0
        %3022 = vmatpush2.msra.mxu0 0.0
        %3023 = vmatprep.subr.mxu0 0.0
        %3024 = vmatpush2.msra.mxu0 0.0
        %3025 = vmatprep.mubr.f32.mxu0 0.0
        %3026 = vmatmul.mubr.f32.gmra.mxu0 %v2938
        %v3027 = vpop.f32.mrf.mxu0
        %v3028 = vadd.f32 0.0, %v3027
        %v3029 = vpop.f32.mrf.mxu0
        %3030 = vmatprep.mubr.f32.mxu0 0.0
        %3031 = vmatmul.mubr.f32.gmra.mxu0 %v2941
        %v3032 = vpop.f32.mrf.mxu0
        %v3033 = vadd.f32 0.0, %v3032
        %v3034 = vpop.f32.mrf.mxu0
        %3035 = vmatprep.mubr.f32.mxu0 0.0
        %3036 = vmatmul.mubr.f32.gmra.mxu0 %v2944
        %v3037 = vpop.f32.mrf.mxu0
        %v3038 = vadd.f32 0.0, %v3037
        %v3039 = vpop.f32.mrf.mxu0
        %3040 = vmatprep.mubr.f32.mxu0 0.0
        %3041 = vmatmul.mubr.f32.gmra.mxu0 %v2947
        %v3042 = vpop.f32.mrf.mxu0
        %v3043 = vadd.f32 0.0, %v3042
        %v3044 = vpop.f32.mrf.mxu0
        %3045 = vmatprep.mubr.f32.mxu0 0.0
        %3046 = vmatmul.mubr.f32.gmra.mxu0 %v2950
        %v3047 = vpop.f32.mrf.mxu0
        %v3048 = vadd.f32 0.0, %v3047
        %v3049 = vpop.f32.mrf.mxu0
        %3050 = vmatprep.mubr.f32.mxu0 0.0
        %3051 = vmatmul.mubr.f32.gmra.mxu0 %v2953
        %v3052 = vpop.f32.mrf.mxu0
        %v3053 = vadd.f32 0.0, %v3052
        %v3054 = vpop.f32.mrf.mxu0
        %3055 = vmatprep.mubr.f32.mxu0 0.0
        %3056 = vmatmul.mubr.f32.gmra.mxu0 %v2956
        %v3057 = vpop.f32.mrf.mxu0
        %v3058 = vadd.f32 0.0, %v3057
        %v3059 = vpop.f32.mrf.mxu0
        %3060 = vmatprep.mubr.f32.mxu0 0.0
        %3061 = vmatmul.mubr.f32.gmra.mxu0 %v2959
        %v3062 = vpop.f32.mrf.mxu0
        %v3063 = vadd.f32 0.0, %v3062
        %v3064 = vpop.f32.mrf.mxu0
        %3065 = vdwg.mxu0
        %v3066 = vadd.f32 %v2538, %v3028
        %v3067 = vadd.f32 %v2539, %v3033
        %v3068 = vadd.f32 %v2540, %v3038
        %v3069 = vadd.f32 %v2541, %v3043
        %v3070 = vadd.f32 %v2542, %v3048
        %v3071 = vadd.f32 %v2543, %v3053
        %v3072 = vadd.f32 %v2544, %v3058
        %v3073 = vadd.f32 %v2545, %v3063
        %s3074 = scalar_lea.vmem %s7, 256
        %v3075 = vld [vmem:[%s3074] sm:$0xff]
        %v3076 = vld [vmem:[%s3074 + $0x8] sm:$0xff]
        %v3077 = vld [vmem:[%s3074 + $0x10] sm:$0xff]
        %v3078 = vld [vmem:[%s3074 + $0x18] sm:$0xff]
        %v3079 = vld [vmem:[%s3074 + $0x20] sm:$0xff]
        %v3080 = vld [vmem:[%s3074 + $0x28] sm:$0xff]
        %v3081 = vld [vmem:[%s3074 + $0x30] sm:$0xff]
        %v3082 = vld [vmem:[%s3074 + $0x38] sm:$0xff]
        %3083 = vxpose.xlu0.b32.start [1/16] %v772, 128
        %3084 = vxpose.xlu0.b32.cont [2/16] 0.0, 128
        %3085 = vxpose.xlu0.b32.cont [3/16] 0.0, 128
        %3086 = vxpose.xlu0.b32.cont [4/16] 0.0, 128
        %3087 = vxpose.xlu0.b32.cont [5/16] 0.0, 128
        %3088 = vxpose.xlu0.b32.cont [6/16] 0.0, 128
        %3089 = vxpose.xlu0.b32.cont [7/16] 0.0, 128
        %3090 = vxpose.xlu0.b32.cont [8/16] 0.0, 128
        %3091 = vxpose.xlu0.b32.cont [9/16] 0.0, 128
        %3092 = vxpose.xlu0.b32.cont [10/16] 0.0, 128
        %3093 = vxpose.xlu0.b32.cont [11/16] 0.0, 128
        %3094 = vxpose.xlu0.b32.cont [12/16] 0.0, 128
        %3095 = vxpose.xlu0.b32.cont [13/16] 0.0, 128
        %3096 = vxpose.xlu0.b32.cont [14/16] 0.0, 128
        %3097 = vxpose.xlu0.b32.cont [15/16] 0.0, 128
        %3098 = vxpose.xlu0.b32.end [16/16] 0.0, 128
        %v3099 = vpop.trf.xlu0
        %v3100 = vpop.trf.xlu0
        %v3101 = vpop.trf.xlu0
        %v3102 = vpop.trf.xlu0
        %v3103 = vpop.trf.xlu0
        %v3104 = vpop.trf.xlu0
        %v3105 = vpop.trf.xlu0
        %v3106 = vpop.trf.xlu0
        %v3107 = vpop.trf.xlu0
        %v3108 = vpop.trf.xlu0
        %v3109 = vpop.trf.xlu0
        %v3110 = vpop.trf.xlu0
        %v3111 = vpop.trf.xlu0
        %v3112 = vpop.trf.xlu0
        %v3113 = vpop.trf.xlu0
        %v3114 = vpop.trf.xlu0
        %v3116 = vsel %vm1001, %v3099, 0
        %v3119 = vsel %vm1001, %v3100, 0
        %v3122 = vsel %vm1001, %v3101, 0
        %v3125 = vsel %vm1001, %v3102, 0
        %v3128 = vsel %vm1001, %v3103, 0
        %v3131 = vsel %vm1001, %v3104, 0
        %v3134 = vsel %vm1001, %v3105, 0
        %v3137 = vsel %vm1001, %v3106, 0
        %3139 = vmatprep.subr.mxu0 0.0
        %3140 = vmatpush1.msra.mxu0 0.0
        %3141 = vmatprep.subr.mxu0 0.0
        %3142 = vmatpush1.msra.mxu0 0.0
        %3143 = vmatprep.subr.mxu0 0.0
        %3144 = vmatpush1.msra.mxu0 0.0
        %3145 = vmatprep.subr.mxu0 0.0
        %3146 = vmatpush1.msra.mxu0 0.0
        %3147 = vmatprep.subr.mxu0 0.0
        %3148 = vmatpush1.msra.mxu0 0.0
        %3149 = vmatprep.subr.mxu0 0.0
        %3150 = vmatpush1.msra.mxu0 0.0
        %3151 = vmatprep.subr.mxu0 0.0
        %3152 = vmatpush1.msra.mxu0 0.0
        %3153 = vmatprep.subr.mxu0 0.0
        %3154 = vmatpush1.msra.mxu0 0.0
        %3155 = vmatprep.subr.mxu0 0.0
        %3156 = vmatpush1.msra.mxu0 0.0
        %3157 = vmatprep.subr.mxu0 0.0
        %3158 = vmatpush1.msra.mxu0 0.0
        %3159 = vmatprep.subr.mxu0 0.0
        %3160 = vmatpush1.msra.mxu0 0.0
        %3161 = vmatprep.subr.mxu0 0.0
        %3162 = vmatpush1.msra.mxu0 0.0
        %3163 = vmatprep.subr.mxu0 0.0
        %3164 = vmatpush1.msra.mxu0 0.0
        %3165 = vmatprep.subr.mxu0 0.0
        %3166 = vmatpush1.msra.mxu0 0.0
        %3167 = vmatprep.subr.mxu0 0.0
        %3168 = vmatpush1.msra.mxu0 0.0
        %3169 = vmatprep.subr.mxu0 0.0
        %3170 = vmatpush1.msra.mxu0 %v836
        %3171 = vmatprep.subr.mxu0 0.0
        %3172 = vmatpush2.msra.mxu0 0.0
        %3173 = vmatprep.subr.mxu0 0.0
        %3174 = vmatpush2.msra.mxu0 0.0
        %3175 = vmatprep.subr.mxu0 0.0
        %3176 = vmatpush2.msra.mxu0 0.0
        %3177 = vmatprep.subr.mxu0 0.0
        %3178 = vmatpush2.msra.mxu0 0.0
        %3179 = vmatprep.subr.mxu0 0.0
        %3180 = vmatpush2.msra.mxu0 0.0
        %3181 = vmatprep.subr.mxu0 0.0
        %3182 = vmatpush2.msra.mxu0 0.0
        %3183 = vmatprep.subr.mxu0 0.0
        %3184 = vmatpush2.msra.mxu0 0.0
        %3185 = vmatprep.subr.mxu0 0.0
        %3186 = vmatpush2.msra.mxu0 0.0
        %3187 = vmatprep.subr.mxu0 0.0
        %3188 = vmatpush2.msra.mxu0 0.0
        %3189 = vmatprep.subr.mxu0 0.0
        %3190 = vmatpush2.msra.mxu0 0.0
        %3191 = vmatprep.subr.mxu0 0.0
        %3192 = vmatpush2.msra.mxu0 0.0
        %3193 = vmatprep.subr.mxu0 0.0
        %3194 = vmatpush2.msra.mxu0 0.0
        %3195 = vmatprep.subr.mxu0 0.0
        %3196 = vmatpush2.msra.mxu0 0.0
        %3197 = vmatprep.subr.mxu0 0.0
        %3198 = vmatpush2.msra.mxu0 0.0
        %3199 = vmatprep.subr.mxu0 0.0
        %3200 = vmatpush2.msra.mxu0 0.0
        %3201 = vmatprep.subr.mxu0 0.0
        %3202 = vmatpush2.msra.mxu0 0.0
        %3203 = vmatprep.mubr.f32.mxu0 0.0
        %3204 = vmatmul.mubr.f32.gmra.mxu0 %v3116
        %v3205 = vpop.f32.mrf.mxu0
        %v3206 = vadd.f32 %v3075, %v3205
        %v3207 = vpop.f32.mrf.mxu0
        %3208 = vmatprep.mubr.f32.mxu0 0.0
        %3209 = vmatmul.mubr.f32.gmra.mxu0 %v3119
        %v3210 = vpop.f32.mrf.mxu0
        %v3211 = vadd.f32 %v3076, %v3210
        %v3212 = vpop.f32.mrf.mxu0
        %3213 = vmatprep.mubr.f32.mxu0 0.0
        %3214 = vmatmul.mubr.f32.gmra.mxu0 %v3122
        %v3215 = vpop.f32.mrf.mxu0
        %v3216 = vadd.f32 %v3077, %v3215
        %v3217 = vpop.f32.mrf.mxu0
        %3218 = vmatprep.mubr.f32.mxu0 0.0
        %3219 = vmatmul.mubr.f32.gmra.mxu0 %v3125
        %v3220 = vpop.f32.mrf.mxu0
        %v3221 = vadd.f32 %v3078, %v3220
        %v3222 = vpop.f32.mrf.mxu0
        %3223 = vmatprep.mubr.f32.mxu0 0.0
        %3224 = vmatmul.mubr.f32.gmra.mxu0 %v3128
        %v3225 = vpop.f32.mrf.mxu0
        %v3226 = vadd.f32 %v3079, %v3225
        %v3227 = vpop.f32.mrf.mxu0
        %3228 = vmatprep.mubr.f32.mxu0 0.0
        %3229 = vmatmul.mubr.f32.gmra.mxu0 %v3131
        %v3230 = vpop.f32.mrf.mxu0
        %v3231 = vadd.f32 %v3080, %v3230
        %v3232 = vpop.f32.mrf.mxu0
        %3233 = vmatprep.mubr.f32.mxu0 0.0
        %3234 = vmatmul.mubr.f32.gmra.mxu0 %v3134
        %v3235 = vpop.f32.mrf.mxu0
        %v3236 = vadd.f32 %v3081, %v3235
        %v3237 = vpop.f32.mrf.mxu0
        %3238 = vmatprep.mubr.f32.mxu0 0.0
        %3239 = vmatmul.mubr.f32.gmra.mxu0 %v3137
        %v3240 = vpop.f32.mrf.mxu0
        %v3241 = vadd.f32 %v3082, %v3240
        %v3242 = vpop.f32.mrf.mxu0
        %3243 = vdwg.mxu0
        %v3244 = vsel %vm1131, %v3206, -inf
        %3245 = vmax.xlane.f32.xlu0 %v3244
        %v3246 = vpop.xlane.xlu0 %3245
        %v3247 = vsel %vm1131, %v3211, -inf
        %3248 = vmax.xlane.f32.xlu0 %v3247
        %v3249 = vpop.xlane.xlu0 %3248
        %v3250 = vsel %vm1131, %v3216, -inf
        %3251 = vmax.xlane.f32.xlu0 %v3250
        %v3252 = vpop.xlane.xlu0 %3251
        %v3253 = vsel %vm1131, %v3221, -inf
        %3254 = vmax.xlane.f32.xlu0 %v3253
        %v3255 = vpop.xlane.xlu0 %3254
        %v3256 = vsel %vm1131, %v3226, -inf
        %3257 = vmax.xlane.f32.xlu0 %v3256
        %v3258 = vpop.xlane.xlu0 %3257
        %v3259 = vsel %vm1131, %v3231, -inf
        %3260 = vmax.xlane.f32.xlu0 %v3259
        %v3261 = vpop.xlane.xlu0 %3260
        %v3262 = vsel %vm1131, %v3236, -inf
        %3263 = vmax.xlane.f32.xlu0 %v3262
        %v3264 = vpop.xlane.xlu0 %3263
        %v3265 = vsel %vm1131, %v3241, -inf
        %3266 = vmax.xlane.f32.xlu0 %v3265
        %v3267 = vpop.xlane.xlu0 %3266
        %v3268 = vsub.f32 %v3206, %v3246
        %v3269 = vsub.f32 %v3211, %v3249
        %v3270 = vsub.f32 %v3216, %v3252
        %v3271 = vsub.f32 %v3221, %v3255
        %v3272 = vsub.f32 %v3226, %v3258
        %v3273 = vsub.f32 %v3231, %v3261
        %v3274 = vsub.f32 %v3236, %v3264
        %v3275 = vsub.f32 %v3241, %v3267
        %v3276 = vmul.f32 %v3268, 1.442695
        %v3277 = vpow.pop %v3276
        %v3278 = vmul.f32 %v3269, 1.442695
        %v3279 = vpow.pop %v3278
        %v3280 = vmul.f32 %v3270, 1.442695
        %v3281 = vpow.pop %v3280
        %v3282 = vmul.f32 %v3271, 1.442695
        %v3283 = vpow.pop %v3282
        %v3284 = vmul.f32 %v3272, 1.442695
        %v3285 = vpow.pop %v3284
        %v3286 = vmul.f32 %v3273, 1.442695
        %v3287 = vpow.pop %v3286
        %v3288 = vmul.f32 %v3274, 1.442695
        %v3289 = vpow.pop %v3288
        %v3290 = vmul.f32 %v3275, 1.442695
        %v3291 = vpow.pop %v3290
        %v3292 = vsel %vm1131, %v3277, 0.0
        %3293 = vadd.xlane.f32.xlu0 %v3292
        %v3294 = vpop.xlane.xlu0 %3293
        %v3295 = vsel %vm1131, %v3279, 0.0
        %3296 = vadd.xlane.f32.xlu0 %v3295
        %v3297 = vpop.xlane.xlu0 %3296
        %v3298 = vsel %vm1131, %v3281, 0.0
        %3299 = vadd.xlane.f32.xlu0 %v3298
        %v3300 = vpop.xlane.xlu0 %3299
        %v3301 = vsel %vm1131, %v3283, 0.0
        %3302 = vadd.xlane.f32.xlu0 %v3301
        %v3303 = vpop.xlane.xlu0 %3302
        %v3304 = vsel %vm1131, %v3285, 0.0
        %3305 = vadd.xlane.f32.xlu0 %v3304
        %v3306 = vpop.xlane.xlu0 %3305
        %v3307 = vsel %vm1131, %v3287, 0.0
        %3308 = vadd.xlane.f32.xlu0 %v3307
        %v3309 = vpop.xlane.xlu0 %3308
        %v3310 = vsel %vm1131, %v3289, 0.0
        %3311 = vadd.xlane.f32.xlu0 %v3310
        %v3312 = vpop.xlane.xlu0 %3311
        %v3313 = vsel %vm1131, %v3291, 0.0
        %3314 = vadd.xlane.f32.xlu0 %v3313
        %v3315 = vpop.xlane.xlu0 %3314
        %v3317 = vsel %vm1131, %v3277, 0
        %v3320 = vsel %vm1131, %v3279, 0
        %v3323 = vsel %vm1131, %v3281, 0
        %v3326 = vsel %vm1131, %v3283, 0
        %v3329 = vsel %vm1131, %v3285, 0
        %v3332 = vsel %vm1131, %v3287, 0
        %v3335 = vsel %vm1131, %v3289, 0
        %v3338 = vsel %vm1131, %v3291, 0
        %v3341 = vsel %vm1131, %v900, 0
        %3343 = vmatprep.subr.mxu0 0.0
        %3344 = vmatpush1.xpose.msra.mxu0 0.0
        %3345 = vmatprep.subr.mxu0 0.0
        %3346 = vmatpush1.xpose.msra.mxu0 0.0
        %3347 = vmatprep.subr.mxu0 0.0
        %3348 = vmatpush1.xpose.msra.mxu0 0.0
        %3349 = vmatprep.subr.mxu0 0.0
        %3350 = vmatpush1.xpose.msra.mxu0 0.0
        %3351 = vmatprep.subr.mxu0 0.0
        %3352 = vmatpush1.xpose.msra.mxu0 0.0
        %3353 = vmatprep.subr.mxu0 0.0
        %3354 = vmatpush1.xpose.msra.mxu0 0.0
        %3355 = vmatprep.subr.mxu0 0.0
        %3356 = vmatpush1.xpose.msra.mxu0 0.0
        %3357 = vmatprep.subr.mxu0 0.0
        %3358 = vmatpush1.xpose.msra.mxu0 0.0
        %3359 = vmatprep.subr.mxu0 0.0
        %3360 = vmatpush1.xpose.msra.mxu0 0.0
        %3361 = vmatprep.subr.mxu0 0.0
        %3362 = vmatpush1.xpose.msra.mxu0 0.0
        %3363 = vmatprep.subr.mxu0 0.0
        %3364 = vmatpush1.xpose.msra.mxu0 0.0
        %3365 = vmatprep.subr.mxu0 0.0
        %3366 = vmatpush1.xpose.msra.mxu0 0.0
        %3367 = vmatprep.subr.mxu0 0.0
        %3368 = vmatpush1.xpose.msra.mxu0 0.0
        %3369 = vmatprep.subr.mxu0 0.0
        %3370 = vmatpush1.xpose.msra.mxu0 0.0
        %3371 = vmatprep.subr.mxu0 0.0
        %3372 = vmatpush1.xpose.msra.mxu0 0.0
        %3373 = vmatprep.subr.mxu0 0.0
        %3374 = vmatpush1.xpose.msra.mxu0 %v3341
        %3375 = vmatprep.subr.mxu0 0.0
        %3376 = vmatpush2.xpose.msra.mxu0 0.0
        %3377 = vmatprep.subr.mxu0 0.0
        %3378 = vmatpush2.xpose.msra.mxu0 0.0
        %3379 = vmatprep.subr.mxu0 0.0
        %3380 = vmatpush2.xpose.msra.mxu0 0.0
        %3381 = vmatprep.subr.mxu0 0.0
        %3382 = vmatpush2.xpose.msra.mxu0 0.0
        %3383 = vmatprep.subr.mxu0 0.0
        %3384 = vmatpush2.xpose.msra.mxu0 0.0
        %3385 = vmatprep.subr.mxu0 0.0
        %3386 = vmatpush2.xpose.msra.mxu0 0.0
        %3387 = vmatprep.subr.mxu0 0.0
        %3388 = vmatpush2.xpose.msra.mxu0 0.0
        %3389 = vmatprep.subr.mxu0 0.0
        %3390 = vmatpush2.xpose.msra.mxu0 0.0
        %3391 = vmatprep.subr.mxu0 0.0
        %3392 = vmatpush2.xpose.msra.mxu0 0.0
        %3393 = vmatprep.subr.mxu0 0.0
        %3394 = vmatpush2.xpose.msra.mxu0 0.0
        %3395 = vmatprep.subr.mxu0 0.0
        %3396 = vmatpush2.xpose.msra.mxu0 0.0
        %3397 = vmatprep.subr.mxu0 0.0
        %3398 = vmatpush2.xpose.msra.mxu0 0.0
        %3399 = vmatprep.subr.mxu0 0.0
        %3400 = vmatpush2.xpose.msra.mxu0 0.0
        %3401 = vmatprep.subr.mxu0 0.0
        %3402 = vmatpush2.xpose.msra.mxu0 0.0
        %3403 = vmatprep.subr.mxu0 0.0
        %3404 = vmatpush2.xpose.msra.mxu0 0.0
        %3405 = vmatprep.subr.mxu0 0.0
        %3406 = vmatpush2.xpose.msra.mxu0 0.0
        %3407 = vmatprep.mubr.f32.mxu0 0.0
        %3408 = vmatmul.mubr.f32.gmra.mxu0 %v3317
        %v3409 = vpop.f32.mrf.mxu0
        %v3410 = vadd.f32 0.0, %v3409
        %v3411 = vpop.f32.mrf.mxu0
        %3412 = vmatprep.mubr.f32.mxu0 0.0
        %3413 = vmatmul.mubr.f32.gmra.mxu0 %v3320
        %v3414 = vpop.f32.mrf.mxu0
        %v3415 = vadd.f32 0.0, %v3414
        %v3416 = vpop.f32.mrf.mxu0
        %3417 = vmatprep.mubr.f32.mxu0 0.0
        %3418 = vmatmul.mubr.f32.gmra.mxu0 %v3323
        %v3419 = vpop.f32.mrf.mxu0
        %v3420 = vadd.f32 0.0, %v3419
        %v3421 = vpop.f32.mrf.mxu0
        %3422 = vmatprep.mubr.f32.mxu0 0.0
        %3423 = vmatmul.mubr.f32.gmra.mxu0 %v3326
        %v3424 = vpop.f32.mrf.mxu0
        %v3425 = vadd.f32 0.0, %v3424
        %v3426 = vpop.f32.mrf.mxu0
        %3427 = vmatprep.mubr.f32.mxu0 0.0
        %3428 = vmatmul.mubr.f32.gmra.mxu0 %v3329
        %v3429 = vpop.f32.mrf.mxu0
        %v3430 = vadd.f32 0.0, %v3429
        %v3431 = vpop.f32.mrf.mxu0
        %3432 = vmatprep.mubr.f32.mxu0 0.0
        %3433 = vmatmul.mubr.f32.gmra.mxu0 %v3332
        %v3434 = vpop.f32.mrf.mxu0
        %v3435 = vadd.f32 0.0, %v3434
        %v3436 = vpop.f32.mrf.mxu0
        %3437 = vmatprep.mubr.f32.mxu0 0.0
        %3438 = vmatmul.mubr.f32.gmra.mxu0 %v3335
        %v3439 = vpop.f32.mrf.mxu0
        %v3440 = vadd.f32 0.0, %v3439
        %v3441 = vpop.f32.mrf.mxu0
        %3442 = vmatprep.mubr.f32.mxu0 0.0
        %3443 = vmatmul.mubr.f32.gmra.mxu0 %v3338
        %v3444 = vpop.f32.mrf.mxu0
        %v3445 = vadd.f32 0.0, %v3444
        %v3446 = vpop.f32.mrf.mxu0
        %3447 = vdwg.mxu0
        %v3448 = vrcp.pop %v3294
        %v3449 = vmul.f32 %v3410, %v3448
        %v3450 = vrcp.pop %v3297
        %v3451 = vmul.f32 %v3415, %v3450
        %v3452 = vrcp.pop %v3300
        %v3453 = vmul.f32 %v3420, %v3452
        %v3454 = vrcp.pop %v3303
        %v3455 = vmul.f32 %v3425, %v3454
        %v3456 = vrcp.pop %v3306
        %v3457 = vmul.f32 %v3430, %v3456
        %v3458 = vrcp.pop %v3309
        %v3459 = vmul.f32 %v3435, %v3458
        %v3460 = vrcp.pop %v3312
        %v3461 = vmul.f32 %v3440, %v3460
        %v3462 = vrcp.pop %v3315
        %v3463 = vmul.f32 %v3445, %v3462
        %v3464 = vld [vmem:[%s5 + $0x20] sm:$0xff]
        %v3466 = vsel %vm1001, %v3449, 0
        %v3469 = vsel %vm1001, %v3451, 0
        %v3472 = vsel %vm1001, %v3453, 0
        %v3475 = vsel %vm1001, %v3455, 0
        %v3478 = vsel %vm1001, %v3457, 0
        %v3481 = vsel %vm1001, %v3459, 0
        %v3484 = vsel %vm1001, %v3461, 0
        %v3487 = vsel %vm1001, %v3463, 0
        %3489 = vmatprep.subr.mxu0 0.0
        %3490 = vmatpush1.msra.mxu0 0.0
        %3491 = vmatprep.subr.mxu0 0.0
        %3492 = vmatpush1.msra.mxu0 0.0
        %3493 = vmatprep.subr.mxu0 0.0
        %3494 = vmatpush1.msra.mxu0 0.0
        %3495 = vmatprep.subr.mxu0 0.0
        %3496 = vmatpush1.msra.mxu0 0.0
        %3497 = vmatprep.subr.mxu0 0.0
        %3498 = vmatpush1.msra.mxu0 0.0
        %3499 = vmatprep.subr.mxu0 0.0
        %3500 = vmatpush1.msra.mxu0 0.0
        %3501 = vmatprep.subr.mxu0 0.0
        %3502 = vmatpush1.msra.mxu0 0.0
        %3503 = vmatprep.subr.mxu0 0.0
        %3504 = vmatpush1.msra.mxu0 0.0
        %3505 = vmatprep.subr.mxu0 0.0
        %3506 = vmatpush1.msra.mxu0 0.0
        %3507 = vmatprep.subr.mxu0 0.0
        %3508 = vmatpush1.msra.mxu0 0.0
        %3509 = vmatprep.subr.mxu0 0.0
        %3510 = vmatpush1.msra.mxu0 0.0
        %3511 = vmatprep.subr.mxu0 0.0
        %3512 = vmatpush1.msra.mxu0 0.0
        %3513 = vmatprep.subr.mxu0 0.0
        %3514 = vmatpush1.msra.mxu0 0.0
        %3515 = vmatprep.subr.mxu0 0.0
        %3516 = vmatpush1.msra.mxu0 0.0
        %3517 = vmatprep.subr.mxu0 0.0
        %3518 = vmatpush1.msra.mxu0 0.0
        %3519 = vmatprep.subr.mxu0 0.0
        %3520 = vmatpush1.msra.mxu0 %v3464
        %3521 = vmatprep.subr.mxu0 0.0
        %3522 = vmatpush2.msra.mxu0 0.0
        %3523 = vmatprep.subr.mxu0 0.0
        %3524 = vmatpush2.msra.mxu0 0.0
        %3525 = vmatprep.subr.mxu0 0.0
        %3526 = vmatpush2.msra.mxu0 0.0
        %3527 = vmatprep.subr.mxu0 0.0
        %3528 = vmatpush2.msra.mxu0 0.0
        %3529 = vmatprep.subr.mxu0 0.0
        %3530 = vmatpush2.msra.mxu0 0.0
        %3531 = vmatprep.subr.mxu0 0.0
        %3532 = vmatpush2.msra.mxu0 0.0
        %3533 = vmatprep.subr.mxu0 0.0
        %3534 = vmatpush2.msra.mxu0 0.0
        %3535 = vmatprep.subr.mxu0 0.0
        %3536 = vmatpush2.msra.mxu0 0.0
        %3537 = vmatprep.subr.mxu0 0.0
        %3538 = vmatpush2.msra.mxu0 0.0
        %3539 = vmatprep.subr.mxu0 0.0
        %3540 = vmatpush2.msra.mxu0 0.0
        %3541 = vmatprep.subr.mxu0 0.0
        %3542 = vmatpush2.msra.mxu0 0.0
        %3543 = vmatprep.subr.mxu0 0.0
        %3544 = vmatpush2.msra.mxu0 0.0
        %3545 = vmatprep.subr.mxu0 0.0
        %3546 = vmatpush2.msra.mxu0 0.0
        %3547 = vmatprep.subr.mxu0 0.0
        %3548 = vmatpush2.msra.mxu0 0.0
        %3549 = vmatprep.subr.mxu0 0.0
        %3550 = vmatpush2.msra.mxu0 0.0
        %3551 = vmatprep.subr.mxu0 0.0
        %3552 = vmatpush2.msra.mxu0 0.0
        %3553 = vmatprep.mubr.f32.mxu0 0.0
        %3554 = vmatmul.mubr.f32.gmra.mxu0 %v3466
        %v3555 = vpop.f32.mrf.mxu0
        %v3556 = vadd.f32 0.0, %v3555
        %v3557 = vpop.f32.mrf.mxu0
        %3558 = vmatprep.mubr.f32.mxu0 0.0
        %3559 = vmatmul.mubr.f32.gmra.mxu0 %v3469
        %v3560 = vpop.f32.mrf.mxu0
        %v3561 = vadd.f32 0.0, %v3560
        %v3562 = vpop.f32.mrf.mxu0
        %3563 = vmatprep.mubr.f32.mxu0 0.0
        %3564 = vmatmul.mubr.f32.gmra.mxu0 %v3472
        %v3565 = vpop.f32.mrf.mxu0
        %v3566 = vadd.f32 0.0, %v3565
        %v3567 = vpop.f32.mrf.mxu0
        %3568 = vmatprep.mubr.f32.mxu0 0.0
        %3569 = vmatmul.mubr.f32.gmra.mxu0 %v3475
        %v3570 = vpop.f32.mrf.mxu0
        %v3571 = vadd.f32 0.0, %v3570
        %v3572 = vpop.f32.mrf.mxu0
        %3573 = vmatprep.mubr.f32.mxu0 0.0
        %3574 = vmatmul.mubr.f32.gmra.mxu0 %v3478
        %v3575 = vpop.f32.mrf.mxu0
        %v3576 = vadd.f32 0.0, %v3575
        %v3577 = vpop.f32.mrf.mxu0
        %3578 = vmatprep.mubr.f32.mxu0 0.0
        %3579 = vmatmul.mubr.f32.gmra.mxu0 %v3481
        %v3580 = vpop.f32.mrf.mxu0
        %v3581 = vadd.f32 0.0, %v3580
        %v3582 = vpop.f32.mrf.mxu0
        %3583 = vmatprep.mubr.f32.mxu0 0.0
        %3584 = vmatmul.mubr.f32.gmra.mxu0 %v3484
        %v3585 = vpop.f32.mrf.mxu0
        %v3586 = vadd.f32 0.0, %v3585
        %v3587 = vpop.f32.mrf.mxu0
        %3588 = vmatprep.mubr.f32.mxu0 0.0
        %3589 = vmatmul.mubr.f32.gmra.mxu0 %v3487
        %v3590 = vpop.f32.mrf.mxu0
        %v3591 = vadd.f32 0.0, %v3590
        %v3592 = vpop.f32.mrf.mxu0
        %3593 = vdwg.mxu0
        %v3594 = vadd.f32 %v3066, %v3556
        %v3595 = vadd.f32 %v3067, %v3561
        %v3596 = vadd.f32 %v3068, %v3566
        %v3597 = vadd.f32 %v3069, %v3571
        %v3598 = vadd.f32 %v3070, %v3576
        %v3599 = vadd.f32 %v3071, %v3581
        %v3600 = vadd.f32 %v3072, %v3586
        %v3601 = vadd.f32 %v3073, %v3591
        %s3602 = scalar_lea.vmem %s7, 320
        %v3603 = vld [vmem:[%s3602] sm:$0xff]
        %v3604 = vld [vmem:[%s3602 + $0x8] sm:$0xff]
        %v3605 = vld [vmem:[%s3602 + $0x10] sm:$0xff]
        %v3606 = vld [vmem:[%s3602 + $0x18] sm:$0xff]
        %v3607 = vld [vmem:[%s3602 + $0x20] sm:$0xff]
        %v3608 = vld [vmem:[%s3602 + $0x28] sm:$0xff]
        %v3609 = vld [vmem:[%s3602 + $0x30] sm:$0xff]
        %v3610 = vld [vmem:[%s3602 + $0x38] sm:$0xff]
        %3611 = vxpose.xlu0.b32.start [1/16] %v775, 128
        %3612 = vxpose.xlu0.b32.cont [2/16] 0.0, 128
        %3613 = vxpose.xlu0.b32.cont [3/16] 0.0, 128
        %3614 = vxpose.xlu0.b32.cont [4/16] 0.0, 128
        %3615 = vxpose.xlu0.b32.cont [5/16] 0.0, 128
        %3616 = vxpose.xlu0.b32.cont [6/16] 0.0, 128
        %3617 = vxpose.xlu0.b32.cont [7/16] 0.0, 128
        %3618 = vxpose.xlu0.b32.cont [8/16] 0.0, 128
        %3619 = vxpose.xlu0.b32.cont [9/16] 0.0, 128
        %3620 = vxpose.xlu0.b32.cont [10/16] 0.0, 128
        %3621 = vxpose.xlu0.b32.cont [11/16] 0.0, 128
        %3622 = vxpose.xlu0.b32.cont [12/16] 0.0, 128
        %3623 = vxpose.xlu0.b32.cont [13/16] 0.0, 128
        %3624 = vxpose.xlu0.b32.cont [14/16] 0.0, 128
        %3625 = vxpose.xlu0.b32.cont [15/16] 0.0, 128
        %3626 = vxpose.xlu0.b32.end [16/16] 0.0, 128
        %v3627 = vpop.trf.xlu0
        %v3628 = vpop.trf.xlu0
        %v3629 = vpop.trf.xlu0
        %v3630 = vpop.trf.xlu0
        %v3631 = vpop.trf.xlu0
        %v3632 = vpop.trf.xlu0
        %v3633 = vpop.trf.xlu0
        %v3634 = vpop.trf.xlu0
        %v3635 = vpop.trf.xlu0
        %v3636 = vpop.trf.xlu0
        %v3637 = vpop.trf.xlu0
        %v3638 = vpop.trf.xlu0
        %v3639 = vpop.trf.xlu0
        %v3640 = vpop.trf.xlu0
        %v3641 = vpop.trf.xlu0
        %v3642 = vpop.trf.xlu0
        %v3644 = vsel %vm1001, %v3627, 0
        %v3647 = vsel %vm1001, %v3628, 0
        %v3650 = vsel %vm1001, %v3629, 0
        %v3653 = vsel %vm1001, %v3630, 0
        %v3656 = vsel %vm1001, %v3631, 0
        %v3659 = vsel %vm1001, %v3632, 0
        %v3662 = vsel %vm1001, %v3633, 0
        %v3665 = vsel %vm1001, %v3634, 0
        %3667 = vmatprep.subr.mxu0 0.0
        %3668 = vmatpush1.msra.mxu0 0.0
        %3669 = vmatprep.subr.mxu0 0.0
        %3670 = vmatpush1.msra.mxu0 0.0
        %3671 = vmatprep.subr.mxu0 0.0
        %3672 = vmatpush1.msra.mxu0 0.0
        %3673 = vmatprep.subr.mxu0 0.0
        %3674 = vmatpush1.msra.mxu0 0.0
        %3675 = vmatprep.subr.mxu0 0.0
        %3676 = vmatpush1.msra.mxu0 0.0
        %3677 = vmatprep.subr.mxu0 0.0
        %3678 = vmatpush1.msra.mxu0 0.0
        %3679 = vmatprep.subr.mxu0 0.0
        %3680 = vmatpush1.msra.mxu0 0.0
        %3681 = vmatprep.subr.mxu0 0.0
        %3682 = vmatpush1.msra.mxu0 0.0
        %3683 = vmatprep.subr.mxu0 0.0
        %3684 = vmatpush1.msra.mxu0 0.0
        %3685 = vmatprep.subr.mxu0 0.0
        %3686 = vmatpush1.msra.mxu0 0.0
        %3687 = vmatprep.subr.mxu0 0.0
        %3688 = vmatpush1.msra.mxu0 0.0
        %3689 = vmatprep.subr.mxu0 0.0
        %3690 = vmatpush1.msra.mxu0 0.0
        %3691 = vmatprep.subr.mxu0 0.0
        %3692 = vmatpush1.msra.mxu0 0.0
        %3693 = vmatprep.subr.mxu0 0.0
        %3694 = vmatpush1.msra.mxu0 0.0
        %3695 = vmatprep.subr.mxu0 0.0
        %3696 = vmatpush1.msra.mxu0 0.0
        %3697 = vmatprep.subr.mxu0 0.0
        %3698 = vmatpush1.msra.mxu0 %v839
        %3699 = vmatprep.subr.mxu0 0.0
        %3700 = vmatpush2.msra.mxu0 0.0
        %3701 = vmatprep.subr.mxu0 0.0
        %3702 = vmatpush2.msra.mxu0 0.0
        %3703 = vmatprep.subr.mxu0 0.0
        %3704 = vmatpush2.msra.mxu0 0.0
        %3705 = vmatprep.subr.mxu0 0.0
        %3706 = vmatpush2.msra.mxu0 0.0
        %3707 = vmatprep.subr.mxu0 0.0
        %3708 = vmatpush2.msra.mxu0 0.0
        %3709 = vmatprep.subr.mxu0 0.0
        %3710 = vmatpush2.msra.mxu0 0.0
        %3711 = vmatprep.subr.mxu0 0.0
        %3712 = vmatpush2.msra.mxu0 0.0
        %3713 = vmatprep.subr.mxu0 0.0
        %3714 = vmatpush2.msra.mxu0 0.0
        %3715 = vmatprep.subr.mxu0 0.0
        %3716 = vmatpush2.msra.mxu0 0.0
        %3717 = vmatprep.subr.mxu0 0.0
        %3718 = vmatpush2.msra.mxu0 0.0
        %3719 = vmatprep.subr.mxu0 0.0
        %3720 = vmatpush2.msra.mxu0 0.0
        %3721 = vmatprep.subr.mxu0 0.0
        %3722 = vmatpush2.msra.mxu0 0.0
        %3723 = vmatprep.subr.mxu0 0.0
        %3724 = vmatpush2.msra.mxu0 0.0
        %3725 = vmatprep.subr.mxu0 0.0
        %3726 = vmatpush2.msra.mxu0 0.0
        %3727 = vmatprep.subr.mxu0 0.0
        %3728 = vmatpush2.msra.mxu0 0.0
        %3729 = vmatprep.subr.mxu0 0.0
        %3730 = vmatpush2.msra.mxu0 0.0
        %3731 = vmatprep.mubr.f32.mxu0 0.0
        %3732 = vmatmul.mubr.f32.gmra.mxu0 %v3644
        %v3733 = vpop.f32.mrf.mxu0
        %v3734 = vadd.f32 %v3603, %v3733
        %v3735 = vpop.f32.mrf.mxu0
        %3736 = vmatprep.mubr.f32.mxu0 0.0
        %3737 = vmatmul.mubr.f32.gmra.mxu0 %v3647
        %v3738 = vpop.f32.mrf.mxu0
        %v3739 = vadd.f32 %v3604, %v3738
        %v3740 = vpop.f32.mrf.mxu0
        %3741 = vmatprep.mubr.f32.mxu0 0.0
        %3742 = vmatmul.mubr.f32.gmra.mxu0 %v3650
        %v3743 = vpop.f32.mrf.mxu0
        %v3744 = vadd.f32 %v3605, %v3743
        %v3745 = vpop.f32.mrf.mxu0
        %3746 = vmatprep.mubr.f32.mxu0 0.0
        %3747 = vmatmul.mubr.f32.gmra.mxu0 %v3653
        %v3748 = vpop.f32.mrf.mxu0
        %v3749 = vadd.f32 %v3606, %v3748
        %v3750 = vpop.f32.mrf.mxu0
        %3751 = vmatprep.mubr.f32.mxu0 0.0
        %3752 = vmatmul.mubr.f32.gmra.mxu0 %v3656
        %v3753 = vpop.f32.mrf.mxu0
        %v3754 = vadd.f32 %v3607, %v3753
        %v3755 = vpop.f32.mrf.mxu0
        %3756 = vmatprep.mubr.f32.mxu0 0.0
        %3757 = vmatmul.mubr.f32.gmra.mxu0 %v3659
        %v3758 = vpop.f32.mrf.mxu0
        %v3759 = vadd.f32 %v3608, %v3758
        %v3760 = vpop.f32.mrf.mxu0
        %3761 = vmatprep.mubr.f32.mxu0 0.0
        %3762 = vmatmul.mubr.f32.gmra.mxu0 %v3662
        %v3763 = vpop.f32.mrf.mxu0
        %v3764 = vadd.f32 %v3609, %v3763
        %v3765 = vpop.f32.mrf.mxu0
        %3766 = vmatprep.mubr.f32.mxu0 0.0
        %3767 = vmatmul.mubr.f32.gmra.mxu0 %v3665
        %v3768 = vpop.f32.mrf.mxu0
        %v3769 = vadd.f32 %v3610, %v3768
        %v3770 = vpop.f32.mrf.mxu0
        %3771 = vdwg.mxu0
        %v3772 = vsel %vm1131, %v3734, -inf
        %3773 = vmax.xlane.f32.xlu0 %v3772
        %v3774 = vpop.xlane.xlu0 %3773
        %v3775 = vsel %vm1131, %v3739, -inf
        %3776 = vmax.xlane.f32.xlu0 %v3775
        %v3777 = vpop.xlane.xlu0 %3776
        %v3778 = vsel %vm1131, %v3744, -inf
        %3779 = vmax.xlane.f32.xlu0 %v3778
        %v3780 = vpop.xlane.xlu0 %3779
        %v3781 = vsel %vm1131, %v3749, -inf
        %3782 = vmax.xlane.f32.xlu0 %v3781
        %v3783 = vpop.xlane.xlu0 %3782
        %v3784 = vsel %vm1131, %v3754, -inf
        %3785 = vmax.xlane.f32.xlu0 %v3784
        %v3786 = vpop.xlane.xlu0 %3785
        %v3787 = vsel %vm1131, %v3759, -inf
        %3788 = vmax.xlane.f32.xlu0 %v3787
        %v3789 = vpop.xlane.xlu0 %3788
        %v3790 = vsel %vm1131, %v3764, -inf
        %3791 = vmax.xlane.f32.xlu0 %v3790
        %v3792 = vpop.xlane.xlu0 %3791
        %v3793 = vsel %vm1131, %v3769, -inf
        %3794 = vmax.xlane.f32.xlu0 %v3793
        %v3795 = vpop.xlane.xlu0 %3794
        %v3796 = vsub.f32 %v3734, %v3774
        %v3797 = vsub.f32 %v3739, %v3777
        %v3798 = vsub.f32 %v3744, %v3780
        %v3799 = vsub.f32 %v3749, %v3783
        %v3800 = vsub.f32 %v3754, %v3786
        %v3801 = vsub.f32 %v3759, %v3789
        %v3802 = vsub.f32 %v3764, %v3792
        %v3803 = vsub.f32 %v3769, %v3795
        %v3804 = vmul.f32 %v3796, 1.442695
        %v3805 = vpow.pop %v3804
        %v3806 = vmul.f32 %v3797, 1.442695
        %v3807 = vpow.pop %v3806
        %v3808 = vmul.f32 %v3798, 1.442695
        %v3809 = vpow.pop %v3808
        %v3810 = vmul.f32 %v3799, 1.442695
        %v3811 = vpow.pop %v3810
        %v3812 = vmul.f32 %v3800, 1.442695
        %v3813 = vpow.pop %v3812
        %v3814 = vmul.f32 %v3801, 1.442695
        %v3815 = vpow.pop %v3814
        %v3816 = vmul.f32 %v3802, 1.442695
        %v3817 = vpow.pop %v3816
        %v3818 = vmul.f32 %v3803, 1.442695
        %v3819 = vpow.pop %v3818
        %v3820 = vsel %vm1131, %v3805, 0.0
        %3821 = vadd.xlane.f32.xlu0 %v3820
        %v3822 = vpop.xlane.xlu0 %3821
        %v3823 = vsel %vm1131, %v3807, 0.0
        %3824 = vadd.xlane.f32.xlu0 %v3823
        %v3825 = vpop.xlane.xlu0 %3824
        %v3826 = vsel %vm1131, %v3809, 0.0
        %3827 = vadd.xlane.f32.xlu0 %v3826
        %v3828 = vpop.xlane.xlu0 %3827
        %v3829 = vsel %vm1131, %v3811, 0.0
        %3830 = vadd.xlane.f32.xlu0 %v3829
        %v3831 = vpop.xlane.xlu0 %3830
        %v3832 = vsel %vm1131, %v3813, 0.0
        %3833 = vadd.xlane.f32.xlu0 %v3832
        %v3834 = vpop.xlane.xlu0 %3833
        %v3835 = vsel %vm1131, %v3815, 0.0
        %3836 = vadd.xlane.f32.xlu0 %v3835
        %v3837 = vpop.xlane.xlu0 %3836
        %v3838 = vsel %vm1131, %v3817, 0.0
        %3839 = vadd.xlane.f32.xlu0 %v3838
        %v3840 = vpop.xlane.xlu0 %3839
        %v3841 = vsel %vm1131, %v3819, 0.0
        %3842 = vadd.xlane.f32.xlu0 %v3841
        %v3843 = vpop.xlane.xlu0 %3842
        %v3845 = vsel %vm1131, %v3805, 0
        %v3848 = vsel %vm1131, %v3807, 0
        %v3851 = vsel %vm1131, %v3809, 0
        %v3854 = vsel %vm1131, %v3811, 0
        %v3857 = vsel %vm1131, %v3813, 0
        %v3860 = vsel %vm1131, %v3815, 0
        %v3863 = vsel %vm1131, %v3817, 0
        %v3866 = vsel %vm1131, %v3819, 0
        %v3869 = vsel %vm1131, %v903, 0
        %3871 = vmatprep.subr.mxu0 0.0
        %3872 = vmatpush1.xpose.msra.mxu0 0.0
        %3873 = vmatprep.subr.mxu0 0.0
        %3874 = vmatpush1.xpose.msra.mxu0 0.0
        %3875 = vmatprep.subr.mxu0 0.0
        %3876 = vmatpush1.xpose.msra.mxu0 0.0
        %3877 = vmatprep.subr.mxu0 0.0
        %3878 = vmatpush1.xpose.msra.mxu0 0.0
        %3879 = vmatprep.subr.mxu0 0.0
        %3880 = vmatpush1.xpose.msra.mxu0 0.0
        %3881 = vmatprep.subr.mxu0 0.0
        %3882 = vmatpush1.xpose.msra.mxu0 0.0
        %3883 = vmatprep.subr.mxu0 0.0
        %3884 = vmatpush1.xpose.msra.mxu0 0.0
        %3885 = vmatprep.subr.mxu0 0.0
        %3886 = vmatpush1.xpose.msra.mxu0 0.0
        %3887 = vmatprep.subr.mxu0 0.0
        %3888 = vmatpush1.xpose.msra.mxu0 0.0
        %3889 = vmatprep.subr.mxu0 0.0
        %3890 = vmatpush1.xpose.msra.mxu0 0.0
        %3891 = vmatprep.subr.mxu0 0.0
        %3892 = vmatpush1.xpose.msra.mxu0 0.0
        %3893 = vmatprep.subr.mxu0 0.0
        %3894 = vmatpush1.xpose.msra.mxu0 0.0
        %3895 = vmatprep.subr.mxu0 0.0
        %3896 = vmatpush1.xpose.msra.mxu0 0.0
        %3897 = vmatprep.subr.mxu0 0.0
        %3898 = vmatpush1.xpose.msra.mxu0 0.0
        %3899 = vmatprep.subr.mxu0 0.0
        %3900 = vmatpush1.xpose.msra.mxu0 0.0
        %3901 = vmatprep.subr.mxu0 0.0
        %3902 = vmatpush1.xpose.msra.mxu0 %v3869
        %3903 = vmatprep.subr.mxu0 0.0
        %3904 = vmatpush2.xpose.msra.mxu0 0.0
        %3905 = vmatprep.subr.mxu0 0.0
        %3906 = vmatpush2.xpose.msra.mxu0 0.0
        %3907 = vmatprep.subr.mxu0 0.0
        %3908 = vmatpush2.xpose.msra.mxu0 0.0
        %3909 = vmatprep.subr.mxu0 0.0
        %3910 = vmatpush2.xpose.msra.mxu0 0.0
        %3911 = vmatprep.subr.mxu0 0.0
        %3912 = vmatpush2.xpose.msra.mxu0 0.0
        %3913 = vmatprep.subr.mxu0 0.0
        %3914 = vmatpush2.xpose.msra.mxu0 0.0
        %3915 = vmatprep.subr.mxu0 0.0
        %3916 = vmatpush2.xpose.msra.mxu0 0.0
        %3917 = vmatprep.subr.mxu0 0.0
        %3918 = vmatpush2.xpose.msra.mxu0 0.0
        %3919 = vmatprep.subr.mxu0 0.0
        %3920 = vmatpush2.xpose.msra.mxu0 0.0
        %3921 = vmatprep.subr.mxu0 0.0
        %3922 = vmatpush2.xpose.msra.mxu0 0.0
        %3923 = vmatprep.subr.mxu0 0.0
        %3924 = vmatpush2.xpose.msra.mxu0 0.0
        %3925 = vmatprep.subr.mxu0 0.0
        %3926 = vmatpush2.xpose.msra.mxu0 0.0
        %3927 = vmatprep.subr.mxu0 0.0
        %3928 = vmatpush2.xpose.msra.mxu0 0.0
        %3929 = vmatprep.subr.mxu0 0.0
        %3930 = vmatpush2.xpose.msra.mxu0 0.0
        %3931 = vmatprep.subr.mxu0 0.0
        %3932 = vmatpush2.xpose.msra.mxu0 0.0
        %3933 = vmatprep.subr.mxu0 0.0
        %3934 = vmatpush2.xpose.msra.mxu0 0.0
        %3935 = vmatprep.mubr.f32.mxu0 0.0
        %3936 = vmatmul.mubr.f32.gmra.mxu0 %v3845
        %v3937 = vpop.f32.mrf.mxu0
        %v3938 = vadd.f32 0.0, %v3937
        %v3939 = vpop.f32.mrf.mxu0
        %3940 = vmatprep.mubr.f32.mxu0 0.0
        %3941 = vmatmul.mubr.f32.gmra.mxu0 %v3848
        %v3942 = vpop.f32.mrf.mxu0
        %v3943 = vadd.f32 0.0, %v3942
        %v3944 = vpop.f32.mrf.mxu0
        %3945 = vmatprep.mubr.f32.mxu0 0.0
        %3946 = vmatmul.mubr.f32.gmra.mxu0 %v3851
        %v3947 = vpop.f32.mrf.mxu0
        %v3948 = vadd.f32 0.0, %v3947
        %v3949 = vpop.f32.mrf.mxu0
        %3950 = vmatprep.mubr.f32.mxu0 0.0
        %3951 = vmatmul.mubr.f32.gmra.mxu0 %v3854
        %v3952 = vpop.f32.mrf.mxu0
        %v3953 = vadd.f32 0.0, %v3952
        %v3954 = vpop.f32.mrf.mxu0
        %3955 = vmatprep.mubr.f32.mxu0 0.0
        %3956 = vmatmul.mubr.f32.gmra.mxu0 %v3857
        %v3957 = vpop.f32.mrf.mxu0
        %v3958 = vadd.f32 0.0, %v3957
        %v3959 = vpop.f32.mrf.mxu0
        %3960 = vmatprep.mubr.f32.mxu0 0.0
        %3961 = vmatmul.mubr.f32.gmra.mxu0 %v3860
        %v3962 = vpop.f32.mrf.mxu0
        %v3963 = vadd.f32 0.0, %v3962
        %v3964 = vpop.f32.mrf.mxu0
        %3965 = vmatprep.mubr.f32.mxu0 0.0
        %3966 = vmatmul.mubr.f32.gmra.mxu0 %v3863
        %v3967 = vpop.f32.mrf.mxu0
        %v3968 = vadd.f32 0.0, %v3967
        %v3969 = vpop.f32.mrf.mxu0
        %3970 = vmatprep.mubr.f32.mxu0 0.0
        %3971 = vmatmul.mubr.f32.gmra.mxu0 %v3866
        %v3972 = vpop.f32.mrf.mxu0
        %v3973 = vadd.f32 0.0, %v3972
        %v3974 = vpop.f32.mrf.mxu0
        %3975 = vdwg.mxu0
        %v3976 = vrcp.pop %v3822
        %v3977 = vmul.f32 %v3938, %v3976
        %v3978 = vrcp.pop %v3825
        %v3979 = vmul.f32 %v3943, %v3978
        %v3980 = vrcp.pop %v3828
        %v3981 = vmul.f32 %v3948, %v3980
        %v3982 = vrcp.pop %v3831
        %v3983 = vmul.f32 %v3953, %v3982
        %v3984 = vrcp.pop %v3834
        %v3985 = vmul.f32 %v3958, %v3984
        %v3986 = vrcp.pop %v3837
        %v3987 = vmul.f32 %v3963, %v3986
        %v3988 = vrcp.pop %v3840
        %v3989 = vmul.f32 %v3968, %v3988
        %v3990 = vrcp.pop %v3843
        %v3991 = vmul.f32 %v3973, %v3990
        %v3992 = vld [vmem:[%s5 + $0x28] sm:$0xff]
        %v3994 = vsel %vm1001, %v3977, 0
        %v3997 = vsel %vm1001, %v3979, 0
        %v4000 = vsel %vm1001, %v3981, 0
        %v4003 = vsel %vm1001, %v3983, 0
        %v4006 = vsel %vm1001, %v3985, 0
        %v4009 = vsel %vm1001, %v3987, 0
        %v4012 = vsel %vm1001, %v3989, 0
        %v4015 = vsel %vm1001, %v3991, 0
        %4017 = vmatprep.subr.mxu0 0.0
        %4018 = vmatpush1.msra.mxu0 0.0
        %4019 = vmatprep.subr.mxu0 0.0
        %4020 = vmatpush1.msra.mxu0 0.0
        %4021 = vmatprep.subr.mxu0 0.0
        %4022 = vmatpush1.msra.mxu0 0.0
        %4023 = vmatprep.subr.mxu0 0.0
        %4024 = vmatpush1.msra.mxu0 0.0
        %4025 = vmatprep.subr.mxu0 0.0
        %4026 = vmatpush1.msra.mxu0 0.0
        %4027 = vmatprep.subr.mxu0 0.0
        %4028 = vmatpush1.msra.mxu0 0.0
        %4029 = vmatprep.subr.mxu0 0.0
        %4030 = vmatpush1.msra.mxu0 0.0
        %4031 = vmatprep.subr.mxu0 0.0
        %4032 = vmatpush1.msra.mxu0 0.0
        %4033 = vmatprep.subr.mxu0 0.0
        %4034 = vmatpush1.msra.mxu0 0.0
        %4035 = vmatprep.subr.mxu0 0.0
        %4036 = vmatpush1.msra.mxu0 0.0
        %4037 = vmatprep.subr.mxu0 0.0
        %4038 = vmatpush1.msra.mxu0 0.0
        %4039 = vmatprep.subr.mxu0 0.0
        %4040 = vmatpush1.msra.mxu0 0.0
        %4041 = vmatprep.subr.mxu0 0.0
        %4042 = vmatpush1.msra.mxu0 0.0
        %4043 = vmatprep.subr.mxu0 0.0
        %4044 = vmatpush1.msra.mxu0 0.0
        %4045 = vmatprep.subr.mxu0 0.0
        %4046 = vmatpush1.msra.mxu0 0.0
        %4047 = vmatprep.subr.mxu0 0.0
        %4048 = vmatpush1.msra.mxu0 %v3992
        %4049 = vmatprep.subr.mxu0 0.0
        %4050 = vmatpush2.msra.mxu0 0.0
        %4051 = vmatprep.subr.mxu0 0.0
        %4052 = vmatpush2.msra.mxu0 0.0
        %4053 = vmatprep.subr.mxu0 0.0
        %4054 = vmatpush2.msra.mxu0 0.0
        %4055 = vmatprep.subr.mxu0 0.0
        %4056 = vmatpush2.msra.mxu0 0.0
        %4057 = vmatprep.subr.mxu0 0.0
        %4058 = vmatpush2.msra.mxu0 0.0
        %4059 = vmatprep.subr.mxu0 0.0
        %4060 = vmatpush2.msra.mxu0 0.0
        %4061 = vmatprep.subr.mxu0 0.0
        %4062 = vmatpush2.msra.mxu0 0.0
        %4063 = vmatprep.subr.mxu0 0.0
        %4064 = vmatpush2.msra.mxu0 0.0
        %4065 = vmatprep.subr.mxu0 0.0
        %4066 = vmatpush2.msra.mxu0 0.0
        %4067 = vmatprep.subr.mxu0 0.0
        %4068 = vmatpush2.msra.mxu0 0.0
        %4069 = vmatprep.subr.mxu0 0.0
        %4070 = vmatpush2.msra.mxu0 0.0
        %4071 = vmatprep.subr.mxu0 0.0
        %4072 = vmatpush2.msra.mxu0 0.0
        %4073 = vmatprep.subr.mxu0 0.0
        %4074 = vmatpush2.msra.mxu0 0.0
        %4075 = vmatprep.subr.mxu0 0.0
        %4076 = vmatpush2.msra.mxu0 0.0
        %4077 = vmatprep.subr.mxu0 0.0
        %4078 = vmatpush2.msra.mxu0 0.0
        %4079 = vmatprep.subr.mxu0 0.0
        %4080 = vmatpush2.msra.mxu0 0.0
        %4081 = vmatprep.mubr.f32.mxu0 0.0
        %4082 = vmatmul.mubr.f32.gmra.mxu0 %v3994
        %v4083 = vpop.f32.mrf.mxu0
        %v4084 = vadd.f32 0.0, %v4083
        %v4085 = vpop.f32.mrf.mxu0
        %4086 = vmatprep.mubr.f32.mxu0 0.0
        %4087 = vmatmul.mubr.f32.gmra.mxu0 %v3997
        %v4088 = vpop.f32.mrf.mxu0
        %v4089 = vadd.f32 0.0, %v4088
        %v4090 = vpop.f32.mrf.mxu0
        %4091 = vmatprep.mubr.f32.mxu0 0.0
        %4092 = vmatmul.mubr.f32.gmra.mxu0 %v4000
        %v4093 = vpop.f32.mrf.mxu0
        %v4094 = vadd.f32 0.0, %v4093
        %v4095 = vpop.f32.mrf.mxu0
        %4096 = vmatprep.mubr.f32.mxu0 0.0
        %4097 = vmatmul.mubr.f32.gmra.mxu0 %v4003
        %v4098 = vpop.f32.mrf.mxu0
        %v4099 = vadd.f32 0.0, %v4098
        %v4100 = vpop.f32.mrf.mxu0
        %4101 = vmatprep.mubr.f32.mxu0 0.0
        %4102 = vmatmul.mubr.f32.gmra.mxu0 %v4006
        %v4103 = vpop.f32.mrf.mxu0
        %v4104 = vadd.f32 0.0, %v4103
        %v4105 = vpop.f32.mrf.mxu0
        %4106 = vmatprep.mubr.f32.mxu0 0.0
        %4107 = vmatmul.mubr.f32.gmra.mxu0 %v4009
        %v4108 = vpop.f32.mrf.mxu0
        %v4109 = vadd.f32 0.0, %v4108
        %v4110 = vpop.f32.mrf.mxu0
        %4111 = vmatprep.mubr.f32.mxu0 0.0
        %4112 = vmatmul.mubr.f32.gmra.mxu0 %v4012
        %v4113 = vpop.f32.mrf.mxu0
        %v4114 = vadd.f32 0.0, %v4113
        %v4115 = vpop.f32.mrf.mxu0
        %4116 = vmatprep.mubr.f32.mxu0 0.0
        %4117 = vmatmul.mubr.f32.gmra.mxu0 %v4015
        %v4118 = vpop.f32.mrf.mxu0
        %v4119 = vadd.f32 0.0, %v4118
        %v4120 = vpop.f32.mrf.mxu0
        %4121 = vdwg.mxu0
        %v4122 = vadd.f32 %v3594, %v4084
        %v4123 = vadd.f32 %v3595, %v4089
        %v4124 = vadd.f32 %v3596, %v4094
        %v4125 = vadd.f32 %v3597, %v4099
        %v4126 = vadd.f32 %v3598, %v4104
        %v4127 = vadd.f32 %v3599, %v4109
        %v4128 = vadd.f32 %v3600, %v4114
        %v4129 = vadd.f32 %v3601, %v4119
        %s4130 = scalar_lea.vmem %s7, 384
        %v4131 = vld [vmem:[%s4130] sm:$0xff]
        %v4132 = vld [vmem:[%s4130 + $0x8] sm:$0xff]
        %v4133 = vld [vmem:[%s4130 + $0x10] sm:$0xff]
        %v4134 = vld [vmem:[%s4130 + $0x18] sm:$0xff]
        %v4135 = vld [vmem:[%s4130 + $0x20] sm:$0xff]
        %v4136 = vld [vmem:[%s4130 + $0x28] sm:$0xff]
        %v4137 = vld [vmem:[%s4130 + $0x30] sm:$0xff]
        %v4138 = vld [vmem:[%s4130 + $0x38] sm:$0xff]
        %4139 = vxpose.xlu0.b32.start [1/16] %v780, 128
        %4140 = vxpose.xlu0.b32.cont [2/16] 0.0, 128
        %4141 = vxpose.xlu0.b32.cont [3/16] 0.0, 128
        %4142 = vxpose.xlu0.b32.cont [4/16] 0.0, 128
        %4143 = vxpose.xlu0.b32.cont [5/16] 0.0, 128
        %4144 = vxpose.xlu0.b32.cont [6/16] 0.0, 128
        %4145 = vxpose.xlu0.b32.cont [7/16] 0.0, 128
        %4146 = vxpose.xlu0.b32.cont [8/16] 0.0, 128
        %4147 = vxpose.xlu0.b32.cont [9/16] 0.0, 128
        %4148 = vxpose.xlu0.b32.cont [10/16] 0.0, 128
        %4149 = vxpose.xlu0.b32.cont [11/16] 0.0, 128
        %4150 = vxpose.xlu0.b32.cont [12/16] 0.0, 128
        %4151 = vxpose.xlu0.b32.cont [13/16] 0.0, 128
        %4152 = vxpose.xlu0.b32.cont [14/16] 0.0, 128
        %4153 = vxpose.xlu0.b32.cont [15/16] 0.0, 128
        %4154 = vxpose.xlu0.b32.end [16/16] 0.0, 128
        %v4155 = vpop.trf.xlu0
        %v4156 = vpop.trf.xlu0
        %v4157 = vpop.trf.xlu0
        %v4158 = vpop.trf.xlu0
        %v4159 = vpop.trf.xlu0
        %v4160 = vpop.trf.xlu0
        %v4161 = vpop.trf.xlu0
        %v4162 = vpop.trf.xlu0
        %v4163 = vpop.trf.xlu0
        %v4164 = vpop.trf.xlu0
        %v4165 = vpop.trf.xlu0
        %v4166 = vpop.trf.xlu0
        %v4167 = vpop.trf.xlu0
        %v4168 = vpop.trf.xlu0
        %v4169 = vpop.trf.xlu0
        %v4170 = vpop.trf.xlu0
        %v4172 = vsel %vm1001, %v4155, 0
        %v4175 = vsel %vm1001, %v4156, 0
        %v4178 = vsel %vm1001, %v4157, 0
        %v4181 = vsel %vm1001, %v4158, 0
        %v4184 = vsel %vm1001, %v4159, 0
        %v4187 = vsel %vm1001, %v4160, 0
        %v4190 = vsel %vm1001, %v4161, 0
        %v4193 = vsel %vm1001, %v4162, 0
        %4195 = vmatprep.subr.mxu0 0.0
        %4196 = vmatpush1.msra.mxu0 0.0
        %4197 = vmatprep.subr.mxu0 0.0
        %4198 = vmatpush1.msra.mxu0 0.0
        %4199 = vmatprep.subr.mxu0 0.0
        %4200 = vmatpush1.msra.mxu0 0.0
        %4201 = vmatprep.subr.mxu0 0.0
        %4202 = vmatpush1.msra.mxu0 0.0
        %4203 = vmatprep.subr.mxu0 0.0
        %4204 = vmatpush1.msra.mxu0 0.0
        %4205 = vmatprep.subr.mxu0 0.0
        %4206 = vmatpush1.msra.mxu0 0.0
        %4207 = vmatprep.subr.mxu0 0.0
        %4208 = vmatpush1.msra.mxu0 0.0
        %4209 = vmatprep.subr.mxu0 0.0
        %4210 = vmatpush1.msra.mxu0 0.0
        %4211 = vmatprep.subr.mxu0 0.0
        %4212 = vmatpush1.msra.mxu0 0.0
        %4213 = vmatprep.subr.mxu0 0.0
        %4214 = vmatpush1.msra.mxu0 0.0
        %4215 = vmatprep.subr.mxu0 0.0
        %4216 = vmatpush1.msra.mxu0 0.0
        %4217 = vmatprep.subr.mxu0 0.0
        %4218 = vmatpush1.msra.mxu0 0.0
        %4219 = vmatprep.subr.mxu0 0.0
        %4220 = vmatpush1.msra.mxu0 0.0
        %4221 = vmatprep.subr.mxu0 0.0
        %4222 = vmatpush1.msra.mxu0 0.0
        %4223 = vmatprep.subr.mxu0 0.0
        %4224 = vmatpush1.msra.mxu0 0.0
        %4225 = vmatprep.subr.mxu0 0.0
        %4226 = vmatpush1.msra.mxu0 %v844
        %4227 = vmatprep.subr.mxu0 0.0
        %4228 = vmatpush2.msra.mxu0 0.0
        %4229 = vmatprep.subr.mxu0 0.0
        %4230 = vmatpush2.msra.mxu0 0.0
        %4231 = vmatprep.subr.mxu0 0.0
        %4232 = vmatpush2.msra.mxu0 0.0
        %4233 = vmatprep.subr.mxu0 0.0
        %4234 = vmatpush2.msra.mxu0 0.0
        %4235 = vmatprep.subr.mxu0 0.0
        %4236 = vmatpush2.msra.mxu0 0.0
        %4237 = vmatprep.subr.mxu0 0.0
        %4238 = vmatpush2.msra.mxu0 0.0
        %4239 = vmatprep.subr.mxu0 0.0
        %4240 = vmatpush2.msra.mxu0 0.0
        %4241 = vmatprep.subr.mxu0 0.0
        %4242 = vmatpush2.msra.mxu0 0.0
        %4243 = vmatprep.subr.mxu0 0.0
        %4244 = vmatpush2.msra.mxu0 0.0
        %4245 = vmatprep.subr.mxu0 0.0
        %4246 = vmatpush2.msra.mxu0 0.0
        %4247 = vmatprep.subr.mxu0 0.0
        %4248 = vmatpush2.msra.mxu0 0.0
        %4249 = vmatprep.subr.mxu0 0.0
        %4250 = vmatpush2.msra.mxu0 0.0
        %4251 = vmatprep.subr.mxu0 0.0
        %4252 = vmatpush2.msra.mxu0 0.0
        %4253 = vmatprep.subr.mxu0 0.0
        %4254 = vmatpush2.msra.mxu0 0.0
        %4255 = vmatprep.subr.mxu0 0.0
        %4256 = vmatpush2.msra.mxu0 0.0
        %4257 = vmatprep.subr.mxu0 0.0
        %4258 = vmatpush2.msra.mxu0 0.0
        %4259 = vmatprep.mubr.f32.mxu0 0.0
        %4260 = vmatmul.mubr.f32.gmra.mxu0 %v4172
        %v4261 = vpop.f32.mrf.mxu0
        %v4262 = vadd.f32 %v4131, %v4261
        %v4263 = vpop.f32.mrf.mxu0
        %4264 = vmatprep.mubr.f32.mxu0 0.0
        %4265 = vmatmul.mubr.f32.gmra.mxu0 %v4175
        %v4266 = vpop.f32.mrf.mxu0
        %v4267 = vadd.f32 %v4132, %v4266
        %v4268 = vpop.f32.mrf.mxu0
        %4269 = vmatprep.mubr.f32.mxu0 0.0
        %4270 = vmatmul.mubr.f32.gmra.mxu0 %v4178
        %v4271 = vpop.f32.mrf.mxu0
        %v4272 = vadd.f32 %v4133, %v4271
        %v4273 = vpop.f32.mrf.mxu0
        %4274 = vmatprep.mubr.f32.mxu0 0.0
        %4275 = vmatmul.mubr.f32.gmra.mxu0 %v4181
        %v4276 = vpop.f32.mrf.mxu0
        %v4277 = vadd.f32 %v4134, %v4276
        %v4278 = vpop.f32.mrf.mxu0
        %4279 = vmatprep.mubr.f32.mxu0 0.0
        %4280 = vmatmul.mubr.f32.gmra.mxu0 %v4184
        %v4281 = vpop.f32.mrf.mxu0
        %v4282 = vadd.f32 %v4135, %v4281
        %v4283 = vpop.f32.mrf.mxu0
        %4284 = vmatprep.mubr.f32.mxu0 0.0
        %4285 = vmatmul.mubr.f32.gmra.mxu0 %v4187
        %v4286 = vpop.f32.mrf.mxu0
        %v4287 = vadd.f32 %v4136, %v4286
        %v4288 = vpop.f32.mrf.mxu0
        %4289 = vmatprep.mubr.f32.mxu0 0.0
        %4290 = vmatmul.mubr.f32.gmra.mxu0 %v4190
        %v4291 = vpop.f32.mrf.mxu0
        %v4292 = vadd.f32 %v4137, %v4291
        %v4293 = vpop.f32.mrf.mxu0
        %4294 = vmatprep.mubr.f32.mxu0 0.0
        %4295 = vmatmul.mubr.f32.gmra.mxu0 %v4193
        %v4296 = vpop.f32.mrf.mxu0
        %v4297 = vadd.f32 %v4138, %v4296
        %v4298 = vpop.f32.mrf.mxu0
        %4299 = vdwg.mxu0
        %v4300 = vsel %vm1131, %v4262, -inf
        %4301 = vmax.xlane.f32.xlu0 %v4300
        %v4302 = vpop.xlane.xlu0 %4301
        %v4303 = vsel %vm1131, %v4267, -inf
        %4304 = vmax.xlane.f32.xlu0 %v4303
        %v4305 = vpop.xlane.xlu0 %4304
        %v4306 = vsel %vm1131, %v4272, -inf
        %4307 = vmax.xlane.f32.xlu0 %v4306
        %v4308 = vpop.xlane.xlu0 %4307
        %v4309 = vsel %vm1131, %v4277, -inf
        %4310 = vmax.xlane.f32.xlu0 %v4309
        %v4311 = vpop.xlane.xlu0 %4310
        %v4312 = vsel %vm1131, %v4282, -inf
        %4313 = vmax.xlane.f32.xlu0 %v4312
        %v4314 = vpop.xlane.xlu0 %4313
        %v4315 = vsel %vm1131, %v4287, -inf
        %4316 = vmax.xlane.f32.xlu0 %v4315
        %v4317 = vpop.xlane.xlu0 %4316
        %v4318 = vsel %vm1131, %v4292, -inf
        %4319 = vmax.xlane.f32.xlu0 %v4318
        %v4320 = vpop.xlane.xlu0 %4319
        %v4321 = vsel %vm1131, %v4297, -inf
        %4322 = vmax.xlane.f32.xlu0 %v4321
        %v4323 = vpop.xlane.xlu0 %4322
        %v4324 = vsub.f32 %v4262, %v4302
        %v4325 = vsub.f32 %v4267, %v4305
        %v4326 = vsub.f32 %v4272, %v4308
        %v4327 = vsub.f32 %v4277, %v4311
        %v4328 = vsub.f32 %v4282, %v4314
        %v4329 = vsub.f32 %v4287, %v4317
        %v4330 = vsub.f32 %v4292, %v4320
        %v4331 = vsub.f32 %v4297, %v4323
        %v4332 = vmul.f32 %v4324, 1.442695
        %v4333 = vpow.pop %v4332
        %v4334 = vmul.f32 %v4325, 1.442695
        %v4335 = vpow.pop %v4334
        %v4336 = vmul.f32 %v4326, 1.442695
        %v4337 = vpow.pop %v4336
        %v4338 = vmul.f32 %v4327, 1.442695
        %v4339 = vpow.pop %v4338
        %v4340 = vmul.f32 %v4328, 1.442695
        %v4341 = vpow.pop %v4340
        %v4342 = vmul.f32 %v4329, 1.442695
        %v4343 = vpow.pop %v4342
        %v4344 = vmul.f32 %v4330, 1.442695
        %v4345 = vpow.pop %v4344
        %v4346 = vmul.f32 %v4331, 1.442695
        %v4347 = vpow.pop %v4346
        %v4348 = vsel %vm1131, %v4333, 0.0
        %4349 = vadd.xlane.f32.xlu0 %v4348
        %v4350 = vpop.xlane.xlu0 %4349
        %v4351 = vsel %vm1131, %v4335, 0.0
        %4352 = vadd.xlane.f32.xlu0 %v4351
        %v4353 = vpop.xlane.xlu0 %4352
        %v4354 = vsel %vm1131, %v4337, 0.0
        %4355 = vadd.xlane.f32.xlu0 %v4354
        %v4356 = vpop.xlane.xlu0 %4355
        %v4357 = vsel %vm1131, %v4339, 0.0
        %4358 = vadd.xlane.f32.xlu0 %v4357
        %v4359 = vpop.xlane.xlu0 %4358
        %v4360 = vsel %vm1131, %v4341, 0.0
        %4361 = vadd.xlane.f32.xlu0 %v4360
        %v4362 = vpop.xlane.xlu0 %4361
        %v4363 = vsel %vm1131, %v4343, 0.0
        %4364 = vadd.xlane.f32.xlu0 %v4363
        %v4365 = vpop.xlane.xlu0 %4364
        %v4366 = vsel %vm1131, %v4345, 0.0
        %4367 = vadd.xlane.f32.xlu0 %v4366
        %v4368 = vpop.xlane.xlu0 %4367
        %v4369 = vsel %vm1131, %v4347, 0.0
        %4370 = vadd.xlane.f32.xlu0 %v4369
        %v4371 = vpop.xlane.xlu0 %4370
        %v4373 = vsel %vm1131, %v4333, 0
        %v4376 = vsel %vm1131, %v4335, 0
        %v4379 = vsel %vm1131, %v4337, 0
        %v4382 = vsel %vm1131, %v4339, 0
        %v4385 = vsel %vm1131, %v4341, 0
        %v4388 = vsel %vm1131, %v4343, 0
        %v4391 = vsel %vm1131, %v4345, 0
        %v4394 = vsel %vm1131, %v4347, 0
        %v4397 = vsel %vm1131, %v908, 0
        %4399 = vmatprep.subr.mxu0 0.0
        %4400 = vmatpush1.xpose.msra.mxu0 0.0
        %4401 = vmatprep.subr.mxu0 0.0
        %4402 = vmatpush1.xpose.msra.mxu0 0.0
        %4403 = vmatprep.subr.mxu0 0.0
        %4404 = vmatpush1.xpose.msra.mxu0 0.0
        %4405 = vmatprep.subr.mxu0 0.0
        %4406 = vmatpush1.xpose.msra.mxu0 0.0
        %4407 = vmatprep.subr.mxu0 0.0
        %4408 = vmatpush1.xpose.msra.mxu0 0.0
        %4409 = vmatprep.subr.mxu0 0.0
        %4410 = vmatpush1.xpose.msra.mxu0 0.0
        %4411 = vmatprep.subr.mxu0 0.0
        %4412 = vmatpush1.xpose.msra.mxu0 0.0
        %4413 = vmatprep.subr.mxu0 0.0
        %4414 = vmatpush1.xpose.msra.mxu0 0.0
        %4415 = vmatprep.subr.mxu0 0.0
        %4416 = vmatpush1.xpose.msra.mxu0 0.0
        %4417 = vmatprep.subr.mxu0 0.0
        %4418 = vmatpush1.xpose.msra.mxu0 0.0
        %4419 = vmatprep.subr.mxu0 0.0
        %4420 = vmatpush1.xpose.msra.mxu0 0.0
        %4421 = vmatprep.subr.mxu0 0.0
        %4422 = vmatpush1.xpose.msra.mxu0 0.0
        %4423 = vmatprep.subr.mxu0 0.0
        %4424 = vmatpush1.xpose.msra.mxu0 0.0
        %4425 = vmatprep.subr.mxu0 0.0
        %4426 = vmatpush1.xpose.msra.mxu0 0.0
        %4427 = vmatprep.subr.mxu0 0.0
        %4428 = vmatpush1.xpose.msra.mxu0 0.0
        %4429 = vmatprep.subr.mxu0 0.0
        %4430 = vmatpush1.xpose.msra.mxu0 %v4397
        %4431 = vmatprep.subr.mxu0 0.0
        %4432 = vmatpush2.xpose.msra.mxu0 0.0
        %4433 = vmatprep.subr.mxu0 0.0
        %4434 = vmatpush2.xpose.msra.mxu0 0.0
        %4435 = vmatprep.subr.mxu0 0.0
        %4436 = vmatpush2.xpose.msra.mxu0 0.0
        %4437 = vmatprep.subr.mxu0 0.0
        %4438 = vmatpush2.xpose.msra.mxu0 0.0
        %4439 = vmatprep.subr.mxu0 0.0
        %4440 = vmatpush2.xpose.msra.mxu0 0.0
        %4441 = vmatprep.subr.mxu0 0.0
        %4442 = vmatpush2.xpose.msra.mxu0 0.0
        %4443 = vmatprep.subr.mxu0 0.0
        %4444 = vmatpush2.xpose.msra.mxu0 0.0
        %4445 = vmatprep.subr.mxu0 0.0
        %4446 = vmatpush2.xpose.msra.mxu0 0.0
        %4447 = vmatprep.subr.mxu0 0.0
        %4448 = vmatpush2.xpose.msra.mxu0 0.0
        %4449 = vmatprep.subr.mxu0 0.0
        %4450 = vmatpush2.xpose.msra.mxu0 0.0
        %4451 = vmatprep.subr.mxu0 0.0
        %4452 = vmatpush2.xpose.msra.mxu0 0.0
        %4453 = vmatprep.subr.mxu0 0.0
        %4454 = vmatpush2.xpose.msra.mxu0 0.0
        %4455 = vmatprep.subr.mxu0 0.0
        %4456 = vmatpush2.xpose.msra.mxu0 0.0
        %4457 = vmatprep.subr.mxu0 0.0
        %4458 = vmatpush2.xpose.msra.mxu0 0.0
        %4459 = vmatprep.subr.mxu0 0.0
        %4460 = vmatpush2.xpose.msra.mxu0 0.0
        %4461 = vmatprep.subr.mxu0 0.0
        %4462 = vmatpush2.xpose.msra.mxu0 0.0
        %4463 = vmatprep.mubr.f32.mxu0 0.0
        %4464 = vmatmul.mubr.f32.gmra.mxu0 %v4373
        %v4465 = vpop.f32.mrf.mxu0
        %v4466 = vadd.f32 0.0, %v4465
        %v4467 = vpop.f32.mrf.mxu0
        %4468 = vmatprep.mubr.f32.mxu0 0.0
        %4469 = vmatmul.mubr.f32.gmra.mxu0 %v4376
        %v4470 = vpop.f32.mrf.mxu0
        %v4471 = vadd.f32 0.0, %v4470
        %v4472 = vpop.f32.mrf.mxu0
        %4473 = vmatprep.mubr.f32.mxu0 0.0
        %4474 = vmatmul.mubr.f32.gmra.mxu0 %v4379
        %v4475 = vpop.f32.mrf.mxu0
        %v4476 = vadd.f32 0.0, %v4475
        %v4477 = vpop.f32.mrf.mxu0
        %4478 = vmatprep.mubr.f32.mxu0 0.0
        %4479 = vmatmul.mubr.f32.gmra.mxu0 %v4382
        %v4480 = vpop.f32.mrf.mxu0
        %v4481 = vadd.f32 0.0, %v4480
        %v4482 = vpop.f32.mrf.mxu0
        %4483 = vmatprep.mubr.f32.mxu0 0.0
        %4484 = vmatmul.mubr.f32.gmra.mxu0 %v4385
        %v4485 = vpop.f32.mrf.mxu0
        %v4486 = vadd.f32 0.0, %v4485
        %v4487 = vpop.f32.mrf.mxu0
        %4488 = vmatprep.mubr.f32.mxu0 0.0
        %4489 = vmatmul.mubr.f32.gmra.mxu0 %v4388
        %v4490 = vpop.f32.mrf.mxu0
        %v4491 = vadd.f32 0.0, %v4490
        %v4492 = vpop.f32.mrf.mxu0
        %4493 = vmatprep.mubr.f32.mxu0 0.0
        %4494 = vmatmul.mubr.f32.gmra.mxu0 %v4391
        %v4495 = vpop.f32.mrf.mxu0
        %v4496 = vadd.f32 0.0, %v4495
        %v4497 = vpop.f32.mrf.mxu0
        %4498 = vmatprep.mubr.f32.mxu0 0.0
        %4499 = vmatmul.mubr.f32.gmra.mxu0 %v4394
        %v4500 = vpop.f32.mrf.mxu0
        %v4501 = vadd.f32 0.0, %v4500
        %v4502 = vpop.f32.mrf.mxu0
        %4503 = vdwg.mxu0
        %v4504 = vrcp.pop %v4350
        %v4505 = vmul.f32 %v4466, %v4504
        %v4506 = vrcp.pop %v4353
        %v4507 = vmul.f32 %v4471, %v4506
        %v4508 = vrcp.pop %v4356
        %v4509 = vmul.f32 %v4476, %v4508
        %v4510 = vrcp.pop %v4359
        %v4511 = vmul.f32 %v4481, %v4510
        %v4512 = vrcp.pop %v4362
        %v4513 = vmul.f32 %v4486, %v4512
        %v4514 = vrcp.pop %v4365
        %v4515 = vmul.f32 %v4491, %v4514
        %v4516 = vrcp.pop %v4368
        %v4517 = vmul.f32 %v4496, %v4516
        %v4518 = vrcp.pop %v4371
        %v4519 = vmul.f32 %v4501, %v4518
        %v4520 = vld [vmem:[%s5 + $0x30] sm:$0xff]
        %v4522 = vsel %vm1001, %v4505, 0
        %v4525 = vsel %vm1001, %v4507, 0
        %v4528 = vsel %vm1001, %v4509, 0
        %v4531 = vsel %vm1001, %v4511, 0
        %v4534 = vsel %vm1001, %v4513, 0
        %v4537 = vsel %vm1001, %v4515, 0
        %v4540 = vsel %vm1001, %v4517, 0
        %v4543 = vsel %vm1001, %v4519, 0
        %4545 = vmatprep.subr.mxu0 0.0
        %4546 = vmatpush1.msra.mxu0 0.0
        %4547 = vmatprep.subr.mxu0 0.0
        %4548 = vmatpush1.msra.mxu0 0.0
        %4549 = vmatprep.subr.mxu0 0.0
        %4550 = vmatpush1.msra.mxu0 0.0
        %4551 = vmatprep.subr.mxu0 0.0
        %4552 = vmatpush1.msra.mxu0 0.0
        %4553 = vmatprep.subr.mxu0 0.0
        %4554 = vmatpush1.msra.mxu0 0.0
        %4555 = vmatprep.subr.mxu0 0.0
        %4556 = vmatpush1.msra.mxu0 0.0
        %4557 = vmatprep.subr.mxu0 0.0
        %4558 = vmatpush1.msra.mxu0 0.0
        %4559 = vmatprep.subr.mxu0 0.0
        %4560 = vmatpush1.msra.mxu0 0.0
        %4561 = vmatprep.subr.mxu0 0.0
        %4562 = vmatpush1.msra.mxu0 0.0
        %4563 = vmatprep.subr.mxu0 0.0
        %4564 = vmatpush1.msra.mxu0 0.0
        %4565 = vmatprep.subr.mxu0 0.0
        %4566 = vmatpush1.msra.mxu0 0.0
        %4567 = vmatprep.subr.mxu0 0.0
        %4568 = vmatpush1.msra.mxu0 0.0
        %4569 = vmatprep.subr.mxu0 0.0
        %4570 = vmatpush1.msra.mxu0 0.0
        %4571 = vmatprep.subr.mxu0 0.0
        %4572 = vmatpush1.msra.mxu0 0.0
        %4573 = vmatprep.subr.mxu0 0.0
        %4574 = vmatpush1.msra.mxu0 0.0
        %4575 = vmatprep.subr.mxu0 0.0
        %4576 = vmatpush1.msra.mxu0 %v4520
        %4577 = vmatprep.subr.mxu0 0.0
        %4578 = vmatpush2.msra.mxu0 0.0
        %4579 = vmatprep.subr.mxu0 0.0
        %4580 = vmatpush2.msra.mxu0 0.0
        %4581 = vmatprep.subr.mxu0 0.0
        %4582 = vmatpush2.msra.mxu0 0.0
        %4583 = vmatprep.subr.mxu0 0.0
        %4584 = vmatpush2.msra.mxu0 0.0
        %4585 = vmatprep.subr.mxu0 0.0
        %4586 = vmatpush2.msra.mxu0 0.0
        %4587 = vmatprep.subr.mxu0 0.0
        %4588 = vmatpush2.msra.mxu0 0.0
        %4589 = vmatprep.subr.mxu0 0.0
        %4590 = vmatpush2.msra.mxu0 0.0
        %4591 = vmatprep.subr.mxu0 0.0
        %4592 = vmatpush2.msra.mxu0 0.0
        %4593 = vmatprep.subr.mxu0 0.0
        %4594 = vmatpush2.msra.mxu0 0.0
        %4595 = vmatprep.subr.mxu0 0.0
        %4596 = vmatpush2.msra.mxu0 0.0
        %4597 = vmatprep.subr.mxu0 0.0
        %4598 = vmatpush2.msra.mxu0 0.0
        %4599 = vmatprep.subr.mxu0 0.0
        %4600 = vmatpush2.msra.mxu0 0.0
        %4601 = vmatprep.subr.mxu0 0.0
        %4602 = vmatpush2.msra.mxu0 0.0
        %4603 = vmatprep.subr.mxu0 0.0
        %4604 = vmatpush2.msra.mxu0 0.0
        %4605 = vmatprep.subr.mxu0 0.0
        %4606 = vmatpush2.msra.mxu0 0.0
        %4607 = vmatprep.subr.mxu0 0.0
        %4608 = vmatpush2.msra.mxu0 0.0
        %4609 = vmatprep.mubr.f32.mxu0 0.0
        %4610 = vmatmul.mubr.f32.gmra.mxu0 %v4522
        %v4611 = vpop.f32.mrf.mxu0
        %v4612 = vadd.f32 0.0, %v4611
        %v4613 = vpop.f32.mrf.mxu0
        %4614 = vmatprep.mubr.f32.mxu0 0.0
        %4615 = vmatmul.mubr.f32.gmra.mxu0 %v4525
        %v4616 = vpop.f32.mrf.mxu0
        %v4617 = vadd.f32 0.0, %v4616
        %v4618 = vpop.f32.mrf.mxu0
        %4619 = vmatprep.mubr.f32.mxu0 0.0
        %4620 = vmatmul.mubr.f32.gmra.mxu0 %v4528
        %v4621 = vpop.f32.mrf.mxu0
        %v4622 = vadd.f32 0.0, %v4621
        %v4623 = vpop.f32.mrf.mxu0
        %4624 = vmatprep.mubr.f32.mxu0 0.0
        %4625 = vmatmul.mubr.f32.gmra.mxu0 %v4531
        %v4626 = vpop.f32.mrf.mxu0
        %v4627 = vadd.f32 0.0, %v4626
        %v4628 = vpop.f32.mrf.mxu0
        %4629 = vmatprep.mubr.f32.mxu0 0.0
        %4630 = vmatmul.mubr.f32.gmra.mxu0 %v4534
        %v4631 = vpop.f32.mrf.mxu0
        %v4632 = vadd.f32 0.0, %v4631
        %v4633 = vpop.f32.mrf.mxu0
        %4634 = vmatprep.mubr.f32.mxu0 0.0
        %4635 = vmatmul.mubr.f32.gmra.mxu0 %v4537
        %v4636 = vpop.f32.mrf.mxu0
        %v4637 = vadd.f32 0.0, %v4636
        %v4638 = vpop.f32.mrf.mxu0
        %4639 = vmatprep.mubr.f32.mxu0 0.0
        %4640 = vmatmul.mubr.f32.gmra.mxu0 %v4540
        %v4641 = vpop.f32.mrf.mxu0
        %v4642 = vadd.f32 0.0, %v4641
        %v4643 = vpop.f32.mrf.mxu0
        %4644 = vmatprep.mubr.f32.mxu0 0.0
        %4645 = vmatmul.mubr.f32.gmra.mxu0 %v4543
        %v4646 = vpop.f32.mrf.mxu0
        %v4647 = vadd.f32 0.0, %v4646
        %v4648 = vpop.f32.mrf.mxu0
        %4649 = vdwg.mxu0
        %v4650 = vadd.f32 %v4122, %v4612
        %v4651 = vadd.f32 %v4123, %v4617
        %v4652 = vadd.f32 %v4124, %v4622
        %v4653 = vadd.f32 %v4125, %v4627
        %v4654 = vadd.f32 %v4126, %v4632
        %v4655 = vadd.f32 %v4127, %v4637
        %v4656 = vadd.f32 %v4128, %v4642
        %v4657 = vadd.f32 %v4129, %v4647
        %s4658 = scalar_lea.vmem %s7, 448
        %v4659 = vld [vmem:[%s4658] sm:$0xff]
        %v4660 = vld [vmem:[%s4658 + $0x8] sm:$0xff]
        %v4661 = vld [vmem:[%s4658 + $0x10] sm:$0xff]
        %v4662 = vld [vmem:[%s4658 + $0x18] sm:$0xff]
        %v4663 = vld [vmem:[%s4658 + $0x20] sm:$0xff]
        %v4664 = vld [vmem:[%s4658 + $0x28] sm:$0xff]
        %v4665 = vld [vmem:[%s4658 + $0x30] sm:$0xff]
        %v4666 = vld [vmem:[%s4658 + $0x38] sm:$0xff]
        %4667 = vxpose.xlu0.b32.start [1/16] %v783, 128
        %4668 = vxpose.xlu0.b32.cont [2/16] 0.0, 128
        %4669 = vxpose.xlu0.b32.cont [3/16] 0.0, 128
        %4670 = vxpose.xlu0.b32.cont [4/16] 0.0, 128
        %4671 = vxpose.xlu0.b32.cont [5/16] 0.0, 128
        %4672 = vxpose.xlu0.b32.cont [6/16] 0.0, 128
        %4673 = vxpose.xlu0.b32.cont [7/16] 0.0, 128
        %4674 = vxpose.xlu0.b32.cont [8/16] 0.0, 128
        %4675 = vxpose.xlu0.b32.cont [9/16] 0.0, 128
        %4676 = vxpose.xlu0.b32.cont [10/16] 0.0, 128
        %4677 = vxpose.xlu0.b32.cont [11/16] 0.0, 128
        %4678 = vxpose.xlu0.b32.cont [12/16] 0.0, 128
        %4679 = vxpose.xlu0.b32.cont [13/16] 0.0, 128
        %4680 = vxpose.xlu0.b32.cont [14/16] 0.0, 128
        %4681 = vxpose.xlu0.b32.cont [15/16] 0.0, 128
        %4682 = vxpose.xlu0.b32.end [16/16] 0.0, 128
        %v4683 = vpop.trf.xlu0
        %v4684 = vpop.trf.xlu0
        %v4685 = vpop.trf.xlu0
        %v4686 = vpop.trf.xlu0
        %v4687 = vpop.trf.xlu0
        %v4688 = vpop.trf.xlu0
        %v4689 = vpop.trf.xlu0
        %v4690 = vpop.trf.xlu0
        %v4691 = vpop.trf.xlu0
        %v4692 = vpop.trf.xlu0
        %v4693 = vpop.trf.xlu0
        %v4694 = vpop.trf.xlu0
        %v4695 = vpop.trf.xlu0
        %v4696 = vpop.trf.xlu0
        %v4697 = vpop.trf.xlu0
        %v4698 = vpop.trf.xlu0
        %v4700 = vsel %vm1001, %v4683, 0
        %v4703 = vsel %vm1001, %v4684, 0
        %v4706 = vsel %vm1001, %v4685, 0
        %v4709 = vsel %vm1001, %v4686, 0
        %v4712 = vsel %vm1001, %v4687, 0
        %v4715 = vsel %vm1001, %v4688, 0
        %v4718 = vsel %vm1001, %v4689, 0
        %v4721 = vsel %vm1001, %v4690, 0
        %4723 = vmatprep.subr.mxu0 0.0
        %4724 = vmatpush1.msra.mxu0 0.0
        %4725 = vmatprep.subr.mxu0 0.0
        %4726 = vmatpush1.msra.mxu0 0.0
        %4727 = vmatprep.subr.mxu0 0.0
        %4728 = vmatpush1.msra.mxu0 0.0
        %4729 = vmatprep.subr.mxu0 0.0
        %4730 = vmatpush1.msra.mxu0 0.0
        %4731 = vmatprep.subr.mxu0 0.0
        %4732 = vmatpush1.msra.mxu0 0.0
        %4733 = vmatprep.subr.mxu0 0.0
        %4734 = vmatpush1.msra.mxu0 0.0
        %4735 = vmatprep.subr.mxu0 0.0
        %4736 = vmatpush1.msra.mxu0 0.0
        %4737 = vmatprep.subr.mxu0 0.0
        %4738 = vmatpush1.msra.mxu0 0.0
        %4739 = vmatprep.subr.mxu0 0.0
        %4740 = vmatpush1.msra.mxu0 0.0
        %4741 = vmatprep.subr.mxu0 0.0
        %4742 = vmatpush1.msra.mxu0 0.0
        %4743 = vmatprep.subr.mxu0 0.0
        %4744 = vmatpush1.msra.mxu0 0.0
        %4745 = vmatprep.subr.mxu0 0.0
        %4746 = vmatpush1.msra.mxu0 0.0
        %4747 = vmatprep.subr.mxu0 0.0
        %4748 = vmatpush1.msra.mxu0 0.0
        %4749 = vmatprep.subr.mxu0 0.0
        %4750 = vmatpush1.msra.mxu0 0.0
        %4751 = vmatprep.subr.mxu0 0.0
        %4752 = vmatpush1.msra.mxu0 0.0
        %4753 = vmatprep.subr.mxu0 0.0
        %4754 = vmatpush1.msra.mxu0 %v847
        %4755 = vmatprep.subr.mxu0 0.0
        %4756 = vmatpush2.msra.mxu0 0.0
        %4757 = vmatprep.subr.mxu0 0.0
        %4758 = vmatpush2.msra.mxu0 0.0
        %4759 = vmatprep.subr.mxu0 0.0
        %4760 = vmatpush2.msra.mxu0 0.0
        %4761 = vmatprep.subr.mxu0 0.0
        %4762 = vmatpush2.msra.mxu0 0.0
        %4763 = vmatprep.subr.mxu0 0.0
        %4764 = vmatpush2.msra.mxu0 0.0
        %4765 = vmatprep.subr.mxu0 0.0
        %4766 = vmatpush2.msra.mxu0 0.0
        %4767 = vmatprep.subr.mxu0 0.0
        %4768 = vmatpush2.msra.mxu0 0.0
        %4769 = vmatprep.subr.mxu0 0.0
        %4770 = vmatpush2.msra.mxu0 0.0
        %4771 = vmatprep.subr.mxu0 0.0
        %4772 = vmatpush2.msra.mxu0 0.0
        %4773 = vmatprep.subr.mxu0 0.0
        %4774 = vmatpush2.msra.mxu0 0.0
        %4775 = vmatprep.subr.mxu0 0.0
        %4776 = vmatpush2.msra.mxu0 0.0
        %4777 = vmatprep.subr.mxu0 0.0
        %4778 = vmatpush2.msra.mxu0 0.0
        %4779 = vmatprep.subr.mxu0 0.0
        %4780 = vmatpush2.msra.mxu0 0.0
        %4781 = vmatprep.subr.mxu0 0.0
        %4782 = vmatpush2.msra.mxu0 0.0
        %4783 = vmatprep.subr.mxu0 0.0
        %4784 = vmatpush2.msra.mxu0 0.0
        %4785 = vmatprep.subr.mxu0 0.0
        %4786 = vmatpush2.msra.mxu0 0.0
        %4787 = vmatprep.mubr.f32.mxu0 0.0
        %4788 = vmatmul.mubr.f32.gmra.mxu0 %v4700
        %v4789 = vpop.f32.mrf.mxu0
        %v4790 = vadd.f32 %v4659, %v4789
        %v4791 = vpop.f32.mrf.mxu0
        %4792 = vmatprep.mubr.f32.mxu0 0.0
        %4793 = vmatmul.mubr.f32.gmra.mxu0 %v4703
        %v4794 = vpop.f32.mrf.mxu0
        %v4795 = vadd.f32 %v4660, %v4794
        %v4796 = vpop.f32.mrf.mxu0
        %4797 = vmatprep.mubr.f32.mxu0 0.0
        %4798 = vmatmul.mubr.f32.gmra.mxu0 %v4706
        %v4799 = vpop.f32.mrf.mxu0
        %v4800 = vadd.f32 %v4661, %v4799
        %v4801 = vpop.f32.mrf.mxu0
        %4802 = vmatprep.mubr.f32.mxu0 0.0
        %4803 = vmatmul.mubr.f32.gmra.mxu0 %v4709
        %v4804 = vpop.f32.mrf.mxu0
        %v4805 = vadd.f32 %v4662, %v4804
        %v4806 = vpop.f32.mrf.mxu0
        %4807 = vmatprep.mubr.f32.mxu0 0.0
        %4808 = vmatmul.mubr.f32.gmra.mxu0 %v4712
        %v4809 = vpop.f32.mrf.mxu0
        %v4810 = vadd.f32 %v4663, %v4809
        %v4811 = vpop.f32.mrf.mxu0
        %4812 = vmatprep.mubr.f32.mxu0 0.0
        %4813 = vmatmul.mubr.f32.gmra.mxu0 %v4715
        %v4814 = vpop.f32.mrf.mxu0
        %v4815 = vadd.f32 %v4664, %v4814
        %v4816 = vpop.f32.mrf.mxu0
        %4817 = vmatprep.mubr.f32.mxu0 0.0
        %4818 = vmatmul.mubr.f32.gmra.mxu0 %v4718
        %v4819 = vpop.f32.mrf.mxu0
        %v4820 = vadd.f32 %v4665, %v4819
        %v4821 = vpop.f32.mrf.mxu0
        %4822 = vmatprep.mubr.f32.mxu0 0.0
        %4823 = vmatmul.mubr.f32.gmra.mxu0 %v4721
        %v4824 = vpop.f32.mrf.mxu0
        %v4825 = vadd.f32 %v4666, %v4824
        %v4826 = vpop.f32.mrf.mxu0
        %4827 = vdwg.mxu0
        %v4828 = vsel %vm1131, %v4790, -inf
        %4829 = vmax.xlane.f32.xlu0 %v4828
        %v4830 = vpop.xlane.xlu0 %4829
        %v4831 = vsel %vm1131, %v4795, -inf
        %4832 = vmax.xlane.f32.xlu0 %v4831
        %v4833 = vpop.xlane.xlu0 %4832
        %v4834 = vsel %vm1131, %v4800, -inf
        %4835 = vmax.xlane.f32.xlu0 %v4834
        %v4836 = vpop.xlane.xlu0 %4835
        %v4837 = vsel %vm1131, %v4805, -inf
        %4838 = vmax.xlane.f32.xlu0 %v4837
        %v4839 = vpop.xlane.xlu0 %4838
        %v4840 = vsel %vm1131, %v4810, -inf
        %4841 = vmax.xlane.f32.xlu0 %v4840
        %v4842 = vpop.xlane.xlu0 %4841
        %v4843 = vsel %vm1131, %v4815, -inf
        %4844 = vmax.xlane.f32.xlu0 %v4843
        %v4845 = vpop.xlane.xlu0 %4844
        %v4846 = vsel %vm1131, %v4820, -inf
        %4847 = vmax.xlane.f32.xlu0 %v4846
        %v4848 = vpop.xlane.xlu0 %4847
        %v4849 = vsel %vm1131, %v4825, -inf
        %4850 = vmax.xlane.f32.xlu0 %v4849
        %v4851 = vpop.xlane.xlu0 %4850
        %v4852 = vsub.f32 %v4790, %v4830
        %v4853 = vsub.f32 %v4795, %v4833
        %v4854 = vsub.f32 %v4800, %v4836
        %v4855 = vsub.f32 %v4805, %v4839
        %v4856 = vsub.f32 %v4810, %v4842
        %v4857 = vsub.f32 %v4815, %v4845
        %v4858 = vsub.f32 %v4820, %v4848
        %v4859 = vsub.f32 %v4825, %v4851
        %v4860 = vmul.f32 %v4852, 1.442695
        %v4861 = vpow.pop %v4860
        %v4862 = vmul.f32 %v4853, 1.442695
        %v4863 = vpow.pop %v4862
        %v4864 = vmul.f32 %v4854, 1.442695
        %v4865 = vpow.pop %v4864
        %v4866 = vmul.f32 %v4855, 1.442695
        %v4867 = vpow.pop %v4866
        %v4868 = vmul.f32 %v4856, 1.442695
        %v4869 = vpow.pop %v4868
        %v4870 = vmul.f32 %v4857, 1.442695
        %v4871 = vpow.pop %v4870
        %v4872 = vmul.f32 %v4858, 1.442695
        %v4873 = vpow.pop %v4872
        %v4874 = vmul.f32 %v4859, 1.442695
        %v4875 = vpow.pop %v4874
        %v4876 = vsel %vm1131, %v4861, 0.0
        %4877 = vadd.xlane.f32.xlu0 %v4876
        %v4878 = vpop.xlane.xlu0 %4877
        %v4879 = vsel %vm1131, %v4863, 0.0
        %4880 = vadd.xlane.f32.xlu0 %v4879
        %v4881 = vpop.xlane.xlu0 %4880
        %v4882 = vsel %vm1131, %v4865, 0.0
        %4883 = vadd.xlane.f32.xlu0 %v4882
        %v4884 = vpop.xlane.xlu0 %4883
        %v4885 = vsel %vm1131, %v4867, 0.0
        %4886 = vadd.xlane.f32.xlu0 %v4885
        %v4887 = vpop.xlane.xlu0 %4886
        %v4888 = vsel %vm1131, %v4869, 0.0
        %4889 = vadd.xlane.f32.xlu0 %v4888
        %v4890 = vpop.xlane.xlu0 %4889
        %v4891 = vsel %vm1131, %v4871, 0.0
        %4892 = vadd.xlane.f32.xlu0 %v4891
        %v4893 = vpop.xlane.xlu0 %4892
        %v4894 = vsel %vm1131, %v4873, 0.0
        %4895 = vadd.xlane.f32.xlu0 %v4894
        %v4896 = vpop.xlane.xlu0 %4895
        %v4897 = vsel %vm1131, %v4875, 0.0
        %4898 = vadd.xlane.f32.xlu0 %v4897
        %v4899 = vpop.xlane.xlu0 %4898
        %v4901 = vsel %vm1131, %v4861, 0
        %v4904 = vsel %vm1131, %v4863, 0
        %v4907 = vsel %vm1131, %v4865, 0
        %v4910 = vsel %vm1131, %v4867, 0
        %v4913 = vsel %vm1131, %v4869, 0
        %v4916 = vsel %vm1131, %v4871, 0
        %v4919 = vsel %vm1131, %v4873, 0
        %v4922 = vsel %vm1131, %v4875, 0
        %v4925 = vsel %vm1131, %v911, 0
        %4927 = vmatprep.subr.mxu0 0.0
        %4928 = vmatpush1.xpose.msra.mxu0 0.0
        %4929 = vmatprep.subr.mxu0 0.0
        %4930 = vmatpush1.xpose.msra.mxu0 0.0
        %4931 = vmatprep.subr.mxu0 0.0
        %4932 = vmatpush1.xpose.msra.mxu0 0.0
        %4933 = vmatprep.subr.mxu0 0.0
        %4934 = vmatpush1.xpose.msra.mxu0 0.0
        %4935 = vmatprep.subr.mxu0 0.0
        %4936 = vmatpush1.xpose.msra.mxu0 0.0
        %4937 = vmatprep.subr.mxu0 0.0
        %4938 = vmatpush1.xpose.msra.mxu0 0.0
        %4939 = vmatprep.subr.mxu0 0.0
        %4940 = vmatpush1.xpose.msra.mxu0 0.0
        %4941 = vmatprep.subr.mxu0 0.0
        %4942 = vmatpush1.xpose.msra.mxu0 0.0
        %4943 = vmatprep.subr.mxu0 0.0
        %4944 = vmatpush1.xpose.msra.mxu0 0.0
        %4945 = vmatprep.subr.mxu0 0.0
        %4946 = vmatpush1.xpose.msra.mxu0 0.0
        %4947 = vmatprep.subr.mxu0 0.0
        %4948 = vmatpush1.xpose.msra.mxu0 0.0
        %4949 = vmatprep.subr.mxu0 0.0
        %4950 = vmatpush1.xpose.msra.mxu0 0.0
        %4951 = vmatprep.subr.mxu0 0.0
        %4952 = vmatpush1.xpose.msra.mxu0 0.0
        %4953 = vmatprep.subr.mxu0 0.0
        %4954 = vmatpush1.xpose.msra.mxu0 0.0
        %4955 = vmatprep.subr.mxu0 0.0
        %4956 = vmatpush1.xpose.msra.mxu0 0.0
        %4957 = vmatprep.subr.mxu0 0.0
        %4958 = vmatpush1.xpose.msra.mxu0 %v4925
        %4959 = vmatprep.subr.mxu0 0.0
        %4960 = vmatpush2.xpose.msra.mxu0 0.0
        %4961 = vmatprep.subr.mxu0 0.0
        %4962 = vmatpush2.xpose.msra.mxu0 0.0
        %4963 = vmatprep.subr.mxu0 0.0
        %4964 = vmatpush2.xpose.msra.mxu0 0.0
        %4965 = vmatprep.subr.mxu0 0.0
        %4966 = vmatpush2.xpose.msra.mxu0 0.0
        %4967 = vmatprep.subr.mxu0 0.0
        %4968 = vmatpush2.xpose.msra.mxu0 0.0
        %4969 = vmatprep.subr.mxu0 0.0
        %4970 = vmatpush2.xpose.msra.mxu0 0.0
        %4971 = vmatprep.subr.mxu0 0.0
        %4972 = vmatpush2.xpose.msra.mxu0 0.0
        %4973 = vmatprep.subr.mxu0 0.0
        %4974 = vmatpush2.xpose.msra.mxu0 0.0
        %4975 = vmatprep.subr.mxu0 0.0
        %4976 = vmatpush2.xpose.msra.mxu0 0.0
        %4977 = vmatprep.subr.mxu0 0.0
        %4978 = vmatpush2.xpose.msra.mxu0 0.0
        %4979 = vmatprep.subr.mxu0 0.0
        %4980 = vmatpush2.xpose.msra.mxu0 0.0
        %4981 = vmatprep.subr.mxu0 0.0
        %4982 = vmatpush2.xpose.msra.mxu0 0.0
        %4983 = vmatprep.subr.mxu0 0.0
        %4984 = vmatpush2.xpose.msra.mxu0 0.0
        %4985 = vmatprep.subr.mxu0 0.0
        %4986 = vmatpush2.xpose.msra.mxu0 0.0
        %4987 = vmatprep.subr.mxu0 0.0
        %4988 = vmatpush2.xpose.msra.mxu0 0.0
        %4989 = vmatprep.subr.mxu0 0.0
        %4990 = vmatpush2.xpose.msra.mxu0 0.0
        %4991 = vmatprep.mubr.f32.mxu0 0.0
        %4992 = vmatmul.mubr.f32.gmra.mxu0 %v4901
        %v4993 = vpop.f32.mrf.mxu0
        %v4994 = vadd.f32 0.0, %v4993
        %v4995 = vpop.f32.mrf.mxu0
        %4996 = vmatprep.mubr.f32.mxu0 0.0
        %4997 = vmatmul.mubr.f32.gmra.mxu0 %v4904
        %v4998 = vpop.f32.mrf.mxu0
        %v4999 = vadd.f32 0.0, %v4998
        %v5000 = vpop.f32.mrf.mxu0
        %5001 = vmatprep.mubr.f32.mxu0 0.0
        %5002 = vmatmul.mubr.f32.gmra.mxu0 %v4907
        %v5003 = vpop.f32.mrf.mxu0
        %v5004 = vadd.f32 0.0, %v5003
        %v5005 = vpop.f32.mrf.mxu0
        %5006 = vmatprep.mubr.f32.mxu0 0.0
        %5007 = vmatmul.mubr.f32.gmra.mxu0 %v4910
        %v5008 = vpop.f32.mrf.mxu0
        %v5009 = vadd.f32 0.0, %v5008
        %v5010 = vpop.f32.mrf.mxu0
        %5011 = vmatprep.mubr.f32.mxu0 0.0
        %5012 = vmatmul.mubr.f32.gmra.mxu0 %v4913
        %v5013 = vpop.f32.mrf.mxu0
        %v5014 = vadd.f32 0.0, %v5013
        %v5015 = vpop.f32.mrf.mxu0
        %5016 = vmatprep.mubr.f32.mxu0 0.0
        %5017 = vmatmul.mubr.f32.gmra.mxu0 %v4916
        %v5018 = vpop.f32.mrf.mxu0
        %v5019 = vadd.f32 0.0, %v5018
        %v5020 = vpop.f32.mrf.mxu0
        %5021 = vmatprep.mubr.f32.mxu0 0.0
        %5022 = vmatmul.mubr.f32.gmra.mxu0 %v4919
        %v5023 = vpop.f32.mrf.mxu0
        %v5024 = vadd.f32 0.0, %v5023
        %v5025 = vpop.f32.mrf.mxu0
        %5026 = vmatprep.mubr.f32.mxu0 0.0
        %5027 = vmatmul.mubr.f32.gmra.mxu0 %v4922
        %v5028 = vpop.f32.mrf.mxu0
        %v5029 = vadd.f32 0.0, %v5028
        %v5030 = vpop.f32.mrf.mxu0
        %5031 = vdwg.mxu0
        %v5032 = vrcp.pop %v4878
        %v5033 = vmul.f32 %v4994, %v5032
        %v5034 = vrcp.pop %v4881
        %v5035 = vmul.f32 %v4999, %v5034
        %v5036 = vrcp.pop %v4884
        %v5037 = vmul.f32 %v5004, %v5036
        %v5038 = vrcp.pop %v4887
        %v5039 = vmul.f32 %v5009, %v5038
        %v5040 = vrcp.pop %v4890
        %v5041 = vmul.f32 %v5014, %v5040
        %v5042 = vrcp.pop %v4893
        %v5043 = vmul.f32 %v5019, %v5042
        %v5044 = vrcp.pop %v4896
        %v5045 = vmul.f32 %v5024, %v5044
        %v5046 = vrcp.pop %v4899
        %v5047 = vmul.f32 %v5029, %v5046
        %v5048 = vld [vmem:[%s5 + $0x38] sm:$0xff]
        %v5050 = vsel %vm1001, %v5033, 0
        %v5053 = vsel %vm1001, %v5035, 0
        %v5056 = vsel %vm1001, %v5037, 0
        %v5059 = vsel %vm1001, %v5039, 0
        %v5062 = vsel %vm1001, %v5041, 0
        %v5065 = vsel %vm1001, %v5043, 0
        %v5068 = vsel %vm1001, %v5045, 0
        %v5071 = vsel %vm1001, %v5047, 0
        %5073 = vmatprep.subr.mxu0 0.0
        %5074 = vmatpush1.msra.mxu0 0.0
        %5075 = vmatprep.subr.mxu0 0.0
        %5076 = vmatpush1.msra.mxu0 0.0
        %5077 = vmatprep.subr.mxu0 0.0
        %5078 = vmatpush1.msra.mxu0 0.0
        %5079 = vmatprep.subr.mxu0 0.0
        %5080 = vmatpush1.msra.mxu0 0.0
        %5081 = vmatprep.subr.mxu0 0.0
        %5082 = vmatpush1.msra.mxu0 0.0
        %5083 = vmatprep.subr.mxu0 0.0
        %5084 = vmatpush1.msra.mxu0 0.0
        %5085 = vmatprep.subr.mxu0 0.0
        %5086 = vmatpush1.msra.mxu0 0.0
        %5087 = vmatprep.subr.mxu0 0.0
        %5088 = vmatpush1.msra.mxu0 0.0
        %5089 = vmatprep.subr.mxu0 0.0
        %5090 = vmatpush1.msra.mxu0 0.0
        %5091 = vmatprep.subr.mxu0 0.0
        %5092 = vmatpush1.msra.mxu0 0.0
        %5093 = vmatprep.subr.mxu0 0.0
        %5094 = vmatpush1.msra.mxu0 0.0
        %5095 = vmatprep.subr.mxu0 0.0
        %5096 = vmatpush1.msra.mxu0 0.0
        %5097 = vmatprep.subr.mxu0 0.0
        %5098 = vmatpush1.msra.mxu0 0.0
        %5099 = vmatprep.subr.mxu0 0.0
        %5100 = vmatpush1.msra.mxu0 0.0
        %5101 = vmatprep.subr.mxu0 0.0
        %5102 = vmatpush1.msra.mxu0 0.0
        %5103 = vmatprep.subr.mxu0 0.0
        %5104 = vmatpush1.msra.mxu0 %v5048
        %5105 = vmatprep.subr.mxu0 0.0
        %5106 = vmatpush2.msra.mxu0 0.0
        %5107 = vmatprep.subr.mxu0 0.0
        %5108 = vmatpush2.msra.mxu0 0.0
        %5109 = vmatprep.subr.mxu0 0.0
        %5110 = vmatpush2.msra.mxu0 0.0
        %5111 = vmatprep.subr.mxu0 0.0
        %5112 = vmatpush2.msra.mxu0 0.0
        %5113 = vmatprep.subr.mxu0 0.0
        %5114 = vmatpush2.msra.mxu0 0.0
        %5115 = vmatprep.subr.mxu0 0.0
        %5116 = vmatpush2.msra.mxu0 0.0
        %5117 = vmatprep.subr.mxu0 0.0
        %5118 = vmatpush2.msra.mxu0 0.0
        %5119 = vmatprep.subr.mxu0 0.0
        %5120 = vmatpush2.msra.mxu0 0.0
        %5121 = vmatprep.subr.mxu0 0.0
        %5122 = vmatpush2.msra.mxu0 0.0
        %5123 = vmatprep.subr.mxu0 0.0
        %5124 = vmatpush2.msra.mxu0 0.0
        %5125 = vmatprep.subr.mxu0 0.0
        %5126 = vmatpush2.msra.mxu0 0.0
        %5127 = vmatprep.subr.mxu0 0.0
        %5128 = vmatpush2.msra.mxu0 0.0
        %5129 = vmatprep.subr.mxu0 0.0
        %5130 = vmatpush2.msra.mxu0 0.0
        %5131 = vmatprep.subr.mxu0 0.0
        %5132 = vmatpush2.msra.mxu0 0.0
        %5133 = vmatprep.subr.mxu0 0.0
        %5134 = vmatpush2.msra.mxu0 0.0
        %5135 = vmatprep.subr.mxu0 0.0
        %5136 = vmatpush2.msra.mxu0 0.0
        %5137 = vmatprep.mubr.f32.mxu0 0.0
        %5138 = vmatmul.mubr.f32.gmra.mxu0 %v5050
        %v5139 = vpop.f32.mrf.mxu0
        %v5140 = vadd.f32 0.0, %v5139
        %v5141 = vpop.f32.mrf.mxu0
        %5142 = vmatprep.mubr.f32.mxu0 0.0
        %5143 = vmatmul.mubr.f32.gmra.mxu0 %v5053
        %v5144 = vpop.f32.mrf.mxu0
        %v5145 = vadd.f32 0.0, %v5144
        %v5146 = vpop.f32.mrf.mxu0
        %5147 = vmatprep.mubr.f32.mxu0 0.0
        %5148 = vmatmul.mubr.f32.gmra.mxu0 %v5056
        %v5149 = vpop.f32.mrf.mxu0
        %v5150 = vadd.f32 0.0, %v5149
        %v5151 = vpop.f32.mrf.mxu0
        %5152 = vmatprep.mubr.f32.mxu0 0.0
        %5153 = vmatmul.mubr.f32.gmra.mxu0 %v5059
        %v5154 = vpop.f32.mrf.mxu0
        %v5155 = vadd.f32 0.0, %v5154
        %v5156 = vpop.f32.mrf.mxu0
        %5157 = vmatprep.mubr.f32.mxu0 0.0
        %5158 = vmatmul.mubr.f32.gmra.mxu0 %v5062
        %v5159 = vpop.f32.mrf.mxu0
        %v5160 = vadd.f32 0.0, %v5159
        %v5161 = vpop.f32.mrf.mxu0
        %5162 = vmatprep.mubr.f32.mxu0 0.0
        %5163 = vmatmul.mubr.f32.gmra.mxu0 %v5065
        %v5164 = vpop.f32.mrf.mxu0
        %v5165 = vadd.f32 0.0, %v5164
        %v5166 = vpop.f32.mrf.mxu0
        %5167 = vmatprep.mubr.f32.mxu0 0.0
        %5168 = vmatmul.mubr.f32.gmra.mxu0 %v5068
        %v5169 = vpop.f32.mrf.mxu0
        %v5170 = vadd.f32 0.0, %v5169
        %v5171 = vpop.f32.mrf.mxu0
        %5172 = vmatprep.mubr.f32.mxu0 0.0
        %5173 = vmatmul.mubr.f32.gmra.mxu0 %v5071
        %v5174 = vpop.f32.mrf.mxu0
        %v5175 = vadd.f32 0.0, %v5174
        %v5176 = vpop.f32.mrf.mxu0
        %5177 = vdwg.mxu0
        %v5178 = vadd.f32 %v4650, %v5140
        %v5179 = vadd.f32 %v4651, %v5145
        %v5180 = vadd.f32 %v4652, %v5150
        %v5181 = vadd.f32 %v4653, %v5155
        %v5182 = vadd.f32 %v4654, %v5160
        %v5183 = vadd.f32 %v4655, %v5165
        %v5184 = vadd.f32 %v4656, %v5170
        %v5185 = vadd.f32 %v4657, %v5175
        %s5186 = scalar_lea.vmem %s7, 512
        %v5187 = vld [vmem:[%s5186] sm:$0xff]
        %v5188 = vld [vmem:[%s5186 + $0x8] sm:$0xff]
        %v5189 = vld [vmem:[%s5186 + $0x10] sm:$0xff]
        %v5190 = vld [vmem:[%s5186 + $0x18] sm:$0xff]
        %v5191 = vld [vmem:[%s5186 + $0x20] sm:$0xff]
        %v5192 = vld [vmem:[%s5186 + $0x28] sm:$0xff]
        %v5193 = vld [vmem:[%s5186 + $0x30] sm:$0xff]
        %v5194 = vld [vmem:[%s5186 + $0x38] sm:$0xff]
        %5195 = vxpose.xlu0.b32.start [1/16] %v788, 128
        %5196 = vxpose.xlu0.b32.cont [2/16] 0.0, 128
        %5197 = vxpose.xlu0.b32.cont [3/16] 0.0, 128
        %5198 = vxpose.xlu0.b32.cont [4/16] 0.0, 128
        %5199 = vxpose.xlu0.b32.cont [5/16] 0.0, 128
        %5200 = vxpose.xlu0.b32.cont [6/16] 0.0, 128
        %5201 = vxpose.xlu0.b32.cont [7/16] 0.0, 128
        %5202 = vxpose.xlu0.b32.cont [8/16] 0.0, 128
        %5203 = vxpose.xlu0.b32.cont [9/16] 0.0, 128
        %5204 = vxpose.xlu0.b32.cont [10/16] 0.0, 128
        %5205 = vxpose.xlu0.b32.cont [11/16] 0.0, 128
        %5206 = vxpose.xlu0.b32.cont [12/16] 0.0, 128
        %5207 = vxpose.xlu0.b32.cont [13/16] 0.0, 128
        %5208 = vxpose.xlu0.b32.cont [14/16] 0.0, 128
        %5209 = vxpose.xlu0.b32.cont [15/16] 0.0, 128
        %5210 = vxpose.xlu0.b32.end [16/16] 0.0, 128
        %v5211 = vpop.trf.xlu0
        %v5212 = vpop.trf.xlu0
        %v5213 = vpop.trf.xlu0
        %v5214 = vpop.trf.xlu0
        %v5215 = vpop.trf.xlu0
        %v5216 = vpop.trf.xlu0
        %v5217 = vpop.trf.xlu0
        %v5218 = vpop.trf.xlu0
        %v5219 = vpop.trf.xlu0
        %v5220 = vpop.trf.xlu0
        %v5221 = vpop.trf.xlu0
        %v5222 = vpop.trf.xlu0
        %v5223 = vpop.trf.xlu0
        %v5224 = vpop.trf.xlu0
        %v5225 = vpop.trf.xlu0
        %v5226 = vpop.trf.xlu0
        %v5228 = vsel %vm1001, %v5211, 0
        %v5231 = vsel %vm1001, %v5212, 0
        %v5234 = vsel %vm1001, %v5213, 0
        %v5237 = vsel %vm1001, %v5214, 0
        %v5240 = vsel %vm1001, %v5215, 0
        %v5243 = vsel %vm1001, %v5216, 0
        %v5246 = vsel %vm1001, %v5217, 0
        %v5249 = vsel %vm1001, %v5218, 0
        %5251 = vmatprep.subr.mxu0 0.0
        %5252 = vmatpush1.msra.mxu0 0.0
        %5253 = vmatprep.subr.mxu0 0.0
        %5254 = vmatpush1.msra.mxu0 0.0
        %5255 = vmatprep.subr.mxu0 0.0
        %5256 = vmatpush1.msra.mxu0 0.0
        %5257 = vmatprep.subr.mxu0 0.0
        %5258 = vmatpush1.msra.mxu0 0.0
        %5259 = vmatprep.subr.mxu0 0.0
        %5260 = vmatpush1.msra.mxu0 0.0
        %5261 = vmatprep.subr.mxu0 0.0
        %5262 = vmatpush1.msra.mxu0 0.0
        %5263 = vmatprep.subr.mxu0 0.0
        %5264 = vmatpush1.msra.mxu0 0.0
        %5265 = vmatprep.subr.mxu0 0.0
        %5266 = vmatpush1.msra.mxu0 0.0
        %5267 = vmatprep.subr.mxu0 0.0
        %5268 = vmatpush1.msra.mxu0 0.0
        %5269 = vmatprep.subr.mxu0 0.0
        %5270 = vmatpush1.msra.mxu0 0.0
        %5271 = vmatprep.subr.mxu0 0.0
        %5272 = vmatpush1.msra.mxu0 0.0
        %5273 = vmatprep.subr.mxu0 0.0
        %5274 = vmatpush1.msra.mxu0 0.0
        %5275 = vmatprep.subr.mxu0 0.0
        %5276 = vmatpush1.msra.mxu0 0.0
        %5277 = vmatprep.subr.mxu0 0.0
        %5278 = vmatpush1.msra.mxu0 0.0
        %5279 = vmatprep.subr.mxu0 0.0
        %5280 = vmatpush1.msra.mxu0 0.0
        %5281 = vmatprep.subr.mxu0 0.0
        %5282 = vmatpush1.msra.mxu0 %v852
        %5283 = vmatprep.subr.mxu0 0.0
        %5284 = vmatpush2.msra.mxu0 0.0
        %5285 = vmatprep.subr.mxu0 0.0
        %5286 = vmatpush2.msra.mxu0 0.0
        %5287 = vmatprep.subr.mxu0 0.0
        %5288 = vmatpush2.msra.mxu0 0.0
        %5289 = vmatprep.subr.mxu0 0.0
        %5290 = vmatpush2.msra.mxu0 0.0
        %5291 = vmatprep.subr.mxu0 0.0
        %5292 = vmatpush2.msra.mxu0 0.0
        %5293 = vmatprep.subr.mxu0 0.0
        %5294 = vmatpush2.msra.mxu0 0.0
        %5295 = vmatprep.subr.mxu0 0.0
        %5296 = vmatpush2.msra.mxu0 0.0
        %5297 = vmatprep.subr.mxu0 0.0
        %5298 = vmatpush2.msra.mxu0 0.0
        %5299 = vmatprep.subr.mxu0 0.0
        %5300 = vmatpush2.msra.mxu0 0.0
        %5301 = vmatprep.subr.mxu0 0.0
        %5302 = vmatpush2.msra.mxu0 0.0
        %5303 = vmatprep.subr.mxu0 0.0
        %5304 = vmatpush2.msra.mxu0 0.0
        %5305 = vmatprep.subr.mxu0 0.0
        %5306 = vmatpush2.msra.mxu0 0.0
        %5307 = vmatprep.subr.mxu0 0.0
        %5308 = vmatpush2.msra.mxu0 0.0
        %5309 = vmatprep.subr.mxu0 0.0
        %5310 = vmatpush2.msra.mxu0 0.0
        %5311 = vmatprep.subr.mxu0 0.0
        %5312 = vmatpush2.msra.mxu0 0.0
        %5313 = vmatprep.subr.mxu0 0.0
        %5314 = vmatpush2.msra.mxu0 0.0
        %5315 = vmatprep.mubr.f32.mxu0 0.0
        %5316 = vmatmul.mubr.f32.gmra.mxu0 %v5228
        %v5317 = vpop.f32.mrf.mxu0
        %v5318 = vadd.f32 %v5187, %v5317
        %v5319 = vpop.f32.mrf.mxu0
        %5320 = vmatprep.mubr.f32.mxu0 0.0
        %5321 = vmatmul.mubr.f32.gmra.mxu0 %v5231
        %v5322 = vpop.f32.mrf.mxu0
        %v5323 = vadd.f32 %v5188, %v5322
        %v5324 = vpop.f32.mrf.mxu0
        %5325 = vmatprep.mubr.f32.mxu0 0.0
        %5326 = vmatmul.mubr.f32.gmra.mxu0 %v5234
        %v5327 = vpop.f32.mrf.mxu0
        %v5328 = vadd.f32 %v5189, %v5327
        %v5329 = vpop.f32.mrf.mxu0
        %5330 = vmatprep.mubr.f32.mxu0 0.0
        %5331 = vmatmul.mubr.f32.gmra.mxu0 %v5237
        %v5332 = vpop.f32.mrf.mxu0
        %v5333 = vadd.f32 %v5190, %v5332
        %v5334 = vpop.f32.mrf.mxu0
        %5335 = vmatprep.mubr.f32.mxu0 0.0
        %5336 = vmatmul.mubr.f32.gmra.mxu0 %v5240
        %v5337 = vpop.f32.mrf.mxu0
        %v5338 = vadd.f32 %v5191, %v5337
        %v5339 = vpop.f32.mrf.mxu0
        %5340 = vmatprep.mubr.f32.mxu0 0.0
        %5341 = vmatmul.mubr.f32.gmra.mxu0 %v5243
        %v5342 = vpop.f32.mrf.mxu0
        %v5343 = vadd.f32 %v5192, %v5342
        %v5344 = vpop.f32.mrf.mxu0
        %5345 = vmatprep.mubr.f32.mxu0 0.0
        %5346 = vmatmul.mubr.f32.gmra.mxu0 %v5246
        %v5347 = vpop.f32.mrf.mxu0
        %v5348 = vadd.f32 %v5193, %v5347
        %v5349 = vpop.f32.mrf.mxu0
        %5350 = vmatprep.mubr.f32.mxu0 0.0
        %5351 = vmatmul.mubr.f32.gmra.mxu0 %v5249
        %v5352 = vpop.f32.mrf.mxu0
        %v5353 = vadd.f32 %v5194, %v5352
        %v5354 = vpop.f32.mrf.mxu0
        %5355 = vdwg.mxu0
        %v5356 = vsel %vm1131, %v5318, -inf
        %5357 = vmax.xlane.f32.xlu0 %v5356
        %v5358 = vpop.xlane.xlu0 %5357
        %v5359 = vsel %vm1131, %v5323, -inf
        %5360 = vmax.xlane.f32.xlu0 %v5359
        %v5361 = vpop.xlane.xlu0 %5360
        %v5362 = vsel %vm1131, %v5328, -inf
        %5363 = vmax.xlane.f32.xlu0 %v5362
        %v5364 = vpop.xlane.xlu0 %5363
        %v5365 = vsel %vm1131, %v5333, -inf
        %5366 = vmax.xlane.f32.xlu0 %v5365
        %v5367 = vpop.xlane.xlu0 %5366
        %v5368 = vsel %vm1131, %v5338, -inf
        %5369 = vmax.xlane.f32.xlu0 %v5368
        %v5370 = vpop.xlane.xlu0 %5369
        %v5371 = vsel %vm1131, %v5343, -inf
        %5372 = vmax.xlane.f32.xlu0 %v5371
        %v5373 = vpop.xlane.xlu0 %5372
        %v5374 = vsel %vm1131, %v5348, -inf
        %5375 = vmax.xlane.f32.xlu0 %v5374
        %v5376 = vpop.xlane.xlu0 %5375
        %v5377 = vsel %vm1131, %v5353, -inf
        %5378 = vmax.xlane.f32.xlu0 %v5377
        %v5379 = vpop.xlane.xlu0 %5378
        %v5380 = vsub.f32 %v5318, %v5358
        %v5381 = vsub.f32 %v5323, %v5361
        %v5382 = vsub.f32 %v5328, %v5364
        %v5383 = vsub.f32 %v5333, %v5367
        %v5384 = vsub.f32 %v5338, %v5370
        %v5385 = vsub.f32 %v5343, %v5373
        %v5386 = vsub.f32 %v5348, %v5376
        %v5387 = vsub.f32 %v5353, %v5379
        %v5388 = vmul.f32 %v5380, 1.442695
        %v5389 = vpow.pop %v5388
        %v5390 = vmul.f32 %v5381, 1.442695
        %v5391 = vpow.pop %v5390
        %v5392 = vmul.f32 %v5382, 1.442695
        %v5393 = vpow.pop %v5392
        %v5394 = vmul.f32 %v5383, 1.442695
        %v5395 = vpow.pop %v5394
        %v5396 = vmul.f32 %v5384, 1.442695
        %v5397 = vpow.pop %v5396
        %v5398 = vmul.f32 %v5385, 1.442695
        %v5399 = vpow.pop %v5398
        %v5400 = vmul.f32 %v5386, 1.442695
        %v5401 = vpow.pop %v5400
        %v5402 = vmul.f32 %v5387, 1.442695
        %v5403 = vpow.pop %v5402
        %v5404 = vsel %vm1131, %v5389, 0.0
        %5405 = vadd.xlane.f32.xlu0 %v5404
        %v5406 = vpop.xlane.xlu0 %5405
        %v5407 = vsel %vm1131, %v5391, 0.0
        %5408 = vadd.xlane.f32.xlu0 %v5407
        %v5409 = vpop.xlane.xlu0 %5408
        %v5410 = vsel %vm1131, %v5393, 0.0
        %5411 = vadd.xlane.f32.xlu0 %v5410
        %v5412 = vpop.xlane.xlu0 %5411
        %v5413 = vsel %vm1131, %v5395, 0.0
        %5414 = vadd.xlane.f32.xlu0 %v5413
        %v5415 = vpop.xlane.xlu0 %5414
        %v5416 = vsel %vm1131, %v5397, 0.0
        %5417 = vadd.xlane.f32.xlu0 %v5416
        %v5418 = vpop.xlane.xlu0 %5417
        %v5419 = vsel %vm1131, %v5399, 0.0
        %5420 = vadd.xlane.f32.xlu0 %v5419
        %v5421 = vpop.xlane.xlu0 %5420
        %v5422 = vsel %vm1131, %v5401, 0.0
        %5423 = vadd.xlane.f32.xlu0 %v5422
        %v5424 = vpop.xlane.xlu0 %5423
        %v5425 = vsel %vm1131, %v5403, 0.0
        %5426 = vadd.xlane.f32.xlu0 %v5425
        %v5427 = vpop.xlane.xlu0 %5426
        %v5429 = vsel %vm1131, %v5389, 0
        %v5432 = vsel %vm1131, %v5391, 0
        %v5435 = vsel %vm1131, %v5393, 0
        %v5438 = vsel %vm1131, %v5395, 0
        %v5441 = vsel %vm1131, %v5397, 0
        %v5444 = vsel %vm1131, %v5399, 0
        %v5447 = vsel %vm1131, %v5401, 0
        %v5450 = vsel %vm1131, %v5403, 0
        %v5453 = vsel %vm1131, %v916, 0
        %5455 = vmatprep.subr.mxu0 0.0
        %5456 = vmatpush1.xpose.msra.mxu0 0.0
        %5457 = vmatprep.subr.mxu0 0.0
        %5458 = vmatpush1.xpose.msra.mxu0 0.0
        %5459 = vmatprep.subr.mxu0 0.0
        %5460 = vmatpush1.xpose.msra.mxu0 0.0
        %5461 = vmatprep.subr.mxu0 0.0
        %5462 = vmatpush1.xpose.msra.mxu0 0.0
        %5463 = vmatprep.subr.mxu0 0.0
        %5464 = vmatpush1.xpose.msra.mxu0 0.0
        %5465 = vmatprep.subr.mxu0 0.0
        %5466 = vmatpush1.xpose.msra.mxu0 0.0
        %5467 = vmatprep.subr.mxu0 0.0
        %5468 = vmatpush1.xpose.msra.mxu0 0.0
        %5469 = vmatprep.subr.mxu0 0.0
        %5470 = vmatpush1.xpose.msra.mxu0 0.0
        %5471 = vmatprep.subr.mxu0 0.0
        %5472 = vmatpush1.xpose.msra.mxu0 0.0
        %5473 = vmatprep.subr.mxu0 0.0
        %5474 = vmatpush1.xpose.msra.mxu0 0.0
        %5475 = vmatprep.subr.mxu0 0.0
        %5476 = vmatpush1.xpose.msra.mxu0 0.0
        %5477 = vmatprep.subr.mxu0 0.0
        %5478 = vmatpush1.xpose.msra.mxu0 0.0
        %5479 = vmatprep.subr.mxu0 0.0
        %5480 = vmatpush1.xpose.msra.mxu0 0.0
        %5481 = vmatprep.subr.mxu0 0.0
        %5482 = vmatpush1.xpose.msra.mxu0 0.0
        %5483 = vmatprep.subr.mxu0 0.0
        %5484 = vmatpush1.xpose.msra.mxu0 0.0
        %5485 = vmatprep.subr.mxu0 0.0
        %5486 = vmatpush1.xpose.msra.mxu0 %v5453
        %5487 = vmatprep.subr.mxu0 0.0
        %5488 = vmatpush2.xpose.msra.mxu0 0.0
        %5489 = vmatprep.subr.mxu0 0.0
        %5490 = vmatpush2.xpose.msra.mxu0 0.0
        %5491 = vmatprep.subr.mxu0 0.0
        %5492 = vmatpush2.xpose.msra.mxu0 0.0
        %5493 = vmatprep.subr.mxu0 0.0
        %5494 = vmatpush2.xpose.msra.mxu0 0.0
        %5495 = vmatprep.subr.mxu0 0.0
        %5496 = vmatpush2.xpose.msra.mxu0 0.0
        %5497 = vmatprep.subr.mxu0 0.0
        %5498 = vmatpush2.xpose.msra.mxu0 0.0
        %5499 = vmatprep.subr.mxu0 0.0
        %5500 = vmatpush2.xpose.msra.mxu0 0.0
        %5501 = vmatprep.subr.mxu0 0.0
        %5502 = vmatpush2.xpose.msra.mxu0 0.0
        %5503 = vmatprep.subr.mxu0 0.0
        %5504 = vmatpush2.xpose.msra.mxu0 0.0
        %5505 = vmatprep.subr.mxu0 0.0
        %5506 = vmatpush2.xpose.msra.mxu0 0.0
        %5507 = vmatprep.subr.mxu0 0.0
        %5508 = vmatpush2.xpose.msra.mxu0 0.0
        %5509 = vmatprep.subr.mxu0 0.0
        %5510 = vmatpush2.xpose.msra.mxu0 0.0
        %5511 = vmatprep.subr.mxu0 0.0
        %5512 = vmatpush2.xpose.msra.mxu0 0.0
        %5513 = vmatprep.subr.mxu0 0.0
        %5514 = vmatpush2.xpose.msra.mxu0 0.0
        %5515 = vmatprep.subr.mxu0 0.0
        %5516 = vmatpush2.xpose.msra.mxu0 0.0
        %5517 = vmatprep.subr.mxu0 0.0
        %5518 = vmatpush2.xpose.msra.mxu0 0.0
        %5519 = vmatprep.mubr.f32.mxu0 0.0
        %5520 = vmatmul.mubr.f32.gmra.mxu0 %v5429
        %v5521 = vpop.f32.mrf.mxu0
        %v5522 = vadd.f32 0.0, %v5521
        %v5523 = vpop.f32.mrf.mxu0
        %5524 = vmatprep.mubr.f32.mxu0 0.0
        %5525 = vmatmul.mubr.f32.gmra.mxu0 %v5432
        %v5526 = vpop.f32.mrf.mxu0
        %v5527 = vadd.f32 0.0, %v5526
        %v5528 = vpop.f32.mrf.mxu0
        %5529 = vmatprep.mubr.f32.mxu0 0.0
        %5530 = vmatmul.mubr.f32.gmra.mxu0 %v5435
        %v5531 = vpop.f32.mrf.mxu0
        %v5532 = vadd.f32 0.0, %v5531
        %v5533 = vpop.f32.mrf.mxu0
        %5534 = vmatprep.mubr.f32.mxu0 0.0
        %5535 = vmatmul.mubr.f32.gmra.mxu0 %v5438
        %v5536 = vpop.f32.mrf.mxu0
        %v5537 = vadd.f32 0.0, %v5536
        %v5538 = vpop.f32.mrf.mxu0
        %5539 = vmatprep.mubr.f32.mxu0 0.0
        %5540 = vmatmul.mubr.f32.gmra.mxu0 %v5441
        %v5541 = vpop.f32.mrf.mxu0
        %v5542 = vadd.f32 0.0, %v5541
        %v5543 = vpop.f32.mrf.mxu0
        %5544 = vmatprep.mubr.f32.mxu0 0.0
        %5545 = vmatmul.mubr.f32.gmra.mxu0 %v5444
        %v5546 = vpop.f32.mrf.mxu0
        %v5547 = vadd.f32 0.0, %v5546
        %v5548 = vpop.f32.mrf.mxu0
        %5549 = vmatprep.mubr.f32.mxu0 0.0
        %5550 = vmatmul.mubr.f32.gmra.mxu0 %v5447
        %v5551 = vpop.f32.mrf.mxu0
        %v5552 = vadd.f32 0.0, %v5551
        %v5553 = vpop.f32.mrf.mxu0
        %5554 = vmatprep.mubr.f32.mxu0 0.0
        %5555 = vmatmul.mubr.f32.gmra.mxu0 %v5450
        %v5556 = vpop.f32.mrf.mxu0
        %v5557 = vadd.f32 0.0, %v5556
        %v5558 = vpop.f32.mrf.mxu0
        %5559 = vdwg.mxu0
        %v5560 = vrcp.pop %v5406
        %v5561 = vmul.f32 %v5522, %v5560
        %v5562 = vrcp.pop %v5409
        %v5563 = vmul.f32 %v5527, %v5562
        %v5564 = vrcp.pop %v5412
        %v5565 = vmul.f32 %v5532, %v5564
        %v5566 = vrcp.pop %v5415
        %v5567 = vmul.f32 %v5537, %v5566
        %v5568 = vrcp.pop %v5418
        %v5569 = vmul.f32 %v5542, %v5568
        %v5570 = vrcp.pop %v5421
        %v5571 = vmul.f32 %v5547, %v5570
        %v5572 = vrcp.pop %v5424
        %v5573 = vmul.f32 %v5552, %v5572
        %v5574 = vrcp.pop %v5427
        %v5575 = vmul.f32 %v5557, %v5574
        %v5576 = vld [vmem:[%s5 + $0x40] sm:$0xff]
        %v5578 = vsel %vm1001, %v5561, 0
        %v5581 = vsel %vm1001, %v5563, 0
        %v5584 = vsel %vm1001, %v5565, 0
        %v5587 = vsel %vm1001, %v5567, 0
        %v5590 = vsel %vm1001, %v5569, 0
        %v5593 = vsel %vm1001, %v5571, 0
        %v5596 = vsel %vm1001, %v5573, 0
        %v5599 = vsel %vm1001, %v5575, 0
        %5601 = vmatprep.subr.mxu0 0.0
        %5602 = vmatpush1.msra.mxu0 0.0
        %5603 = vmatprep.subr.mxu0 0.0
        %5604 = vmatpush1.msra.mxu0 0.0
        %5605 = vmatprep.subr.mxu0 0.0
        %5606 = vmatpush1.msra.mxu0 0.0
        %5607 = vmatprep.subr.mxu0 0.0
        %5608 = vmatpush1.msra.mxu0 0.0
        %5609 = vmatprep.subr.mxu0 0.0
        %5610 = vmatpush1.msra.mxu0 0.0
        %5611 = vmatprep.subr.mxu0 0.0
        %5612 = vmatpush1.msra.mxu0 0.0
        %5613 = vmatprep.subr.mxu0 0.0
        %5614 = vmatpush1.msra.mxu0 0.0
        %5615 = vmatprep.subr.mxu0 0.0
        %5616 = vmatpush1.msra.mxu0 0.0
        %5617 = vmatprep.subr.mxu0 0.0
        %5618 = vmatpush1.msra.mxu0 0.0
        %5619 = vmatprep.subr.mxu0 0.0
        %5620 = vmatpush1.msra.mxu0 0.0
        %5621 = vmatprep.subr.mxu0 0.0
        %5622 = vmatpush1.msra.mxu0 0.0
        %5623 = vmatprep.subr.mxu0 0.0
        %5624 = vmatpush1.msra.mxu0 0.0
        %5625 = vmatprep.subr.mxu0 0.0
        %5626 = vmatpush1.msra.mxu0 0.0
        %5627 = vmatprep.subr.mxu0 0.0
        %5628 = vmatpush1.msra.mxu0 0.0
        %5629 = vmatprep.subr.mxu0 0.0
        %5630 = vmatpush1.msra.mxu0 0.0
        %5631 = vmatprep.subr.mxu0 0.0
        %5632 = vmatpush1.msra.mxu0 %v5576
        %5633 = vmatprep.subr.mxu0 0.0
        %5634 = vmatpush2.msra.mxu0 0.0
        %5635 = vmatprep.subr.mxu0 0.0
        %5636 = vmatpush2.msra.mxu0 0.0
        %5637 = vmatprep.subr.mxu0 0.0
        %5638 = vmatpush2.msra.mxu0 0.0
        %5639 = vmatprep.subr.mxu0 0.0
        %5640 = vmatpush2.msra.mxu0 0.0
        %5641 = vmatprep.subr.mxu0 0.0
        %5642 = vmatpush2.msra.mxu0 0.0
        %5643 = vmatprep.subr.mxu0 0.0
        %5644 = vmatpush2.msra.mxu0 0.0
        %5645 = vmatprep.subr.mxu0 0.0
        %5646 = vmatpush2.msra.mxu0 0.0
        %5647 = vmatprep.subr.mxu0 0.0
        %5648 = vmatpush2.msra.mxu0 0.0
        %5649 = vmatprep.subr.mxu0 0.0
        %5650 = vmatpush2.msra.mxu0 0.0
        %5651 = vmatprep.subr.mxu0 0.0
        %5652 = vmatpush2.msra.mxu0 0.0
        %5653 = vmatprep.subr.mxu0 0.0
        %5654 = vmatpush2.msra.mxu0 0.0
        %5655 = vmatprep.subr.mxu0 0.0
        %5656 = vmatpush2.msra.mxu0 0.0
        %5657 = vmatprep.subr.mxu0 0.0
        %5658 = vmatpush2.msra.mxu0 0.0
        %5659 = vmatprep.subr.mxu0 0.0
        %5660 = vmatpush2.msra.mxu0 0.0
        %5661 = vmatprep.subr.mxu0 0.0
        %5662 = vmatpush2.msra.mxu0 0.0
        %5663 = vmatprep.subr.mxu0 0.0
        %5664 = vmatpush2.msra.mxu0 0.0
        %5665 = vmatprep.mubr.f32.mxu0 0.0
        %5666 = vmatmul.mubr.f32.gmra.mxu0 %v5578
        %v5667 = vpop.f32.mrf.mxu0
        %v5668 = vadd.f32 0.0, %v5667
        %v5669 = vpop.f32.mrf.mxu0
        %5670 = vmatprep.mubr.f32.mxu0 0.0
        %5671 = vmatmul.mubr.f32.gmra.mxu0 %v5581
        %v5672 = vpop.f32.mrf.mxu0
        %v5673 = vadd.f32 0.0, %v5672
        %v5674 = vpop.f32.mrf.mxu0
        %5675 = vmatprep.mubr.f32.mxu0 0.0
        %5676 = vmatmul.mubr.f32.gmra.mxu0 %v5584
        %v5677 = vpop.f32.mrf.mxu0
        %v5678 = vadd.f32 0.0, %v5677
        %v5679 = vpop.f32.mrf.mxu0
        %5680 = vmatprep.mubr.f32.mxu0 0.0
        %5681 = vmatmul.mubr.f32.gmra.mxu0 %v5587
        %v5682 = vpop.f32.mrf.mxu0
        %v5683 = vadd.f32 0.0, %v5682
        %v5684 = vpop.f32.mrf.mxu0
        %5685 = vmatprep.mubr.f32.mxu0 0.0
        %5686 = vmatmul.mubr.f32.gmra.mxu0 %v5590
        %v5687 = vpop.f32.mrf.mxu0
        %v5688 = vadd.f32 0.0, %v5687
        %v5689 = vpop.f32.mrf.mxu0
        %5690 = vmatprep.mubr.f32.mxu0 0.0
        %5691 = vmatmul.mubr.f32.gmra.mxu0 %v5593
        %v5692 = vpop.f32.mrf.mxu0
        %v5693 = vadd.f32 0.0, %v5692
        %v5694 = vpop.f32.mrf.mxu0
        %5695 = vmatprep.mubr.f32.mxu0 0.0
        %5696 = vmatmul.mubr.f32.gmra.mxu0 %v5596
        %v5697 = vpop.f32.mrf.mxu0
        %v5698 = vadd.f32 0.0, %v5697
        %v5699 = vpop.f32.mrf.mxu0
        %5700 = vmatprep.mubr.f32.mxu0 0.0
        %5701 = vmatmul.mubr.f32.gmra.mxu0 %v5599
        %v5702 = vpop.f32.mrf.mxu0
        %v5703 = vadd.f32 0.0, %v5702
        %v5704 = vpop.f32.mrf.mxu0
        %5705 = vdwg.mxu0
        %v5706 = vadd.f32 %v5178, %v5668
        %v5707 = vadd.f32 %v5179, %v5673
        %v5708 = vadd.f32 %v5180, %v5678
        %v5709 = vadd.f32 %v5181, %v5683
        %v5710 = vadd.f32 %v5182, %v5688
        %v5711 = vadd.f32 %v5183, %v5693
        %v5712 = vadd.f32 %v5184, %v5698
        %v5713 = vadd.f32 %v5185, %v5703
        %s5714 = scalar_lea.vmem %s7, 576
        %v5715 = vld [vmem:[%s5714] sm:$0xff]
        %v5716 = vld [vmem:[%s5714 + $0x8] sm:$0xff]
        %v5717 = vld [vmem:[%s5714 + $0x10] sm:$0xff]
        %v5718 = vld [vmem:[%s5714 + $0x18] sm:$0xff]
        %v5719 = vld [vmem:[%s5714 + $0x20] sm:$0xff]
        %v5720 = vld [vmem:[%s5714 + $0x28] sm:$0xff]
        %v5721 = vld [vmem:[%s5714 + $0x30] sm:$0xff]
        %v5722 = vld [vmem:[%s5714 + $0x38] sm:$0xff]
        %5723 = vxpose.xlu0.b32.start [1/16] %v791, 128
        %5724 = vxpose.xlu0.b32.cont [2/16] 0.0, 128
        %5725 = vxpose.xlu0.b32.cont [3/16] 0.0, 128
        %5726 = vxpose.xlu0.b32.cont [4/16] 0.0, 128
        %5727 = vxpose.xlu0.b32.cont [5/16] 0.0, 128
        %5728 = vxpose.xlu0.b32.cont [6/16] 0.0, 128
        %5729 = vxpose.xlu0.b32.cont [7/16] 0.0, 128
        %5730 = vxpose.xlu0.b32.cont [8/16] 0.0, 128
        %5731 = vxpose.xlu0.b32.cont [9/16] 0.0, 128
        %5732 = vxpose.xlu0.b32.cont [10/16] 0.0, 128
        %5733 = vxpose.xlu0.b32.cont [11/16] 0.0, 128
        %5734 = vxpose.xlu0.b32.cont [12/16] 0.0, 128
        %5735 = vxpose.xlu0.b32.cont [13/16] 0.0, 128
        %5736 = vxpose.xlu0.b32.cont [14/16] 0.0, 128
        %5737 = vxpose.xlu0.b32.cont [15/16] 0.0, 128
        %5738 = vxpose.xlu0.b32.end [16/16] 0.0, 128
        %v5739 = vpop.trf.xlu0
        %v5740 = vpop.trf.xlu0
        %v5741 = vpop.trf.xlu0
        %v5742 = vpop.trf.xlu0
        %v5743 = vpop.trf.xlu0
        %v5744 = vpop.trf.xlu0
        %v5745 = vpop.trf.xlu0
        %v5746 = vpop.trf.xlu0
        %v5747 = vpop.trf.xlu0
        %v5748 = vpop.trf.xlu0
        %v5749 = vpop.trf.xlu0
        %v5750 = vpop.trf.xlu0
        %v5751 = vpop.trf.xlu0
        %v5752 = vpop.trf.xlu0
        %v5753 = vpop.trf.xlu0
        %v5754 = vpop.trf.xlu0
        %v5756 = vsel %vm1001, %v5739, 0
        %v5759 = vsel %vm1001, %v5740, 0
        %v5762 = vsel %vm1001, %v5741, 0
        %v5765 = vsel %vm1001, %v5742, 0
        %v5768 = vsel %vm1001, %v5743, 0
        %v5771 = vsel %vm1001, %v5744, 0
        %v5774 = vsel %vm1001, %v5745, 0
        %v5777 = vsel %vm1001, %v5746, 0
        %5779 = vmatprep.subr.mxu0 0.0
        %5780 = vmatpush1.msra.mxu0 0.0
        %5781 = vmatprep.subr.mxu0 0.0
        %5782 = vmatpush1.msra.mxu0 0.0
        %5783 = vmatprep.subr.mxu0 0.0
        %5784 = vmatpush1.msra.mxu0 0.0
        %5785 = vmatprep.subr.mxu0 0.0
        %5786 = vmatpush1.msra.mxu0 0.0
        %5787 = vmatprep.subr.mxu0 0.0
        %5788 = vmatpush1.msra.mxu0 0.0
        %5789 = vmatprep.subr.mxu0 0.0
        %5790 = vmatpush1.msra.mxu0 0.0
        %5791 = vmatprep.subr.mxu0 0.0
        %5792 = vmatpush1.msra.mxu0 0.0
        %5793 = vmatprep.subr.mxu0 0.0
        %5794 = vmatpush1.msra.mxu0 0.0
        %5795 = vmatprep.subr.mxu0 0.0
        %5796 = vmatpush1.msra.mxu0 0.0
        %5797 = vmatprep.subr.mxu0 0.0
        %5798 = vmatpush1.msra.mxu0 0.0
        %5799 = vmatprep.subr.mxu0 0.0
        %5800 = vmatpush1.msra.mxu0 0.0
        %5801 = vmatprep.subr.mxu0 0.0
        %5802 = vmatpush1.msra.mxu0 0.0
        %5803 = vmatprep.subr.mxu0 0.0
        %5804 = vmatpush1.msra.mxu0 0.0
        %5805 = vmatprep.subr.mxu0 0.0
        %5806 = vmatpush1.msra.mxu0 0.0
        %5807 = vmatprep.subr.mxu0 0.0
        %5808 = vmatpush1.msra.mxu0 0.0
        %5809 = vmatprep.subr.mxu0 0.0
        %5810 = vmatpush1.msra.mxu0 %v855
        %5811 = vmatprep.subr.mxu0 0.0
        %5812 = vmatpush2.msra.mxu0 0.0
        %5813 = vmatprep.subr.mxu0 0.0
        %5814 = vmatpush2.msra.mxu0 0.0
        %5815 = vmatprep.subr.mxu0 0.0
        %5816 = vmatpush2.msra.mxu0 0.0
        %5817 = vmatprep.subr.mxu0 0.0
        %5818 = vmatpush2.msra.mxu0 0.0
        %5819 = vmatprep.subr.mxu0 0.0
        %5820 = vmatpush2.msra.mxu0 0.0
        %5821 = vmatprep.subr.mxu0 0.0
        %5822 = vmatpush2.msra.mxu0 0.0
        %5823 = vmatprep.subr.mxu0 0.0
        %5824 = vmatpush2.msra.mxu0 0.0
        %5825 = vmatprep.subr.mxu0 0.0
        %5826 = vmatpush2.msra.mxu0 0.0
        %5827 = vmatprep.subr.mxu0 0.0
        %5828 = vmatpush2.msra.mxu0 0.0
        %5829 = vmatprep.subr.mxu0 0.0
        %5830 = vmatpush2.msra.mxu0 0.0
        %5831 = vmatprep.subr.mxu0 0.0
        %5832 = vmatpush2.msra.mxu0 0.0
        %5833 = vmatprep.subr.mxu0 0.0
        %5834 = vmatpush2.msra.mxu0 0.0
        %5835 = vmatprep.subr.mxu0 0.0
        %5836 = vmatpush2.msra.mxu0 0.0
        %5837 = vmatprep.subr.mxu0 0.0
        %5838 = vmatpush2.msra.mxu0 0.0
        %5839 = vmatprep.subr.mxu0 0.0
        %5840 = vmatpush2.msra.mxu0 0.0
        %5841 = vmatprep.subr.mxu0 0.0
        %5842 = vmatpush2.msra.mxu0 0.0
        %5843 = vmatprep.mubr.f32.mxu0 0.0
        %5844 = vmatmul.mubr.f32.gmra.mxu0 %v5756
        %v5845 = vpop.f32.mrf.mxu0
        %v5846 = vadd.f32 %v5715, %v5845
        %v5847 = vpop.f32.mrf.mxu0
        %5848 = vmatprep.mubr.f32.mxu0 0.0
        %5849 = vmatmul.mubr.f32.gmra.mxu0 %v5759
        %v5850 = vpop.f32.mrf.mxu0
        %v5851 = vadd.f32 %v5716, %v5850
        %v5852 = vpop.f32.mrf.mxu0
        %5853 = vmatprep.mubr.f32.mxu0 0.0
        %5854 = vmatmul.mubr.f32.gmra.mxu0 %v5762
        %v5855 = vpop.f32.mrf.mxu0
        %v5856 = vadd.f32 %v5717, %v5855
        %v5857 = vpop.f32.mrf.mxu0
        %5858 = vmatprep.mubr.f32.mxu0 0.0
        %5859 = vmatmul.mubr.f32.gmra.mxu0 %v5765
        %v5860 = vpop.f32.mrf.mxu0
        %v5861 = vadd.f32 %v5718, %v5860
        %v5862 = vpop.f32.mrf.mxu0
        %5863 = vmatprep.mubr.f32.mxu0 0.0
        %5864 = vmatmul.mubr.f32.gmra.mxu0 %v5768
        %v5865 = vpop.f32.mrf.mxu0
        %v5866 = vadd.f32 %v5719, %v5865
        %v5867 = vpop.f32.mrf.mxu0
        %5868 = vmatprep.mubr.f32.mxu0 0.0
        %5869 = vmatmul.mubr.f32.gmra.mxu0 %v5771
        %v5870 = vpop.f32.mrf.mxu0
        %v5871 = vadd.f32 %v5720, %v5870
        %v5872 = vpop.f32.mrf.mxu0
        %5873 = vmatprep.mubr.f32.mxu0 0.0
        %5874 = vmatmul.mubr.f32.gmra.mxu0 %v5774
        %v5875 = vpop.f32.mrf.mxu0
        %v5876 = vadd.f32 %v5721, %v5875
        %v5877 = vpop.f32.mrf.mxu0
        %5878 = vmatprep.mubr.f32.mxu0 0.0
        %5879 = vmatmul.mubr.f32.gmra.mxu0 %v5777
        %v5880 = vpop.f32.mrf.mxu0
        %v5881 = vadd.f32 %v5722, %v5880
        %v5882 = vpop.f32.mrf.mxu0
        %5883 = vdwg.mxu0
        %v5884 = vsel %vm1131, %v5846, -inf
        %5885 = vmax.xlane.f32.xlu0 %v5884
        %v5886 = vpop.xlane.xlu0 %5885
        %v5887 = vsel %vm1131, %v5851, -inf
        %5888 = vmax.xlane.f32.xlu0 %v5887
        %v5889 = vpop.xlane.xlu0 %5888
        %v5890 = vsel %vm1131, %v5856, -inf
        %5891 = vmax.xlane.f32.xlu0 %v5890
        %v5892 = vpop.xlane.xlu0 %5891
        %v5893 = vsel %vm1131, %v5861, -inf
        %5894 = vmax.xlane.f32.xlu0 %v5893
        %v5895 = vpop.xlane.xlu0 %5894
        %v5896 = vsel %vm1131, %v5866, -inf
        %5897 = vmax.xlane.f32.xlu0 %v5896
        %v5898 = vpop.xlane.xlu0 %5897
        %v5899 = vsel %vm1131, %v5871, -inf
        %5900 = vmax.xlane.f32.xlu0 %v5899
        %v5901 = vpop.xlane.xlu0 %5900
        %v5902 = vsel %vm1131, %v5876, -inf
        %5903 = vmax.xlane.f32.xlu0 %v5902
        %v5904 = vpop.xlane.xlu0 %5903
        %v5905 = vsel %vm1131, %v5881, -inf
        %5906 = vmax.xlane.f32.xlu0 %v5905
        %v5907 = vpop.xlane.xlu0 %5906
        %v5908 = vsub.f32 %v5846, %v5886
        %v5909 = vsub.f32 %v5851, %v5889
        %v5910 = vsub.f32 %v5856, %v5892
        %v5911 = vsub.f32 %v5861, %v5895
        %v5912 = vsub.f32 %v5866, %v5898
        %v5913 = vsub.f32 %v5871, %v5901
        %v5914 = vsub.f32 %v5876, %v5904
        %v5915 = vsub.f32 %v5881, %v5907
        %v5916 = vmul.f32 %v5908, 1.442695
        %v5917 = vpow.pop %v5916
        %v5918 = vmul.f32 %v5909, 1.442695
        %v5919 = vpow.pop %v5918
        %v5920 = vmul.f32 %v5910, 1.442695
        %v5921 = vpow.pop %v5920
        %v5922 = vmul.f32 %v5911, 1.442695
        %v5923 = vpow.pop %v5922
        %v5924 = vmul.f32 %v5912, 1.442695
        %v5925 = vpow.pop %v5924
        %v5926 = vmul.f32 %v5913, 1.442695
        %v5927 = vpow.pop %v5926
        %v5928 = vmul.f32 %v5914, 1.442695
        %v5929 = vpow.pop %v5928
        %v5930 = vmul.f32 %v5915, 1.442695
        %v5931 = vpow.pop %v5930
        %v5932 = vsel %vm1131, %v5917, 0.0
        %5933 = vadd.xlane.f32.xlu0 %v5932
        %v5934 = vpop.xlane.xlu0 %5933
        %v5935 = vsel %vm1131, %v5919, 0.0
        %5936 = vadd.xlane.f32.xlu0 %v5935
        %v5937 = vpop.xlane.xlu0 %5936
        %v5938 = vsel %vm1131, %v5921, 0.0
        %5939 = vadd.xlane.f32.xlu0 %v5938
        %v5940 = vpop.xlane.xlu0 %5939
        %v5941 = vsel %vm1131, %v5923, 0.0
        %5942 = vadd.xlane.f32.xlu0 %v5941
        %v5943 = vpop.xlane.xlu0 %5942
        %v5944 = vsel %vm1131, %v5925, 0.0
        %5945 = vadd.xlane.f32.xlu0 %v5944
        %v5946 = vpop.xlane.xlu0 %5945
        %v5947 = vsel %vm1131, %v5927, 0.0
        %5948 = vadd.xlane.f32.xlu0 %v5947
        %v5949 = vpop.xlane.xlu0 %5948
        %v5950 = vsel %vm1131, %v5929, 0.0
        %5951 = vadd.xlane.f32.xlu0 %v5950
        %v5952 = vpop.xlane.xlu0 %5951
        %v5953 = vsel %vm1131, %v5931, 0.0
        %5954 = vadd.xlane.f32.xlu0 %v5953
        %v5955 = vpop.xlane.xlu0 %5954
        %v5957 = vsel %vm1131, %v5917, 0
        %v5960 = vsel %vm1131, %v5919, 0
        %v5963 = vsel %vm1131, %v5921, 0
        %v5966 = vsel %vm1131, %v5923, 0
        %v5969 = vsel %vm1131, %v5925, 0
        %v5972 = vsel %vm1131, %v5927, 0
        %v5975 = vsel %vm1131, %v5929, 0
        %v5978 = vsel %vm1131, %v5931, 0
        %v5981 = vsel %vm1131, %v919, 0
        %5983 = vmatprep.subr.mxu0 0.0
        %5984 = vmatpush1.xpose.msra.mxu0 0.0
        %5985 = vmatprep.subr.mxu0 0.0
        %5986 = vmatpush1.xpose.msra.mxu0 0.0
        %5987 = vmatprep.subr.mxu0 0.0
        %5988 = vmatpush1.xpose.msra.mxu0 0.0
        %5989 = vmatprep.subr.mxu0 0.0
        %5990 = vmatpush1.xpose.msra.mxu0 0.0
        %5991 = vmatprep.subr.mxu0 0.0
        %5992 = vmatpush1.xpose.msra.mxu0 0.0
        %5993 = vmatprep.subr.mxu0 0.0
        %5994 = vmatpush1.xpose.msra.mxu0 0.0
        %5995 = vmatprep.subr.mxu0 0.0
        %5996 = vmatpush1.xpose.msra.mxu0 0.0
        %5997 = vmatprep.subr.mxu0 0.0
        %5998 = vmatpush1.xpose.msra.mxu0 0.0
        %5999 = vmatprep.subr.mxu0 0.0
        %6000 = vmatpush1.xpose.msra.mxu0 0.0
        %6001 = vmatprep.subr.mxu0 0.0
        %6002 = vmatpush1.xpose.msra.mxu0 0.0
        %6003 = vmatprep.subr.mxu0 0.0
        %6004 = vmatpush1.xpose.msra.mxu0 0.0
        %6005 = vmatprep.subr.mxu0 0.0
        %6006 = vmatpush1.xpose.msra.mxu0 0.0
        %6007 = vmatprep.subr.mxu0 0.0
        %6008 = vmatpush1.xpose.msra.mxu0 0.0
        %6009 = vmatprep.subr.mxu0 0.0
        %6010 = vmatpush1.xpose.msra.mxu0 0.0
        %6011 = vmatprep.subr.mxu0 0.0
        %6012 = vmatpush1.xpose.msra.mxu0 0.0
        %6013 = vmatprep.subr.mxu0 0.0
        %6014 = vmatpush1.xpose.msra.mxu0 %v5981
        %6015 = vmatprep.subr.mxu0 0.0
        %6016 = vmatpush2.xpose.msra.mxu0 0.0
        %6017 = vmatprep.subr.mxu0 0.0
        %6018 = vmatpush2.xpose.msra.mxu0 0.0
        %6019 = vmatprep.subr.mxu0 0.0
        %6020 = vmatpush2.xpose.msra.mxu0 0.0
        %6021 = vmatprep.subr.mxu0 0.0
        %6022 = vmatpush2.xpose.msra.mxu0 0.0
        %6023 = vmatprep.subr.mxu0 0.0
        %6024 = vmatpush2.xpose.msra.mxu0 0.0
        %6025 = vmatprep.subr.mxu0 0.0
        %6026 = vmatpush2.xpose.msra.mxu0 0.0
        %6027 = vmatprep.subr.mxu0 0.0
        %6028 = vmatpush2.xpose.msra.mxu0 0.0
        %6029 = vmatprep.subr.mxu0 0.0
        %6030 = vmatpush2.xpose.msra.mxu0 0.0
        %6031 = vmatprep.subr.mxu0 0.0
        %6032 = vmatpush2.xpose.msra.mxu0 0.0
        %6033 = vmatprep.subr.mxu0 0.0
        %6034 = vmatpush2.xpose.msra.mxu0 0.0
        %6035 = vmatprep.subr.mxu0 0.0
        %6036 = vmatpush2.xpose.msra.mxu0 0.0
        %6037 = vmatprep.subr.mxu0 0.0
        %6038 = vmatpush2.xpose.msra.mxu0 0.0
        %6039 = vmatprep.subr.mxu0 0.0
        %6040 = vmatpush2.xpose.msra.mxu0 0.0
        %6041 = vmatprep.subr.mxu0 0.0
        %6042 = vmatpush2.xpose.msra.mxu0 0.0
        %6043 = vmatprep.subr.mxu0 0.0
        %6044 = vmatpush2.xpose.msra.mxu0 0.0
        %6045 = vmatprep.subr.mxu0 0.0
        %6046 = vmatpush2.xpose.msra.mxu0 0.0
        %6047 = vmatprep.mubr.f32.mxu0 0.0
        %6048 = vmatmul.mubr.f32.gmra.mxu0 %v5957
        %v6049 = vpop.f32.mrf.mxu0
        %v6050 = vadd.f32 0.0, %v6049
        %v6051 = vpop.f32.mrf.mxu0
        %6052 = vmatprep.mubr.f32.mxu0 0.0
        %6053 = vmatmul.mubr.f32.gmra.mxu0 %v5960
        %v6054 = vpop.f32.mrf.mxu0
        %v6055 = vadd.f32 0.0, %v6054
        %v6056 = vpop.f32.mrf.mxu0
        %6057 = vmatprep.mubr.f32.mxu0 0.0
        %6058 = vmatmul.mubr.f32.gmra.mxu0 %v5963
        %v6059 = vpop.f32.mrf.mxu0
        %v6060 = vadd.f32 0.0, %v6059
        %v6061 = vpop.f32.mrf.mxu0
        %6062 = vmatprep.mubr.f32.mxu0 0.0
        %6063 = vmatmul.mubr.f32.gmra.mxu0 %v5966
        %v6064 = vpop.f32.mrf.mxu0
        %v6065 = vadd.f32 0.0, %v6064
        %v6066 = vpop.f32.mrf.mxu0
        %6067 = vmatprep.mubr.f32.mxu0 0.0
        %6068 = vmatmul.mubr.f32.gmra.mxu0 %v5969
        %v6069 = vpop.f32.mrf.mxu0
        %v6070 = vadd.f32 0.0, %v6069
        %v6071 = vpop.f32.mrf.mxu0
        %6072 = vmatprep.mubr.f32.mxu0 0.0
        %6073 = vmatmul.mubr.f32.gmra.mxu0 %v5972
        %v6074 = vpop.f32.mrf.mxu0
        %v6075 = vadd.f32 0.0, %v6074
        %v6076 = vpop.f32.mrf.mxu0
        %6077 = vmatprep.mubr.f32.mxu0 0.0
        %6078 = vmatmul.mubr.f32.gmra.mxu0 %v5975
        %v6079 = vpop.f32.mrf.mxu0
        %v6080 = vadd.f32 0.0, %v6079
        %v6081 = vpop.f32.mrf.mxu0
        %6082 = vmatprep.mubr.f32.mxu0 0.0
        %6083 = vmatmul.mubr.f32.gmra.mxu0 %v5978
        %v6084 = vpop.f32.mrf.mxu0
        %v6085 = vadd.f32 0.0, %v6084
        %v6086 = vpop.f32.mrf.mxu0
        %6087 = vdwg.mxu0
        %v6088 = vrcp.pop %v5934
        %v6089 = vmul.f32 %v6050, %v6088
        %v6090 = vrcp.pop %v5937
        %v6091 = vmul.f32 %v6055, %v6090
        %v6092 = vrcp.pop %v5940
        %v6093 = vmul.f32 %v6060, %v6092
        %v6094 = vrcp.pop %v5943
        %v6095 = vmul.f32 %v6065, %v6094
        %v6096 = vrcp.pop %v5946
        %v6097 = vmul.f32 %v6070, %v6096
        %v6098 = vrcp.pop %v5949
        %v6099 = vmul.f32 %v6075, %v6098
        %v6100 = vrcp.pop %v5952
        %v6101 = vmul.f32 %v6080, %v6100
        %v6102 = vrcp.pop %v5955
        %v6103 = vmul.f32 %v6085, %v6102
        %v6104 = vld [vmem:[%s5 + $0x48] sm:$0xff]
        %v6106 = vsel %vm1001, %v6089, 0
        %v6109 = vsel %vm1001, %v6091, 0
        %v6112 = vsel %vm1001, %v6093, 0
        %v6115 = vsel %vm1001, %v6095, 0
        %v6118 = vsel %vm1001, %v6097, 0
        %v6121 = vsel %vm1001, %v6099, 0
        %v6124 = vsel %vm1001, %v6101, 0
        %v6127 = vsel %vm1001, %v6103, 0
        %6129 = vmatprep.subr.mxu0 0.0
        %6130 = vmatpush1.msra.mxu0 0.0
        %6131 = vmatprep.subr.mxu0 0.0
        %6132 = vmatpush1.msra.mxu0 0.0
        %6133 = vmatprep.subr.mxu0 0.0
        %6134 = vmatpush1.msra.mxu0 0.0
        %6135 = vmatprep.subr.mxu0 0.0
        %6136 = vmatpush1.msra.mxu0 0.0
        %6137 = vmatprep.subr.mxu0 0.0
        %6138 = vmatpush1.msra.mxu0 0.0
        %6139 = vmatprep.subr.mxu0 0.0
        %6140 = vmatpush1.msra.mxu0 0.0
        %6141 = vmatprep.subr.mxu0 0.0
        %6142 = vmatpush1.msra.mxu0 0.0
        %6143 = vmatprep.subr.mxu0 0.0
        %6144 = vmatpush1.msra.mxu0 0.0
        %6145 = vmatprep.subr.mxu0 0.0
        %6146 = vmatpush1.msra.mxu0 0.0
        %6147 = vmatprep.subr.mxu0 0.0
        %6148 = vmatpush1.msra.mxu0 0.0
        %6149 = vmatprep.subr.mxu0 0.0
        %6150 = vmatpush1.msra.mxu0 0.0
        %6151 = vmatprep.subr.mxu0 0.0
        %6152 = vmatpush1.msra.mxu0 0.0
        %6153 = vmatprep.subr.mxu0 0.0
        %6154 = vmatpush1.msra.mxu0 0.0
        %6155 = vmatprep.subr.mxu0 0.0
        %6156 = vmatpush1.msra.mxu0 0.0
        %6157 = vmatprep.subr.mxu0 0.0
        %6158 = vmatpush1.msra.mxu0 0.0
        %6159 = vmatprep.subr.mxu0 0.0
        %6160 = vmatpush1.msra.mxu0 %v6104
        %6161 = vmatprep.subr.mxu0 0.0
        %6162 = vmatpush2.msra.mxu0 0.0
        %6163 = vmatprep.subr.mxu0 0.0
        %6164 = vmatpush2.msra.mxu0 0.0
        %6165 = vmatprep.subr.mxu0 0.0
        %6166 = vmatpush2.msra.mxu0 0.0
        %6167 = vmatprep.subr.mxu0 0.0
        %6168 = vmatpush2.msra.mxu0 0.0
        %6169 = vmatprep.subr.mxu0 0.0
        %6170 = vmatpush2.msra.mxu0 0.0
        %6171 = vmatprep.subr.mxu0 0.0
        %6172 = vmatpush2.msra.mxu0 0.0
        %6173 = vmatprep.subr.mxu0 0.0
        %6174 = vmatpush2.msra.mxu0 0.0
        %6175 = vmatprep.subr.mxu0 0.0
        %6176 = vmatpush2.msra.mxu0 0.0
        %6177 = vmatprep.subr.mxu0 0.0
        %6178 = vmatpush2.msra.mxu0 0.0
        %6179 = vmatprep.subr.mxu0 0.0
        %6180 = vmatpush2.msra.mxu0 0.0
        %6181 = vmatprep.subr.mxu0 0.0
        %6182 = vmatpush2.msra.mxu0 0.0
        %6183 = vmatprep.subr.mxu0 0.0
        %6184 = vmatpush2.msra.mxu0 0.0
        %6185 = vmatprep.subr.mxu0 0.0
        %6186 = vmatpush2.msra.mxu0 0.0
        %6187 = vmatprep.subr.mxu0 0.0
        %6188 = vmatpush2.msra.mxu0 0.0
        %6189 = vmatprep.subr.mxu0 0.0
        %6190 = vmatpush2.msra.mxu0 0.0
        %6191 = vmatprep.subr.mxu0 0.0
        %6192 = vmatpush2.msra.mxu0 0.0
        %6193 = vmatprep.mubr.f32.mxu0 0.0
        %6194 = vmatmul.mubr.f32.gmra.mxu0 %v6106
        %v6195 = vpop.f32.mrf.mxu0
        %v6196 = vadd.f32 0.0, %v6195
        %v6197 = vpop.f32.mrf.mxu0
        %6198 = vmatprep.mubr.f32.mxu0 0.0
        %6199 = vmatmul.mubr.f32.gmra.mxu0 %v6109
        %v6200 = vpop.f32.mrf.mxu0
        %v6201 = vadd.f32 0.0, %v6200
        %v6202 = vpop.f32.mrf.mxu0
        %6203 = vmatprep.mubr.f32.mxu0 0.0
        %6204 = vmatmul.mubr.f32.gmra.mxu0 %v6112
        %v6205 = vpop.f32.mrf.mxu0
        %v6206 = vadd.f32 0.0, %v6205
        %v6207 = vpop.f32.mrf.mxu0
        %6208 = vmatprep.mubr.f32.mxu0 0.0
        %6209 = vmatmul.mubr.f32.gmra.mxu0 %v6115
        %v6210 = vpop.f32.mrf.mxu0
        %v6211 = vadd.f32 0.0, %v6210
        %v6212 = vpop.f32.mrf.mxu0
        %6213 = vmatprep.mubr.f32.mxu0 0.0
        %6214 = vmatmul.mubr.f32.gmra.mxu0 %v6118
        %v6215 = vpop.f32.mrf.mxu0
        %v6216 = vadd.f32 0.0, %v6215
        %v6217 = vpop.f32.mrf.mxu0
        %6218 = vmatprep.mubr.f32.mxu0 0.0
        %6219 = vmatmul.mubr.f32.gmra.mxu0 %v6121
        %v6220 = vpop.f32.mrf.mxu0
        %v6221 = vadd.f32 0.0, %v6220
        %v6222 = vpop.f32.mrf.mxu0
        %6223 = vmatprep.mubr.f32.mxu0 0.0
        %6224 = vmatmul.mubr.f32.gmra.mxu0 %v6124
        %v6225 = vpop.f32.mrf.mxu0
        %v6226 = vadd.f32 0.0, %v6225
        %v6227 = vpop.f32.mrf.mxu0
        %6228 = vmatprep.mubr.f32.mxu0 0.0
        %6229 = vmatmul.mubr.f32.gmra.mxu0 %v6127
        %v6230 = vpop.f32.mrf.mxu0
        %v6231 = vadd.f32 0.0, %v6230
        %v6232 = vpop.f32.mrf.mxu0
        %6233 = vdwg.mxu0
        %v6234 = vadd.f32 %v5706, %v6196
        %v6235 = vadd.f32 %v5707, %v6201
        %v6236 = vadd.f32 %v5708, %v6206
        %v6237 = vadd.f32 %v5709, %v6211
        %v6238 = vadd.f32 %v5710, %v6216
        %v6239 = vadd.f32 %v5711, %v6221
        %v6240 = vadd.f32 %v5712, %v6226
        %v6241 = vadd.f32 %v5713, %v6231
        %s6242 = scalar_lea.vmem %s7, 640
        %v6243 = vld [vmem:[%s6242] sm:$0xff]
        %v6244 = vld [vmem:[%s6242 + $0x8] sm:$0xff]
        %v6245 = vld [vmem:[%s6242 + $0x10] sm:$0xff]
        %v6246 = vld [vmem:[%s6242 + $0x18] sm:$0xff]
        %v6247 = vld [vmem:[%s6242 + $0x20] sm:$0xff]
        %v6248 = vld [vmem:[%s6242 + $0x28] sm:$0xff]
        %v6249 = vld [vmem:[%s6242 + $0x30] sm:$0xff]
        %v6250 = vld [vmem:[%s6242 + $0x38] sm:$0xff]
        %6251 = vxpose.xlu0.b32.start [1/16] %v796, 128
        %6252 = vxpose.xlu0.b32.cont [2/16] 0.0, 128
        %6253 = vxpose.xlu0.b32.cont [3/16] 0.0, 128
        %6254 = vxpose.xlu0.b32.cont [4/16] 0.0, 128
        %6255 = vxpose.xlu0.b32.cont [5/16] 0.0, 128
        %6256 = vxpose.xlu0.b32.cont [6/16] 0.0, 128
        %6257 = vxpose.xlu0.b32.cont [7/16] 0.0, 128
        %6258 = vxpose.xlu0.b32.cont [8/16] 0.0, 128
        %6259 = vxpose.xlu0.b32.cont [9/16] 0.0, 128
        %6260 = vxpose.xlu0.b32.cont [10/16] 0.0, 128
        %6261 = vxpose.xlu0.b32.cont [11/16] 0.0, 128
        %6262 = vxpose.xlu0.b32.cont [12/16] 0.0, 128
        %6263 = vxpose.xlu0.b32.cont [13/16] 0.0, 128
        %6264 = vxpose.xlu0.b32.cont [14/16] 0.0, 128
        %6265 = vxpose.xlu0.b32.cont [15/16] 0.0, 128
        %6266 = vxpose.xlu0.b32.end [16/16] 0.0, 128
        %v6267 = vpop.trf.xlu0
        %v6268 = vpop.trf.xlu0
        %v6269 = vpop.trf.xlu0
        %v6270 = vpop.trf.xlu0
        %v6271 = vpop.trf.xlu0
        %v6272 = vpop.trf.xlu0
        %v6273 = vpop.trf.xlu0
        %v6274 = vpop.trf.xlu0
        %v6275 = vpop.trf.xlu0
        %v6276 = vpop.trf.xlu0
        %v6277 = vpop.trf.xlu0
        %v6278 = vpop.trf.xlu0
        %v6279 = vpop.trf.xlu0
        %v6280 = vpop.trf.xlu0
        %v6281 = vpop.trf.xlu0
        %v6282 = vpop.trf.xlu0
        %v6284 = vsel %vm1001, %v6267, 0
        %v6287 = vsel %vm1001, %v6268, 0
        %v6290 = vsel %vm1001, %v6269, 0
        %v6293 = vsel %vm1001, %v6270, 0
        %v6296 = vsel %vm1001, %v6271, 0
        %v6299 = vsel %vm1001, %v6272, 0
        %v6302 = vsel %vm1001, %v6273, 0
        %v6305 = vsel %vm1001, %v6274, 0
        %6307 = vmatprep.subr.mxu0 0.0
        %6308 = vmatpush1.msra.mxu0 0.0
        %6309 = vmatprep.subr.mxu0 0.0
        %6310 = vmatpush1.msra.mxu0 0.0
        %6311 = vmatprep.subr.mxu0 0.0
        %6312 = vmatpush1.msra.mxu0 0.0
        %6313 = vmatprep.subr.mxu0 0.0
        %6314 = vmatpush1.msra.mxu0 0.0
        %6315 = vmatprep.subr.mxu0 0.0
        %6316 = vmatpush1.msra.mxu0 0.0
        %6317 = vmatprep.subr.mxu0 0.0
        %6318 = vmatpush1.msra.mxu0 0.0
        %6319 = vmatprep.subr.mxu0 0.0
        %6320 = vmatpush1.msra.mxu0 0.0
        %6321 = vmatprep.subr.mxu0 0.0
        %6322 = vmatpush1.msra.mxu0 0.0
        %6323 = vmatprep.subr.mxu0 0.0
        %6324 = vmatpush1.msra.mxu0 0.0
        %6325 = vmatprep.subr.mxu0 0.0
        %6326 = vmatpush1.msra.mxu0 0.0
        %6327 = vmatprep.subr.mxu0 0.0
        %6328 = vmatpush1.msra.mxu0 0.0
        %6329 = vmatprep.subr.mxu0 0.0
        %6330 = vmatpush1.msra.mxu0 0.0
        %6331 = vmatprep.subr.mxu0 0.0
        %6332 = vmatpush1.msra.mxu0 0.0
        %6333 = vmatprep.subr.mxu0 0.0
        %6334 = vmatpush1.msra.mxu0 0.0
        %6335 = vmatprep.subr.mxu0 0.0
        %6336 = vmatpush1.msra.mxu0 0.0
        %6337 = vmatprep.subr.mxu0 0.0
        %6338 = vmatpush1.msra.mxu0 %v860
        %6339 = vmatprep.subr.mxu0 0.0
        %6340 = vmatpush2.msra.mxu0 0.0
        %6341 = vmatprep.subr.mxu0 0.0
        %6342 = vmatpush2.msra.mxu0 0.0
        %6343 = vmatprep.subr.mxu0 0.0
        %6344 = vmatpush2.msra.mxu0 0.0
        %6345 = vmatprep.subr.mxu0 0.0
        %6346 = vmatpush2.msra.mxu0 0.0
        %6347 = vmatprep.subr.mxu0 0.0
        %6348 = vmatpush2.msra.mxu0 0.0
        %6349 = vmatprep.subr.mxu0 0.0
        %6350 = vmatpush2.msra.mxu0 0.0
        %6351 = vmatprep.subr.mxu0 0.0
        %6352 = vmatpush2.msra.mxu0 0.0
        %6353 = vmatprep.subr.mxu0 0.0
        %6354 = vmatpush2.msra.mxu0 0.0
        %6355 = vmatprep.subr.mxu0 0.0
        %6356 = vmatpush2.msra.mxu0 0.0
        %6357 = vmatprep.subr.mxu0 0.0
        %6358 = vmatpush2.msra.mxu0 0.0
        %6359 = vmatprep.subr.mxu0 0.0
        %6360 = vmatpush2.msra.mxu0 0.0
        %6361 = vmatprep.subr.mxu0 0.0
        %6362 = vmatpush2.msra.mxu0 0.0
        %6363 = vmatprep.subr.mxu0 0.0
        %6364 = vmatpush2.msra.mxu0 0.0
        %6365 = vmatprep.subr.mxu0 0.0
        %6366 = vmatpush2.msra.mxu0 0.0
        %6367 = vmatprep.subr.mxu0 0.0
        %6368 = vmatpush2.msra.mxu0 0.0
        %6369 = vmatprep.subr.mxu0 0.0
        %6370 = vmatpush2.msra.mxu0 0.0
        %6371 = vmatprep.mubr.f32.mxu0 0.0
        %6372 = vmatmul.mubr.f32.gmra.mxu0 %v6284
        %v6373 = vpop.f32.mrf.mxu0
        %v6374 = vadd.f32 %v6243, %v6373
        %v6375 = vpop.f32.mrf.mxu0
        %6376 = vmatprep.mubr.f32.mxu0 0.0
        %6377 = vmatmul.mubr.f32.gmra.mxu0 %v6287
        %v6378 = vpop.f32.mrf.mxu0
        %v6379 = vadd.f32 %v6244, %v6378
        %v6380 = vpop.f32.mrf.mxu0
        %6381 = vmatprep.mubr.f32.mxu0 0.0
        %6382 = vmatmul.mubr.f32.gmra.mxu0 %v6290
        %v6383 = vpop.f32.mrf.mxu0
        %v6384 = vadd.f32 %v6245, %v6383
        %v6385 = vpop.f32.mrf.mxu0
        %6386 = vmatprep.mubr.f32.mxu0 0.0
        %6387 = vmatmul.mubr.f32.gmra.mxu0 %v6293
        %v6388 = vpop.f32.mrf.mxu0
        %v6389 = vadd.f32 %v6246, %v6388
        %v6390 = vpop.f32.mrf.mxu0
        %6391 = vmatprep.mubr.f32.mxu0 0.0
        %6392 = vmatmul.mubr.f32.gmra.mxu0 %v6296
        %v6393 = vpop.f32.mrf.mxu0
        %v6394 = vadd.f32 %v6247, %v6393
        %v6395 = vpop.f32.mrf.mxu0
        %6396 = vmatprep.mubr.f32.mxu0 0.0
        %6397 = vmatmul.mubr.f32.gmra.mxu0 %v6299
        %v6398 = vpop.f32.mrf.mxu0
        %v6399 = vadd.f32 %v6248, %v6398
        %v6400 = vpop.f32.mrf.mxu0
        %6401 = vmatprep.mubr.f32.mxu0 0.0
        %6402 = vmatmul.mubr.f32.gmra.mxu0 %v6302
        %v6403 = vpop.f32.mrf.mxu0
        %v6404 = vadd.f32 %v6249, %v6403
        %v6405 = vpop.f32.mrf.mxu0
        %6406 = vmatprep.mubr.f32.mxu0 0.0
        %6407 = vmatmul.mubr.f32.gmra.mxu0 %v6305
        %v6408 = vpop.f32.mrf.mxu0
        %v6409 = vadd.f32 %v6250, %v6408
        %v6410 = vpop.f32.mrf.mxu0
        %6411 = vdwg.mxu0
        %v6412 = vsel %vm1131, %v6374, -inf
        %6413 = vmax.xlane.f32.xlu0 %v6412
        %v6414 = vpop.xlane.xlu0 %6413
        %v6415 = vsel %vm1131, %v6379, -inf
        %6416 = vmax.xlane.f32.xlu0 %v6415
        %v6417 = vpop.xlane.xlu0 %6416
        %v6418 = vsel %vm1131, %v6384, -inf
        %6419 = vmax.xlane.f32.xlu0 %v6418
        %v6420 = vpop.xlane.xlu0 %6419
        %v6421 = vsel %vm1131, %v6389, -inf
        %6422 = vmax.xlane.f32.xlu0 %v6421
        %v6423 = vpop.xlane.xlu0 %6422
        %v6424 = vsel %vm1131, %v6394, -inf
        %6425 = vmax.xlane.f32.xlu0 %v6424
        %v6426 = vpop.xlane.xlu0 %6425
        %v6427 = vsel %vm1131, %v6399, -inf
        %6428 = vmax.xlane.f32.xlu0 %v6427
        %v6429 = vpop.xlane.xlu0 %6428
        %v6430 = vsel %vm1131, %v6404, -inf
        %6431 = vmax.xlane.f32.xlu0 %v6430
        %v6432 = vpop.xlane.xlu0 %6431
        %v6433 = vsel %vm1131, %v6409, -inf
        %6434 = vmax.xlane.f32.xlu0 %v6433
        %v6435 = vpop.xlane.xlu0 %6434
        %v6436 = vsub.f32 %v6374, %v6414
        %v6437 = vsub.f32 %v6379, %v6417
        %v6438 = vsub.f32 %v6384, %v6420
        %v6439 = vsub.f32 %v6389, %v6423
        %v6440 = vsub.f32 %v6394, %v6426
        %v6441 = vsub.f32 %v6399, %v6429
        %v6442 = vsub.f32 %v6404, %v6432
        %v6443 = vsub.f32 %v6409, %v6435
        %v6444 = vmul.f32 %v6436, 1.442695
        %v6445 = vpow.pop %v6444
        %v6446 = vmul.f32 %v6437, 1.442695
        %v6447 = vpow.pop %v6446
        %v6448 = vmul.f32 %v6438, 1.442695
        %v6449 = vpow.pop %v6448
        %v6450 = vmul.f32 %v6439, 1.442695
        %v6451 = vpow.pop %v6450
        %v6452 = vmul.f32 %v6440, 1.442695
        %v6453 = vpow.pop %v6452
        %v6454 = vmul.f32 %v6441, 1.442695
        %v6455 = vpow.pop %v6454
        %v6456 = vmul.f32 %v6442, 1.442695
        %v6457 = vpow.pop %v6456
        %v6458 = vmul.f32 %v6443, 1.442695
        %v6459 = vpow.pop %v6458
        %v6460 = vsel %vm1131, %v6445, 0.0
        %6461 = vadd.xlane.f32.xlu0 %v6460
        %v6462 = vpop.xlane.xlu0 %6461
        %v6463 = vsel %vm1131, %v6447, 0.0
        %6464 = vadd.xlane.f32.xlu0 %v6463
        %v6465 = vpop.xlane.xlu0 %6464
        %v6466 = vsel %vm1131, %v6449, 0.0
        %6467 = vadd.xlane.f32.xlu0 %v6466
        %v6468 = vpop.xlane.xlu0 %6467
        %v6469 = vsel %vm1131, %v6451, 0.0
        %6470 = vadd.xlane.f32.xlu0 %v6469
        %v6471 = vpop.xlane.xlu0 %6470
        %v6472 = vsel %vm1131, %v6453, 0.0
        %6473 = vadd.xlane.f32.xlu0 %v6472
        %v6474 = vpop.xlane.xlu0 %6473
        %v6475 = vsel %vm1131, %v6455, 0.0
        %6476 = vadd.xlane.f32.xlu0 %v6475
        %v6477 = vpop.xlane.xlu0 %6476
        %v6478 = vsel %vm1131, %v6457, 0.0
        %6479 = vadd.xlane.f32.xlu0 %v6478
        %v6480 = vpop.xlane.xlu0 %6479
        %v6481 = vsel %vm1131, %v6459, 0.0
        %6482 = vadd.xlane.f32.xlu0 %v6481
        %v6483 = vpop.xlane.xlu0 %6482
        %v6485 = vsel %vm1131, %v6445, 0
        %v6488 = vsel %vm1131, %v6447, 0
        %v6491 = vsel %vm1131, %v6449, 0
        %v6494 = vsel %vm1131, %v6451, 0
        %v6497 = vsel %vm1131, %v6453, 0
        %v6500 = vsel %vm1131, %v6455, 0
        %v6503 = vsel %vm1131, %v6457, 0
        %v6506 = vsel %vm1131, %v6459, 0
        %v6509 = vsel %vm1131, %v924, 0
        %6511 = vmatprep.subr.mxu0 0.0
        %6512 = vmatpush1.xpose.msra.mxu0 0.0
        %6513 = vmatprep.subr.mxu0 0.0
        %6514 = vmatpush1.xpose.msra.mxu0 0.0
        %6515 = vmatprep.subr.mxu0 0.0
        %6516 = vmatpush1.xpose.msra.mxu0 0.0
        %6517 = vmatprep.subr.mxu0 0.0
        %6518 = vmatpush1.xpose.msra.mxu0 0.0
        %6519 = vmatprep.subr.mxu0 0.0
        %6520 = vmatpush1.xpose.msra.mxu0 0.0
        %6521 = vmatprep.subr.mxu0 0.0
        %6522 = vmatpush1.xpose.msra.mxu0 0.0
        %6523 = vmatprep.subr.mxu0 0.0
        %6524 = vmatpush1.xpose.msra.mxu0 0.0
        %6525 = vmatprep.subr.mxu0 0.0
        %6526 = vmatpush1.xpose.msra.mxu0 0.0
        %6527 = vmatprep.subr.mxu0 0.0
        %6528 = vmatpush1.xpose.msra.mxu0 0.0
        %6529 = vmatprep.subr.mxu0 0.0
        %6530 = vmatpush1.xpose.msra.mxu0 0.0
        %6531 = vmatprep.subr.mxu0 0.0
        %6532 = vmatpush1.xpose.msra.mxu0 0.0
        %6533 = vmatprep.subr.mxu0 0.0
        %6534 = vmatpush1.xpose.msra.mxu0 0.0
        %6535 = vmatprep.subr.mxu0 0.0
        %6536 = vmatpush1.xpose.msra.mxu0 0.0
        %6537 = vmatprep.subr.mxu0 0.0
        %6538 = vmatpush1.xpose.msra.mxu0 0.0
        %6539 = vmatprep.subr.mxu0 0.0
        %6540 = vmatpush1.xpose.msra.mxu0 0.0
        %6541 = vmatprep.subr.mxu0 0.0
        %6542 = vmatpush1.xpose.msra.mxu0 %v6509
        %6543 = vmatprep.subr.mxu0 0.0
        %6544 = vmatpush2.xpose.msra.mxu0 0.0
        %6545 = vmatprep.subr.mxu0 0.0
        %6546 = vmatpush2.xpose.msra.mxu0 0.0
        %6547 = vmatprep.subr.mxu0 0.0
        %6548 = vmatpush2.xpose.msra.mxu0 0.0
        %6549 = vmatprep.subr.mxu0 0.0
        %6550 = vmatpush2.xpose.msra.mxu0 0.0
        %6551 = vmatprep.subr.mxu0 0.0
        %6552 = vmatpush2.xpose.msra.mxu0 0.0
        %6553 = vmatprep.subr.mxu0 0.0
        %6554 = vmatpush2.xpose.msra.mxu0 0.0
        %6555 = vmatprep.subr.mxu0 0.0
        %6556 = vmatpush2.xpose.msra.mxu0 0.0
        %6557 = vmatprep.subr.mxu0 0.0
        %6558 = vmatpush2.xpose.msra.mxu0 0.0
        %6559 = vmatprep.subr.mxu0 0.0
        %6560 = vmatpush2.xpose.msra.mxu0 0.0
        %6561 = vmatprep.subr.mxu0 0.0
        %6562 = vmatpush2.xpose.msra.mxu0 0.0
        %6563 = vmatprep.subr.mxu0 0.0
        %6564 = vmatpush2.xpose.msra.mxu0 0.0
        %6565 = vmatprep.subr.mxu0 0.0
        %6566 = vmatpush2.xpose.msra.mxu0 0.0
        %6567 = vmatprep.subr.mxu0 0.0
        %6568 = vmatpush2.xpose.msra.mxu0 0.0
        %6569 = vmatprep.subr.mxu0 0.0
        %6570 = vmatpush2.xpose.msra.mxu0 0.0
        %6571 = vmatprep.subr.mxu0 0.0
        %6572 = vmatpush2.xpose.msra.mxu0 0.0
        %6573 = vmatprep.subr.mxu0 0.0
        %6574 = vmatpush2.xpose.msra.mxu0 0.0
        %6575 = vmatprep.mubr.f32.mxu0 0.0
        %6576 = vmatmul.mubr.f32.gmra.mxu0 %v6485
        %v6577 = vpop.f32.mrf.mxu0
        %v6578 = vadd.f32 0.0, %v6577
        %v6579 = vpop.f32.mrf.mxu0
        %6580 = vmatprep.mubr.f32.mxu0 0.0
        %6581 = vmatmul.mubr.f32.gmra.mxu0 %v6488
        %v6582 = vpop.f32.mrf.mxu0
        %v6583 = vadd.f32 0.0, %v6582
        %v6584 = vpop.f32.mrf.mxu0
        %6585 = vmatprep.mubr.f32.mxu0 0.0
        %6586 = vmatmul.mubr.f32.gmra.mxu0 %v6491
        %v6587 = vpop.f32.mrf.mxu0
        %v6588 = vadd.f32 0.0, %v6587
        %v6589 = vpop.f32.mrf.mxu0
        %6590 = vmatprep.mubr.f32.mxu0 0.0
        %6591 = vmatmul.mubr.f32.gmra.mxu0 %v6494
        %v6592 = vpop.f32.mrf.mxu0
        %v6593 = vadd.f32 0.0, %v6592
        %v6594 = vpop.f32.mrf.mxu0
        %6595 = vmatprep.mubr.f32.mxu0 0.0
        %6596 = vmatmul.mubr.f32.gmra.mxu0 %v6497
        %v6597 = vpop.f32.mrf.mxu0
        %v6598 = vadd.f32 0.0, %v6597
        %v6599 = vpop.f32.mrf.mxu0
        %6600 = vmatprep.mubr.f32.mxu0 0.0
        %6601 = vmatmul.mubr.f32.gmra.mxu0 %v6500
        %v6602 = vpop.f32.mrf.mxu0
        %v6603 = vadd.f32 0.0, %v6602
        %v6604 = vpop.f32.mrf.mxu0
        %6605 = vmatprep.mubr.f32.mxu0 0.0
        %6606 = vmatmul.mubr.f32.gmra.mxu0 %v6503
        %v6607 = vpop.f32.mrf.mxu0
        %v6608 = vadd.f32 0.0, %v6607
        %v6609 = vpop.f32.mrf.mxu0
        %6610 = vmatprep.mubr.f32.mxu0 0.0
        %6611 = vmatmul.mubr.f32.gmra.mxu0 %v6506
        %v6612 = vpop.f32.mrf.mxu0
        %v6613 = vadd.f32 0.0, %v6612
        %v6614 = vpop.f32.mrf.mxu0
        %6615 = vdwg.mxu0
        %v6616 = vrcp.pop %v6462
        %v6617 = vmul.f32 %v6578, %v6616
        %v6618 = vrcp.pop %v6465
        %v6619 = vmul.f32 %v6583, %v6618
        %v6620 = vrcp.pop %v6468
        %v6621 = vmul.f32 %v6588, %v6620
        %v6622 = vrcp.pop %v6471
        %v6623 = vmul.f32 %v6593, %v6622
        %v6624 = vrcp.pop %v6474
        %v6625 = vmul.f32 %v6598, %v6624
        %v6626 = vrcp.pop %v6477
        %v6627 = vmul.f32 %v6603, %v6626
        %v6628 = vrcp.pop %v6480
        %v6629 = vmul.f32 %v6608, %v6628
        %v6630 = vrcp.pop %v6483
        %v6631 = vmul.f32 %v6613, %v6630
        %v6632 = vld [vmem:[%s5 + $0x50] sm:$0xff]
        %v6634 = vsel %vm1001, %v6617, 0
        %v6637 = vsel %vm1001, %v6619, 0
        %v6640 = vsel %vm1001, %v6621, 0
        %v6643 = vsel %vm1001, %v6623, 0
        %v6646 = vsel %vm1001, %v6625, 0
        %v6649 = vsel %vm1001, %v6627, 0
        %v6652 = vsel %vm1001, %v6629, 0
        %v6655 = vsel %vm1001, %v6631, 0
        %6657 = vmatprep.subr.mxu0 0.0
        %6658 = vmatpush1.msra.mxu0 0.0
        %6659 = vmatprep.subr.mxu0 0.0
        %6660 = vmatpush1.msra.mxu0 0.0
        %6661 = vmatprep.subr.mxu0 0.0
        %6662 = vmatpush1.msra.mxu0 0.0
        %6663 = vmatprep.subr.mxu0 0.0
        %6664 = vmatpush1.msra.mxu0 0.0
        %6665 = vmatprep.subr.mxu0 0.0
        %6666 = vmatpush1.msra.mxu0 0.0
        %6667 = vmatprep.subr.mxu0 0.0
        %6668 = vmatpush1.msra.mxu0 0.0
        %6669 = vmatprep.subr.mxu0 0.0
        %6670 = vmatpush1.msra.mxu0 0.0
        %6671 = vmatprep.subr.mxu0 0.0
        %6672 = vmatpush1.msra.mxu0 0.0
        %6673 = vmatprep.subr.mxu0 0.0
        %6674 = vmatpush1.msra.mxu0 0.0
        %6675 = vmatprep.subr.mxu0 0.0
        %6676 = vmatpush1.msra.mxu0 0.0
        %6677 = vmatprep.subr.mxu0 0.0
        %6678 = vmatpush1.msra.mxu0 0.0
        %6679 = vmatprep.subr.mxu0 0.0
        %6680 = vmatpush1.msra.mxu0 0.0
        %6681 = vmatprep.subr.mxu0 0.0
        %6682 = vmatpush1.msra.mxu0 0.0
        %6683 = vmatprep.subr.mxu0 0.0
        %6684 = vmatpush1.msra.mxu0 0.0
        %6685 = vmatprep.subr.mxu0 0.0
        %6686 = vmatpush1.msra.mxu0 0.0
        %6687 = vmatprep.subr.mxu0 0.0
        %6688 = vmatpush1.msra.mxu0 %v6632
        %6689 = vmatprep.subr.mxu0 0.0
        %6690 = vmatpush2.msra.mxu0 0.0
        %6691 = vmatprep.subr.mxu0 0.0
        %6692 = vmatpush2.msra.mxu0 0.0
        %6693 = vmatprep.subr.mxu0 0.0
        %6694 = vmatpush2.msra.mxu0 0.0
        %6695 = vmatprep.subr.mxu0 0.0
        %6696 = vmatpush2.msra.mxu0 0.0
        %6697 = vmatprep.subr.mxu0 0.0
        %6698 = vmatpush2.msra.mxu0 0.0
        %6699 = vmatprep.subr.mxu0 0.0
        %6700 = vmatpush2.msra.mxu0 0.0
        %6701 = vmatprep.subr.mxu0 0.0
        %6702 = vmatpush2.msra.mxu0 0.0
        %6703 = vmatprep.subr.mxu0 0.0
        %6704 = vmatpush2.msra.mxu0 0.0
        %6705 = vmatprep.subr.mxu0 0.0
        %6706 = vmatpush2.msra.mxu0 0.0
        %6707 = vmatprep.subr.mxu0 0.0
        %6708 = vmatpush2.msra.mxu0 0.0
        %6709 = vmatprep.subr.mxu0 0.0
        %6710 = vmatpush2.msra.mxu0 0.0
        %6711 = vmatprep.subr.mxu0 0.0
        %6712 = vmatpush2.msra.mxu0 0.0
        %6713 = vmatprep.subr.mxu0 0.0
        %6714 = vmatpush2.msra.mxu0 0.0
        %6715 = vmatprep.subr.mxu0 0.0
        %6716 = vmatpush2.msra.mxu0 0.0
        %6717 = vmatprep.subr.mxu0 0.0
        %6718 = vmatpush2.msra.mxu0 0.0
        %6719 = vmatprep.subr.mxu0 0.0
        %6720 = vmatpush2.msra.mxu0 0.0
        %6721 = vmatprep.mubr.f32.mxu0 0.0
        %6722 = vmatmul.mubr.f32.gmra.mxu0 %v6634
        %v6723 = vpop.f32.mrf.mxu0
        %v6724 = vadd.f32 0.0, %v6723
        %v6725 = vpop.f32.mrf.mxu0
        %6726 = vmatprep.mubr.f32.mxu0 0.0
        %6727 = vmatmul.mubr.f32.gmra.mxu0 %v6637
        %v6728 = vpop.f32.mrf.mxu0
        %v6729 = vadd.f32 0.0, %v6728
        %v6730 = vpop.f32.mrf.mxu0
        %6731 = vmatprep.mubr.f32.mxu0 0.0
        %6732 = vmatmul.mubr.f32.gmra.mxu0 %v6640
        %v6733 = vpop.f32.mrf.mxu0
        %v6734 = vadd.f32 0.0, %v6733
        %v6735 = vpop.f32.mrf.mxu0
        %6736 = vmatprep.mubr.f32.mxu0 0.0
        %6737 = vmatmul.mubr.f32.gmra.mxu0 %v6643
        %v6738 = vpop.f32.mrf.mxu0
        %v6739 = vadd.f32 0.0, %v6738
        %v6740 = vpop.f32.mrf.mxu0
        %6741 = vmatprep.mubr.f32.mxu0 0.0
        %6742 = vmatmul.mubr.f32.gmra.mxu0 %v6646
        %v6743 = vpop.f32.mrf.mxu0
        %v6744 = vadd.f32 0.0, %v6743
        %v6745 = vpop.f32.mrf.mxu0
        %6746 = vmatprep.mubr.f32.mxu0 0.0
        %6747 = vmatmul.mubr.f32.gmra.mxu0 %v6649
        %v6748 = vpop.f32.mrf.mxu0
        %v6749 = vadd.f32 0.0, %v6748
        %v6750 = vpop.f32.mrf.mxu0
        %6751 = vmatprep.mubr.f32.mxu0 0.0
        %6752 = vmatmul.mubr.f32.gmra.mxu0 %v6652
        %v6753 = vpop.f32.mrf.mxu0
        %v6754 = vadd.f32 0.0, %v6753
        %v6755 = vpop.f32.mrf.mxu0
        %6756 = vmatprep.mubr.f32.mxu0 0.0
        %6757 = vmatmul.mubr.f32.gmra.mxu0 %v6655
        %v6758 = vpop.f32.mrf.mxu0
        %v6759 = vadd.f32 0.0, %v6758
        %v6760 = vpop.f32.mrf.mxu0
        %6761 = vdwg.mxu0
        %v6762 = vadd.f32 %v6234, %v6724
        %v6763 = vadd.f32 %v6235, %v6729
        %v6764 = vadd.f32 %v6236, %v6734
        %v6765 = vadd.f32 %v6237, %v6739
        %v6766 = vadd.f32 %v6238, %v6744
        %v6767 = vadd.f32 %v6239, %v6749
        %v6768 = vadd.f32 %v6240, %v6754
        %v6769 = vadd.f32 %v6241, %v6759
        %s6770 = scalar_lea.vmem %s7, 704
        %v6771 = vld [vmem:[%s6770] sm:$0xff]
        %v6772 = vld [vmem:[%s6770 + $0x8] sm:$0xff]
        %v6773 = vld [vmem:[%s6770 + $0x10] sm:$0xff]
        %v6774 = vld [vmem:[%s6770 + $0x18] sm:$0xff]
        %v6775 = vld [vmem:[%s6770 + $0x20] sm:$0xff]
        %v6776 = vld [vmem:[%s6770 + $0x28] sm:$0xff]
        %v6777 = vld [vmem:[%s6770 + $0x30] sm:$0xff]
        %v6778 = vld [vmem:[%s6770 + $0x38] sm:$0xff]
        %6779 = vxpose.xlu0.b32.start [1/16] %v799, 128
        %6780 = vxpose.xlu0.b32.cont [2/16] 0.0, 128
        %6781 = vxpose.xlu0.b32.cont [3/16] 0.0, 128
        %6782 = vxpose.xlu0.b32.cont [4/16] 0.0, 128
        %6783 = vxpose.xlu0.b32.cont [5/16] 0.0, 128
        %6784 = vxpose.xlu0.b32.cont [6/16] 0.0, 128
        %6785 = vxpose.xlu0.b32.cont [7/16] 0.0, 128
        %6786 = vxpose.xlu0.b32.cont [8/16] 0.0, 128
        %6787 = vxpose.xlu0.b32.cont [9/16] 0.0, 128
        %6788 = vxpose.xlu0.b32.cont [10/16] 0.0, 128
        %6789 = vxpose.xlu0.b32.cont [11/16] 0.0, 128
        %6790 = vxpose.xlu0.b32.cont [12/16] 0.0, 128
        %6791 = vxpose.xlu0.b32.cont [13/16] 0.0, 128
        %6792 = vxpose.xlu0.b32.cont [14/16] 0.0, 128
        %6793 = vxpose.xlu0.b32.cont [15/16] 0.0, 128
        %6794 = vxpose.xlu0.b32.end [16/16] 0.0, 128
        %v6795 = vpop.trf.xlu0
        %v6796 = vpop.trf.xlu0
        %v6797 = vpop.trf.xlu0
        %v6798 = vpop.trf.xlu0
        %v6799 = vpop.trf.xlu0
        %v6800 = vpop.trf.xlu0
        %v6801 = vpop.trf.xlu0
        %v6802 = vpop.trf.xlu0
        %v6803 = vpop.trf.xlu0
        %v6804 = vpop.trf.xlu0
        %v6805 = vpop.trf.xlu0
        %v6806 = vpop.trf.xlu0
        %v6807 = vpop.trf.xlu0
        %v6808 = vpop.trf.xlu0
        %v6809 = vpop.trf.xlu0
        %v6810 = vpop.trf.xlu0
        %v6812 = vsel %vm1001, %v6795, 0
        %v6815 = vsel %vm1001, %v6796, 0
        %v6818 = vsel %vm1001, %v6797, 0
        %v6821 = vsel %vm1001, %v6798, 0
        %v6824 = vsel %vm1001, %v6799, 0
        %v6827 = vsel %vm1001, %v6800, 0
        %v6830 = vsel %vm1001, %v6801, 0
        %v6833 = vsel %vm1001, %v6802, 0
        %6835 = vmatprep.subr.mxu0 0.0
        %6836 = vmatpush1.msra.mxu0 0.0
        %6837 = vmatprep.subr.mxu0 0.0
        %6838 = vmatpush1.msra.mxu0 0.0
        %6839 = vmatprep.subr.mxu0 0.0
        %6840 = vmatpush1.msra.mxu0 0.0
        %6841 = vmatprep.subr.mxu0 0.0
        %6842 = vmatpush1.msra.mxu0 0.0
        %6843 = vmatprep.subr.mxu0 0.0
        %6844 = vmatpush1.msra.mxu0 0.0
        %6845 = vmatprep.subr.mxu0 0.0
        %6846 = vmatpush1.msra.mxu0 0.0
        %6847 = vmatprep.subr.mxu0 0.0
        %6848 = vmatpush1.msra.mxu0 0.0
        %6849 = vmatprep.subr.mxu0 0.0
        %6850 = vmatpush1.msra.mxu0 0.0
        %6851 = vmatprep.subr.mxu0 0.0
        %6852 = vmatpush1.msra.mxu0 0.0
        %6853 = vmatprep.subr.mxu0 0.0
        %6854 = vmatpush1.msra.mxu0 0.0
        %6855 = vmatprep.subr.mxu0 0.0
        %6856 = vmatpush1.msra.mxu0 0.0
        %6857 = vmatprep.subr.mxu0 0.0
        %6858 = vmatpush1.msra.mxu0 0.0
        %6859 = vmatprep.subr.mxu0 0.0
        %6860 = vmatpush1.msra.mxu0 0.0
        %6861 = vmatprep.subr.mxu0 0.0
        %6862 = vmatpush1.msra.mxu0 0.0
        %6863 = vmatprep.subr.mxu0 0.0
        %6864 = vmatpush1.msra.mxu0 0.0
        %6865 = vmatprep.subr.mxu0 0.0
        %6866 = vmatpush1.msra.mxu0 %v863
        %6867 = vmatprep.subr.mxu0 0.0
        %6868 = vmatpush2.msra.mxu0 0.0
        %6869 = vmatprep.subr.mxu0 0.0
        %6870 = vmatpush2.msra.mxu0 0.0
        %6871 = vmatprep.subr.mxu0 0.0
        %6872 = vmatpush2.msra.mxu0 0.0
        %6873 = vmatprep.subr.mxu0 0.0
        %6874 = vmatpush2.msra.mxu0 0.0
        %6875 = vmatprep.subr.mxu0 0.0
        %6876 = vmatpush2.msra.mxu0 0.0
        %6877 = vmatprep.subr.mxu0 0.0
        %6878 = vmatpush2.msra.mxu0 0.0
        %6879 = vmatprep.subr.mxu0 0.0
        %6880 = vmatpush2.msra.mxu0 0.0
        %6881 = vmatprep.subr.mxu0 0.0
        %6882 = vmatpush2.msra.mxu0 0.0
        %6883 = vmatprep.subr.mxu0 0.0
        %6884 = vmatpush2.msra.mxu0 0.0
        %6885 = vmatprep.subr.mxu0 0.0
        %6886 = vmatpush2.msra.mxu0 0.0
        %6887 = vmatprep.subr.mxu0 0.0
        %6888 = vmatpush2.msra.mxu0 0.0
        %6889 = vmatprep.subr.mxu0 0.0
        %6890 = vmatpush2.msra.mxu0 0.0
        %6891 = vmatprep.subr.mxu0 0.0
        %6892 = vmatpush2.msra.mxu0 0.0
        %6893 = vmatprep.subr.mxu0 0.0
        %6894 = vmatpush2.msra.mxu0 0.0
        %6895 = vmatprep.subr.mxu0 0.0
        %6896 = vmatpush2.msra.mxu0 0.0
        %6897 = vmatprep.subr.mxu0 0.0
        %6898 = vmatpush2.msra.mxu0 0.0
        %6899 = vmatprep.mubr.f32.mxu0 0.0
        %6900 = vmatmul.mubr.f32.gmra.mxu0 %v6812
        %v6901 = vpop.f32.mrf.mxu0
        %v6902 = vadd.f32 %v6771, %v6901
        %v6903 = vpop.f32.mrf.mxu0
        %6904 = vmatprep.mubr.f32.mxu0 0.0
        %6905 = vmatmul.mubr.f32.gmra.mxu0 %v6815
        %v6906 = vpop.f32.mrf.mxu0
        %v6907 = vadd.f32 %v6772, %v6906
        %v6908 = vpop.f32.mrf.mxu0
        %6909 = vmatprep.mubr.f32.mxu0 0.0
        %6910 = vmatmul.mubr.f32.gmra.mxu0 %v6818
        %v6911 = vpop.f32.mrf.mxu0
        %v6912 = vadd.f32 %v6773, %v6911
        %v6913 = vpop.f32.mrf.mxu0
        %6914 = vmatprep.mubr.f32.mxu0 0.0
        %6915 = vmatmul.mubr.f32.gmra.mxu0 %v6821
        %v6916 = vpop.f32.mrf.mxu0
        %v6917 = vadd.f32 %v6774, %v6916
        %v6918 = vpop.f32.mrf.mxu0
        %6919 = vmatprep.mubr.f32.mxu0 0.0
        %6920 = vmatmul.mubr.f32.gmra.mxu0 %v6824
        %v6921 = vpop.f32.mrf.mxu0
        %v6922 = vadd.f32 %v6775, %v6921
        %v6923 = vpop.f32.mrf.mxu0
        %6924 = vmatprep.mubr.f32.mxu0 0.0
        %6925 = vmatmul.mubr.f32.gmra.mxu0 %v6827
        %v6926 = vpop.f32.mrf.mxu0
        %v6927 = vadd.f32 %v6776, %v6926
        %v6928 = vpop.f32.mrf.mxu0
        %6929 = vmatprep.mubr.f32.mxu0 0.0
        %6930 = vmatmul.mubr.f32.gmra.mxu0 %v6830
        %v6931 = vpop.f32.mrf.mxu0
        %v6932 = vadd.f32 %v6777, %v6931
        %v6933 = vpop.f32.mrf.mxu0
        %6934 = vmatprep.mubr.f32.mxu0 0.0
        %6935 = vmatmul.mubr.f32.gmra.mxu0 %v6833
        %v6936 = vpop.f32.mrf.mxu0
        %v6937 = vadd.f32 %v6778, %v6936
        %v6938 = vpop.f32.mrf.mxu0
        %6939 = vdwg.mxu0
        %v6940 = vsel %vm1131, %v6902, -inf
        %6941 = vmax.xlane.f32.xlu0 %v6940
        %v6942 = vpop.xlane.xlu0 %6941
        %v6943 = vsel %vm1131, %v6907, -inf
        %6944 = vmax.xlane.f32.xlu0 %v6943
        %v6945 = vpop.xlane.xlu0 %6944
        %v6946 = vsel %vm1131, %v6912, -inf
        %6947 = vmax.xlane.f32.xlu0 %v6946
        %v6948 = vpop.xlane.xlu0 %6947
        %v6949 = vsel %vm1131, %v6917, -inf
        %6950 = vmax.xlane.f32.xlu0 %v6949
        %v6951 = vpop.xlane.xlu0 %6950
        %v6952 = vsel %vm1131, %v6922, -inf
        %6953 = vmax.xlane.f32.xlu0 %v6952
        %v6954 = vpop.xlane.xlu0 %6953
        %v6955 = vsel %vm1131, %v6927, -inf
        %6956 = vmax.xlane.f32.xlu0 %v6955
        %v6957 = vpop.xlane.xlu0 %6956
        %v6958 = vsel %vm1131, %v6932, -inf
        %6959 = vmax.xlane.f32.xlu0 %v6958
        %v6960 = vpop.xlane.xlu0 %6959
        %v6961 = vsel %vm1131, %v6937, -inf
        %6962 = vmax.xlane.f32.xlu0 %v6961
        %v6963 = vpop.xlane.xlu0 %6962
        %v6964 = vsub.f32 %v6902, %v6942
        %v6965 = vsub.f32 %v6907, %v6945
        %v6966 = vsub.f32 %v6912, %v6948
        %v6967 = vsub.f32 %v6917, %v6951
        %v6968 = vsub.f32 %v6922, %v6954
        %v6969 = vsub.f32 %v6927, %v6957
        %v6970 = vsub.f32 %v6932, %v6960
        %v6971 = vsub.f32 %v6937, %v6963
        %v6972 = vmul.f32 %v6964, 1.442695
        %v6973 = vpow.pop %v6972
        %v6974 = vmul.f32 %v6965, 1.442695
        %v6975 = vpow.pop %v6974
        %v6976 = vmul.f32 %v6966, 1.442695
        %v6977 = vpow.pop %v6976
        %v6978 = vmul.f32 %v6967, 1.442695
        %v6979 = vpow.pop %v6978
        %v6980 = vmul.f32 %v6968, 1.442695
        %v6981 = vpow.pop %v6980
        %v6982 = vmul.f32 %v6969, 1.442695
        %v6983 = vpow.pop %v6982
        %v6984 = vmul.f32 %v6970, 1.442695
        %v6985 = vpow.pop %v6984
        %v6986 = vmul.f32 %v6971, 1.442695
        %v6987 = vpow.pop %v6986
        %v6988 = vsel %vm1131, %v6973, 0.0
        %6989 = vadd.xlane.f32.xlu0 %v6988
        %v6990 = vpop.xlane.xlu0 %6989
        %v6991 = vsel %vm1131, %v6975, 0.0
        %6992 = vadd.xlane.f32.xlu0 %v6991
        %v6993 = vpop.xlane.xlu0 %6992
        %v6994 = vsel %vm1131, %v6977, 0.0
        %6995 = vadd.xlane.f32.xlu0 %v6994
        %v6996 = vpop.xlane.xlu0 %6995
        %v6997 = vsel %vm1131, %v6979, 0.0
        %6998 = vadd.xlane.f32.xlu0 %v6997
        %v6999 = vpop.xlane.xlu0 %6998
        %v7000 = vsel %vm1131, %v6981, 0.0
        %7001 = vadd.xlane.f32.xlu0 %v7000
        %v7002 = vpop.xlane.xlu0 %7001
        %v7003 = vsel %vm1131, %v6983, 0.0
        %7004 = vadd.xlane.f32.xlu0 %v7003
        %v7005 = vpop.xlane.xlu0 %7004
        %v7006 = vsel %vm1131, %v6985, 0.0
        %7007 = vadd.xlane.f32.xlu0 %v7006
        %v7008 = vpop.xlane.xlu0 %7007
        %v7009 = vsel %vm1131, %v6987, 0.0
        %7010 = vadd.xlane.f32.xlu0 %v7009
        %v7011 = vpop.xlane.xlu0 %7010
        %v7013 = vsel %vm1131, %v6973, 0
        %v7016 = vsel %vm1131, %v6975, 0
        %v7019 = vsel %vm1131, %v6977, 0
        %v7022 = vsel %vm1131, %v6979, 0
        %v7025 = vsel %vm1131, %v6981, 0
        %v7028 = vsel %vm1131, %v6983, 0
        %v7031 = vsel %vm1131, %v6985, 0
        %v7034 = vsel %vm1131, %v6987, 0
        %v7037 = vsel %vm1131, %v927, 0
        %7039 = vmatprep.subr.mxu0 0.0
        %7040 = vmatpush1.xpose.msra.mxu0 0.0
        %7041 = vmatprep.subr.mxu0 0.0
        %7042 = vmatpush1.xpose.msra.mxu0 0.0
        %7043 = vmatprep.subr.mxu0 0.0
        %7044 = vmatpush1.xpose.msra.mxu0 0.0
        %7045 = vmatprep.subr.mxu0 0.0
        %7046 = vmatpush1.xpose.msra.mxu0 0.0
        %7047 = vmatprep.subr.mxu0 0.0
        %7048 = vmatpush1.xpose.msra.mxu0 0.0
        %7049 = vmatprep.subr.mxu0 0.0
        %7050 = vmatpush1.xpose.msra.mxu0 0.0
        %7051 = vmatprep.subr.mxu0 0.0
        %7052 = vmatpush1.xpose.msra.mxu0 0.0
        %7053 = vmatprep.subr.mxu0 0.0
        %7054 = vmatpush1.xpose.msra.mxu0 0.0
        %7055 = vmatprep.subr.mxu0 0.0
        %7056 = vmatpush1.xpose.msra.mxu0 0.0
        %7057 = vmatprep.subr.mxu0 0.0
        %7058 = vmatpush1.xpose.msra.mxu0 0.0
        %7059 = vmatprep.subr.mxu0 0.0
        %7060 = vmatpush1.xpose.msra.mxu0 0.0
        %7061 = vmatprep.subr.mxu0 0.0
        %7062 = vmatpush1.xpose.msra.mxu0 0.0
        %7063 = vmatprep.subr.mxu0 0.0
        %7064 = vmatpush1.xpose.msra.mxu0 0.0
        %7065 = vmatprep.subr.mxu0 0.0
        %7066 = vmatpush1.xpose.msra.mxu0 0.0
        %7067 = vmatprep.subr.mxu0 0.0
        %7068 = vmatpush1.xpose.msra.mxu0 0.0
        %7069 = vmatprep.subr.mxu0 0.0
        %7070 = vmatpush1.xpose.msra.mxu0 %v7037
        %7071 = vmatprep.subr.mxu0 0.0
        %7072 = vmatpush2.xpose.msra.mxu0 0.0
        %7073 = vmatprep.subr.mxu0 0.0
        %7074 = vmatpush2.xpose.msra.mxu0 0.0
        %7075 = vmatprep.subr.mxu0 0.0
        %7076 = vmatpush2.xpose.msra.mxu0 0.0
        %7077 = vmatprep.subr.mxu0 0.0
        %7078 = vmatpush2.xpose.msra.mxu0 0.0
        %7079 = vmatprep.subr.mxu0 0.0
        %7080 = vmatpush2.xpose.msra.mxu0 0.0
        %7081 = vmatprep.subr.mxu0 0.0
        %7082 = vmatpush2.xpose.msra.mxu0 0.0
        %7083 = vmatprep.subr.mxu0 0.0
        %7084 = vmatpush2.xpose.msra.mxu0 0.0
        %7085 = vmatprep.subr.mxu0 0.0
        %7086 = vmatpush2.xpose.msra.mxu0 0.0
        %7087 = vmatprep.subr.mxu0 0.0
        %7088 = vmatpush2.xpose.msra.mxu0 0.0
        %7089 = vmatprep.subr.mxu0 0.0
        %7090 = vmatpush2.xpose.msra.mxu0 0.0
        %7091 = vmatprep.subr.mxu0 0.0
        %7092 = vmatpush2.xpose.msra.mxu0 0.0
        %7093 = vmatprep.subr.mxu0 0.0
        %7094 = vmatpush2.xpose.msra.mxu0 0.0
        %7095 = vmatprep.subr.mxu0 0.0
        %7096 = vmatpush2.xpose.msra.mxu0 0.0
        %7097 = vmatprep.subr.mxu0 0.0
        %7098 = vmatpush2.xpose.msra.mxu0 0.0
        %7099 = vmatprep.subr.mxu0 0.0
        %7100 = vmatpush2.xpose.msra.mxu0 0.0
        %7101 = vmatprep.subr.mxu0 0.0
        %7102 = vmatpush2.xpose.msra.mxu0 0.0
        %7103 = vmatprep.mubr.f32.mxu0 0.0
        %7104 = vmatmul.mubr.f32.gmra.mxu0 %v7013
        %v7105 = vpop.f32.mrf.mxu0
        %v7106 = vadd.f32 0.0, %v7105
        %v7107 = vpop.f32.mrf.mxu0
        %7108 = vmatprep.mubr.f32.mxu0 0.0
        %7109 = vmatmul.mubr.f32.gmra.mxu0 %v7016
        %v7110 = vpop.f32.mrf.mxu0
        %v7111 = vadd.f32 0.0, %v7110
        %v7112 = vpop.f32.mrf.mxu0
        %7113 = vmatprep.mubr.f32.mxu0 0.0
        %7114 = vmatmul.mubr.f32.gmra.mxu0 %v7019
        %v7115 = vpop.f32.mrf.mxu0
        %v7116 = vadd.f32 0.0, %v7115
        %v7117 = vpop.f32.mrf.mxu0
        %7118 = vmatprep.mubr.f32.mxu0 0.0
        %7119 = vmatmul.mubr.f32.gmra.mxu0 %v7022
        %v7120 = vpop.f32.mrf.mxu0
        %v7121 = vadd.f32 0.0, %v7120
        %v7122 = vpop.f32.mrf.mxu0
        %7123 = vmatprep.mubr.f32.mxu0 0.0
        %7124 = vmatmul.mubr.f32.gmra.mxu0 %v7025
        %v7125 = vpop.f32.mrf.mxu0
        %v7126 = vadd.f32 0.0, %v7125
        %v7127 = vpop.f32.mrf.mxu0
        %7128 = vmatprep.mubr.f32.mxu0 0.0
        %7129 = vmatmul.mubr.f32.gmra.mxu0 %v7028
        %v7130 = vpop.f32.mrf.mxu0
        %v7131 = vadd.f32 0.0, %v7130
        %v7132 = vpop.f32.mrf.mxu0
        %7133 = vmatprep.mubr.f32.mxu0 0.0
        %7134 = vmatmul.mubr.f32.gmra.mxu0 %v7031
        %v7135 = vpop.f32.mrf.mxu0
        %v7136 = vadd.f32 0.0, %v7135
        %v7137 = vpop.f32.mrf.mxu0
        %7138 = vmatprep.mubr.f32.mxu0 0.0
        %7139 = vmatmul.mubr.f32.gmra.mxu0 %v7034
        %v7140 = vpop.f32.mrf.mxu0
        %v7141 = vadd.f32 0.0, %v7140
        %v7142 = vpop.f32.mrf.mxu0
        %7143 = vdwg.mxu0
        %v7144 = vrcp.pop %v6990
        %v7145 = vmul.f32 %v7106, %v7144
        %v7146 = vrcp.pop %v6993
        %v7147 = vmul.f32 %v7111, %v7146
        %v7148 = vrcp.pop %v6996
        %v7149 = vmul.f32 %v7116, %v7148
        %v7150 = vrcp.pop %v6999
        %v7151 = vmul.f32 %v7121, %v7150
        %v7152 = vrcp.pop %v7002
        %v7153 = vmul.f32 %v7126, %v7152
        %v7154 = vrcp.pop %v7005
        %v7155 = vmul.f32 %v7131, %v7154
        %v7156 = vrcp.pop %v7008
        %v7157 = vmul.f32 %v7136, %v7156
        %v7158 = vrcp.pop %v7011
        %v7159 = vmul.f32 %v7141, %v7158
        %v7160 = vld [vmem:[%s5 + $0x58] sm:$0xff]
        %v7162 = vsel %vm1001, %v7145, 0
        %v7165 = vsel %vm1001, %v7147, 0
        %v7168 = vsel %vm1001, %v7149, 0
        %v7171 = vsel %vm1001, %v7151, 0
        %v7174 = vsel %vm1001, %v7153, 0
        %v7177 = vsel %vm1001, %v7155, 0
        %v7180 = vsel %vm1001, %v7157, 0
        %v7183 = vsel %vm1001, %v7159, 0
        %7185 = vmatprep.subr.mxu0 0.0
        %7186 = vmatpush1.msra.mxu0 0.0
        %7187 = vmatprep.subr.mxu0 0.0
        %7188 = vmatpush1.msra.mxu0 0.0
        %7189 = vmatprep.subr.mxu0 0.0
        %7190 = vmatpush1.msra.mxu0 0.0
        %7191 = vmatprep.subr.mxu0 0.0
        %7192 = vmatpush1.msra.mxu0 0.0
        %7193 = vmatprep.subr.mxu0 0.0
        %7194 = vmatpush1.msra.mxu0 0.0
        %7195 = vmatprep.subr.mxu0 0.0
        %7196 = vmatpush1.msra.mxu0 0.0
        %7197 = vmatprep.subr.mxu0 0.0
        %7198 = vmatpush1.msra.mxu0 0.0
        %7199 = vmatprep.subr.mxu0 0.0
        %7200 = vmatpush1.msra.mxu0 0.0
        %7201 = vmatprep.subr.mxu0 0.0
        %7202 = vmatpush1.msra.mxu0 0.0
        %7203 = vmatprep.subr.mxu0 0.0
        %7204 = vmatpush1.msra.mxu0 0.0
        %7205 = vmatprep.subr.mxu0 0.0
        %7206 = vmatpush1.msra.mxu0 0.0
        %7207 = vmatprep.subr.mxu0 0.0
        %7208 = vmatpush1.msra.mxu0 0.0
        %7209 = vmatprep.subr.mxu0 0.0
        %7210 = vmatpush1.msra.mxu0 0.0
        %7211 = vmatprep.subr.mxu0 0.0
        %7212 = vmatpush1.msra.mxu0 0.0
        %7213 = vmatprep.subr.mxu0 0.0
        %7214 = vmatpush1.msra.mxu0 0.0
        %7215 = vmatprep.subr.mxu0 0.0
        %7216 = vmatpush1.msra.mxu0 %v7160
        %7217 = vmatprep.subr.mxu0 0.0
        %7218 = vmatpush2.msra.mxu0 0.0
        %7219 = vmatprep.subr.mxu0 0.0
        %7220 = vmatpush2.msra.mxu0 0.0
        %7221 = vmatprep.subr.mxu0 0.0
        %7222 = vmatpush2.msra.mxu0 0.0
        %7223 = vmatprep.subr.mxu0 0.0
        %7224 = vmatpush2.msra.mxu0 0.0
        %7225 = vmatprep.subr.mxu0 0.0
        %7226 = vmatpush2.msra.mxu0 0.0
        %7227 = vmatprep.subr.mxu0 0.0
        %7228 = vmatpush2.msra.mxu0 0.0
        %7229 = vmatprep.subr.mxu0 0.0
        %7230 = vmatpush2.msra.mxu0 0.0
        %7231 = vmatprep.subr.mxu0 0.0
        %7232 = vmatpush2.msra.mxu0 0.0
        %7233 = vmatprep.subr.mxu0 0.0
        %7234 = vmatpush2.msra.mxu0 0.0
        %7235 = vmatprep.subr.mxu0 0.0
        %7236 = vmatpush2.msra.mxu0 0.0
        %7237 = vmatprep.subr.mxu0 0.0
        %7238 = vmatpush2.msra.mxu0 0.0
        %7239 = vmatprep.subr.mxu0 0.0
        %7240 = vmatpush2.msra.mxu0 0.0
        %7241 = vmatprep.subr.mxu0 0.0
        %7242 = vmatpush2.msra.mxu0 0.0
        %7243 = vmatprep.subr.mxu0 0.0
        %7244 = vmatpush2.msra.mxu0 0.0
        %7245 = vmatprep.subr.mxu0 0.0
        %7246 = vmatpush2.msra.mxu0 0.0
        %7247 = vmatprep.subr.mxu0 0.0
        %7248 = vmatpush2.msra.mxu0 0.0
        %7249 = vmatprep.mubr.f32.mxu0 0.0
        %7250 = vmatmul.mubr.f32.gmra.mxu0 %v7162
        %v7251 = vpop.f32.mrf.mxu0
        %v7252 = vadd.f32 0.0, %v7251
        %v7253 = vpop.f32.mrf.mxu0
        %7254 = vmatprep.mubr.f32.mxu0 0.0
        %7255 = vmatmul.mubr.f32.gmra.mxu0 %v7165
        %v7256 = vpop.f32.mrf.mxu0
        %v7257 = vadd.f32 0.0, %v7256
        %v7258 = vpop.f32.mrf.mxu0
        %7259 = vmatprep.mubr.f32.mxu0 0.0
        %7260 = vmatmul.mubr.f32.gmra.mxu0 %v7168
        %v7261 = vpop.f32.mrf.mxu0
        %v7262 = vadd.f32 0.0, %v7261
        %v7263 = vpop.f32.mrf.mxu0
        %7264 = vmatprep.mubr.f32.mxu0 0.0
        %7265 = vmatmul.mubr.f32.gmra.mxu0 %v7171
        %v7266 = vpop.f32.mrf.mxu0
        %v7267 = vadd.f32 0.0, %v7266
        %v7268 = vpop.f32.mrf.mxu0
        %7269 = vmatprep.mubr.f32.mxu0 0.0
        %7270 = vmatmul.mubr.f32.gmra.mxu0 %v7174
        %v7271 = vpop.f32.mrf.mxu0
        %v7272 = vadd.f32 0.0, %v7271
        %v7273 = vpop.f32.mrf.mxu0
        %7274 = vmatprep.mubr.f32.mxu0 0.0
        %7275 = vmatmul.mubr.f32.gmra.mxu0 %v7177
        %v7276 = vpop.f32.mrf.mxu0
        %v7277 = vadd.f32 0.0, %v7276
        %v7278 = vpop.f32.mrf.mxu0
        %7279 = vmatprep.mubr.f32.mxu0 0.0
        %7280 = vmatmul.mubr.f32.gmra.mxu0 %v7180
        %v7281 = vpop.f32.mrf.mxu0
        %v7282 = vadd.f32 0.0, %v7281
        %v7283 = vpop.f32.mrf.mxu0
        %7284 = vmatprep.mubr.f32.mxu0 0.0
        %7285 = vmatmul.mubr.f32.gmra.mxu0 %v7183
        %v7286 = vpop.f32.mrf.mxu0
        %v7287 = vadd.f32 0.0, %v7286
        %v7288 = vpop.f32.mrf.mxu0
        %7289 = vdwg.mxu0
        %v7290 = vadd.f32 %v6762, %v7252
        %v7291 = vadd.f32 %v6763, %v7257
        %v7292 = vadd.f32 %v6764, %v7262
        %v7293 = vadd.f32 %v6765, %v7267
        %v7294 = vadd.f32 %v6766, %v7272
        %v7295 = vadd.f32 %v6767, %v7277
        %v7296 = vadd.f32 %v6768, %v7282
        %v7297 = vadd.f32 %v6769, %v7287
        %s7298 = scalar_lea.vmem %s7, 768
        %v7299 = vld [vmem:[%s7298] sm:$0xff]
        %v7300 = vld [vmem:[%s7298 + $0x8] sm:$0xff]
        %v7301 = vld [vmem:[%s7298 + $0x10] sm:$0xff]
        %v7302 = vld [vmem:[%s7298 + $0x18] sm:$0xff]
        %v7303 = vld [vmem:[%s7298 + $0x20] sm:$0xff]
        %v7304 = vld [vmem:[%s7298 + $0x28] sm:$0xff]
        %v7305 = vld [vmem:[%s7298 + $0x30] sm:$0xff]
        %v7306 = vld [vmem:[%s7298 + $0x38] sm:$0xff]
        %7307 = vxpose.xlu0.b32.start [1/16] %v804, 128
        %7308 = vxpose.xlu0.b32.cont [2/16] 0.0, 128
        %7309 = vxpose.xlu0.b32.cont [3/16] 0.0, 128
        %7310 = vxpose.xlu0.b32.cont [4/16] 0.0, 128
        %7311 = vxpose.xlu0.b32.cont [5/16] 0.0, 128
        %7312 = vxpose.xlu0.b32.cont [6/16] 0.0, 128
        %7313 = vxpose.xlu0.b32.cont [7/16] 0.0, 128
        %7314 = vxpose.xlu0.b32.cont [8/16] 0.0, 128
        %7315 = vxpose.xlu0.b32.cont [9/16] 0.0, 128
        %7316 = vxpose.xlu0.b32.cont [10/16] 0.0, 128
        %7317 = vxpose.xlu0.b32.cont [11/16] 0.0, 128
        %7318 = vxpose.xlu0.b32.cont [12/16] 0.0, 128
        %7319 = vxpose.xlu0.b32.cont [13/16] 0.0, 128
        %7320 = vxpose.xlu0.b32.cont [14/16] 0.0, 128
        %7321 = vxpose.xlu0.b32.cont [15/16] 0.0, 128
        %7322 = vxpose.xlu0.b32.end [16/16] 0.0, 128
        %v7323 = vpop.trf.xlu0
        %v7324 = vpop.trf.xlu0
        %v7325 = vpop.trf.xlu0
        %v7326 = vpop.trf.xlu0
        %v7327 = vpop.trf.xlu0
        %v7328 = vpop.trf.xlu0
        %v7329 = vpop.trf.xlu0
        %v7330 = vpop.trf.xlu0
        %v7331 = vpop.trf.xlu0
        %v7332 = vpop.trf.xlu0
        %v7333 = vpop.trf.xlu0
        %v7334 = vpop.trf.xlu0
        %v7335 = vpop.trf.xlu0
        %v7336 = vpop.trf.xlu0
        %v7337 = vpop.trf.xlu0
        %v7338 = vpop.trf.xlu0
        %v7340 = vsel %vm1001, %v7323, 0
        %v7343 = vsel %vm1001, %v7324, 0
        %v7346 = vsel %vm1001, %v7325, 0
        %v7349 = vsel %vm1001, %v7326, 0
        %v7352 = vsel %vm1001, %v7327, 0
        %v7355 = vsel %vm1001, %v7328, 0
        %v7358 = vsel %vm1001, %v7329, 0
        %v7361 = vsel %vm1001, %v7330, 0
        %7363 = vmatprep.subr.mxu0 0.0
        %7364 = vmatpush1.msra.mxu0 0.0
        %7365 = vmatprep.subr.mxu0 0.0
        %7366 = vmatpush1.msra.mxu0 0.0
        %7367 = vmatprep.subr.mxu0 0.0
        %7368 = vmatpush1.msra.mxu0 0.0
        %7369 = vmatprep.subr.mxu0 0.0
        %7370 = vmatpush1.msra.mxu0 0.0
        %7371 = vmatprep.subr.mxu0 0.0
        %7372 = vmatpush1.msra.mxu0 0.0
        %7373 = vmatprep.subr.mxu0 0.0
        %7374 = vmatpush1.msra.mxu0 0.0
        %7375 = vmatprep.subr.mxu0 0.0
        %7376 = vmatpush1.msra.mxu0 0.0
        %7377 = vmatprep.subr.mxu0 0.0
        %7378 = vmatpush1.msra.mxu0 0.0
        %7379 = vmatprep.subr.mxu0 0.0
        %7380 = vmatpush1.msra.mxu0 0.0
        %7381 = vmatprep.subr.mxu0 0.0
        %7382 = vmatpush1.msra.mxu0 0.0
        %7383 = vmatprep.subr.mxu0 0.0
        %7384 = vmatpush1.msra.mxu0 0.0
        %7385 = vmatprep.subr.mxu0 0.0
        %7386 = vmatpush1.msra.mxu0 0.0
        %7387 = vmatprep.subr.mxu0 0.0
        %7388 = vmatpush1.msra.mxu0 0.0
        %7389 = vmatprep.subr.mxu0 0.0
        %7390 = vmatpush1.msra.mxu0 0.0
        %7391 = vmatprep.subr.mxu0 0.0
        %7392 = vmatpush1.msra.mxu0 0.0
        %7393 = vmatprep.subr.mxu0 0.0
        %7394 = vmatpush1.msra.mxu0 %v868
        %7395 = vmatprep.subr.mxu0 0.0
        %7396 = vmatpush2.msra.mxu0 0.0
        %7397 = vmatprep.subr.mxu0 0.0
        %7398 = vmatpush2.msra.mxu0 0.0
        %7399 = vmatprep.subr.mxu0 0.0
        %7400 = vmatpush2.msra.mxu0 0.0
        %7401 = vmatprep.subr.mxu0 0.0
        %7402 = vmatpush2.msra.mxu0 0.0
        %7403 = vmatprep.subr.mxu0 0.0
        %7404 = vmatpush2.msra.mxu0 0.0
        %7405 = vmatprep.subr.mxu0 0.0
        %7406 = vmatpush2.msra.mxu0 0.0
        %7407 = vmatprep.subr.mxu0 0.0
        %7408 = vmatpush2.msra.mxu0 0.0
        %7409 = vmatprep.subr.mxu0 0.0
        %7410 = vmatpush2.msra.mxu0 0.0
        %7411 = vmatprep.subr.mxu0 0.0
        %7412 = vmatpush2.msra.mxu0 0.0
        %7413 = vmatprep.subr.mxu0 0.0
        %7414 = vmatpush2.msra.mxu0 0.0
        %7415 = vmatprep.subr.mxu0 0.0
        %7416 = vmatpush2.msra.mxu0 0.0
        %7417 = vmatprep.subr.mxu0 0.0
        %7418 = vmatpush2.msra.mxu0 0.0
        %7419 = vmatprep.subr.mxu0 0.0
        %7420 = vmatpush2.msra.mxu0 0.0
        %7421 = vmatprep.subr.mxu0 0.0
        %7422 = vmatpush2.msra.mxu0 0.0
        %7423 = vmatprep.subr.mxu0 0.0
        %7424 = vmatpush2.msra.mxu0 0.0
        %7425 = vmatprep.subr.mxu0 0.0
        %7426 = vmatpush2.msra.mxu0 0.0
        %7427 = vmatprep.mubr.f32.mxu0 0.0
        %7428 = vmatmul.mubr.f32.gmra.mxu0 %v7340
        %v7429 = vpop.f32.mrf.mxu0
        %v7430 = vadd.f32 %v7299, %v7429
        %v7431 = vpop.f32.mrf.mxu0
        %7432 = vmatprep.mubr.f32.mxu0 0.0
        %7433 = vmatmul.mubr.f32.gmra.mxu0 %v7343
        %v7434 = vpop.f32.mrf.mxu0
        %v7435 = vadd.f32 %v7300, %v7434
        %v7436 = vpop.f32.mrf.mxu0
        %7437 = vmatprep.mubr.f32.mxu0 0.0
        %7438 = vmatmul.mubr.f32.gmra.mxu0 %v7346
        %v7439 = vpop.f32.mrf.mxu0
        %v7440 = vadd.f32 %v7301, %v7439
        %v7441 = vpop.f32.mrf.mxu0
        %7442 = vmatprep.mubr.f32.mxu0 0.0
        %7443 = vmatmul.mubr.f32.gmra.mxu0 %v7349
        %v7444 = vpop.f32.mrf.mxu0
        %v7445 = vadd.f32 %v7302, %v7444
        %v7446 = vpop.f32.mrf.mxu0
        %7447 = vmatprep.mubr.f32.mxu0 0.0
        %7448 = vmatmul.mubr.f32.gmra.mxu0 %v7352
        %v7449 = vpop.f32.mrf.mxu0
        %v7450 = vadd.f32 %v7303, %v7449
        %v7451 = vpop.f32.mrf.mxu0
        %7452 = vmatprep.mubr.f32.mxu0 0.0
        %7453 = vmatmul.mubr.f32.gmra.mxu0 %v7355
        %v7454 = vpop.f32.mrf.mxu0
        %v7455 = vadd.f32 %v7304, %v7454
        %v7456 = vpop.f32.mrf.mxu0
        %7457 = vmatprep.mubr.f32.mxu0 0.0
        %7458 = vmatmul.mubr.f32.gmra.mxu0 %v7358
        %v7459 = vpop.f32.mrf.mxu0
        %v7460 = vadd.f32 %v7305, %v7459
        %v7461 = vpop.f32.mrf.mxu0
        %7462 = vmatprep.mubr.f32.mxu0 0.0
        %7463 = vmatmul.mubr.f32.gmra.mxu0 %v7361
        %v7464 = vpop.f32.mrf.mxu0
        %v7465 = vadd.f32 %v7306, %v7464
        %v7466 = vpop.f32.mrf.mxu0
        %7467 = vdwg.mxu0
        %v7468 = vsel %vm1131, %v7430, -inf
        %7469 = vmax.xlane.f32.xlu0 %v7468
        %v7470 = vpop.xlane.xlu0 %7469
        %v7471 = vsel %vm1131, %v7435, -inf
        %7472 = vmax.xlane.f32.xlu0 %v7471
        %v7473 = vpop.xlane.xlu0 %7472
        %v7474 = vsel %vm1131, %v7440, -inf
        %7475 = vmax.xlane.f32.xlu0 %v7474
        %v7476 = vpop.xlane.xlu0 %7475
        %v7477 = vsel %vm1131, %v7445, -inf
        %7478 = vmax.xlane.f32.xlu0 %v7477
        %v7479 = vpop.xlane.xlu0 %7478
        %v7480 = vsel %vm1131, %v7450, -inf
        %7481 = vmax.xlane.f32.xlu0 %v7480
        %v7482 = vpop.xlane.xlu0 %7481
        %v7483 = vsel %vm1131, %v7455, -inf
        %7484 = vmax.xlane.f32.xlu0 %v7483
        %v7485 = vpop.xlane.xlu0 %7484
        %v7486 = vsel %vm1131, %v7460, -inf
        %7487 = vmax.xlane.f32.xlu0 %v7486
        %v7488 = vpop.xlane.xlu0 %7487
        %v7489 = vsel %vm1131, %v7465, -inf
        %7490 = vmax.xlane.f32.xlu0 %v7489
        %v7491 = vpop.xlane.xlu0 %7490
        %v7492 = vsub.f32 %v7430, %v7470
        %v7493 = vsub.f32 %v7435, %v7473
        %v7494 = vsub.f32 %v7440, %v7476
        %v7495 = vsub.f32 %v7445, %v7479
        %v7496 = vsub.f32 %v7450, %v7482
        %v7497 = vsub.f32 %v7455, %v7485
        %v7498 = vsub.f32 %v7460, %v7488
        %v7499 = vsub.f32 %v7465, %v7491
        %v7500 = vmul.f32 %v7492, 1.442695
        %v7501 = vpow.pop %v7500
        %v7502 = vmul.f32 %v7493, 1.442695
        %v7503 = vpow.pop %v7502
        %v7504 = vmul.f32 %v7494, 1.442695
        %v7505 = vpow.pop %v7504
        %v7506 = vmul.f32 %v7495, 1.442695
        %v7507 = vpow.pop %v7506
        %v7508 = vmul.f32 %v7496, 1.442695
        %v7509 = vpow.pop %v7508
        %v7510 = vmul.f32 %v7497, 1.442695
        %v7511 = vpow.pop %v7510
        %v7512 = vmul.f32 %v7498, 1.442695
        %v7513 = vpow.pop %v7512
        %v7514 = vmul.f32 %v7499, 1.442695
        %v7515 = vpow.pop %v7514
        %v7516 = vsel %vm1131, %v7501, 0.0
        %7517 = vadd.xlane.f32.xlu0 %v7516
        %v7518 = vpop.xlane.xlu0 %7517
        %v7519 = vsel %vm1131, %v7503, 0.0
        %7520 = vadd.xlane.f32.xlu0 %v7519
        %v7521 = vpop.xlane.xlu0 %7520
        %v7522 = vsel %vm1131, %v7505, 0.0
        %7523 = vadd.xlane.f32.xlu0 %v7522
        %v7524 = vpop.xlane.xlu0 %7523
        %v7525 = vsel %vm1131, %v7507, 0.0
        %7526 = vadd.xlane.f32.xlu0 %v7525
        %v7527 = vpop.xlane.xlu0 %7526
        %v7528 = vsel %vm1131, %v7509, 0.0
        %7529 = vadd.xlane.f32.xlu0 %v7528
        %v7530 = vpop.xlane.xlu0 %7529
        %v7531 = vsel %vm1131, %v7511, 0.0
        %7532 = vadd.xlane.f32.xlu0 %v7531
        %v7533 = vpop.xlane.xlu0 %7532
        %v7534 = vsel %vm1131, %v7513, 0.0
        %7535 = vadd.xlane.f32.xlu0 %v7534
        %v7536 = vpop.xlane.xlu0 %7535
        %v7537 = vsel %vm1131, %v7515, 0.0
        %7538 = vadd.xlane.f32.xlu0 %v7537
        %v7539 = vpop.xlane.xlu0 %7538
        %v7541 = vsel %vm1131, %v7501, 0
        %v7544 = vsel %vm1131, %v7503, 0
        %v7547 = vsel %vm1131, %v7505, 0
        %v7550 = vsel %vm1131, %v7507, 0
        %v7553 = vsel %vm1131, %v7509, 0
        %v7556 = vsel %vm1131, %v7511, 0
        %v7559 = vsel %vm1131, %v7513, 0
        %v7562 = vsel %vm1131, %v7515, 0
        %v7565 = vsel %vm1131, %v932, 0
        %7567 = vmatprep.subr.mxu0 0.0
        %7568 = vmatpush1.xpose.msra.mxu0 0.0
        %7569 = vmatprep.subr.mxu0 0.0
        %7570 = vmatpush1.xpose.msra.mxu0 0.0
        %7571 = vmatprep.subr.mxu0 0.0
        %7572 = vmatpush1.xpose.msra.mxu0 0.0
        %7573 = vmatprep.subr.mxu0 0.0
        %7574 = vmatpush1.xpose.msra.mxu0 0.0
        %7575 = vmatprep.subr.mxu0 0.0
        %7576 = vmatpush1.xpose.msra.mxu0 0.0
        %7577 = vmatprep.subr.mxu0 0.0
        %7578 = vmatpush1.xpose.msra.mxu0 0.0
        %7579 = vmatprep.subr.mxu0 0.0
        %7580 = vmatpush1.xpose.msra.mxu0 0.0
        %7581 = vmatprep.subr.mxu0 0.0
        %7582 = vmatpush1.xpose.msra.mxu0 0.0
        %7583 = vmatprep.subr.mxu0 0.0
        %7584 = vmatpush1.xpose.msra.mxu0 0.0
        %7585 = vmatprep.subr.mxu0 0.0
        %7586 = vmatpush1.xpose.msra.mxu0 0.0
        %7587 = vmatprep.subr.mxu0 0.0
        %7588 = vmatpush1.xpose.msra.mxu0 0.0
        %7589 = vmatprep.subr.mxu0 0.0
        %7590 = vmatpush1.xpose.msra.mxu0 0.0
        %7591 = vmatprep.subr.mxu0 0.0
        %7592 = vmatpush1.xpose.msra.mxu0 0.0
        %7593 = vmatprep.subr.mxu0 0.0
        %7594 = vmatpush1.xpose.msra.mxu0 0.0
        %7595 = vmatprep.subr.mxu0 0.0
        %7596 = vmatpush1.xpose.msra.mxu0 0.0
        %7597 = vmatprep.subr.mxu0 0.0
        %7598 = vmatpush1.xpose.msra.mxu0 %v7565
        %7599 = vmatprep.subr.mxu0 0.0
        %7600 = vmatpush2.xpose.msra.mxu0 0.0
        %7601 = vmatprep.subr.mxu0 0.0
        %7602 = vmatpush2.xpose.msra.mxu0 0.0
        %7603 = vmatprep.subr.mxu0 0.0
        %7604 = vmatpush2.xpose.msra.mxu0 0.0
        %7605 = vmatprep.subr.mxu0 0.0
        %7606 = vmatpush2.xpose.msra.mxu0 0.0
        %7607 = vmatprep.subr.mxu0 0.0
        %7608 = vmatpush2.xpose.msra.mxu0 0.0
        %7609 = vmatprep.subr.mxu0 0.0
        %7610 = vmatpush2.xpose.msra.mxu0 0.0
        %7611 = vmatprep.subr.mxu0 0.0
        %7612 = vmatpush2.xpose.msra.mxu0 0.0
        %7613 = vmatprep.subr.mxu0 0.0
        %7614 = vmatpush2.xpose.msra.mxu0 0.0
        %7615 = vmatprep.subr.mxu0 0.0
        %7616 = vmatpush2.xpose.msra.mxu0 0.0
        %7617 = vmatprep.subr.mxu0 0.0
        %7618 = vmatpush2.xpose.msra.mxu0 0.0
        %7619 = vmatprep.subr.mxu0 0.0
        %7620 = vmatpush2.xpose.msra.mxu0 0.0
        %7621 = vmatprep.subr.mxu0 0.0
        %7622 = vmatpush2.xpose.msra.mxu0 0.0
        %7623 = vmatprep.subr.mxu0 0.0
        %7624 = vmatpush2.xpose.msra.mxu0 0.0
        %7625 = vmatprep.subr.mxu0 0.0
        %7626 = vmatpush2.xpose.msra.mxu0 0.0
        %7627 = vmatprep.subr.mxu0 0.0
        %7628 = vmatpush2.xpose.msra.mxu0 0.0
        %7629 = vmatprep.subr.mxu0 0.0
        %7630 = vmatpush2.xpose.msra.mxu0 0.0
        %7631 = vmatprep.mubr.f32.mxu0 0.0
        %7632 = vmatmul.mubr.f32.gmra.mxu0 %v7541
        %v7633 = vpop.f32.mrf.mxu0
        %v7634 = vadd.f32 0.0, %v7633
        %v7635 = vpop.f32.mrf.mxu0
        %7636 = vmatprep.mubr.f32.mxu0 0.0
        %7637 = vmatmul.mubr.f32.gmra.mxu0 %v7544
        %v7638 = vpop.f32.mrf.mxu0
        %v7639 = vadd.f32 0.0, %v7638
        %v7640 = vpop.f32.mrf.mxu0
        %7641 = vmatprep.mubr.f32.mxu0 0.0
        %7642 = vmatmul.mubr.f32.gmra.mxu0 %v7547
        %v7643 = vpop.f32.mrf.mxu0
        %v7644 = vadd.f32 0.0, %v7643
        %v7645 = vpop.f32.mrf.mxu0
        %7646 = vmatprep.mubr.f32.mxu0 0.0
        %7647 = vmatmul.mubr.f32.gmra.mxu0 %v7550
        %v7648 = vpop.f32.mrf.mxu0
        %v7649 = vadd.f32 0.0, %v7648
        %v7650 = vpop.f32.mrf.mxu0
        %7651 = vmatprep.mubr.f32.mxu0 0.0
        %7652 = vmatmul.mubr.f32.gmra.mxu0 %v7553
        %v7653 = vpop.f32.mrf.mxu0
        %v7654 = vadd.f32 0.0, %v7653
        %v7655 = vpop.f32.mrf.mxu0
        %7656 = vmatprep.mubr.f32.mxu0 0.0
        %7657 = vmatmul.mubr.f32.gmra.mxu0 %v7556
        %v7658 = vpop.f32.mrf.mxu0
        %v7659 = vadd.f32 0.0, %v7658
        %v7660 = vpop.f32.mrf.mxu0
        %7661 = vmatprep.mubr.f32.mxu0 0.0
        %7662 = vmatmul.mubr.f32.gmra.mxu0 %v7559
        %v7663 = vpop.f32.mrf.mxu0
        %v7664 = vadd.f32 0.0, %v7663
        %v7665 = vpop.f32.mrf.mxu0
        %7666 = vmatprep.mubr.f32.mxu0 0.0
        %7667 = vmatmul.mubr.f32.gmra.mxu0 %v7562
        %v7668 = vpop.f32.mrf.mxu0
        %v7669 = vadd.f32 0.0, %v7668
        %v7670 = vpop.f32.mrf.mxu0
        %7671 = vdwg.mxu0
        %v7672 = vrcp.pop %v7518
        %v7673 = vmul.f32 %v7634, %v7672
        %v7674 = vrcp.pop %v7521
        %v7675 = vmul.f32 %v7639, %v7674
        %v7676 = vrcp.pop %v7524
        %v7677 = vmul.f32 %v7644, %v7676
        %v7678 = vrcp.pop %v7527
        %v7679 = vmul.f32 %v7649, %v7678
        %v7680 = vrcp.pop %v7530
        %v7681 = vmul.f32 %v7654, %v7680
        %v7682 = vrcp.pop %v7533
        %v7683 = vmul.f32 %v7659, %v7682
        %v7684 = vrcp.pop %v7536
        %v7685 = vmul.f32 %v7664, %v7684
        %v7686 = vrcp.pop %v7539
        %v7687 = vmul.f32 %v7669, %v7686
        %v7688 = vld [vmem:[%s5 + $0x60] sm:$0xff]
        %v7690 = vsel %vm1001, %v7673, 0
        %v7693 = vsel %vm1001, %v7675, 0
        %v7696 = vsel %vm1001, %v7677, 0
        %v7699 = vsel %vm1001, %v7679, 0
        %v7702 = vsel %vm1001, %v7681, 0
        %v7705 = vsel %vm1001, %v7683, 0
        %v7708 = vsel %vm1001, %v7685, 0
        %v7711 = vsel %vm1001, %v7687, 0
        %7713 = vmatprep.subr.mxu0 0.0
        %7714 = vmatpush1.msra.mxu0 0.0
        %7715 = vmatprep.subr.mxu0 0.0
        %7716 = vmatpush1.msra.mxu0 0.0
        %7717 = vmatprep.subr.mxu0 0.0
        %7718 = vmatpush1.msra.mxu0 0.0
        %7719 = vmatprep.subr.mxu0 0.0
        %7720 = vmatpush1.msra.mxu0 0.0
        %7721 = vmatprep.subr.mxu0 0.0
        %7722 = vmatpush1.msra.mxu0 0.0
        %7723 = vmatprep.subr.mxu0 0.0
        %7724 = vmatpush1.msra.mxu0 0.0
        %7725 = vmatprep.subr.mxu0 0.0
        %7726 = vmatpush1.msra.mxu0 0.0
        %7727 = vmatprep.subr.mxu0 0.0
        %7728 = vmatpush1.msra.mxu0 0.0
        %7729 = vmatprep.subr.mxu0 0.0
        %7730 = vmatpush1.msra.mxu0 0.0
        %7731 = vmatprep.subr.mxu0 0.0
        %7732 = vmatpush1.msra.mxu0 0.0
        %7733 = vmatprep.subr.mxu0 0.0
        %7734 = vmatpush1.msra.mxu0 0.0
        %7735 = vmatprep.subr.mxu0 0.0
        %7736 = vmatpush1.msra.mxu0 0.0
        %7737 = vmatprep.subr.mxu0 0.0
        %7738 = vmatpush1.msra.mxu0 0.0
        %7739 = vmatprep.subr.mxu0 0.0
        %7740 = vmatpush1.msra.mxu0 0.0
        %7741 = vmatprep.subr.mxu0 0.0
        %7742 = vmatpush1.msra.mxu0 0.0
        %7743 = vmatprep.subr.mxu0 0.0
        %7744 = vmatpush1.msra.mxu0 %v7688
        %7745 = vmatprep.subr.mxu0 0.0
        %7746 = vmatpush2.msra.mxu0 0.0
        %7747 = vmatprep.subr.mxu0 0.0
        %7748 = vmatpush2.msra.mxu0 0.0
        %7749 = vmatprep.subr.mxu0 0.0
        %7750 = vmatpush2.msra.mxu0 0.0
        %7751 = vmatprep.subr.mxu0 0.0
        %7752 = vmatpush2.msra.mxu0 0.0
        %7753 = vmatprep.subr.mxu0 0.0
        %7754 = vmatpush2.msra.mxu0 0.0
        %7755 = vmatprep.subr.mxu0 0.0
        %7756 = vmatpush2.msra.mxu0 0.0
        %7757 = vmatprep.subr.mxu0 0.0
        %7758 = vmatpush2.msra.mxu0 0.0
        %7759 = vmatprep.subr.mxu0 0.0
        %7760 = vmatpush2.msra.mxu0 0.0
        %7761 = vmatprep.subr.mxu0 0.0
        %7762 = vmatpush2.msra.mxu0 0.0
        %7763 = vmatprep.subr.mxu0 0.0
        %7764 = vmatpush2.msra.mxu0 0.0
        %7765 = vmatprep.subr.mxu0 0.0
        %7766 = vmatpush2.msra.mxu0 0.0
        %7767 = vmatprep.subr.mxu0 0.0
        %7768 = vmatpush2.msra.mxu0 0.0
        %7769 = vmatprep.subr.mxu0 0.0
        %7770 = vmatpush2.msra.mxu0 0.0
        %7771 = vmatprep.subr.mxu0 0.0
        %7772 = vmatpush2.msra.mxu0 0.0
        %7773 = vmatprep.subr.mxu0 0.0
        %7774 = vmatpush2.msra.mxu0 0.0
        %7775 = vmatprep.subr.mxu0 0.0
        %7776 = vmatpush2.msra.mxu0 0.0
        %7777 = vmatprep.mubr.f32.mxu0 0.0
        %7778 = vmatmul.mubr.f32.gmra.mxu0 %v7690
        %v7779 = vpop.f32.mrf.mxu0
        %v7780 = vadd.f32 0.0, %v7779
        %v7781 = vpop.f32.mrf.mxu0
        %7782 = vmatprep.mubr.f32.mxu0 0.0
        %7783 = vmatmul.mubr.f32.gmra.mxu0 %v7693
        %v7784 = vpop.f32.mrf.mxu0
        %v7785 = vadd.f32 0.0, %v7784
        %v7786 = vpop.f32.mrf.mxu0
        %7787 = vmatprep.mubr.f32.mxu0 0.0
        %7788 = vmatmul.mubr.f32.gmra.mxu0 %v7696
        %v7789 = vpop.f32.mrf.mxu0
        %v7790 = vadd.f32 0.0, %v7789
        %v7791 = vpop.f32.mrf.mxu0
        %7792 = vmatprep.mubr.f32.mxu0 0.0
        %7793 = vmatmul.mubr.f32.gmra.mxu0 %v7699
        %v7794 = vpop.f32.mrf.mxu0
        %v7795 = vadd.f32 0.0, %v7794
        %v7796 = vpop.f32.mrf.mxu0
        %7797 = vmatprep.mubr.f32.mxu0 0.0
        %7798 = vmatmul.mubr.f32.gmra.mxu0 %v7702
        %v7799 = vpop.f32.mrf.mxu0
        %v7800 = vadd.f32 0.0, %v7799
        %v7801 = vpop.f32.mrf.mxu0
        %7802 = vmatprep.mubr.f32.mxu0 0.0
        %7803 = vmatmul.mubr.f32.gmra.mxu0 %v7705
        %v7804 = vpop.f32.mrf.mxu0
        %v7805 = vadd.f32 0.0, %v7804
        %v7806 = vpop.f32.mrf.mxu0
        %7807 = vmatprep.mubr.f32.mxu0 0.0
        %7808 = vmatmul.mubr.f32.gmra.mxu0 %v7708
        %v7809 = vpop.f32.mrf.mxu0
        %v7810 = vadd.f32 0.0, %v7809
        %v7811 = vpop.f32.mrf.mxu0
        %7812 = vmatprep.mubr.f32.mxu0 0.0
        %7813 = vmatmul.mubr.f32.gmra.mxu0 %v7711
        %v7814 = vpop.f32.mrf.mxu0
        %v7815 = vadd.f32 0.0, %v7814
        %v7816 = vpop.f32.mrf.mxu0
        %7817 = vdwg.mxu0
        %v7818 = vadd.f32 %v7290, %v7780
        %v7819 = vadd.f32 %v7291, %v7785
        %v7820 = vadd.f32 %v7292, %v7790
        %v7821 = vadd.f32 %v7293, %v7795
        %v7822 = vadd.f32 %v7294, %v7800
        %v7823 = vadd.f32 %v7295, %v7805
        %v7824 = vadd.f32 %v7296, %v7810
        %v7825 = vadd.f32 %v7297, %v7815
        %s7826 = scalar_lea.vmem %s7, 832
        %v7827 = vld [vmem:[%s7826] sm:$0xff]
        %v7828 = vld [vmem:[%s7826 + $0x8] sm:$0xff]
        %v7829 = vld [vmem:[%s7826 + $0x10] sm:$0xff]
        %v7830 = vld [vmem:[%s7826 + $0x18] sm:$0xff]
        %v7831 = vld [vmem:[%s7826 + $0x20] sm:$0xff]
        %v7832 = vld [vmem:[%s7826 + $0x28] sm:$0xff]
        %v7833 = vld [vmem:[%s7826 + $0x30] sm:$0xff]
        %v7834 = vld [vmem:[%s7826 + $0x38] sm:$0xff]
        %7835 = vxpose.xlu0.b32.start [1/16] %v807, 128
        %7836 = vxpose.xlu0.b32.cont [2/16] 0.0, 128
        %7837 = vxpose.xlu0.b32.cont [3/16] 0.0, 128
        %7838 = vxpose.xlu0.b32.cont [4/16] 0.0, 128
        %7839 = vxpose.xlu0.b32.cont [5/16] 0.0, 128
        %7840 = vxpose.xlu0.b32.cont [6/16] 0.0, 128
        %7841 = vxpose.xlu0.b32.cont [7/16] 0.0, 128
        %7842 = vxpose.xlu0.b32.cont [8/16] 0.0, 128
        %7843 = vxpose.xlu0.b32.cont [9/16] 0.0, 128
        %7844 = vxpose.xlu0.b32.cont [10/16] 0.0, 128
        %7845 = vxpose.xlu0.b32.cont [11/16] 0.0, 128
        %7846 = vxpose.xlu0.b32.cont [12/16] 0.0, 128
        %7847 = vxpose.xlu0.b32.cont [13/16] 0.0, 128
        %7848 = vxpose.xlu0.b32.cont [14/16] 0.0, 128
        %7849 = vxpose.xlu0.b32.cont [15/16] 0.0, 128
        %7850 = vxpose.xlu0.b32.end [16/16] 0.0, 128
        %v7851 = vpop.trf.xlu0
        %v7852 = vpop.trf.xlu0
        %v7853 = vpop.trf.xlu0
        %v7854 = vpop.trf.xlu0
        %v7855 = vpop.trf.xlu0
        %v7856 = vpop.trf.xlu0
        %v7857 = vpop.trf.xlu0
        %v7858 = vpop.trf.xlu0
        %v7859 = vpop.trf.xlu0
        %v7860 = vpop.trf.xlu0
        %v7861 = vpop.trf.xlu0
        %v7862 = vpop.trf.xlu0
        %v7863 = vpop.trf.xlu0
        %v7864 = vpop.trf.xlu0
        %v7865 = vpop.trf.xlu0
        %v7866 = vpop.trf.xlu0
        %v7868 = vsel %vm1001, %v7851, 0
        %v7871 = vsel %vm1001, %v7852, 0
        %v7874 = vsel %vm1001, %v7853, 0
        %v7877 = vsel %vm1001, %v7854, 0
        %v7880 = vsel %vm1001, %v7855, 0
        %v7883 = vsel %vm1001, %v7856, 0
        %v7886 = vsel %vm1001, %v7857, 0
        %v7889 = vsel %vm1001, %v7858, 0
        %7891 = vmatprep.subr.mxu0 0.0
        %7892 = vmatpush1.msra.mxu0 0.0
        %7893 = vmatprep.subr.mxu0 0.0
        %7894 = vmatpush1.msra.mxu0 0.0
        %7895 = vmatprep.subr.mxu0 0.0
        %7896 = vmatpush1.msra.mxu0 0.0
        %7897 = vmatprep.subr.mxu0 0.0
        %7898 = vmatpush1.msra.mxu0 0.0
        %7899 = vmatprep.subr.mxu0 0.0
        %7900 = vmatpush1.msra.mxu0 0.0
        %7901 = vmatprep.subr.mxu0 0.0
        %7902 = vmatpush1.msra.mxu0 0.0
        %7903 = vmatprep.subr.mxu0 0.0
        %7904 = vmatpush1.msra.mxu0 0.0
        %7905 = vmatprep.subr.mxu0 0.0
        %7906 = vmatpush1.msra.mxu0 0.0
        %7907 = vmatprep.subr.mxu0 0.0
        %7908 = vmatpush1.msra.mxu0 0.0
        %7909 = vmatprep.subr.mxu0 0.0
        %7910 = vmatpush1.msra.mxu0 0.0
        %7911 = vmatprep.subr.mxu0 0.0
        %7912 = vmatpush1.msra.mxu0 0.0
        %7913 = vmatprep.subr.mxu0 0.0
        %7914 = vmatpush1.msra.mxu0 0.0
        %7915 = vmatprep.subr.mxu0 0.0
        %7916 = vmatpush1.msra.mxu0 0.0
        %7917 = vmatprep.subr.mxu0 0.0
        %7918 = vmatpush1.msra.mxu0 0.0
        %7919 = vmatprep.subr.mxu0 0.0
        %7920 = vmatpush1.msra.mxu0 0.0
        %7921 = vmatprep.subr.mxu0 0.0
        %7922 = vmatpush1.msra.mxu0 %v871
        %7923 = vmatprep.subr.mxu0 0.0
        %7924 = vmatpush2.msra.mxu0 0.0
        %7925 = vmatprep.subr.mxu0 0.0
        %7926 = vmatpush2.msra.mxu0 0.0
        %7927 = vmatprep.subr.mxu0 0.0
        %7928 = vmatpush2.msra.mxu0 0.0
        %7929 = vmatprep.subr.mxu0 0.0
        %7930 = vmatpush2.msra.mxu0 0.0
        %7931 = vmatprep.subr.mxu0 0.0
        %7932 = vmatpush2.msra.mxu0 0.0
        %7933 = vmatprep.subr.mxu0 0.0
        %7934 = vmatpush2.msra.mxu0 0.0
        %7935 = vmatprep.subr.mxu0 0.0
        %7936 = vmatpush2.msra.mxu0 0.0
        %7937 = vmatprep.subr.mxu0 0.0
        %7938 = vmatpush2.msra.mxu0 0.0
        %7939 = vmatprep.subr.mxu0 0.0
        %7940 = vmatpush2.msra.mxu0 0.0
        %7941 = vmatprep.subr.mxu0 0.0
        %7942 = vmatpush2.msra.mxu0 0.0
        %7943 = vmatprep.subr.mxu0 0.0
        %7944 = vmatpush2.msra.mxu0 0.0
        %7945 = vmatprep.subr.mxu0 0.0
        %7946 = vmatpush2.msra.mxu0 0.0
        %7947 = vmatprep.subr.mxu0 0.0
        %7948 = vmatpush2.msra.mxu0 0.0
        %7949 = vmatprep.subr.mxu0 0.0
        %7950 = vmatpush2.msra.mxu0 0.0
        %7951 = vmatprep.subr.mxu0 0.0
        %7952 = vmatpush2.msra.mxu0 0.0
        %7953 = vmatprep.subr.mxu0 0.0
        %7954 = vmatpush2.msra.mxu0 0.0
        %7955 = vmatprep.mubr.f32.mxu0 0.0
        %7956 = vmatmul.mubr.f32.gmra.mxu0 %v7868
        %v7957 = vpop.f32.mrf.mxu0
        %v7958 = vadd.f32 %v7827, %v7957
        %v7959 = vpop.f32.mrf.mxu0
        %7960 = vmatprep.mubr.f32.mxu0 0.0
        %7961 = vmatmul.mubr.f32.gmra.mxu0 %v7871
        %v7962 = vpop.f32.mrf.mxu0
        %v7963 = vadd.f32 %v7828, %v7962
        %v7964 = vpop.f32.mrf.mxu0
        %7965 = vmatprep.mubr.f32.mxu0 0.0
        %7966 = vmatmul.mubr.f32.gmra.mxu0 %v7874
        %v7967 = vpop.f32.mrf.mxu0
        %v7968 = vadd.f32 %v7829, %v7967
        %v7969 = vpop.f32.mrf.mxu0
        %7970 = vmatprep.mubr.f32.mxu0 0.0
        %7971 = vmatmul.mubr.f32.gmra.mxu0 %v7877
        %v7972 = vpop.f32.mrf.mxu0
        %v7973 = vadd.f32 %v7830, %v7972
        %v7974 = vpop.f32.mrf.mxu0
        %7975 = vmatprep.mubr.f32.mxu0 0.0
        %7976 = vmatmul.mubr.f32.gmra.mxu0 %v7880
        %v7977 = vpop.f32.mrf.mxu0
        %v7978 = vadd.f32 %v7831, %v7977
        %v7979 = vpop.f32.mrf.mxu0
        %7980 = vmatprep.mubr.f32.mxu0 0.0
        %7981 = vmatmul.mubr.f32.gmra.mxu0 %v7883
        %v7982 = vpop.f32.mrf.mxu0
        %v7983 = vadd.f32 %v7832, %v7982
        %v7984 = vpop.f32.mrf.mxu0
        %7985 = vmatprep.mubr.f32.mxu0 0.0
        %7986 = vmatmul.mubr.f32.gmra.mxu0 %v7886
        %v7987 = vpop.f32.mrf.mxu0
        %v7988 = vadd.f32 %v7833, %v7987
        %v7989 = vpop.f32.mrf.mxu0
        %7990 = vmatprep.mubr.f32.mxu0 0.0
        %7991 = vmatmul.mubr.f32.gmra.mxu0 %v7889
        %v7992 = vpop.f32.mrf.mxu0
        %v7993 = vadd.f32 %v7834, %v7992
        %v7994 = vpop.f32.mrf.mxu0
        %7995 = vdwg.mxu0
        %v7996 = vsel %vm1131, %v7958, -inf
        %7997 = vmax.xlane.f32.xlu0 %v7996
        %v7998 = vpop.xlane.xlu0 %7997
        %v7999 = vsel %vm1131, %v7963, -inf
        %8000 = vmax.xlane.f32.xlu0 %v7999
        %v8001 = vpop.xlane.xlu0 %8000
        %v8002 = vsel %vm1131, %v7968, -inf
        %8003 = vmax.xlane.f32.xlu0 %v8002
        %v8004 = vpop.xlane.xlu0 %8003
        %v8005 = vsel %vm1131, %v7973, -inf
        %8006 = vmax.xlane.f32.xlu0 %v8005
        %v8007 = vpop.xlane.xlu0 %8006
        %v8008 = vsel %vm1131, %v7978, -inf
        %8009 = vmax.xlane.f32.xlu0 %v8008
        %v8010 = vpop.xlane.xlu0 %8009
        %v8011 = vsel %vm1131, %v7983, -inf
        %8012 = vmax.xlane.f32.xlu0 %v8011
        %v8013 = vpop.xlane.xlu0 %8012
        %v8014 = vsel %vm1131, %v7988, -inf
        %8015 = vmax.xlane.f32.xlu0 %v8014
        %v8016 = vpop.xlane.xlu0 %8015
        %v8017 = vsel %vm1131, %v7993, -inf
        %8018 = vmax.xlane.f32.xlu0 %v8017
        %v8019 = vpop.xlane.xlu0 %8018
        %v8020 = vsub.f32 %v7958, %v7998
        %v8021 = vsub.f32 %v7963, %v8001
        %v8022 = vsub.f32 %v7968, %v8004
        %v8023 = vsub.f32 %v7973, %v8007
        %v8024 = vsub.f32 %v7978, %v8010
        %v8025 = vsub.f32 %v7983, %v8013
        %v8026 = vsub.f32 %v7988, %v8016
        %v8027 = vsub.f32 %v7993, %v8019
        %v8028 = vmul.f32 %v8020, 1.442695
        %v8029 = vpow.pop %v8028
        %v8030 = vmul.f32 %v8021, 1.442695
        %v8031 = vpow.pop %v8030
        %v8032 = vmul.f32 %v8022, 1.442695
        %v8033 = vpow.pop %v8032
        %v8034 = vmul.f32 %v8023, 1.442695
        %v8035 = vpow.pop %v8034
        %v8036 = vmul.f32 %v8024, 1.442695
        %v8037 = vpow.pop %v8036
        %v8038 = vmul.f32 %v8025, 1.442695
        %v8039 = vpow.pop %v8038
        %v8040 = vmul.f32 %v8026, 1.442695
        %v8041 = vpow.pop %v8040
        %v8042 = vmul.f32 %v8027, 1.442695
        %v8043 = vpow.pop %v8042
        %v8044 = vsel %vm1131, %v8029, 0.0
        %8045 = vadd.xlane.f32.xlu0 %v8044
        %v8046 = vpop.xlane.xlu0 %8045
        %v8047 = vsel %vm1131, %v8031, 0.0
        %8048 = vadd.xlane.f32.xlu0 %v8047
        %v8049 = vpop.xlane.xlu0 %8048
        %v8050 = vsel %vm1131, %v8033, 0.0
        %8051 = vadd.xlane.f32.xlu0 %v8050
        %v8052 = vpop.xlane.xlu0 %8051
        %v8053 = vsel %vm1131, %v8035, 0.0
        %8054 = vadd.xlane.f32.xlu0 %v8053
        %v8055 = vpop.xlane.xlu0 %8054
        %v8056 = vsel %vm1131, %v8037, 0.0
        %8057 = vadd.xlane.f32.xlu0 %v8056
        %v8058 = vpop.xlane.xlu0 %8057
        %v8059 = vsel %vm1131, %v8039, 0.0
        %8060 = vadd.xlane.f32.xlu0 %v8059
        %v8061 = vpop.xlane.xlu0 %8060
        %v8062 = vsel %vm1131, %v8041, 0.0
        %8063 = vadd.xlane.f32.xlu0 %v8062
        %v8064 = vpop.xlane.xlu0 %8063
        %v8065 = vsel %vm1131, %v8043, 0.0
        %8066 = vadd.xlane.f32.xlu0 %v8065
        %v8067 = vpop.xlane.xlu0 %8066
        %v8069 = vsel %vm1131, %v8029, 0
        %v8072 = vsel %vm1131, %v8031, 0
        %v8075 = vsel %vm1131, %v8033, 0
        %v8078 = vsel %vm1131, %v8035, 0
        %v8081 = vsel %vm1131, %v8037, 0
        %v8084 = vsel %vm1131, %v8039, 0
        %v8087 = vsel %vm1131, %v8041, 0
        %v8090 = vsel %vm1131, %v8043, 0
        %v8093 = vsel %vm1131, %v935, 0
        %8095 = vmatprep.subr.mxu0 0.0
        %8096 = vmatpush1.xpose.msra.mxu0 0.0
        %8097 = vmatprep.subr.mxu0 0.0
        %8098 = vmatpush1.xpose.msra.mxu0 0.0
        %8099 = vmatprep.subr.mxu0 0.0
        %8100 = vmatpush1.xpose.msra.mxu0 0.0
        %8101 = vmatprep.subr.mxu0 0.0
        %8102 = vmatpush1.xpose.msra.mxu0 0.0
        %8103 = vmatprep.subr.mxu0 0.0
        %8104 = vmatpush1.xpose.msra.mxu0 0.0
        %8105 = vmatprep.subr.mxu0 0.0
        %8106 = vmatpush1.xpose.msra.mxu0 0.0
        %8107 = vmatprep.subr.mxu0 0.0
        %8108 = vmatpush1.xpose.msra.mxu0 0.0
        %8109 = vmatprep.subr.mxu0 0.0
        %8110 = vmatpush1.xpose.msra.mxu0 0.0
        %8111 = vmatprep.subr.mxu0 0.0
        %8112 = vmatpush1.xpose.msra.mxu0 0.0
        %8113 = vmatprep.subr.mxu0 0.0
        %8114 = vmatpush1.xpose.msra.mxu0 0.0
        %8115 = vmatprep.subr.mxu0 0.0
        %8116 = vmatpush1.xpose.msra.mxu0 0.0
        %8117 = vmatprep.subr.mxu0 0.0
        %8118 = vmatpush1.xpose.msra.mxu0 0.0
        %8119 = vmatprep.subr.mxu0 0.0
        %8120 = vmatpush1.xpose.msra.mxu0 0.0
        %8121 = vmatprep.subr.mxu0 0.0
        %8122 = vmatpush1.xpose.msra.mxu0 0.0
        %8123 = vmatprep.subr.mxu0 0.0
        %8124 = vmatpush1.xpose.msra.mxu0 0.0
        %8125 = vmatprep.subr.mxu0 0.0
        %8126 = vmatpush1.xpose.msra.mxu0 %v8093
        %8127 = vmatprep.subr.mxu0 0.0
        %8128 = vmatpush2.xpose.msra.mxu0 0.0
        %8129 = vmatprep.subr.mxu0 0.0
        %8130 = vmatpush2.xpose.msra.mxu0 0.0
        %8131 = vmatprep.subr.mxu0 0.0
        %8132 = vmatpush2.xpose.msra.mxu0 0.0
        %8133 = vmatprep.subr.mxu0 0.0
        %8134 = vmatpush2.xpose.msra.mxu0 0.0
        %8135 = vmatprep.subr.mxu0 0.0
        %8136 = vmatpush2.xpose.msra.mxu0 0.0
        %8137 = vmatprep.subr.mxu0 0.0
        %8138 = vmatpush2.xpose.msra.mxu0 0.0
        %8139 = vmatprep.subr.mxu0 0.0
        %8140 = vmatpush2.xpose.msra.mxu0 0.0
        %8141 = vmatprep.subr.mxu0 0.0
        %8142 = vmatpush2.xpose.msra.mxu0 0.0
        %8143 = vmatprep.subr.mxu0 0.0
        %8144 = vmatpush2.xpose.msra.mxu0 0.0
        %8145 = vmatprep.subr.mxu0 0.0
        %8146 = vmatpush2.xpose.msra.mxu0 0.0
        %8147 = vmatprep.subr.mxu0 0.0
        %8148 = vmatpush2.xpose.msra.mxu0 0.0
        %8149 = vmatprep.subr.mxu0 0.0
        %8150 = vmatpush2.xpose.msra.mxu0 0.0
        %8151 = vmatprep.subr.mxu0 0.0
        %8152 = vmatpush2.xpose.msra.mxu0 0.0
        %8153 = vmatprep.subr.mxu0 0.0
        %8154 = vmatpush2.xpose.msra.mxu0 0.0
        %8155 = vmatprep.subr.mxu0 0.0
        %8156 = vmatpush2.xpose.msra.mxu0 0.0
        %8157 = vmatprep.subr.mxu0 0.0
        %8158 = vmatpush2.xpose.msra.mxu0 0.0
        %8159 = vmatprep.mubr.f32.mxu0 0.0
        %8160 = vmatmul.mubr.f32.gmra.mxu0 %v8069
        %v8161 = vpop.f32.mrf.mxu0
        %v8162 = vadd.f32 0.0, %v8161
        %v8163 = vpop.f32.mrf.mxu0
        %8164 = vmatprep.mubr.f32.mxu0 0.0
        %8165 = vmatmul.mubr.f32.gmra.mxu0 %v8072
        %v8166 = vpop.f32.mrf.mxu0
        %v8167 = vadd.f32 0.0, %v8166
        %v8168 = vpop.f32.mrf.mxu0
        %8169 = vmatprep.mubr.f32.mxu0 0.0
        %8170 = vmatmul.mubr.f32.gmra.mxu0 %v8075
        %v8171 = vpop.f32.mrf.mxu0
        %v8172 = vadd.f32 0.0, %v8171
        %v8173 = vpop.f32.mrf.mxu0
        %8174 = vmatprep.mubr.f32.mxu0 0.0
        %8175 = vmatmul.mubr.f32.gmra.mxu0 %v8078
        %v8176 = vpop.f32.mrf.mxu0
        %v8177 = vadd.f32 0.0, %v8176
        %v8178 = vpop.f32.mrf.mxu0
        %8179 = vmatprep.mubr.f32.mxu0 0.0
        %8180 = vmatmul.mubr.f32.gmra.mxu0 %v8081
        %v8181 = vpop.f32.mrf.mxu0
        %v8182 = vadd.f32 0.0, %v8181
        %v8183 = vpop.f32.mrf.mxu0
        %8184 = vmatprep.mubr.f32.mxu0 0.0
        %8185 = vmatmul.mubr.f32.gmra.mxu0 %v8084
        %v8186 = vpop.f32.mrf.mxu0
        %v8187 = vadd.f32 0.0, %v8186
        %v8188 = vpop.f32.mrf.mxu0
        %8189 = vmatprep.mubr.f32.mxu0 0.0
        %8190 = vmatmul.mubr.f32.gmra.mxu0 %v8087
        %v8191 = vpop.f32.mrf.mxu0
        %v8192 = vadd.f32 0.0, %v8191
        %v8193 = vpop.f32.mrf.mxu0
        %8194 = vmatprep.mubr.f32.mxu0 0.0
        %8195 = vmatmul.mubr.f32.gmra.mxu0 %v8090
        %v8196 = vpop.f32.mrf.mxu0
        %v8197 = vadd.f32 0.0, %v8196
        %v8198 = vpop.f32.mrf.mxu0
        %8199 = vdwg.mxu0
        %v8200 = vrcp.pop %v8046
        %v8201 = vmul.f32 %v8162, %v8200
        %v8202 = vrcp.pop %v8049
        %v8203 = vmul.f32 %v8167, %v8202
        %v8204 = vrcp.pop %v8052
        %v8205 = vmul.f32 %v8172, %v8204
        %v8206 = vrcp.pop %v8055
        %v8207 = vmul.f32 %v8177, %v8206
        %v8208 = vrcp.pop %v8058
        %v8209 = vmul.f32 %v8182, %v8208
        %v8210 = vrcp.pop %v8061
        %v8211 = vmul.f32 %v8187, %v8210
        %v8212 = vrcp.pop %v8064
        %v8213 = vmul.f32 %v8192, %v8212
        %v8214 = vrcp.pop %v8067
        %v8215 = vmul.f32 %v8197, %v8214
        %v8216 = vld [vmem:[%s5 + $0x68] sm:$0xff]
        %v8218 = vsel %vm1001, %v8201, 0
        %v8221 = vsel %vm1001, %v8203, 0
        %v8224 = vsel %vm1001, %v8205, 0
        %v8227 = vsel %vm1001, %v8207, 0
        %v8230 = vsel %vm1001, %v8209, 0
        %v8233 = vsel %vm1001, %v8211, 0
        %v8236 = vsel %vm1001, %v8213, 0
        %v8239 = vsel %vm1001, %v8215, 0
        %8241 = vmatprep.subr.mxu0 0.0
        %8242 = vmatpush1.msra.mxu0 0.0
        %8243 = vmatprep.subr.mxu0 0.0
        %8244 = vmatpush1.msra.mxu0 0.0
        %8245 = vmatprep.subr.mxu0 0.0
        %8246 = vmatpush1.msra.mxu0 0.0
        %8247 = vmatprep.subr.mxu0 0.0
        %8248 = vmatpush1.msra.mxu0 0.0
        %8249 = vmatprep.subr.mxu0 0.0
        %8250 = vmatpush1.msra.mxu0 0.0
        %8251 = vmatprep.subr.mxu0 0.0
        %8252 = vmatpush1.msra.mxu0 0.0
        %8253 = vmatprep.subr.mxu0 0.0
        %8254 = vmatpush1.msra.mxu0 0.0
        %8255 = vmatprep.subr.mxu0 0.0
        %8256 = vmatpush1.msra.mxu0 0.0
        %8257 = vmatprep.subr.mxu0 0.0
        %8258 = vmatpush1.msra.mxu0 0.0
        %8259 = vmatprep.subr.mxu0 0.0
        %8260 = vmatpush1.msra.mxu0 0.0
        %8261 = vmatprep.subr.mxu0 0.0
        %8262 = vmatpush1.msra.mxu0 0.0
        %8263 = vmatprep.subr.mxu0 0.0
        %8264 = vmatpush1.msra.mxu0 0.0
        %8265 = vmatprep.subr.mxu0 0.0
        %8266 = vmatpush1.msra.mxu0 0.0
        %8267 = vmatprep.subr.mxu0 0.0
        %8268 = vmatpush1.msra.mxu0 0.0
        %8269 = vmatprep.subr.mxu0 0.0
        %8270 = vmatpush1.msra.mxu0 0.0
        %8271 = vmatprep.subr.mxu0 0.0
        %8272 = vmatpush1.msra.mxu0 %v8216
        %8273 = vmatprep.subr.mxu0 0.0
        %8274 = vmatpush2.msra.mxu0 0.0
        %8275 = vmatprep.subr.mxu0 0.0
        %8276 = vmatpush2.msra.mxu0 0.0
        %8277 = vmatprep.subr.mxu0 0.0
        %8278 = vmatpush2.msra.mxu0 0.0
        %8279 = vmatprep.subr.mxu0 0.0
        %8280 = vmatpush2.msra.mxu0 0.0
        %8281 = vmatprep.subr.mxu0 0.0
        %8282 = vmatpush2.msra.mxu0 0.0
        %8283 = vmatprep.subr.mxu0 0.0
        %8284 = vmatpush2.msra.mxu0 0.0
        %8285 = vmatprep.subr.mxu0 0.0
        %8286 = vmatpush2.msra.mxu0 0.0
        %8287 = vmatprep.subr.mxu0 0.0
        %8288 = vmatpush2.msra.mxu0 0.0
        %8289 = vmatprep.subr.mxu0 0.0
        %8290 = vmatpush2.msra.mxu0 0.0
        %8291 = vmatprep.subr.mxu0 0.0
        %8292 = vmatpush2.msra.mxu0 0.0
        %8293 = vmatprep.subr.mxu0 0.0
        %8294 = vmatpush2.msra.mxu0 0.0
        %8295 = vmatprep.subr.mxu0 0.0
        %8296 = vmatpush2.msra.mxu0 0.0
        %8297 = vmatprep.subr.mxu0 0.0
        %8298 = vmatpush2.msra.mxu0 0.0
        %8299 = vmatprep.subr.mxu0 0.0
        %8300 = vmatpush2.msra.mxu0 0.0
        %8301 = vmatprep.subr.mxu0 0.0
        %8302 = vmatpush2.msra.mxu0 0.0
        %8303 = vmatprep.subr.mxu0 0.0
        %8304 = vmatpush2.msra.mxu0 0.0
        %8305 = vmatprep.mubr.f32.mxu0 0.0
        %8306 = vmatmul.mubr.f32.gmra.mxu0 %v8218
        %v8307 = vpop.f32.mrf.mxu0
        %v8308 = vadd.f32 0.0, %v8307
        %v8309 = vpop.f32.mrf.mxu0
        %8310 = vmatprep.mubr.f32.mxu0 0.0
        %8311 = vmatmul.mubr.f32.gmra.mxu0 %v8221
        %v8312 = vpop.f32.mrf.mxu0
        %v8313 = vadd.f32 0.0, %v8312
        %v8314 = vpop.f32.mrf.mxu0
        %8315 = vmatprep.mubr.f32.mxu0 0.0
        %8316 = vmatmul.mubr.f32.gmra.mxu0 %v8224
        %v8317 = vpop.f32.mrf.mxu0
        %v8318 = vadd.f32 0.0, %v8317
        %v8319 = vpop.f32.mrf.mxu0
        %8320 = vmatprep.mubr.f32.mxu0 0.0
        %8321 = vmatmul.mubr.f32.gmra.mxu0 %v8227
        %v8322 = vpop.f32.mrf.mxu0
        %v8323 = vadd.f32 0.0, %v8322
        %v8324 = vpop.f32.mrf.mxu0
        %8325 = vmatprep.mubr.f32.mxu0 0.0
        %8326 = vmatmul.mubr.f32.gmra.mxu0 %v8230
        %v8327 = vpop.f32.mrf.mxu0
        %v8328 = vadd.f32 0.0, %v8327
        %v8329 = vpop.f32.mrf.mxu0
        %8330 = vmatprep.mubr.f32.mxu0 0.0
        %8331 = vmatmul.mubr.f32.gmra.mxu0 %v8233
        %v8332 = vpop.f32.mrf.mxu0
        %v8333 = vadd.f32 0.0, %v8332
        %v8334 = vpop.f32.mrf.mxu0
        %8335 = vmatprep.mubr.f32.mxu0 0.0
        %8336 = vmatmul.mubr.f32.gmra.mxu0 %v8236
        %v8337 = vpop.f32.mrf.mxu0
        %v8338 = vadd.f32 0.0, %v8337
        %v8339 = vpop.f32.mrf.mxu0
        %8340 = vmatprep.mubr.f32.mxu0 0.0
        %8341 = vmatmul.mubr.f32.gmra.mxu0 %v8239
        %v8342 = vpop.f32.mrf.mxu0
        %v8343 = vadd.f32 0.0, %v8342
        %v8344 = vpop.f32.mrf.mxu0
        %8345 = vdwg.mxu0
        %v8346 = vadd.f32 %v7818, %v8308
        %v8347 = vadd.f32 %v7819, %v8313
        %v8348 = vadd.f32 %v7820, %v8318
        %v8349 = vadd.f32 %v7821, %v8323
        %v8350 = vadd.f32 %v7822, %v8328
        %v8351 = vadd.f32 %v7823, %v8333
        %v8352 = vadd.f32 %v7824, %v8338
        %v8353 = vadd.f32 %v7825, %v8343
        %s8354 = scalar_lea.vmem %s7, 896
        %v8355 = vld [vmem:[%s8354] sm:$0xff]
        %v8356 = vld [vmem:[%s8354 + $0x8] sm:$0xff]
        %v8357 = vld [vmem:[%s8354 + $0x10] sm:$0xff]
        %v8358 = vld [vmem:[%s8354 + $0x18] sm:$0xff]
        %v8359 = vld [vmem:[%s8354 + $0x20] sm:$0xff]
        %v8360 = vld [vmem:[%s8354 + $0x28] sm:$0xff]
        %v8361 = vld [vmem:[%s8354 + $0x30] sm:$0xff]
        %v8362 = vld [vmem:[%s8354 + $0x38] sm:$0xff]
        %8363 = vxpose.xlu0.b32.start [1/16] %v812, 128
        %8364 = vxpose.xlu0.b32.cont [2/16] 0.0, 128
        %8365 = vxpose.xlu0.b32.cont [3/16] 0.0, 128
        %8366 = vxpose.xlu0.b32.cont [4/16] 0.0, 128
        %8367 = vxpose.xlu0.b32.cont [5/16] 0.0, 128
        %8368 = vxpose.xlu0.b32.cont [6/16] 0.0, 128
        %8369 = vxpose.xlu0.b32.cont [7/16] 0.0, 128
        %8370 = vxpose.xlu0.b32.cont [8/16] 0.0, 128
        %8371 = vxpose.xlu0.b32.cont [9/16] 0.0, 128
        %8372 = vxpose.xlu0.b32.cont [10/16] 0.0, 128
        %8373 = vxpose.xlu0.b32.cont [11/16] 0.0, 128
        %8374 = vxpose.xlu0.b32.cont [12/16] 0.0, 128
        %8375 = vxpose.xlu0.b32.cont [13/16] 0.0, 128
        %8376 = vxpose.xlu0.b32.cont [14/16] 0.0, 128
        %8377 = vxpose.xlu0.b32.cont [15/16] 0.0, 128
        %8378 = vxpose.xlu0.b32.end [16/16] 0.0, 128
        %v8379 = vpop.trf.xlu0
        %v8380 = vpop.trf.xlu0
        %v8381 = vpop.trf.xlu0
        %v8382 = vpop.trf.xlu0
        %v8383 = vpop.trf.xlu0
        %v8384 = vpop.trf.xlu0
        %v8385 = vpop.trf.xlu0
        %v8386 = vpop.trf.xlu0
        %v8387 = vpop.trf.xlu0
        %v8388 = vpop.trf.xlu0
        %v8389 = vpop.trf.xlu0
        %v8390 = vpop.trf.xlu0
        %v8391 = vpop.trf.xlu0
        %v8392 = vpop.trf.xlu0
        %v8393 = vpop.trf.xlu0
        %v8394 = vpop.trf.xlu0
        %v8396 = vsel %vm1001, %v8379, 0
        %v8399 = vsel %vm1001, %v8380, 0
        %v8402 = vsel %vm1001, %v8381, 0
        %v8405 = vsel %vm1001, %v8382, 0
        %v8408 = vsel %vm1001, %v8383, 0
        %v8411 = vsel %vm1001, %v8384, 0
        %v8414 = vsel %vm1001, %v8385, 0
        %v8417 = vsel %vm1001, %v8386, 0
        %8419 = vmatprep.subr.mxu0 0.0
        %8420 = vmatpush1.msra.mxu0 0.0
        %8421 = vmatprep.subr.mxu0 0.0
        %8422 = vmatpush1.msra.mxu0 0.0
        %8423 = vmatprep.subr.mxu0 0.0
        %8424 = vmatpush1.msra.mxu0 0.0
        %8425 = vmatprep.subr.mxu0 0.0
        %8426 = vmatpush1.msra.mxu0 0.0
        %8427 = vmatprep.subr.mxu0 0.0
        %8428 = vmatpush1.msra.mxu0 0.0
        %8429 = vmatprep.subr.mxu0 0.0
        %8430 = vmatpush1.msra.mxu0 0.0
        %8431 = vmatprep.subr.mxu0 0.0
        %8432 = vmatpush1.msra.mxu0 0.0
        %8433 = vmatprep.subr.mxu0 0.0
        %8434 = vmatpush1.msra.mxu0 0.0
        %8435 = vmatprep.subr.mxu0 0.0
        %8436 = vmatpush1.msra.mxu0 0.0
        %8437 = vmatprep.subr.mxu0 0.0
        %8438 = vmatpush1.msra.mxu0 0.0
        %8439 = vmatprep.subr.mxu0 0.0
        %8440 = vmatpush1.msra.mxu0 0.0
        %8441 = vmatprep.subr.mxu0 0.0
        %8442 = vmatpush1.msra.mxu0 0.0
        %8443 = vmatprep.subr.mxu0 0.0
        %8444 = vmatpush1.msra.mxu0 0.0
        %8445 = vmatprep.subr.mxu0 0.0
        %8446 = vmatpush1.msra.mxu0 0.0
        %8447 = vmatprep.subr.mxu0 0.0
        %8448 = vmatpush1.msra.mxu0 0.0
        %8449 = vmatprep.subr.mxu0 0.0
        %8450 = vmatpush1.msra.mxu0 %v876
        %8451 = vmatprep.subr.mxu0 0.0
        %8452 = vmatpush2.msra.mxu0 0.0
        %8453 = vmatprep.subr.mxu0 0.0
        %8454 = vmatpush2.msra.mxu0 0.0
        %8455 = vmatprep.subr.mxu0 0.0
        %8456 = vmatpush2.msra.mxu0 0.0
        %8457 = vmatprep.subr.mxu0 0.0
        %8458 = vmatpush2.msra.mxu0 0.0
        %8459 = vmatprep.subr.mxu0 0.0
        %8460 = vmatpush2.msra.mxu0 0.0
        %8461 = vmatprep.subr.mxu0 0.0
        %8462 = vmatpush2.msra.mxu0 0.0
        %8463 = vmatprep.subr.mxu0 0.0
        %8464 = vmatpush2.msra.mxu0 0.0
        %8465 = vmatprep.subr.mxu0 0.0
        %8466 = vmatpush2.msra.mxu0 0.0
        %8467 = vmatprep.subr.mxu0 0.0
        %8468 = vmatpush2.msra.mxu0 0.0
        %8469 = vmatprep.subr.mxu0 0.0
        %8470 = vmatpush2.msra.mxu0 0.0
        %8471 = vmatprep.subr.mxu0 0.0
        %8472 = vmatpush2.msra.mxu0 0.0
        %8473 = vmatprep.subr.mxu0 0.0
        %8474 = vmatpush2.msra.mxu0 0.0
        %8475 = vmatprep.subr.mxu0 0.0
        %8476 = vmatpush2.msra.mxu0 0.0
        %8477 = vmatprep.subr.mxu0 0.0
        %8478 = vmatpush2.msra.mxu0 0.0
        %8479 = vmatprep.subr.mxu0 0.0
        %8480 = vmatpush2.msra.mxu0 0.0
        %8481 = vmatprep.subr.mxu0 0.0
        %8482 = vmatpush2.msra.mxu0 0.0
        %8483 = vmatprep.mubr.f32.mxu0 0.0
        %8484 = vmatmul.mubr.f32.gmra.mxu0 %v8396
        %v8485 = vpop.f32.mrf.mxu0
        %v8486 = vadd.f32 %v8355, %v8485
        %v8487 = vpop.f32.mrf.mxu0
        %8488 = vmatprep.mubr.f32.mxu0 0.0
        %8489 = vmatmul.mubr.f32.gmra.mxu0 %v8399
        %v8490 = vpop.f32.mrf.mxu0
        %v8491 = vadd.f32 %v8356, %v8490
        %v8492 = vpop.f32.mrf.mxu0
        %8493 = vmatprep.mubr.f32.mxu0 0.0
        %8494 = vmatmul.mubr.f32.gmra.mxu0 %v8402
        %v8495 = vpop.f32.mrf.mxu0
        %v8496 = vadd.f32 %v8357, %v8495
        %v8497 = vpop.f32.mrf.mxu0
        %8498 = vmatprep.mubr.f32.mxu0 0.0
        %8499 = vmatmul.mubr.f32.gmra.mxu0 %v8405
        %v8500 = vpop.f32.mrf.mxu0
        %v8501 = vadd.f32 %v8358, %v8500
        %v8502 = vpop.f32.mrf.mxu0
        %8503 = vmatprep.mubr.f32.mxu0 0.0
        %8504 = vmatmul.mubr.f32.gmra.mxu0 %v8408
        %v8505 = vpop.f32.mrf.mxu0
        %v8506 = vadd.f32 %v8359, %v8505
        %v8507 = vpop.f32.mrf.mxu0
        %8508 = vmatprep.mubr.f32.mxu0 0.0
        %8509 = vmatmul.mubr.f32.gmra.mxu0 %v8411
        %v8510 = vpop.f32.mrf.mxu0
        %v8511 = vadd.f32 %v8360, %v8510
        %v8512 = vpop.f32.mrf.mxu0
        %8513 = vmatprep.mubr.f32.mxu0 0.0
        %8514 = vmatmul.mubr.f32.gmra.mxu0 %v8414
        %v8515 = vpop.f32.mrf.mxu0
        %v8516 = vadd.f32 %v8361, %v8515
        %v8517 = vpop.f32.mrf.mxu0
        %8518 = vmatprep.mubr.f32.mxu0 0.0
        %8519 = vmatmul.mubr.f32.gmra.mxu0 %v8417
        %v8520 = vpop.f32.mrf.mxu0
        %v8521 = vadd.f32 %v8362, %v8520
        %v8522 = vpop.f32.mrf.mxu0
        %8523 = vdwg.mxu0
        %v8524 = vsel %vm1131, %v8486, -inf
        %8525 = vmax.xlane.f32.xlu0 %v8524
        %v8526 = vpop.xlane.xlu0 %8525
        %v8527 = vsel %vm1131, %v8491, -inf
        %8528 = vmax.xlane.f32.xlu0 %v8527
        %v8529 = vpop.xlane.xlu0 %8528
        %v8530 = vsel %vm1131, %v8496, -inf
        %8531 = vmax.xlane.f32.xlu0 %v8530
        %v8532 = vpop.xlane.xlu0 %8531
        %v8533 = vsel %vm1131, %v8501, -inf
        %8534 = vmax.xlane.f32.xlu0 %v8533
        %v8535 = vpop.xlane.xlu0 %8534
        %v8536 = vsel %vm1131, %v8506, -inf
        %8537 = vmax.xlane.f32.xlu0 %v8536
        %v8538 = vpop.xlane.xlu0 %8537
        %v8539 = vsel %vm1131, %v8511, -inf
        %8540 = vmax.xlane.f32.xlu0 %v8539
        %v8541 = vpop.xlane.xlu0 %8540
        %v8542 = vsel %vm1131, %v8516, -inf
        %8543 = vmax.xlane.f32.xlu0 %v8542
        %v8544 = vpop.xlane.xlu0 %8543
        %v8545 = vsel %vm1131, %v8521, -inf
        %8546 = vmax.xlane.f32.xlu0 %v8545
        %v8547 = vpop.xlane.xlu0 %8546
        %v8548 = vsub.f32 %v8486, %v8526
        %v8549 = vsub.f32 %v8491, %v8529
        %v8550 = vsub.f32 %v8496, %v8532
        %v8551 = vsub.f32 %v8501, %v8535
        %v8552 = vsub.f32 %v8506, %v8538
        %v8553 = vsub.f32 %v8511, %v8541
        %v8554 = vsub.f32 %v8516, %v8544
        %v8555 = vsub.f32 %v8521, %v8547
        %v8556 = vmul.f32 %v8548, 1.442695
        %v8557 = vpow.pop %v8556
        %v8558 = vmul.f32 %v8549, 1.442695
        %v8559 = vpow.pop %v8558
        %v8560 = vmul.f32 %v8550, 1.442695
        %v8561 = vpow.pop %v8560
        %v8562 = vmul.f32 %v8551, 1.442695
        %v8563 = vpow.pop %v8562
        %v8564 = vmul.f32 %v8552, 1.442695
        %v8565 = vpow.pop %v8564
        %v8566 = vmul.f32 %v8553, 1.442695
        %v8567 = vpow.pop %v8566
        %v8568 = vmul.f32 %v8554, 1.442695
        %v8569 = vpow.pop %v8568
        %v8570 = vmul.f32 %v8555, 1.442695
        %v8571 = vpow.pop %v8570
        %v8572 = vsel %vm1131, %v8557, 0.0
        %8573 = vadd.xlane.f32.xlu0 %v8572
        %v8574 = vpop.xlane.xlu0 %8573
        %v8575 = vsel %vm1131, %v8559, 0.0
        %8576 = vadd.xlane.f32.xlu0 %v8575
        %v8577 = vpop.xlane.xlu0 %8576
        %v8578 = vsel %vm1131, %v8561, 0.0
        %8579 = vadd.xlane.f32.xlu0 %v8578
        %v8580 = vpop.xlane.xlu0 %8579
        %v8581 = vsel %vm1131, %v8563, 0.0
        %8582 = vadd.xlane.f32.xlu0 %v8581
        %v8583 = vpop.xlane.xlu0 %8582
        %v8584 = vsel %vm1131, %v8565, 0.0
        %8585 = vadd.xlane.f32.xlu0 %v8584
        %v8586 = vpop.xlane.xlu0 %8585
        %v8587 = vsel %vm1131, %v8567, 0.0
        %8588 = vadd.xlane.f32.xlu0 %v8587
        %v8589 = vpop.xlane.xlu0 %8588
        %v8590 = vsel %vm1131, %v8569, 0.0
        %8591 = vadd.xlane.f32.xlu0 %v8590
        %v8592 = vpop.xlane.xlu0 %8591
        %v8593 = vsel %vm1131, %v8571, 0.0
        %8594 = vadd.xlane.f32.xlu0 %v8593
        %v8595 = vpop.xlane.xlu0 %8594
        %v8597 = vsel %vm1131, %v8557, 0
        %v8600 = vsel %vm1131, %v8559, 0
        %v8603 = vsel %vm1131, %v8561, 0
        %v8606 = vsel %vm1131, %v8563, 0
        %v8609 = vsel %vm1131, %v8565, 0
        %v8612 = vsel %vm1131, %v8567, 0
        %v8615 = vsel %vm1131, %v8569, 0
        %v8618 = vsel %vm1131, %v8571, 0
        %v8621 = vsel %vm1131, %v940, 0
        %8623 = vmatprep.subr.mxu0 0.0
        %8624 = vmatpush1.xpose.msra.mxu0 0.0
        %8625 = vmatprep.subr.mxu0 0.0
        %8626 = vmatpush1.xpose.msra.mxu0 0.0
        %8627 = vmatprep.subr.mxu0 0.0
        %8628 = vmatpush1.xpose.msra.mxu0 0.0
        %8629 = vmatprep.subr.mxu0 0.0
        %8630 = vmatpush1.xpose.msra.mxu0 0.0
        %8631 = vmatprep.subr.mxu0 0.0
        %8632 = vmatpush1.xpose.msra.mxu0 0.0
        %8633 = vmatprep.subr.mxu0 0.0
        %8634 = vmatpush1.xpose.msra.mxu0 0.0
        %8635 = vmatprep.subr.mxu0 0.0
        %8636 = vmatpush1.xpose.msra.mxu0 0.0
        %8637 = vmatprep.subr.mxu0 0.0
        %8638 = vmatpush1.xpose.msra.mxu0 0.0
        %8639 = vmatprep.subr.mxu0 0.0
        %8640 = vmatpush1.xpose.msra.mxu0 0.0
        %8641 = vmatprep.subr.mxu0 0.0
        %8642 = vmatpush1.xpose.msra.mxu0 0.0
        %8643 = vmatprep.subr.mxu0 0.0
        %8644 = vmatpush1.xpose.msra.mxu0 0.0
        %8645 = vmatprep.subr.mxu0 0.0
        %8646 = vmatpush1.xpose.msra.mxu0 0.0
        %8647 = vmatprep.subr.mxu0 0.0
        %8648 = vmatpush1.xpose.msra.mxu0 0.0
        %8649 = vmatprep.subr.mxu0 0.0
        %8650 = vmatpush1.xpose.msra.mxu0 0.0
        %8651 = vmatprep.subr.mxu0 0.0
        %8652 = vmatpush1.xpose.msra.mxu0 0.0
        %8653 = vmatprep.subr.mxu0 0.0
        %8654 = vmatpush1.xpose.msra.mxu0 %v8621
        %8655 = vmatprep.subr.mxu0 0.0
        %8656 = vmatpush2.xpose.msra.mxu0 0.0
        %8657 = vmatprep.subr.mxu0 0.0
        %8658 = vmatpush2.xpose.msra.mxu0 0.0
        %8659 = vmatprep.subr.mxu0 0.0
        %8660 = vmatpush2.xpose.msra.mxu0 0.0
        %8661 = vmatprep.subr.mxu0 0.0
        %8662 = vmatpush2.xpose.msra.mxu0 0.0
        %8663 = vmatprep.subr.mxu0 0.0
        %8664 = vmatpush2.xpose.msra.mxu0 0.0
        %8665 = vmatprep.subr.mxu0 0.0
        %8666 = vmatpush2.xpose.msra.mxu0 0.0
        %8667 = vmatprep.subr.mxu0 0.0
        %8668 = vmatpush2.xpose.msra.mxu0 0.0
        %8669 = vmatprep.subr.mxu0 0.0
        %8670 = vmatpush2.xpose.msra.mxu0 0.0
        %8671 = vmatprep.subr.mxu0 0.0
        %8672 = vmatpush2.xpose.msra.mxu0 0.0
        %8673 = vmatprep.subr.mxu0 0.0
        %8674 = vmatpush2.xpose.msra.mxu0 0.0
        %8675 = vmatprep.subr.mxu0 0.0
        %8676 = vmatpush2.xpose.msra.mxu0 0.0
        %8677 = vmatprep.subr.mxu0 0.0
        %8678 = vmatpush2.xpose.msra.mxu0 0.0
        %8679 = vmatprep.subr.mxu0 0.0
        %8680 = vmatpush2.xpose.msra.mxu0 0.0
        %8681 = vmatprep.subr.mxu0 0.0
        %8682 = vmatpush2.xpose.msra.mxu0 0.0
        %8683 = vmatprep.subr.mxu0 0.0
        %8684 = vmatpush2.xpose.msra.mxu0 0.0
        %8685 = vmatprep.subr.mxu0 0.0
        %8686 = vmatpush2.xpose.msra.mxu0 0.0
        %8687 = vmatprep.mubr.f32.mxu0 0.0
        %8688 = vmatmul.mubr.f32.gmra.mxu0 %v8597
        %v8689 = vpop.f32.mrf.mxu0
        %v8690 = vadd.f32 0.0, %v8689
        %v8691 = vpop.f32.mrf.mxu0
        %8692 = vmatprep.mubr.f32.mxu0 0.0
        %8693 = vmatmul.mubr.f32.gmra.mxu0 %v8600
        %v8694 = vpop.f32.mrf.mxu0
        %v8695 = vadd.f32 0.0, %v8694
        %v8696 = vpop.f32.mrf.mxu0
        %8697 = vmatprep.mubr.f32.mxu0 0.0
        %8698 = vmatmul.mubr.f32.gmra.mxu0 %v8603
        %v8699 = vpop.f32.mrf.mxu0
        %v8700 = vadd.f32 0.0, %v8699
        %v8701 = vpop.f32.mrf.mxu0
        %8702 = vmatprep.mubr.f32.mxu0 0.0
        %8703 = vmatmul.mubr.f32.gmra.mxu0 %v8606
        %v8704 = vpop.f32.mrf.mxu0
        %v8705 = vadd.f32 0.0, %v8704
        %v8706 = vpop.f32.mrf.mxu0
        %8707 = vmatprep.mubr.f32.mxu0 0.0
        %8708 = vmatmul.mubr.f32.gmra.mxu0 %v8609
        %v8709 = vpop.f32.mrf.mxu0
        %v8710 = vadd.f32 0.0, %v8709
        %v8711 = vpop.f32.mrf.mxu0
        %8712 = vmatprep.mubr.f32.mxu0 0.0
        %8713 = vmatmul.mubr.f32.gmra.mxu0 %v8612
        %v8714 = vpop.f32.mrf.mxu0
        %v8715 = vadd.f32 0.0, %v8714
        %v8716 = vpop.f32.mrf.mxu0
        %8717 = vmatprep.mubr.f32.mxu0 0.0
        %8718 = vmatmul.mubr.f32.gmra.mxu0 %v8615
        %v8719 = vpop.f32.mrf.mxu0
        %v8720 = vadd.f32 0.0, %v8719
        %v8721 = vpop.f32.mrf.mxu0
        %8722 = vmatprep.mubr.f32.mxu0 0.0
        %8723 = vmatmul.mubr.f32.gmra.mxu0 %v8618
        %v8724 = vpop.f32.mrf.mxu0
        %v8725 = vadd.f32 0.0, %v8724
        %v8726 = vpop.f32.mrf.mxu0
        %8727 = vdwg.mxu0
        %v8728 = vrcp.pop %v8574
        %v8729 = vmul.f32 %v8690, %v8728
        %v8730 = vrcp.pop %v8577
        %v8731 = vmul.f32 %v8695, %v8730
        %v8732 = vrcp.pop %v8580
        %v8733 = vmul.f32 %v8700, %v8732
        %v8734 = vrcp.pop %v8583
        %v8735 = vmul.f32 %v8705, %v8734
        %v8736 = vrcp.pop %v8586
        %v8737 = vmul.f32 %v8710, %v8736
        %v8738 = vrcp.pop %v8589
        %v8739 = vmul.f32 %v8715, %v8738
        %v8740 = vrcp.pop %v8592
        %v8741 = vmul.f32 %v8720, %v8740
        %v8742 = vrcp.pop %v8595
        %v8743 = vmul.f32 %v8725, %v8742
        %v8744 = vld [vmem:[%s5 + $0x70] sm:$0xff]
        %v8746 = vsel %vm1001, %v8729, 0
        %v8749 = vsel %vm1001, %v8731, 0
        %v8752 = vsel %vm1001, %v8733, 0
        %v8755 = vsel %vm1001, %v8735, 0
        %v8758 = vsel %vm1001, %v8737, 0
        %v8761 = vsel %vm1001, %v8739, 0
        %v8764 = vsel %vm1001, %v8741, 0
        %v8767 = vsel %vm1001, %v8743, 0
        %8769 = vmatprep.subr.mxu0 0.0
        %8770 = vmatpush1.msra.mxu0 0.0
        %8771 = vmatprep.subr.mxu0 0.0
        %8772 = vmatpush1.msra.mxu0 0.0
        %8773 = vmatprep.subr.mxu0 0.0
        %8774 = vmatpush1.msra.mxu0 0.0
        %8775 = vmatprep.subr.mxu0 0.0
        %8776 = vmatpush1.msra.mxu0 0.0
        %8777 = vmatprep.subr.mxu0 0.0
        %8778 = vmatpush1.msra.mxu0 0.0
        %8779 = vmatprep.subr.mxu0 0.0
        %8780 = vmatpush1.msra.mxu0 0.0
        %8781 = vmatprep.subr.mxu0 0.0
        %8782 = vmatpush1.msra.mxu0 0.0
        %8783 = vmatprep.subr.mxu0 0.0
        %8784 = vmatpush1.msra.mxu0 0.0
        %8785 = vmatprep.subr.mxu0 0.0
        %8786 = vmatpush1.msra.mxu0 0.0
        %8787 = vmatprep.subr.mxu0 0.0
        %8788 = vmatpush1.msra.mxu0 0.0
        %8789 = vmatprep.subr.mxu0 0.0
        %8790 = vmatpush1.msra.mxu0 0.0
        %8791 = vmatprep.subr.mxu0 0.0
        %8792 = vmatpush1.msra.mxu0 0.0
        %8793 = vmatprep.subr.mxu0 0.0
        %8794 = vmatpush1.msra.mxu0 0.0
        %8795 = vmatprep.subr.mxu0 0.0
        %8796 = vmatpush1.msra.mxu0 0.0
        %8797 = vmatprep.subr.mxu0 0.0
        %8798 = vmatpush1.msra.mxu0 0.0
        %8799 = vmatprep.subr.mxu0 0.0
        %8800 = vmatpush1.msra.mxu0 %v8744
        %8801 = vmatprep.subr.mxu0 0.0
        %8802 = vmatpush2.msra.mxu0 0.0
        %8803 = vmatprep.subr.mxu0 0.0
        %8804 = vmatpush2.msra.mxu0 0.0
        %8805 = vmatprep.subr.mxu0 0.0
        %8806 = vmatpush2.msra.mxu0 0.0
        %8807 = vmatprep.subr.mxu0 0.0
        %8808 = vmatpush2.msra.mxu0 0.0
        %8809 = vmatprep.subr.mxu0 0.0
        %8810 = vmatpush2.msra.mxu0 0.0
        %8811 = vmatprep.subr.mxu0 0.0
        %8812 = vmatpush2.msra.mxu0 0.0
        %8813 = vmatprep.subr.mxu0 0.0
        %8814 = vmatpush2.msra.mxu0 0.0
        %8815 = vmatprep.subr.mxu0 0.0
        %8816 = vmatpush2.msra.mxu0 0.0
        %8817 = vmatprep.subr.mxu0 0.0
        %8818 = vmatpush2.msra.mxu0 0.0
        %8819 = vmatprep.subr.mxu0 0.0
        %8820 = vmatpush2.msra.mxu0 0.0
        %8821 = vmatprep.subr.mxu0 0.0
        %8822 = vmatpush2.msra.mxu0 0.0
        %8823 = vmatprep.subr.mxu0 0.0
        %8824 = vmatpush2.msra.mxu0 0.0
        %8825 = vmatprep.subr.mxu0 0.0
        %8826 = vmatpush2.msra.mxu0 0.0
        %8827 = vmatprep.subr.mxu0 0.0
        %8828 = vmatpush2.msra.mxu0 0.0
        %8829 = vmatprep.subr.mxu0 0.0
        %8830 = vmatpush2.msra.mxu0 0.0
        %8831 = vmatprep.subr.mxu0 0.0
        %8832 = vmatpush2.msra.mxu0 0.0
        %8833 = vmatprep.mubr.f32.mxu0 0.0
        %8834 = vmatmul.mubr.f32.gmra.mxu0 %v8746
        %v8835 = vpop.f32.mrf.mxu0
        %v8836 = vadd.f32 0.0, %v8835
        %v8837 = vpop.f32.mrf.mxu0
        %8838 = vmatprep.mubr.f32.mxu0 0.0
        %8839 = vmatmul.mubr.f32.gmra.mxu0 %v8749
        %v8840 = vpop.f32.mrf.mxu0
        %v8841 = vadd.f32 0.0, %v8840
        %v8842 = vpop.f32.mrf.mxu0
        %8843 = vmatprep.mubr.f32.mxu0 0.0
        %8844 = vmatmul.mubr.f32.gmra.mxu0 %v8752
        %v8845 = vpop.f32.mrf.mxu0
        %v8846 = vadd.f32 0.0, %v8845
        %v8847 = vpop.f32.mrf.mxu0
        %8848 = vmatprep.mubr.f32.mxu0 0.0
        %8849 = vmatmul.mubr.f32.gmra.mxu0 %v8755
        %v8850 = vpop.f32.mrf.mxu0
        %v8851 = vadd.f32 0.0, %v8850
        %v8852 = vpop.f32.mrf.mxu0
        %8853 = vmatprep.mubr.f32.mxu0 0.0
        %8854 = vmatmul.mubr.f32.gmra.mxu0 %v8758
        %v8855 = vpop.f32.mrf.mxu0
        %v8856 = vadd.f32 0.0, %v8855
        %v8857 = vpop.f32.mrf.mxu0
        %8858 = vmatprep.mubr.f32.mxu0 0.0
        %8859 = vmatmul.mubr.f32.gmra.mxu0 %v8761
        %v8860 = vpop.f32.mrf.mxu0
        %v8861 = vadd.f32 0.0, %v8860
        %v8862 = vpop.f32.mrf.mxu0
        %8863 = vmatprep.mubr.f32.mxu0 0.0
        %8864 = vmatmul.mubr.f32.gmra.mxu0 %v8764
        %v8865 = vpop.f32.mrf.mxu0
        %v8866 = vadd.f32 0.0, %v8865
        %v8867 = vpop.f32.mrf.mxu0
        %8868 = vmatprep.mubr.f32.mxu0 0.0
        %8869 = vmatmul.mubr.f32.gmra.mxu0 %v8767
        %v8870 = vpop.f32.mrf.mxu0
        %v8871 = vadd.f32 0.0, %v8870
        %v8872 = vpop.f32.mrf.mxu0
        %8873 = vdwg.mxu0
        %v8874 = vadd.f32 %v8346, %v8836
        %v8875 = vadd.f32 %v8347, %v8841
        %v8876 = vadd.f32 %v8348, %v8846
        %v8877 = vadd.f32 %v8349, %v8851
        %v8878 = vadd.f32 %v8350, %v8856
        %v8879 = vadd.f32 %v8351, %v8861
        %v8880 = vadd.f32 %v8352, %v8866
        %v8881 = vadd.f32 %v8353, %v8871
        %s8882 = scalar_lea.vmem %s7, 960
        %v8883 = vld [vmem:[%s8882] sm:$0xff]
        %v8884 = vld [vmem:[%s8882 + $0x8] sm:$0xff]
        %v8885 = vld [vmem:[%s8882 + $0x10] sm:$0xff]
        %v8886 = vld [vmem:[%s8882 + $0x18] sm:$0xff]
        %v8887 = vld [vmem:[%s8882 + $0x20] sm:$0xff]
        %v8888 = vld [vmem:[%s8882 + $0x28] sm:$0xff]
        %v8889 = vld [vmem:[%s8882 + $0x30] sm:$0xff]
        %v8890 = vld [vmem:[%s8882 + $0x38] sm:$0xff]
        %8891 = vxpose.xlu0.b32.start [1/16] %v815, 128
        %8892 = vxpose.xlu0.b32.cont [2/16] 0.0, 128
        %8893 = vxpose.xlu0.b32.cont [3/16] 0.0, 128
        %8894 = vxpose.xlu0.b32.cont [4/16] 0.0, 128
        %8895 = vxpose.xlu0.b32.cont [5/16] 0.0, 128
        %8896 = vxpose.xlu0.b32.cont [6/16] 0.0, 128
        %8897 = vxpose.xlu0.b32.cont [7/16] 0.0, 128
        %8898 = vxpose.xlu0.b32.cont [8/16] 0.0, 128
        %8899 = vxpose.xlu0.b32.cont [9/16] 0.0, 128
        %8900 = vxpose.xlu0.b32.cont [10/16] 0.0, 128
        %8901 = vxpose.xlu0.b32.cont [11/16] 0.0, 128
        %8902 = vxpose.xlu0.b32.cont [12/16] 0.0, 128
        %8903 = vxpose.xlu0.b32.cont [13/16] 0.0, 128
        %8904 = vxpose.xlu0.b32.cont [14/16] 0.0, 128
        %8905 = vxpose.xlu0.b32.cont [15/16] 0.0, 128
        %8906 = vxpose.xlu0.b32.end [16/16] 0.0, 128
        %v8907 = vpop.trf.xlu0
        %v8908 = vpop.trf.xlu0
        %v8909 = vpop.trf.xlu0
        %v8910 = vpop.trf.xlu0
        %v8911 = vpop.trf.xlu0
        %v8912 = vpop.trf.xlu0
        %v8913 = vpop.trf.xlu0
        %v8914 = vpop.trf.xlu0
        %v8915 = vpop.trf.xlu0
        %v8916 = vpop.trf.xlu0
        %v8917 = vpop.trf.xlu0
        %v8918 = vpop.trf.xlu0
        %v8919 = vpop.trf.xlu0
        %v8920 = vpop.trf.xlu0
        %v8921 = vpop.trf.xlu0
        %v8922 = vpop.trf.xlu0
        %v8924 = vsel %vm1001, %v8907, 0
        %v8927 = vsel %vm1001, %v8908, 0
        %v8930 = vsel %vm1001, %v8909, 0
        %v8933 = vsel %vm1001, %v8910, 0
        %v8936 = vsel %vm1001, %v8911, 0
        %v8939 = vsel %vm1001, %v8912, 0
        %v8942 = vsel %vm1001, %v8913, 0
        %v8945 = vsel %vm1001, %v8914, 0
        %8947 = vmatprep.subr.mxu0 0.0
        %8948 = vmatpush1.msra.mxu0 0.0
        %8949 = vmatprep.subr.mxu0 0.0
        %8950 = vmatpush1.msra.mxu0 0.0
        %8951 = vmatprep.subr.mxu0 0.0
        %8952 = vmatpush1.msra.mxu0 0.0
        %8953 = vmatprep.subr.mxu0 0.0
        %8954 = vmatpush1.msra.mxu0 0.0
        %8955 = vmatprep.subr.mxu0 0.0
        %8956 = vmatpush1.msra.mxu0 0.0
        %8957 = vmatprep.subr.mxu0 0.0
        %8958 = vmatpush1.msra.mxu0 0.0
        %8959 = vmatprep.subr.mxu0 0.0
        %8960 = vmatpush1.msra.mxu0 0.0
        %8961 = vmatprep.subr.mxu0 0.0
        %8962 = vmatpush1.msra.mxu0 0.0
        %8963 = vmatprep.subr.mxu0 0.0
        %8964 = vmatpush1.msra.mxu0 0.0
        %8965 = vmatprep.subr.mxu0 0.0
        %8966 = vmatpush1.msra.mxu0 0.0
        %8967 = vmatprep.subr.mxu0 0.0
        %8968 = vmatpush1.msra.mxu0 0.0
        %8969 = vmatprep.subr.mxu0 0.0
        %8970 = vmatpush1.msra.mxu0 0.0
        %8971 = vmatprep.subr.mxu0 0.0
        %8972 = vmatpush1.msra.mxu0 0.0
        %8973 = vmatprep.subr.mxu0 0.0
        %8974 = vmatpush1.msra.mxu0 0.0
        %8975 = vmatprep.subr.mxu0 0.0
        %8976 = vmatpush1.msra.mxu0 0.0
        %8977 = vmatprep.subr.mxu0 0.0
        %8978 = vmatpush1.msra.mxu0 %v879
        %8979 = vmatprep.subr.mxu0 0.0
        %8980 = vmatpush2.msra.mxu0 0.0
        %8981 = vmatprep.subr.mxu0 0.0
        %8982 = vmatpush2.msra.mxu0 0.0
        %8983 = vmatprep.subr.mxu0 0.0
        %8984 = vmatpush2.msra.mxu0 0.0
        %8985 = vmatprep.subr.mxu0 0.0
        %8986 = vmatpush2.msra.mxu0 0.0
        %8987 = vmatprep.subr.mxu0 0.0
        %8988 = vmatpush2.msra.mxu0 0.0
        %8989 = vmatprep.subr.mxu0 0.0
        %8990 = vmatpush2.msra.mxu0 0.0
        %8991 = vmatprep.subr.mxu0 0.0
        %8992 = vmatpush2.msra.mxu0 0.0
        %8993 = vmatprep.subr.mxu0 0.0
        %8994 = vmatpush2.msra.mxu0 0.0
        %8995 = vmatprep.subr.mxu0 0.0
        %8996 = vmatpush2.msra.mxu0 0.0
        %8997 = vmatprep.subr.mxu0 0.0
        %8998 = vmatpush2.msra.mxu0 0.0
        %8999 = vmatprep.subr.mxu0 0.0
        %9000 = vmatpush2.msra.mxu0 0.0
        %9001 = vmatprep.subr.mxu0 0.0
        %9002 = vmatpush2.msra.mxu0 0.0
        %9003 = vmatprep.subr.mxu0 0.0
        %9004 = vmatpush2.msra.mxu0 0.0
        %9005 = vmatprep.subr.mxu0 0.0
        %9006 = vmatpush2.msra.mxu0 0.0
        %9007 = vmatprep.subr.mxu0 0.0
        %9008 = vmatpush2.msra.mxu0 0.0
        %9009 = vmatprep.subr.mxu0 0.0
        %9010 = vmatpush2.msra.mxu0 0.0
        %9011 = vmatprep.mubr.f32.mxu0 0.0
        %9012 = vmatmul.mubr.f32.gmra.mxu0 %v8924
        %v9013 = vpop.f32.mrf.mxu0
        %v9014 = vadd.f32 %v8883, %v9013
        %v9015 = vpop.f32.mrf.mxu0
        %9016 = vmatprep.mubr.f32.mxu0 0.0
        %9017 = vmatmul.mubr.f32.gmra.mxu0 %v8927
        %v9018 = vpop.f32.mrf.mxu0
        %v9019 = vadd.f32 %v8884, %v9018
        %v9020 = vpop.f32.mrf.mxu0
        %9021 = vmatprep.mubr.f32.mxu0 0.0
        %9022 = vmatmul.mubr.f32.gmra.mxu0 %v8930
        %v9023 = vpop.f32.mrf.mxu0
        %v9024 = vadd.f32 %v8885, %v9023
        %v9025 = vpop.f32.mrf.mxu0
        %9026 = vmatprep.mubr.f32.mxu0 0.0
        %9027 = vmatmul.mubr.f32.gmra.mxu0 %v8933
        %v9028 = vpop.f32.mrf.mxu0
        %v9029 = vadd.f32 %v8886, %v9028
        %v9030 = vpop.f32.mrf.mxu0
        %9031 = vmatprep.mubr.f32.mxu0 0.0
        %9032 = vmatmul.mubr.f32.gmra.mxu0 %v8936
        %v9033 = vpop.f32.mrf.mxu0
        %v9034 = vadd.f32 %v8887, %v9033
        %v9035 = vpop.f32.mrf.mxu0
        %9036 = vmatprep.mubr.f32.mxu0 0.0
        %9037 = vmatmul.mubr.f32.gmra.mxu0 %v8939
        %v9038 = vpop.f32.mrf.mxu0
        %v9039 = vadd.f32 %v8888, %v9038
        %v9040 = vpop.f32.mrf.mxu0
        %9041 = vmatprep.mubr.f32.mxu0 0.0
        %9042 = vmatmul.mubr.f32.gmra.mxu0 %v8942
        %v9043 = vpop.f32.mrf.mxu0
        %v9044 = vadd.f32 %v8889, %v9043
        %v9045 = vpop.f32.mrf.mxu0
        %9046 = vmatprep.mubr.f32.mxu0 0.0
        %9047 = vmatmul.mubr.f32.gmra.mxu0 %v8945
        %v9048 = vpop.f32.mrf.mxu0
        %v9049 = vadd.f32 %v8890, %v9048
        %v9050 = vpop.f32.mrf.mxu0
        %9051 = vdwg.mxu0
        %v9052 = vsel %vm1131, %v9014, -inf
        %9053 = vmax.xlane.f32.xlu0 %v9052
        %v9054 = vpop.xlane.xlu0 %9053
        %v9055 = vsel %vm1131, %v9019, -inf
        %9056 = vmax.xlane.f32.xlu0 %v9055
        %v9057 = vpop.xlane.xlu0 %9056
        %v9058 = vsel %vm1131, %v9024, -inf
        %9059 = vmax.xlane.f32.xlu0 %v9058
        %v9060 = vpop.xlane.xlu0 %9059
        %v9061 = vsel %vm1131, %v9029, -inf
        %9062 = vmax.xlane.f32.xlu0 %v9061
        %v9063 = vpop.xlane.xlu0 %9062
        %v9064 = vsel %vm1131, %v9034, -inf
        %9065 = vmax.xlane.f32.xlu0 %v9064
        %v9066 = vpop.xlane.xlu0 %9065
        %v9067 = vsel %vm1131, %v9039, -inf
        %9068 = vmax.xlane.f32.xlu0 %v9067
        %v9069 = vpop.xlane.xlu0 %9068
        %v9070 = vsel %vm1131, %v9044, -inf
        %9071 = vmax.xlane.f32.xlu0 %v9070
        %v9072 = vpop.xlane.xlu0 %9071
        %v9073 = vsel %vm1131, %v9049, -inf
        %9074 = vmax.xlane.f32.xlu0 %v9073
        %v9075 = vpop.xlane.xlu0 %9074
        %v9076 = vsub.f32 %v9014, %v9054
        %v9077 = vsub.f32 %v9019, %v9057
        %v9078 = vsub.f32 %v9024, %v9060
        %v9079 = vsub.f32 %v9029, %v9063
        %v9080 = vsub.f32 %v9034, %v9066
        %v9081 = vsub.f32 %v9039, %v9069
        %v9082 = vsub.f32 %v9044, %v9072
        %v9083 = vsub.f32 %v9049, %v9075
        %v9084 = vmul.f32 %v9076, 1.442695
        %v9085 = vpow.pop %v9084
        %v9086 = vmul.f32 %v9077, 1.442695
        %v9087 = vpow.pop %v9086
        %v9088 = vmul.f32 %v9078, 1.442695
        %v9089 = vpow.pop %v9088
        %v9090 = vmul.f32 %v9079, 1.442695
        %v9091 = vpow.pop %v9090
        %v9092 = vmul.f32 %v9080, 1.442695
        %v9093 = vpow.pop %v9092
        %v9094 = vmul.f32 %v9081, 1.442695
        %v9095 = vpow.pop %v9094
        %v9096 = vmul.f32 %v9082, 1.442695
        %v9097 = vpow.pop %v9096
        %v9098 = vmul.f32 %v9083, 1.442695
        %v9099 = vpow.pop %v9098
        %v9100 = vsel %vm1131, %v9085, 0.0
        %9101 = vadd.xlane.f32.xlu0 %v9100
        %v9102 = vpop.xlane.xlu0 %9101
        %v9103 = vsel %vm1131, %v9087, 0.0
        %9104 = vadd.xlane.f32.xlu0 %v9103
        %v9105 = vpop.xlane.xlu0 %9104
        %v9106 = vsel %vm1131, %v9089, 0.0
        %9107 = vadd.xlane.f32.xlu0 %v9106
        %v9108 = vpop.xlane.xlu0 %9107
        %v9109 = vsel %vm1131, %v9091, 0.0
        %9110 = vadd.xlane.f32.xlu0 %v9109
        %v9111 = vpop.xlane.xlu0 %9110
        %v9112 = vsel %vm1131, %v9093, 0.0
        %9113 = vadd.xlane.f32.xlu0 %v9112
        %v9114 = vpop.xlane.xlu0 %9113
        %v9115 = vsel %vm1131, %v9095, 0.0
        %9116 = vadd.xlane.f32.xlu0 %v9115
        %v9117 = vpop.xlane.xlu0 %9116
        %v9118 = vsel %vm1131, %v9097, 0.0
        %9119 = vadd.xlane.f32.xlu0 %v9118
        %v9120 = vpop.xlane.xlu0 %9119
        %v9121 = vsel %vm1131, %v9099, 0.0
        %9122 = vadd.xlane.f32.xlu0 %v9121
        %v9123 = vpop.xlane.xlu0 %9122
        %v9125 = vsel %vm1131, %v9085, 0
        %v9128 = vsel %vm1131, %v9087, 0
        %v9131 = vsel %vm1131, %v9089, 0
        %v9134 = vsel %vm1131, %v9091, 0
        %v9137 = vsel %vm1131, %v9093, 0
        %v9140 = vsel %vm1131, %v9095, 0
        %v9143 = vsel %vm1131, %v9097, 0
        %v9146 = vsel %vm1131, %v9099, 0
        %v9149 = vsel %vm1131, %v943, 0
        %9151 = vmatprep.subr.mxu0 0.0
        %9152 = vmatpush1.xpose.msra.mxu0 0.0
        %9153 = vmatprep.subr.mxu0 0.0
        %9154 = vmatpush1.xpose.msra.mxu0 0.0
        %9155 = vmatprep.subr.mxu0 0.0
        %9156 = vmatpush1.xpose.msra.mxu0 0.0
        %9157 = vmatprep.subr.mxu0 0.0
        %9158 = vmatpush1.xpose.msra.mxu0 0.0
        %9159 = vmatprep.subr.mxu0 0.0
        %9160 = vmatpush1.xpose.msra.mxu0 0.0
        %9161 = vmatprep.subr.mxu0 0.0
        %9162 = vmatpush1.xpose.msra.mxu0 0.0
        %9163 = vmatprep.subr.mxu0 0.0
        %9164 = vmatpush1.xpose.msra.mxu0 0.0
        %9165 = vmatprep.subr.mxu0 0.0
        %9166 = vmatpush1.xpose.msra.mxu0 0.0
        %9167 = vmatprep.subr.mxu0 0.0
        %9168 = vmatpush1.xpose.msra.mxu0 0.0
        %9169 = vmatprep.subr.mxu0 0.0
        %9170 = vmatpush1.xpose.msra.mxu0 0.0
        %9171 = vmatprep.subr.mxu0 0.0
        %9172 = vmatpush1.xpose.msra.mxu0 0.0
        %9173 = vmatprep.subr.mxu0 0.0
        %9174 = vmatpush1.xpose.msra.mxu0 0.0
        %9175 = vmatprep.subr.mxu0 0.0
        %9176 = vmatpush1.xpose.msra.mxu0 0.0
        %9177 = vmatprep.subr.mxu0 0.0
        %9178 = vmatpush1.xpose.msra.mxu0 0.0
        %9179 = vmatprep.subr.mxu0 0.0
        %9180 = vmatpush1.xpose.msra.mxu0 0.0
        %9181 = vmatprep.subr.mxu0 0.0
        %9182 = vmatpush1.xpose.msra.mxu0 %v9149
        %9183 = vmatprep.subr.mxu0 0.0
        %9184 = vmatpush2.xpose.msra.mxu0 0.0
        %9185 = vmatprep.subr.mxu0 0.0
        %9186 = vmatpush2.xpose.msra.mxu0 0.0
        %9187 = vmatprep.subr.mxu0 0.0
        %9188 = vmatpush2.xpose.msra.mxu0 0.0
        %9189 = vmatprep.subr.mxu0 0.0
        %9190 = vmatpush2.xpose.msra.mxu0 0.0
        %9191 = vmatprep.subr.mxu0 0.0
        %9192 = vmatpush2.xpose.msra.mxu0 0.0
        %9193 = vmatprep.subr.mxu0 0.0
        %9194 = vmatpush2.xpose.msra.mxu0 0.0
        %9195 = vmatprep.subr.mxu0 0.0
        %9196 = vmatpush2.xpose.msra.mxu0 0.0
        %9197 = vmatprep.subr.mxu0 0.0
        %9198 = vmatpush2.xpose.msra.mxu0 0.0
        %9199 = vmatprep.subr.mxu0 0.0
        %9200 = vmatpush2.xpose.msra.mxu0 0.0
        %9201 = vmatprep.subr.mxu0 0.0
        %9202 = vmatpush2.xpose.msra.mxu0 0.0
        %9203 = vmatprep.subr.mxu0 0.0
        %9204 = vmatpush2.xpose.msra.mxu0 0.0
        %9205 = vmatprep.subr.mxu0 0.0
        %9206 = vmatpush2.xpose.msra.mxu0 0.0
        %9207 = vmatprep.subr.mxu0 0.0
        %9208 = vmatpush2.xpose.msra.mxu0 0.0
        %9209 = vmatprep.subr.mxu0 0.0
        %9210 = vmatpush2.xpose.msra.mxu0 0.0
        %9211 = vmatprep.subr.mxu0 0.0
        %9212 = vmatpush2.xpose.msra.mxu0 0.0
        %9213 = vmatprep.subr.mxu0 0.0
        %9214 = vmatpush2.xpose.msra.mxu0 0.0
        %9215 = vmatprep.mubr.f32.mxu0 0.0
        %9216 = vmatmul.mubr.f32.gmra.mxu0 %v9125
        %v9217 = vpop.f32.mrf.mxu0
        %v9218 = vadd.f32 0.0, %v9217
        %v9219 = vpop.f32.mrf.mxu0
        %9220 = vmatprep.mubr.f32.mxu0 0.0
        %9221 = vmatmul.mubr.f32.gmra.mxu0 %v9128
        %v9222 = vpop.f32.mrf.mxu0
        %v9223 = vadd.f32 0.0, %v9222
        %v9224 = vpop.f32.mrf.mxu0
        %9225 = vmatprep.mubr.f32.mxu0 0.0
        %9226 = vmatmul.mubr.f32.gmra.mxu0 %v9131
        %v9227 = vpop.f32.mrf.mxu0
        %v9228 = vadd.f32 0.0, %v9227
        %v9229 = vpop.f32.mrf.mxu0
        %9230 = vmatprep.mubr.f32.mxu0 0.0
        %9231 = vmatmul.mubr.f32.gmra.mxu0 %v9134
        %v9232 = vpop.f32.mrf.mxu0
        %v9233 = vadd.f32 0.0, %v9232
        %v9234 = vpop.f32.mrf.mxu0
        %9235 = vmatprep.mubr.f32.mxu0 0.0
        %9236 = vmatmul.mubr.f32.gmra.mxu0 %v9137
        %v9237 = vpop.f32.mrf.mxu0
        %v9238 = vadd.f32 0.0, %v9237
        %v9239 = vpop.f32.mrf.mxu0
        %9240 = vmatprep.mubr.f32.mxu0 0.0
        %9241 = vmatmul.mubr.f32.gmra.mxu0 %v9140
        %v9242 = vpop.f32.mrf.mxu0
        %v9243 = vadd.f32 0.0, %v9242
        %v9244 = vpop.f32.mrf.mxu0
        %9245 = vmatprep.mubr.f32.mxu0 0.0
        %9246 = vmatmul.mubr.f32.gmra.mxu0 %v9143
        %v9247 = vpop.f32.mrf.mxu0
        %v9248 = vadd.f32 0.0, %v9247
        %v9249 = vpop.f32.mrf.mxu0
        %9250 = vmatprep.mubr.f32.mxu0 0.0
        %9251 = vmatmul.mubr.f32.gmra.mxu0 %v9146
        %v9252 = vpop.f32.mrf.mxu0
        %v9253 = vadd.f32 0.0, %v9252
        %v9254 = vpop.f32.mrf.mxu0
        %9255 = vdwg.mxu0
        %v9256 = vrcp.pop %v9102
        %v9257 = vmul.f32 %v9218, %v9256
        %v9258 = vrcp.pop %v9105
        %v9259 = vmul.f32 %v9223, %v9258
        %v9260 = vrcp.pop %v9108
        %v9261 = vmul.f32 %v9228, %v9260
        %v9262 = vrcp.pop %v9111
        %v9263 = vmul.f32 %v9233, %v9262
        %v9264 = vrcp.pop %v9114
        %v9265 = vmul.f32 %v9238, %v9264
        %v9266 = vrcp.pop %v9117
        %v9267 = vmul.f32 %v9243, %v9266
        %v9268 = vrcp.pop %v9120
        %v9269 = vmul.f32 %v9248, %v9268
        %v9270 = vrcp.pop %v9123
        %v9271 = vmul.f32 %v9253, %v9270
        %v9272 = vld [vmem:[%s5 + $0x78] sm:$0xff]
        %v9274 = vsel %vm1001, %v9257, 0
        %v9277 = vsel %vm1001, %v9259, 0
        %v9280 = vsel %vm1001, %v9261, 0
        %v9283 = vsel %vm1001, %v9263, 0
        %v9286 = vsel %vm1001, %v9265, 0
        %v9289 = vsel %vm1001, %v9267, 0
        %v9292 = vsel %vm1001, %v9269, 0
        %v9295 = vsel %vm1001, %v9271, 0
        %9297 = vmatprep.subr.mxu0 0.0
        %9298 = vmatpush1.msra.mxu0 0.0
        %9299 = vmatprep.subr.mxu0 0.0
        %9300 = vmatpush1.msra.mxu0 0.0
        %9301 = vmatprep.subr.mxu0 0.0
        %9302 = vmatpush1.msra.mxu0 0.0
        %9303 = vmatprep.subr.mxu0 0.0
        %9304 = vmatpush1.msra.mxu0 0.0
        %9305 = vmatprep.subr.mxu0 0.0
        %9306 = vmatpush1.msra.mxu0 0.0
        %9307 = vmatprep.subr.mxu0 0.0
        %9308 = vmatpush1.msra.mxu0 0.0
        %9309 = vmatprep.subr.mxu0 0.0
        %9310 = vmatpush1.msra.mxu0 0.0
        %9311 = vmatprep.subr.mxu0 0.0
        %9312 = vmatpush1.msra.mxu0 0.0
        %9313 = vmatprep.subr.mxu0 0.0
        %9314 = vmatpush1.msra.mxu0 0.0
        %9315 = vmatprep.subr.mxu0 0.0
        %9316 = vmatpush1.msra.mxu0 0.0
        %9317 = vmatprep.subr.mxu0 0.0
        %9318 = vmatpush1.msra.mxu0 0.0
        %9319 = vmatprep.subr.mxu0 0.0
        %9320 = vmatpush1.msra.mxu0 0.0
        %9321 = vmatprep.subr.mxu0 0.0
        %9322 = vmatpush1.msra.mxu0 0.0
        %9323 = vmatprep.subr.mxu0 0.0
        %9324 = vmatpush1.msra.mxu0 0.0
        %9325 = vmatprep.subr.mxu0 0.0
        %9326 = vmatpush1.msra.mxu0 0.0
        %9327 = vmatprep.subr.mxu0 0.0
        %9328 = vmatpush1.msra.mxu0 %v9272
        %9329 = vmatprep.subr.mxu0 0.0
        %9330 = vmatpush2.msra.mxu0 0.0
        %9331 = vmatprep.subr.mxu0 0.0
        %9332 = vmatpush2.msra.mxu0 0.0
        %9333 = vmatprep.subr.mxu0 0.0
        %9334 = vmatpush2.msra.mxu0 0.0
        %9335 = vmatprep.subr.mxu0 0.0
        %9336 = vmatpush2.msra.mxu0 0.0
        %9337 = vmatprep.subr.mxu0 0.0
        %9338 = vmatpush2.msra.mxu0 0.0
        %9339 = vmatprep.subr.mxu0 0.0
        %9340 = vmatpush2.msra.mxu0 0.0
        %9341 = vmatprep.subr.mxu0 0.0
        %9342 = vmatpush2.msra.mxu0 0.0
        %9343 = vmatprep.subr.mxu0 0.0
        %9344 = vmatpush2.msra.mxu0 0.0
        %9345 = vmatprep.subr.mxu0 0.0
        %9346 = vmatpush2.msra.mxu0 0.0
        %9347 = vmatprep.subr.mxu0 0.0
        %9348 = vmatpush2.msra.mxu0 0.0
        %9349 = vmatprep.subr.mxu0 0.0
        %9350 = vmatpush2.msra.mxu0 0.0
        %9351 = vmatprep.subr.mxu0 0.0
        %9352 = vmatpush2.msra.mxu0 0.0
        %9353 = vmatprep.subr.mxu0 0.0
        %9354 = vmatpush2.msra.mxu0 0.0
        %9355 = vmatprep.subr.mxu0 0.0
        %9356 = vmatpush2.msra.mxu0 0.0
        %9357 = vmatprep.subr.mxu0 0.0
        %9358 = vmatpush2.msra.mxu0 0.0
        %9359 = vmatprep.subr.mxu0 0.0
        %9360 = vmatpush2.msra.mxu0 0.0
        %9361 = vmatprep.mubr.f32.mxu0 0.0
        %9362 = vmatmul.mubr.f32.gmra.mxu0 %v9274
        %v9363 = vpop.f32.mrf.mxu0
        %v9364 = vadd.f32 0.0, %v9363
        %v9365 = vpop.f32.mrf.mxu0
        %9366 = vmatprep.mubr.f32.mxu0 0.0
        %9367 = vmatmul.mubr.f32.gmra.mxu0 %v9277
        %v9368 = vpop.f32.mrf.mxu0
        %v9369 = vadd.f32 0.0, %v9368
        %v9370 = vpop.f32.mrf.mxu0
        %9371 = vmatprep.mubr.f32.mxu0 0.0
        %9372 = vmatmul.mubr.f32.gmra.mxu0 %v9280
        %v9373 = vpop.f32.mrf.mxu0
        %v9374 = vadd.f32 0.0, %v9373
        %v9375 = vpop.f32.mrf.mxu0
        %9376 = vmatprep.mubr.f32.mxu0 0.0
        %9377 = vmatmul.mubr.f32.gmra.mxu0 %v9283
        %v9378 = vpop.f32.mrf.mxu0
        %v9379 = vadd.f32 0.0, %v9378
        %v9380 = vpop.f32.mrf.mxu0
        %9381 = vmatprep.mubr.f32.mxu0 0.0
        %9382 = vmatmul.mubr.f32.gmra.mxu0 %v9286
        %v9383 = vpop.f32.mrf.mxu0
        %v9384 = vadd.f32 0.0, %v9383
        %v9385 = vpop.f32.mrf.mxu0
        %9386 = vmatprep.mubr.f32.mxu0 0.0
        %9387 = vmatmul.mubr.f32.gmra.mxu0 %v9289
        %v9388 = vpop.f32.mrf.mxu0
        %v9389 = vadd.f32 0.0, %v9388
        %v9390 = vpop.f32.mrf.mxu0
        %9391 = vmatprep.mubr.f32.mxu0 0.0
        %9392 = vmatmul.mubr.f32.gmra.mxu0 %v9292
        %v9393 = vpop.f32.mrf.mxu0
        %v9394 = vadd.f32 0.0, %v9393
        %v9395 = vpop.f32.mrf.mxu0
        %9396 = vmatprep.mubr.f32.mxu0 0.0
        %9397 = vmatmul.mubr.f32.gmra.mxu0 %v9295
        %v9398 = vpop.f32.mrf.mxu0
        %v9399 = vadd.f32 0.0, %v9398
        %v9400 = vpop.f32.mrf.mxu0
        %9401 = vdwg.mxu0
        %v9402 = vadd.f32 %v8874, %v9364
        %v9403 = vadd.f32 %v8875, %v9369
        %v9404 = vadd.f32 %v8876, %v9374
        %v9405 = vadd.f32 %v8877, %v9379
        %v9406 = vadd.f32 %v8878, %v9384
        %v9407 = vadd.f32 %v8879, %v9389
        %v9408 = vadd.f32 %v8880, %v9394
        %v9409 = vadd.f32 %v8881, %v9399
        %9410 = vst.msk [vmem:[%s298] sm:$0xff] %vm329, %v9402
        %9411 = vst.msk [vmem:[%s298 + $0x8] sm:$0xff] %vm329, %v9403
        %9412 = vst.msk [vmem:[%s298 + $0x10] sm:$0xff] %vm329, %v9404
        %9413 = vst.msk [vmem:[%s298 + $0x18] sm:$0xff] %vm329, %v9405
        %9414 = vst.msk [vmem:[%s298 + $0x20] sm:$0xff] %vm329, %v9406
        %9415 = vst.msk [vmem:[%s298 + $0x28] sm:$0xff] %vm329, %v9407
        %9416 = vst.msk [vmem:[%s298 + $0x30] sm:$0xff] %vm329, %v9408
        %9417 = vst.msk [vmem:[%s298 + $0x38] sm:$0xff] %vm329, %v9409
        %s9418 = sand.u32 %s203, 1
        %s9419 = scalar_lea.sflag [#allocation3], %s9418
        %s9420 = sand.u32 %s203, 1
        %s9421 = smul.addr %s9420, 64
        %s9422 = scalar_lea.vmem [#allocation2], %s9421
        // Predicated region
        $region53: #{attention_level_forward.1} parent=51 // pred_check
          %p9423 = pneg %p213
        $region54: #{attention_level_forward.1} parent=51 // pred_check_branch
          %9425 = sbr.rel (%p9423) target = $region56
        $region55: #{attention_level_forward.1} parent=51 // pred_region
          %s9427 = ssub.s32 1024, 1024
          %9428 = vsyncadd %s9419, %s9427
          %s9429 = smul.addr %s22, 8
          %s9430 = smul.addr %s9429, 128
          %s9431 = scalar_lea.hbm %s8, %s9430
          %s9432 = sshll.u32 %s9422, 4
          %s9433 = int_to_ptr.vmem [resolvable:$true] %s9432
          %9438 = dma.vmem_to_hbm [thread:$0]  %s9433, 1024, %s9431, %s9419, 128, 128, 8
        $region56: #{attention_level_forward.1} parent=51 // pred_fallthru
          _
      $region52: #{attention_level_forward.1} parent=5 // pred_fallthru
        _
      %p9439 = scmp.le.s32.totalorder 2, %s17
      // Predicated region
      $region57: #{attention_level_forward.1} parent=5 // pred_check
        %p9440 = pneg %p9439
      $region58: #{attention_level_forward.1} parent=5 // pred_check_branch
        %9442 = sbr.rel (%p9440) target = $region60
      $region59: #{attention_level_forward.1} parent=5 // pred_region
        %s9443 = ssub.s32 %s17, 2
        // Predicated region
        $region61: #{attention_level_forward.1} parent=59 // pred_check
          %p9444 = pneg %p219
        $region62: #{attention_level_forward.1} parent=59 // pred_check_branch
          %9446 = sbr.rel (%p9444) target = $region64
        $region63: #{attention_level_forward.1} parent=59 // pred_region
          %s9447 = sand.u32 %s204, 1
          %s9448 = scalar_lea.sflag [#allocation3], %s9447
          %s9449 = sand.u32 %s204, 1
          %s9450 = smul.addr %s9449, 64
          %s9451 = scalar_lea.vmem [#allocation2], %s9450
          %9452 = dma.done %s9448, 1024
        $region64: #{attention_level_forward.1} parent=59 // pred_fallthru
          _
      $region60: #{attention_level_forward.1} parent=5 // pred_fallthru
        _
    $region6: #{attention_level_forward.1} parent=1 // loop_footer
      %s21 = sadd.s32 1, %s17
    $region7: #{attention_level_forward.1} parent=1 // loop_footer_branch
      %16 = sbr.rel target = $region3
    $region8: #{attention_level_forward.1} parent=1 // loop_exit
      _
    %9453 = vsyncpa [#allocation3], 1
    %s9454 = scalar_lea.sflag [#allocation3], 1
    %9455 = vsyncpa %s9454, 1

</llo_original>
